<compile_context>
chip_gen: v5e
topology: v5e:2x2
jax: 0.10.0
libtpu: 0.0.40
codegen_flags: <defaults>
</compile_context>

<pallas_src>
import jax
import jax.numpy as jnp
from jax.experimental import pallas as pl
from jax.experimental.pallas import tpu as pltpu

VMEM = pl.BlockSpec(memory_space=pltpu.MemorySpace.VMEM)


# ---------------------------------------------------------------------------
# The single fused kernel: conv1+pool1 -> conv2+pool2 -> ip1+relu -> ip2+softmax
# ---------------------------------------------------------------------------
def _caffenet_kernel(p1_ref, w1_ref, b1_ref, w2_ref, b2_ref,
                     wip1_ref, bip1_ref, wip2_ref, bip2_ref, o_ref):
    nb = o_ref.shape[0]                     # batch
    blk1 = p1_ref.shape[0] // 4             # rows per conv1-pool corner block
    nsite = 16 * nb                         # rows per (window, parity) block / per conv2 corner

    # ---- conv1: ONE corner-folded GEMM; pool1 = max over the 4 corner row-blocks
    y1 = jnp.dot(p1_ref[...], w1_ref[...], preferred_element_type=jnp.float32)
    p1w = jnp.maximum(jnp.maximum(y1[0 * blk1:1 * blk1], y1[1 * blk1:2 * blk1]),
                      jnp.maximum(y1[2 * blk1:3 * blk1], y1[3 * blk1:4 * blk1]))
    p1w = p1w + b1_ref[...]                 # bias commutes with max
    # p1w rows: ((ah*3+aw)*4 + pc) * 16*nb + (ph*4+pw)*nb + n
    #   (ah, aw) = 4x4 window of the 6x6 pool1 parity plane, pc = parity class.

    # ---- conv2 im2col, corner-grouped, from the window-expanded pool1 --------
    # Every (kernel-offset, corner) feature block is one contiguous 32-row slice.
    blocks = [p1w[b * nsite:(b + 1) * nsite, :] for b in range(blk1 // nsite)]
    corner_patches = []
    for dy in range(2):
        for dx in range(2):                 # conv2-pool corner (dy, dx)
            feats = []
            for kh in range(5):
                ah, py = divmod(dy + kh, 2)
                for kw in range(5):
                    aw, px = divmod(dx + kw, 2)
                    feats.append(blocks[(ah * 3 + aw) * 4 + py * 2 + px])
            # feature order (kh, kw, ci) -> matches the repacked conv2 weight
            corner_patches.append(jnp.concatenate(feats, axis=-1))   # (16*nb, 500)
    p2 = jnp.concatenate(corner_patches, axis=0)                     # (64*nb, 500)

    # ---- conv2: ONE corner-folded GEMM; pool2 = max over the 4 corner blocks --
    y2 = jnp.dot(p2.astype(jnp.bfloat16), w2_ref[...],
                 preferred_element_type=jnp.float32)                 # (64*nb, 50)
    m2 = jnp.maximum(jnp.maximum(y2[0 * nsite:1 * nsite], y2[1 * nsite:2 * nsite]),
                     jnp.maximum(y2[2 * nsite:3 * nsite], y2[3 * nsite:4 * nsite]))
    pool2 = m2 + b2_ref[...]                # (16*nb, 50), rows = (site s, batch n)

    # ---- FC flatten: (16*nb, 50) -> (nb, 800), feature order (site, channel) --
    # (single rows->lanes relayout; ip1 weight was pre-permuted to this order)
    flat = jnp.concatenate([pool2[s * nb:(s + 1) * nb, :] for s in range(16)],
                           axis=-1).astype(jnp.bfloat16)             # (nb, 800)

    # ---- ip1 + ReLU: one K=800 dot ----
    h = jnp.dot(flat, wip1_ref[...], preferred_element_type=jnp.float32) + bip1_ref[...]
    h = jnp.maximum(h, 0.0)

    # ---- ip2 + softmax (prob); exact divide per correctness feedback ----
    logits = jnp.dot(h.astype(jnp.bfloat16), wip2_ref[...],
                     preferred_element_type=jnp.float32) + bip2_ref[...]
    mx = jnp.max(logits, axis=-1, keepdims=True)
    e = jnp.exp(logits - mx)
    o_ref[...] = e / jnp.sum(e, axis=-1, keepdims=True)


# ---------------------------------------------------------------------------
# XLA glue: window-expanded, corner-grouped im2col of the 28x28 input.
#
# Row index of the returned patch matrix (C order):
#   ((((((((e*2+f)*3+ah)*3+aw)*2+py)*2+px)*4+u)*4+v)*N + n
# where (e,f)  = conv1-pool corner, (ah,aw) = 4x4 window of the 6x6 parity plane,
#       (py,px)= parity of the pool1 coordinate, (u,v) = in-window position,
# so that the conv1 output position is  h0 = 4*(ah+u) + 2*py + e,
#                                        w0 = 4*(aw+v) + 2*px + f.
# This makes every conv2 im2col feature block a contiguous row slice in-kernel.
# ---------------------------------------------------------------------------
def _conv1_window_patches(x):                       # x: (N, 28, 28) f32
    N = x.shape[0]
    cols = [x[:, i:i + 24, j:j + 24] for i in range(5) for j in range(5)]
    t = jnp.stack(cols, axis=-1)                    # (N,24,24,25)  [n,h0,w0,k]
    t = t.reshape(N, 6, 2, 2, 6, 2, 2, 25)          # [n,gh,py,e,gw,px,f,k]
    t = jnp.stack([t[:, ah:ah + 4] for ah in range(3)], axis=0)
    #                                               (3,N,4,2,2,6,2,2,25) [ah,n,u,py,e,gw,px,f,k]
    t = jnp.stack([t[:, :, :, :, :, aw:aw + 4] for aw in range(3)], axis=1)
    #                                               (3,3,N,4,2,2,4,2,2,25) [ah,aw,n,u,py,e,v,px,f,k]
    t = jnp.transpose(t, (5, 8, 0, 1, 4, 7, 3, 6, 2, 9))   # [e,f,ah,aw,py,px,u,v,n,k]
    return t.reshape(2304 * N, 25).astype(jnp.bfloat16)


# ---------------------------------------------------------------------------
# CaffeNet forward (LeNet topology), ONE pallas_call total
# ---------------------------------------------------------------------------
def caffenet_forward(x_nchw, params):
    N = x_nchw.shape[0]
    # TODO(synk): parse_prototxt (file-based topology construction) has no Pallas
    # equivalent; the topology is hard-coded to the standard Caffe LeNet.
    x = x_nchw[:, 0].astype(jnp.float32)            # (N, 28, 28), data blob C=1
    p1 = _conv1_window_patches(x)                   # (2304*N, 25) bf16 (one-time glue)

    n_classes = params["ip2_wm"].shape[1]
    return pl.pallas_call(
        _caffenet_kernel,
        out_shape=jax.ShapeDtypeStruct((N, n_classes), jnp.float32),
        in_specs=[VMEM] * 9,
        out_specs=VMEM,
    )(p1,
      params["conv1_wm"], params["conv1_b"],
      params["conv2_wm"], params["conv2_b"],
      params["ip1_wm"], params["ip1_b"],
      params["ip2_wm"], params["ip2_b"])


# ---------------------------------------------------------------------------
# Parameters: PyTorch layout -> one-time kernel-ready repack (outside jit)
# ---------------------------------------------------------------------------
def init_params(key):
    """PyTorch-layout parameters (Conv2d OIHW, Linear (out,in))."""
    def initw(k, shape, scale=0.05):
        return scale * jax.random.normal(k, shape, jnp.float32)

    ks = jax.random.split(key, 8)
    return {
        "conv1_w": initw(ks[0], (20, 1, 5, 5)),
        "conv1_b": initw(ks[1], (20,)),
        "conv2_w": initw(ks[2], (50, 20, 5, 5)),
        "conv2_b": initw(ks[3], (50,)),
        "ip1_w":   initw(ks[4], (500, 800)),
        "ip1_b":   initw(ks[5], (500,)),
        "ip2_w":   initw(ks[6], (10, 500)),
        "ip2_b":   initw(ks[7], (10,)),
    }


def prepare_params(p):
    """Repack PyTorch-layout params into kernel-ready (bf16, pre-transposed) form."""
    # conv weight matrices, patch-feature order (kh, kw, ci) -> (K, Cout)
    conv1_wm = jnp.transpose(p["conv1_w"], (2, 3, 1, 0)).reshape(25, 20)
    conv2_wm = jnp.transpose(p["conv2_w"], (2, 3, 1, 0)).reshape(500, 50)
    # ip1: PyTorch flattens pool2 NCHW -> feature f = c*16 + s  (s = h*4 + w).
    # The kernel's flatten produces feature order f' = s*50 + c, so permute W1^T.
    w1t = jnp.transpose(p["ip1_w"])                               # (800, 500) [c*16+s, :]
    ip1_wm = jnp.transpose(w1t.reshape(50, 16, 500), (1, 0, 2)).reshape(800, 500)
    return {
        "conv1_wm": conv1_wm.astype(jnp.bfloat16),
        "conv1_b":  p["conv1_b"].reshape(1, 20).astype(jnp.float32),
        "conv2_wm": conv2_wm.astype(jnp.bfloat16),
        "conv2_b":  p["conv2_b"].reshape(1, 50).astype(jnp.float32),
        "ip1_wm":   ip1_wm.astype(jnp.bfloat16),
        "ip1_b":    p["ip1_b"].reshape(1, 500).astype(jnp.float32),
        "ip2_wm":   jnp.transpose(p["ip2_w"]).astype(jnp.bfloat16),   # (500, 10)
        "ip2_b":    p["ip2_b"].reshape(1, 10).astype(jnp.float32),
    }


# ---------------------------------------------------------------------------
# Pure-JAX reference (f32) for a correctness sanity check
# ---------------------------------------------------------------------------
def caffenet_reference(x_nchw, p):
    def conv(x, w, b):
        y = jax.lax.conv_general_dilated(
            x, w, (1, 1), "VALID", dimension_numbers=("NCHW", "OIHW", "NCHW"))
        return y + b.reshape(1, -1, 1, 1)

    def pool(x):
        n, c, h, w = x.shape
        return jnp.max(x.reshape(n, c, h // 2, 2, w // 2, 2), axis=(3, 5))

    x = x_nchw.astype(jnp.float32)
    x = pool(conv(x, p["conv1_w"], p["conv1_b"]))
    x = pool(conv(x, p["conv2_w"], p["conv2_b"]))
    x = x.reshape(x.shape[0], -1)                           # NCHW flatten (FCView)
    x = jnp.maximum(x @ p["ip1_w"].T + p["ip1_b"], 0.0)
    x = x @ p["ip2_w"].T + p["ip2_b"]
    return jax.nn.softmax(x, axis=-1)


if __name__ == "__main__":
    key = jax.random.PRNGKey(0)
    pkey, xkey = jax.random.split(key)
    params_pt = init_params(pkey)            # PyTorch-layout parameters
    params = prepare_params(params_pt)       # one-time repack (outside jit)

    # data blob: 1 channel, 28x28 (as hard-coded in create_network), batch=2
    x = jax.random.normal(xkey, (2, 1, 28, 28), jnp.float32)

    out = jax.jit(caffenet_forward)(x, params)
    out = jax.block_until_ready(out)

    assert out.shape == (2, 10)
    assert bool(jnp.all(jnp.isfinite(out)))
    # exact softmax divide -> rows sum to 1 up to f32 rounding
    assert bool(jnp.allclose(jnp.sum(out, axis=-1), 1.0, atol=1e-3))
    # match the f32 pure-JAX reference (bf16 inference-level tolerance)
    ref = caffenet_reference(x, params_pt)
    assert bool(jnp.allclose(out, ref, atol=2e-2))
    print("KERNEL_OK")
</pallas_src>

<mosaic_0001>
module attributes {stable_mosaic.version = 11 : i64} {
  func.func @_caffenet_kernel(%arg0: memref<4608x25xbf16, #tpu.memory_space<vmem>>, %arg1: memref<25x20xbf16, #tpu.memory_space<vmem>>, %arg2: memref<1x20xf32, #tpu.memory_space<vmem>>, %arg3: memref<500x50xbf16, #tpu.memory_space<vmem>>, %arg4: memref<1x50xf32, #tpu.memory_space<vmem>>, %arg5: memref<800x500xbf16, #tpu.memory_space<vmem>>, %arg6: memref<1x500xf32, #tpu.memory_space<vmem>>, %arg7: memref<500x10xbf16, #tpu.memory_space<vmem>>, %arg8: memref<1x10xf32, #tpu.memory_space<vmem>>, %arg9: memref<2x10xf32, #tpu.memory_space<vmem>>) attributes {dimension_semantics = [], scalar_prefetch = 0 : i64, scratch_operands = 0 : i64, tpu.core_type = #tpu.core_type<tc>} {
    %c0 = arith.constant 0 : index
    %c0_0 = arith.constant 0 : index
    %0 = vector.load %arg0[%c0, %c0_0] : memref<4608x25xbf16, #tpu.memory_space<vmem>>, vector<4608x25xbf16>
    %c0_1 = arith.constant 0 : index
    %c0_2 = arith.constant 0 : index
    %1 = vector.load %arg1[%c0_1, %c0_2] : memref<25x20xbf16, #tpu.memory_space<vmem>>, vector<25x20xbf16>
    %cst = arith.constant dense<0.000000e+00> : vector<4608x20xf32>
    %2 = tpu.matmul %0, %1, %cst {dimension_numbers = #tpu.dot_dimension_numbers<[1], [0], [0], [1], [0, 0, 1, 1], [], []>} : vector<4608x25xbf16>, vector<25x20xbf16>, vector<4608x20xf32> -> vector<4608x20xf32>
    %3 = vector.extract_strided_slice %2 {offsets = [0, 0], sizes = [1152, 20], strides = [1, 1]} : vector<4608x20xf32> to vector<1152x20xf32>
    %4 = vector.extract_strided_slice %2 {offsets = [1152, 0], sizes = [1152, 20], strides = [1, 1]} : vector<4608x20xf32> to vector<1152x20xf32>
    %5 = arith.maximumf %3, %4 : vector<1152x20xf32>
    %6 = vector.extract_strided_slice %2 {offsets = [2304, 0], sizes = [1152, 20], strides = [1, 1]} : vector<4608x20xf32> to vector<1152x20xf32>
    %7 = vector.extract_strided_slice %2 {offsets = [3456, 0], sizes = [1152, 20], strides = [1, 1]} : vector<4608x20xf32> to vector<1152x20xf32>
    %8 = arith.maximumf %6, %7 : vector<1152x20xf32>
    %9 = arith.maximumf %5, %8 : vector<1152x20xf32>
    %c0_3 = arith.constant 0 : index
    %c0_4 = arith.constant 0 : index
    %10 = vector.load %arg2[%c0_3, %c0_4] : memref<1x20xf32, #tpu.memory_space<vmem>>, vector<1x20xf32>
    %11 = vector.broadcast %10 : vector<1x20xf32> to vector<1152x20xf32>
    %12 = arith.addf %9, %11 : vector<1152x20xf32>
    %13 = vector.extract_strided_slice %12 {offsets = [0, 0], sizes = [32, 20], strides = [1, 1]} : vector<1152x20xf32> to vector<32x20xf32>
    %14 = vector.extract_strided_slice %12 {offsets = [32, 0], sizes = [32, 20], strides = [1, 1]} : vector<1152x20xf32> to vector<32x20xf32>
    %15 = vector.extract_strided_slice %12 {offsets = [64, 0], sizes = [32, 20], strides = [1, 1]} : vector<1152x20xf32> to vector<32x20xf32>
    %16 = vector.extract_strided_slice %12 {offsets = [96, 0], sizes = [32, 20], strides = [1, 1]} : vector<1152x20xf32> to vector<32x20xf32>
    %17 = vector.extract_strided_slice %12 {offsets = [128, 0], sizes = [32, 20], strides = [1, 1]} : vector<1152x20xf32> to vector<32x20xf32>
    %18 = vector.extract_strided_slice %12 {offsets = [160, 0], sizes = [32, 20], strides = [1, 1]} : vector<1152x20xf32> to vector<32x20xf32>
    %19 = vector.extract_strided_slice %12 {offsets = [192, 0], sizes = [32, 20], strides = [1, 1]} : vector<1152x20xf32> to vector<32x20xf32>
    %20 = vector.extract_strided_slice %12 {offsets = [224, 0], sizes = [32, 20], strides = [1, 1]} : vector<1152x20xf32> to vector<32x20xf32>
    %21 = vector.extract_strided_slice %12 {offsets = [256, 0], sizes = [32, 20], strides = [1, 1]} : vector<1152x20xf32> to vector<32x20xf32>
    %22 = vector.extract_strided_slice %12 {offsets = [288, 0], sizes = [32, 20], strides = [1, 1]} : vector<1152x20xf32> to vector<32x20xf32>
    %23 = vector.extract_strided_slice %12 {offsets = [320, 0], sizes = [32, 20], strides = [1, 1]} : vector<1152x20xf32> to vector<32x20xf32>
    %24 = vector.extract_strided_slice %12 {offsets = [352, 0], sizes = [32, 20], strides = [1, 1]} : vector<1152x20xf32> to vector<32x20xf32>
    %25 = vector.extract_strided_slice %12 {offsets = [384, 0], sizes = [32, 20], strides = [1, 1]} : vector<1152x20xf32> to vector<32x20xf32>
    %26 = vector.extract_strided_slice %12 {offsets = [416, 0], sizes = [32, 20], strides = [1, 1]} : vector<1152x20xf32> to vector<32x20xf32>
    %27 = vector.extract_strided_slice %12 {offsets = [448, 0], sizes = [32, 20], strides = [1, 1]} : vector<1152x20xf32> to vector<32x20xf32>
    %28 = vector.extract_strided_slice %12 {offsets = [480, 0], sizes = [32, 20], strides = [1, 1]} : vector<1152x20xf32> to vector<32x20xf32>
    %29 = vector.extract_strided_slice %12 {offsets = [512, 0], sizes = [32, 20], strides = [1, 1]} : vector<1152x20xf32> to vector<32x20xf32>
    %30 = vector.extract_strided_slice %12 {offsets = [544, 0], sizes = [32, 20], strides = [1, 1]} : vector<1152x20xf32> to vector<32x20xf32>
    %31 = vector.extract_strided_slice %12 {offsets = [576, 0], sizes = [32, 20], strides = [1, 1]} : vector<1152x20xf32> to vector<32x20xf32>
    %32 = vector.extract_strided_slice %12 {offsets = [608, 0], sizes = [32, 20], strides = [1, 1]} : vector<1152x20xf32> to vector<32x20xf32>
    %33 = vector.extract_strided_slice %12 {offsets = [640, 0], sizes = [32, 20], strides = [1, 1]} : vector<1152x20xf32> to vector<32x20xf32>
    %34 = vector.extract_strided_slice %12 {offsets = [672, 0], sizes = [32, 20], strides = [1, 1]} : vector<1152x20xf32> to vector<32x20xf32>
    %35 = vector.extract_strided_slice %12 {offsets = [704, 0], sizes = [32, 20], strides = [1, 1]} : vector<1152x20xf32> to vector<32x20xf32>
    %36 = vector.extract_strided_slice %12 {offsets = [736, 0], sizes = [32, 20], strides = [1, 1]} : vector<1152x20xf32> to vector<32x20xf32>
    %37 = vector.extract_strided_slice %12 {offsets = [768, 0], sizes = [32, 20], strides = [1, 1]} : vector<1152x20xf32> to vector<32x20xf32>
    %38 = vector.extract_strided_slice %12 {offsets = [800, 0], sizes = [32, 20], strides = [1, 1]} : vector<1152x20xf32> to vector<32x20xf32>
    %39 = vector.extract_strided_slice %12 {offsets = [832, 0], sizes = [32, 20], strides = [1, 1]} : vector<1152x20xf32> to vector<32x20xf32>
    %40 = vector.extract_strided_slice %12 {offsets = [864, 0], sizes = [32, 20], strides = [1, 1]} : vector<1152x20xf32> to vector<32x20xf32>
    %41 = vector.extract_strided_slice %12 {offsets = [896, 0], sizes = [32, 20], strides = [1, 1]} : vector<1152x20xf32> to vector<32x20xf32>
    %42 = vector.extract_strided_slice %12 {offsets = [928, 0], sizes = [32, 20], strides = [1, 1]} : vector<1152x20xf32> to vector<32x20xf32>
    %43 = vector.extract_strided_slice %12 {offsets = [960, 0], sizes = [32, 20], strides = [1, 1]} : vector<1152x20xf32> to vector<32x20xf32>
    %44 = vector.extract_strided_slice %12 {offsets = [992, 0], sizes = [32, 20], strides = [1, 1]} : vector<1152x20xf32> to vector<32x20xf32>
    %45 = vector.extract_strided_slice %12 {offsets = [1024, 0], sizes = [32, 20], strides = [1, 1]} : vector<1152x20xf32> to vector<32x20xf32>
    %46 = vector.extract_strided_slice %12 {offsets = [1056, 0], sizes = [32, 20], strides = [1, 1]} : vector<1152x20xf32> to vector<32x20xf32>
    %47 = vector.extract_strided_slice %12 {offsets = [1088, 0], sizes = [32, 20], strides = [1, 1]} : vector<1152x20xf32> to vector<32x20xf32>
    %48 = vector.extract_strided_slice %12 {offsets = [1120, 0], sizes = [32, 20], strides = [1, 1]} : vector<1152x20xf32> to vector<32x20xf32>
    %49 = tpu.concatenate %13, %14, %17, %18, %21, %15, %16, %19, %20, %23, %25, %26, %29, %30, %33, %27 in 1 : vector<32x20xf32>, vector<32x20xf32>, vector<32x20xf32>, vector<32x20xf32>, vector<32x20xf32>, vector<32x20xf32>, vector<32x20xf32>, vector<32x20xf32>, vector<32x20xf32>, vector<32x20xf32>, vector<32x20xf32>, vector<32x20xf32>, vector<32x20xf32>, vector<32x20xf32>, vector<32x20xf32>, vector<32x20xf32> -> vector<32x320xf32>
    %50 = tpu.concatenate %28, %31, %32, %35, %37, %38, %41, %42, %45 in 1 : vector<32x20xf32>, vector<32x20xf32>, vector<32x20xf32>, vector<32x20xf32>, vector<32x20xf32>, vector<32x20xf32>, vector<32x20xf32>, vector<32x20xf32>, vector<32x20xf32> -> vector<32x180xf32>
    %51 = tpu.concatenate %49, %50 in 1 : vector<32x320xf32>, vector<32x180xf32> -> vector<32x500xf32>
    %52 = tpu.concatenate %14, %17, %18, %21, %22, %16, %19, %20, %23, %24, %26, %29, %30, %33, %34, %28 in 1 : vector<32x20xf32>, vector<32x20xf32>, vector<32x20xf32>, vector<32x20xf32>, vector<32x20xf32>, vector<32x20xf32>, vector<32x20xf32>, vector<32x20xf32>, vector<32x20xf32>, vector<32x20xf32>, vector<32x20xf32>, vector<32x20xf32>, vector<32x20xf32>, vector<32x20xf32>, vector<32x20xf32>, vector<32x20xf32> -> vector<32x320xf32>
    %53 = tpu.concatenate %31, %32, %35, %36, %38, %41, %42, %45, %46 in 1 : vector<32x20xf32>, vector<32x20xf32>, vector<32x20xf32>, vector<32x20xf32>, vector<32x20xf32>, vector<32x20xf32>, vector<32x20xf32>, vector<32x20xf32>, vector<32x20xf32> -> vector<32x180xf32>
    %54 = tpu.concatenate %52, %53 in 1 : vector<32x320xf32>, vector<32x180xf32> -> vector<32x500xf32>
    %55 = tpu.concatenate %15, %16, %19, %20, %23, %25, %26, %29, %30, %33, %27, %28, %31, %32, %35, %37 in 1 : vector<32x20xf32>, vector<32x20xf32>, vector<32x20xf32>, vector<32x20xf32>, vector<32x20xf32>, vector<32x20xf32>, vector<32x20xf32>, vector<32x20xf32>, vector<32x20xf32>, vector<32x20xf32>, vector<32x20xf32>, vector<32x20xf32>, vector<32x20xf32>, vector<32x20xf32>, vector<32x20xf32>, vector<32x20xf32> -> vector<32x320xf32>
    %56 = tpu.concatenate %38, %41, %42, %45, %39, %40, %43, %44, %47 in 1 : vector<32x20xf32>, vector<32x20xf32>, vector<32x20xf32>, vector<32x20xf32>, vector<32x20xf32>, vector<32x20xf32>, vector<32x20xf32>, vector<32x20xf32>, vector<32x20xf32> -> vector<32x180xf32>
    %57 = tpu.concatenate %55, %56 in 1 : vector<32x320xf32>, vector<32x180xf32> -> vector<32x500xf32>
    %58 = tpu.concatenate %16, %19, %20, %23, %24, %26, %29, %30, %33, %34, %28, %31, %32, %35, %36, %38 in 1 : vector<32x20xf32>, vector<32x20xf32>, vector<32x20xf32>, vector<32x20xf32>, vector<32x20xf32>, vector<32x20xf32>, vector<32x20xf32>, vector<32x20xf32>, vector<32x20xf32>, vector<32x20xf32>, vector<32x20xf32>, vector<32x20xf32>, vector<32x20xf32>, vector<32x20xf32>, vector<32x20xf32>, vector<32x20xf32> -> vector<32x320xf32>
    %59 = tpu.concatenate %41, %42, %45, %46, %40, %43, %44, %47, %48 in 1 : vector<32x20xf32>, vector<32x20xf32>, vector<32x20xf32>, vector<32x20xf32>, vector<32x20xf32>, vector<32x20xf32>, vector<32x20xf32>, vector<32x20xf32>, vector<32x20xf32> -> vector<32x180xf32>
    %60 = tpu.concatenate %58, %59 in 1 : vector<32x320xf32>, vector<32x180xf32> -> vector<32x500xf32>
    %61 = tpu.concatenate %51, %54, %57, %60 in 0 : vector<32x500xf32>, vector<32x500xf32>, vector<32x500xf32>, vector<32x500xf32> -> vector<128x500xf32>
    %62 = arith.truncf %61 : vector<128x500xf32> to vector<128x500xbf16>
    %c0_5 = arith.constant 0 : index
    %c0_6 = arith.constant 0 : index
    %63 = vector.load %arg3[%c0_5, %c0_6] : memref<500x50xbf16, #tpu.memory_space<vmem>>, vector<500x50xbf16>
    %cst_7 = arith.constant dense<0.000000e+00> : vector<128x50xf32>
    %64 = tpu.matmul %62, %63, %cst_7 {dimension_numbers = #tpu.dot_dimension_numbers<[1], [0], [0], [1], [0, 0, 1, 1], [], []>} : vector<128x500xbf16>, vector<500x50xbf16>, vector<128x50xf32> -> vector<128x50xf32>
    %65 = vector.extract_strided_slice %64 {offsets = [0, 0], sizes = [32, 50], strides = [1, 1]} : vector<128x50xf32> to vector<32x50xf32>
    %66 = vector.extract_strided_slice %64 {offsets = [32, 0], sizes = [32, 50], strides = [1, 1]} : vector<128x50xf32> to vector<32x50xf32>
    %67 = arith.maximumf %65, %66 : vector<32x50xf32>
    %68 = vector.extract_strided_slice %64 {offsets = [64, 0], sizes = [32, 50], strides = [1, 1]} : vector<128x50xf32> to vector<32x50xf32>
    %69 = vector.extract_strided_slice %64 {offsets = [96, 0], sizes = [32, 50], strides = [1, 1]} : vector<128x50xf32> to vector<32x50xf32>
    %70 = arith.maximumf %68, %69 : vector<32x50xf32>
    %71 = arith.maximumf %67, %70 : vector<32x50xf32>
    %c0_8 = arith.constant 0 : index
    %c0_9 = arith.constant 0 : index
    %72 = vector.load %arg4[%c0_8, %c0_9] : memref<1x50xf32, #tpu.memory_space<vmem>>, vector<1x50xf32>
    %73 = vector.broadcast %72 : vector<1x50xf32> to vector<32x50xf32>
    %74 = arith.addf %71, %73 : vector<32x50xf32>
    %75 = vector.extract_strided_slice %74 {offsets = [0, 0], sizes = [2, 50], strides = [1, 1]} : vector<32x50xf32> to vector<2x50xf32>
    %76 = vector.extract_strided_slice %74 {offsets = [2, 0], sizes = [2, 50], strides = [1, 1]} : vector<32x50xf32> to vector<2x50xf32>
    %77 = vector.extract_strided_slice %74 {offsets = [4, 0], sizes = [2, 50], strides = [1, 1]} : vector<32x50xf32> to vector<2x50xf32>
    %78 = vector.extract_strided_slice %74 {offsets = [6, 0], sizes = [2, 50], strides = [1, 1]} : vector<32x50xf32> to vector<2x50xf32>
    %79 = vector.extract_strided_slice %74 {offsets = [8, 0], sizes = [2, 50], strides = [1, 1]} : vector<32x50xf32> to vector<2x50xf32>
    %80 = vector.extract_strided_slice %74 {offsets = [10, 0], sizes = [2, 50], strides = [1, 1]} : vector<32x50xf32> to vector<2x50xf32>
    %81 = vector.extract_strided_slice %74 {offsets = [12, 0], sizes = [2, 50], strides = [1, 1]} : vector<32x50xf32> to vector<2x50xf32>
    %82 = vector.extract_strided_slice %74 {offsets = [14, 0], sizes = [2, 50], strides = [1, 1]} : vector<32x50xf32> to vector<2x50xf32>
    %83 = vector.extract_strided_slice %74 {offsets = [16, 0], sizes = [2, 50], strides = [1, 1]} : vector<32x50xf32> to vector<2x50xf32>
    %84 = vector.extract_strided_slice %74 {offsets = [18, 0], sizes = [2, 50], strides = [1, 1]} : vector<32x50xf32> to vector<2x50xf32>
    %85 = vector.extract_strided_slice %74 {offsets = [20, 0], sizes = [2, 50], strides = [1, 1]} : vector<32x50xf32> to vector<2x50xf32>
    %86 = vector.extract_strided_slice %74 {offsets = [22, 0], sizes = [2, 50], strides = [1, 1]} : vector<32x50xf32> to vector<2x50xf32>
    %87 = vector.extract_strided_slice %74 {offsets = [24, 0], sizes = [2, 50], strides = [1, 1]} : vector<32x50xf32> to vector<2x50xf32>
    %88 = vector.extract_strided_slice %74 {offsets = [26, 0], sizes = [2, 50], strides = [1, 1]} : vector<32x50xf32> to vector<2x50xf32>
    %89 = vector.extract_strided_slice %74 {offsets = [28, 0], sizes = [2, 50], strides = [1, 1]} : vector<32x50xf32> to vector<2x50xf32>
    %90 = vector.extract_strided_slice %74 {offsets = [30, 0], sizes = [2, 50], strides = [1, 1]} : vector<32x50xf32> to vector<2x50xf32>
    %91 = tpu.concatenate %75, %76, %77, %78, %79, %80, %81, %82, %83, %84, %85, %86, %87, %88, %89, %90 in 1 : vector<2x50xf32>, vector<2x50xf32>, vector<2x50xf32>, vector<2x50xf32>, vector<2x50xf32>, vector<2x50xf32>, vector<2x50xf32>, vector<2x50xf32>, vector<2x50xf32>, vector<2x50xf32>, vector<2x50xf32>, vector<2x50xf32>, vector<2x50xf32>, vector<2x50xf32>, vector<2x50xf32>, vector<2x50xf32> -> vector<2x800xf32>
    %92 = arith.truncf %91 : vector<2x800xf32> to vector<2x800xbf16>
    %c0_10 = arith.constant 0 : index
    %c0_11 = arith.constant 0 : index
    %93 = vector.load %arg5[%c0_10, %c0_11] : memref<800x500xbf16, #tpu.memory_space<vmem>>, vector<800x500xbf16>
    %cst_12 = arith.constant dense<0.000000e+00> : vector<2x500xf32>
    %94 = tpu.matmul %92, %93, %cst_12 {dimension_numbers = #tpu.dot_dimension_numbers<[1], [0], [0], [1], [0, 0, 1, 1], [], []>} : vector<2x800xbf16>, vector<800x500xbf16>, vector<2x500xf32> -> vector<2x500xf32>
    %c0_13 = arith.constant 0 : index
    %c0_14 = arith.constant 0 : index
    %95 = vector.load %arg6[%c0_13, %c0_14] : memref<1x500xf32, #tpu.memory_space<vmem>>, vector<1x500xf32>
    %96 = vector.broadcast %95 : vector<1x500xf32> to vector<2x500xf32>
    %97 = arith.addf %94, %96 : vector<2x500xf32>
    %cst_15 = arith.constant 0.000000e+00 : f32
    %98 = vector.broadcast %cst_15 : f32 to vector<2x500xf32>
    %99 = arith.maximumf %97, %98 : vector<2x500xf32>
    %100 = arith.truncf %99 : vector<2x500xf32> to vector<2x500xbf16>
    %c0_16 = arith.constant 0 : index
    %c0_17 = arith.constant 0 : index
    %101 = vector.load %arg7[%c0_16, %c0_17] : memref<500x10xbf16, #tpu.memory_space<vmem>>, vector<500x10xbf16>
    %cst_18 = arith.constant dense<0.000000e+00> : vector<2x10xf32>
    %102 = tpu.matmul %100, %101, %cst_18 {dimension_numbers = #tpu.dot_dimension_numbers<[1], [0], [0], [1], [0, 0, 1, 1], [], []>} : vector<2x500xbf16>, vector<500x10xbf16>, vector<2x10xf32> -> vector<2x10xf32>
    %c0_19 = arith.constant 0 : index
    %c0_20 = arith.constant 0 : index
    %103 = vector.load %arg8[%c0_19, %c0_20] : memref<1x10xf32, #tpu.memory_space<vmem>>, vector<1x10xf32>
    %104 = vector.broadcast %103 : vector<1x10xf32> to vector<2x10xf32>
    %105 = arith.addf %102, %104 : vector<2x10xf32>
    %cst_21 = arith.constant dense<0xFF800000> : vector<2xf32>
    %106 = vector.multi_reduction <maximumf>, %105, %cst_21 [1] : vector<2x10xf32> to vector<2xf32>
    %107 = vector.shape_cast %106 : vector<2xf32> to vector<2x1xf32>
    %108 = vector.broadcast %107 : vector<2x1xf32> to vector<2x10xf32>
    %109 = arith.subf %105, %108 : vector<2x10xf32>
    %110 = math.exp %109 : vector<2x10xf32>
    %cst_22 = arith.constant dense<0.000000e+00> : vector<2xf32>
    %111 = vector.multi_reduction <add>, %110, %cst_22 [1] : vector<2x10xf32> to vector<2xf32>
    %112 = vector.shape_cast %111 : vector<2xf32> to vector<2x1xf32>
    %113 = vector.broadcast %112 : vector<2x1xf32> to vector<2x10xf32>
    %114 = arith.divf %110, %113 : vector<2x10xf32>
    %c0_23 = arith.constant 0 : index
    %c0_24 = arith.constant 0 : index
    %115 = vector.load %arg9[%c0_23, %c0_24] : memref<2x10xf32, #tpu.memory_space<vmem>>, vector<2x10xf32>
    tpu.vector_store %arg9[%c0_23, %c0_24], %114 {strides = array<i32>} : memref<2x10xf32, #tpu.memory_space<vmem>>, vector<2x10xf32>,
    return
  }
}

</mosaic_0001>

<llo_original>
// kernel: caffenet_forward.1
$region0: #{caffenet_forward.1}
  #allocation0 [shape = 'u32[]', space=smem, size = 0x4, offset = 0x4, fixed_abs, tag = 'smem constant byte address 0x4 - core index']
  #allocation1 [shape = 'u32[72,128]{1,0:T(1,128)}', space=vmem, size = 0x9000, scoped, tag = 'internal scratch']
  %s0 = inlined_call_operand.vmem [shape: bf16[4608,25], index: 0, kind: input, shape index: {}]
  %s1 = inlined_call_operand.vmem [shape: bf16[25,20], index: 1, kind: input, shape index: {}]
  %s2 = inlined_call_operand.vmem [shape: f32[1,20], index: 2, kind: input, shape index: {}]
  %s3 = inlined_call_operand.vmem [shape: bf16[500,50], index: 3, kind: input, shape index: {}]
  %s4 = inlined_call_operand.vmem [shape: f32[1,50], index: 4, kind: input, shape index: {}]
  %s5 = inlined_call_operand.vmem [shape: bf16[800,500], index: 5, kind: input, shape index: {}]
  %s6 = inlined_call_operand.vmem [shape: f32[1,500], index: 6, kind: input, shape index: {}]
  %s7 = inlined_call_operand.vmem [shape: bf16[500,10], index: 7, kind: input, shape index: {}]
  %s8 = inlined_call_operand.vmem [shape: f32[1,10], index: 8, kind: input, shape index: {}]
  %s9 = inlined_call_operand.hbm [shape: f32[2,10], index: 9, kind: output, shape index: {}]
  %s10 = sld [smem:[#allocation0]]
  $region46: #{caffenet_forward.1} parent=0
    _
  %s12 = ssub.s32 1, %s10
  %s13 = scalar_select 0, %s12, %s10
  $region1: #{caffenet_forward.1} parent=0
    #allocation2 [shape = 'u8[1024]{0}', space=vmem, size = 0x400, scoped, tag = 'output window, operand 0, single buffered']
    #allocation3 [shape = 's32[1]{0}', space=sflag, size = 0x4, scoped, tag = 'scoped memory for caffenet_forward.1']
    %14 = vsyncpa [#allocation3], 0
    // Predicated region
    $region2: #{caffenet_forward.1} parent=1 // pred_check
      _
    $region3: #{caffenet_forward.1} parent=1 // pred_check_branch
      %16 = sbr.rel (0) target = $region5
    $region4: #{caffenet_forward.1} parent=1 // pred_region
      _
    $region5: #{caffenet_forward.1} parent=1 // pred_fallthru
      _
    // Predicated region
    $region6: #{caffenet_forward.1} parent=1 // pred_check
      _
    $region7: #{caffenet_forward.1} parent=1 // pred_check_branch
      %18 = sbr.rel (0) target = $region9
    $region8: #{caffenet_forward.1} parent=1 // pred_region
      _
    $region9: #{caffenet_forward.1} parent=1 // pred_fallthru
      _
    // Predicated region
    $region10: #{caffenet_forward.1} parent=1 // pred_check
      _
    $region11: #{caffenet_forward.1} parent=1 // pred_check_branch
      %20 = sbr.rel (0) target = $region13
    $region12: #{caffenet_forward.1} parent=1 // pred_region
      _
    $region13: #{caffenet_forward.1} parent=1 // pred_fallthru
      _
    // Predicated region
    $region14: #{caffenet_forward.1} parent=1 // pred_check
      _
    $region15: #{caffenet_forward.1} parent=1 // pred_check_branch
      %22 = sbr.rel (0) target = $region17
    $region16: #{caffenet_forward.1} parent=1 // pred_region
      _
    $region17: #{caffenet_forward.1} parent=1 // pred_fallthru
      _
    // Predicated region
    $region18: #{caffenet_forward.1} parent=1 // pred_check
      _
    $region19: #{caffenet_forward.1} parent=1 // pred_check_branch
      %24 = sbr.rel (0) target = $region21
    $region20: #{caffenet_forward.1} parent=1 // pred_region
      _
    $region21: #{caffenet_forward.1} parent=1 // pred_fallthru
      _
    // Predicated region
    $region22: #{caffenet_forward.1} parent=1 // pred_check
      _
    $region23: #{caffenet_forward.1} parent=1 // pred_check_branch
      %26 = sbr.rel (0) target = $region25
    $region24: #{caffenet_forward.1} parent=1 // pred_region
      _
    $region25: #{caffenet_forward.1} parent=1 // pred_fallthru
      _
    // Predicated region
    $region26: #{caffenet_forward.1} parent=1 // pred_check
      _
    $region27: #{caffenet_forward.1} parent=1 // pred_check_branch
      %28 = sbr.rel (0) target = $region29
    $region28: #{caffenet_forward.1} parent=1 // pred_region
      _
    $region29: #{caffenet_forward.1} parent=1 // pred_fallthru
      _
    // Predicated region
    $region30: #{caffenet_forward.1} parent=1 // pred_check
      _
    $region31: #{caffenet_forward.1} parent=1 // pred_check_branch
      %30 = sbr.rel (0) target = $region33
    $region32: #{caffenet_forward.1} parent=1 // pred_region
      _
    $region33: #{caffenet_forward.1} parent=1 // pred_fallthru
      _
    // Predicated region
    $region34: #{caffenet_forward.1} parent=1 // pred_check
      _
    $region35: #{caffenet_forward.1} parent=1 // pred_check_branch
      %32 = sbr.rel (0) target = $region37
    $region36: #{caffenet_forward.1} parent=1 // pred_region
      _
    $region37: #{caffenet_forward.1} parent=1 // pred_fallthru
      _
    %v34 = vld [vmem:[%s0] sm:$0xf]
    %v35 = vld [vmem:[%s0 + $0x4] sm:$0xf]
    %v36 = vld [vmem:[%s0 + $0x8] sm:$0xf]
    %v37 = vld [vmem:[%s0 + $0xc] sm:$0xf]
    %v38 = vld [vmem:[%s0 + $0x10] sm:$0xf]
    %v39 = vld [vmem:[%s0 + $0x14] sm:$0xf]
    %v40 = vld [vmem:[%s0 + $0x18] sm:$0xf]
    %v41 = vld [vmem:[%s0 + $0x1c] sm:$0xf]
    %v42 = vld [vmem:[%s0 + $0x20] sm:$0xf]
    %v43 = vld [vmem:[%s0 + $0x24] sm:$0xf]
    %v44 = vld [vmem:[%s0 + $0x28] sm:$0xf]
    %v45 = vld [vmem:[%s0 + $0x2c] sm:$0xf]
    %v46 = vld [vmem:[%s0 + $0x30] sm:$0xf]
    %v47 = vld [vmem:[%s0 + $0x34] sm:$0xf]
    %v48 = vld [vmem:[%s0 + $0x38] sm:$0xf]
    %v49 = vld [vmem:[%s0 + $0x3c] sm:$0xf]
    %v50 = vld [vmem:[%s0 + $0x40] sm:$0xf]
    %v51 = vld [vmem:[%s0 + $0x44] sm:$0xf]
    %v52 = vld [vmem:[%s0 + $0x48] sm:$0xf]
    %v53 = vld [vmem:[%s0 + $0x4c] sm:$0xf]
    %v54 = vld [vmem:[%s0 + $0x50] sm:$0xf]
    %v55 = vld [vmem:[%s0 + $0x54] sm:$0xf]
    %v56 = vld [vmem:[%s0 + $0x58] sm:$0xf]
    %v57 = vld [vmem:[%s0 + $0x5c] sm:$0xf]
    %v58 = vld [vmem:[%s0 + $0x60] sm:$0xf]
    %v59 = vld [vmem:[%s0 + $0x64] sm:$0xf]
    %v60 = vld [vmem:[%s0 + $0x68] sm:$0xf]
    %v61 = vld [vmem:[%s0 + $0x6c] sm:$0xf]
    %v62 = vld [vmem:[%s0 + $0x70] sm:$0xf]
    %v63 = vld [vmem:[%s0 + $0x74] sm:$0xf]
    %v64 = vld [vmem:[%s0 + $0x78] sm:$0xf]
    %v65 = vld [vmem:[%s0 + $0x7c] sm:$0xf]
    %v66 = vld [vmem:[%s0 + $0x80] sm:$0xf]
    %v67 = vld [vmem:[%s0 + $0x84] sm:$0xf]
    %v68 = vld [vmem:[%s0 + $0x88] sm:$0xf]
    %v69 = vld [vmem:[%s0 + $0x8c] sm:$0xf]
    %v70 = vld [vmem:[%s0 + $0x90] sm:$0xf]
    %v71 = vld [vmem:[%s0 + $0x94] sm:$0xf]
    %v72 = vld [vmem:[%s0 + $0x98] sm:$0xf]
    %v73 = vld [vmem:[%s0 + $0x9c] sm:$0xf]
    %v74 = vld [vmem:[%s0 + $0xa0] sm:$0xf]
    %v75 = vld [vmem:[%s0 + $0xa4] sm:$0xf]
    %v76 = vld [vmem:[%s0 + $0xa8] sm:$0xf]
    %v77 = vld [vmem:[%s0 + $0xac] sm:$0xf]
    %v78 = vld [vmem:[%s0 + $0xb0] sm:$0xf]
    %v79 = vld [vmem:[%s0 + $0xb4] sm:$0xf]
    %v80 = vld [vmem:[%s0 + $0xb8] sm:$0xf]
    %v81 = vld [vmem:[%s0 + $0xbc] sm:$0xf]
    %v82 = vld [vmem:[%s0 + $0xc0] sm:$0xf]
    %v83 = vld [vmem:[%s0 + $0xc4] sm:$0xf]
    %v84 = vld [vmem:[%s0 + $0xc8] sm:$0xf]
    %v85 = vld [vmem:[%s0 + $0xcc] sm:$0xf]
    %v86 = vld [vmem:[%s0 + $0xd0] sm:$0xf]
    %v87 = vld [vmem:[%s0 + $0xd4] sm:$0xf]
    %v88 = vld [vmem:[%s0 + $0xd8] sm:$0xf]
    %v89 = vld [vmem:[%s0 + $0xdc] sm:$0xf]
    %v90 = vld [vmem:[%s0 + $0xe0] sm:$0xf]
    %v91 = vld [vmem:[%s0 + $0xe4] sm:$0xf]
    %v92 = vld [vmem:[%s0 + $0xe8] sm:$0xf]
    %v93 = vld [vmem:[%s0 + $0xec] sm:$0xf]
    %v94 = vld [vmem:[%s0 + $0xf0] sm:$0xf]
    %v95 = vld [vmem:[%s0 + $0xf4] sm:$0xf]
    %v96 = vld [vmem:[%s0 + $0xf8] sm:$0xf]
    %v97 = vld [vmem:[%s0 + $0xfc] sm:$0xf]
    %v98 = vld [vmem:[%s0 + $0x100] sm:$0xf]
    %v99 = vld [vmem:[%s0 + $0x104] sm:$0xf]
    %v100 = vld [vmem:[%s0 + $0x108] sm:$0xf]
    %v101 = vld [vmem:[%s0 + $0x10c] sm:$0xf]
    %v102 = vld [vmem:[%s0 + $0x110] sm:$0xf]
    %v103 = vld [vmem:[%s0 + $0x114] sm:$0xf]
    %v104 = vld [vmem:[%s0 + $0x118] sm:$0xf]
    %v105 = vld [vmem:[%s0 + $0x11c] sm:$0xf]
    %v106 = vld [vmem:[%s0 + $0x120] sm:$0xf]
    %v107 = vld [vmem:[%s0 + $0x124] sm:$0xf]
    %v108 = vld [vmem:[%s0 + $0x128] sm:$0xf]
    %v109 = vld [vmem:[%s0 + $0x12c] sm:$0xf]
    %v110 = vld [vmem:[%s0 + $0x130] sm:$0xf]
    %v111 = vld [vmem:[%s0 + $0x134] sm:$0xf]
    %v112 = vld [vmem:[%s0 + $0x138] sm:$0xf]
    %v113 = vld [vmem:[%s0 + $0x13c] sm:$0xf]
    %v114 = vld [vmem:[%s0 + $0x140] sm:$0xf]
    %v115 = vld [vmem:[%s0 + $0x144] sm:$0xf]
    %v116 = vld [vmem:[%s0 + $0x148] sm:$0xf]
    %v117 = vld [vmem:[%s0 + $0x14c] sm:$0xf]
    %v118 = vld [vmem:[%s0 + $0x150] sm:$0xf]
    %v119 = vld [vmem:[%s0 + $0x154] sm:$0xf]
    %v120 = vld [vmem:[%s0 + $0x158] sm:$0xf]
    %v121 = vld [vmem:[%s0 + $0x15c] sm:$0xf]
    %v122 = vld [vmem:[%s0 + $0x160] sm:$0xf]
    %v123 = vld [vmem:[%s0 + $0x164] sm:$0xf]
    %v124 = vld [vmem:[%s0 + $0x168] sm:$0xf]
    %v125 = vld [vmem:[%s0 + $0x16c] sm:$0xf]
    %v126 = vld [vmem:[%s0 + $0x170] sm:$0xf]
    %v127 = vld [vmem:[%s0 + $0x174] sm:$0xf]
    %v128 = vld [vmem:[%s0 + $0x178] sm:$0xf]
    %v129 = vld [vmem:[%s0 + $0x17c] sm:$0xf]
    %v130 = vld [vmem:[%s0 + $0x180] sm:$0xf]
    %v131 = vld [vmem:[%s0 + $0x184] sm:$0xf]
    %v132 = vld [vmem:[%s0 + $0x188] sm:$0xf]
    %v133 = vld [vmem:[%s0 + $0x18c] sm:$0xf]
    %v134 = vld [vmem:[%s0 + $0x190] sm:$0xf]
    %v135 = vld [vmem:[%s0 + $0x194] sm:$0xf]
    %v136 = vld [vmem:[%s0 + $0x198] sm:$0xf]
    %v137 = vld [vmem:[%s0 + $0x19c] sm:$0xf]
    %v138 = vld [vmem:[%s0 + $0x1a0] sm:$0xf]
    %v139 = vld [vmem:[%s0 + $0x1a4] sm:$0xf]
    %v140 = vld [vmem:[%s0 + $0x1a8] sm:$0xf]
    %v141 = vld [vmem:[%s0 + $0x1ac] sm:$0xf]
    %v142 = vld [vmem:[%s0 + $0x1b0] sm:$0xf]
    %v143 = vld [vmem:[%s0 + $0x1b4] sm:$0xf]
    %v144 = vld [vmem:[%s0 + $0x1b8] sm:$0xf]
    %v145 = vld [vmem:[%s0 + $0x1bc] sm:$0xf]
    %v146 = vld [vmem:[%s0 + $0x1c0] sm:$0xf]
    %v147 = vld [vmem:[%s0 + $0x1c4] sm:$0xf]
    %v148 = vld [vmem:[%s0 + $0x1c8] sm:$0xf]
    %v149 = vld [vmem:[%s0 + $0x1cc] sm:$0xf]
    %v150 = vld [vmem:[%s0 + $0x1d0] sm:$0xf]
    %v151 = vld [vmem:[%s0 + $0x1d4] sm:$0xf]
    %v152 = vld [vmem:[%s0 + $0x1d8] sm:$0xf]
    %v153 = vld [vmem:[%s0 + $0x1dc] sm:$0xf]
    %v154 = vld [vmem:[%s0 + $0x1e0] sm:$0xf]
    %v155 = vld [vmem:[%s0 + $0x1e4] sm:$0xf]
    %v156 = vld [vmem:[%s0 + $0x1e8] sm:$0xf]
    %v157 = vld [vmem:[%s0 + $0x1ec] sm:$0xf]
    %v158 = vld [vmem:[%s0 + $0x1f0] sm:$0xf]
    %v159 = vld [vmem:[%s0 + $0x1f4] sm:$0xf]
    %v160 = vld [vmem:[%s0 + $0x1f8] sm:$0xf]
    %v161 = vld [vmem:[%s0 + $0x1fc] sm:$0xf]
    %v162 = vld [vmem:[%s0 + $0x200] sm:$0xf]
    %v163 = vld [vmem:[%s0 + $0x204] sm:$0xf]
    %v164 = vld [vmem:[%s0 + $0x208] sm:$0xf]
    %v165 = vld [vmem:[%s0 + $0x20c] sm:$0xf]
    %v166 = vld [vmem:[%s0 + $0x210] sm:$0xf]
    %v167 = vld [vmem:[%s0 + $0x214] sm:$0xf]
    %v168 = vld [vmem:[%s0 + $0x218] sm:$0xf]
    %v169 = vld [vmem:[%s0 + $0x21c] sm:$0xf]
    %v170 = vld [vmem:[%s0 + $0x220] sm:$0xf]
    %v171 = vld [vmem:[%s0 + $0x224] sm:$0xf]
    %v172 = vld [vmem:[%s0 + $0x228] sm:$0xf]
    %v173 = vld [vmem:[%s0 + $0x22c] sm:$0xf]
    %v174 = vld [vmem:[%s0 + $0x230] sm:$0xf]
    %v175 = vld [vmem:[%s0 + $0x234] sm:$0xf]
    %v176 = vld [vmem:[%s0 + $0x238] sm:$0xf]
    %v177 = vld [vmem:[%s0 + $0x23c] sm:$0xf]
    %v178 = vld [vmem:[%s0 + $0x240] sm:$0xf]
    %v179 = vld [vmem:[%s0 + $0x244] sm:$0xf]
    %v180 = vld [vmem:[%s0 + $0x248] sm:$0xf]
    %v181 = vld [vmem:[%s0 + $0x24c] sm:$0xf]
    %v182 = vld [vmem:[%s0 + $0x250] sm:$0xf]
    %v183 = vld [vmem:[%s0 + $0x254] sm:$0xf]
    %v184 = vld [vmem:[%s0 + $0x258] sm:$0xf]
    %v185 = vld [vmem:[%s0 + $0x25c] sm:$0xf]
    %v186 = vld [vmem:[%s0 + $0x260] sm:$0xf]
    %v187 = vld [vmem:[%s0 + $0x264] sm:$0xf]
    %v188 = vld [vmem:[%s0 + $0x268] sm:$0xf]
    %v189 = vld [vmem:[%s0 + $0x26c] sm:$0xf]
    %v190 = vld [vmem:[%s0 + $0x270] sm:$0xf]
    %v191 = vld [vmem:[%s0 + $0x274] sm:$0xf]
    %v192 = vld [vmem:[%s0 + $0x278] sm:$0xf]
    %v193 = vld [vmem:[%s0 + $0x27c] sm:$0xf]
    %v194 = vld [vmem:[%s0 + $0x280] sm:$0xf]
    %v195 = vld [vmem:[%s0 + $0x284] sm:$0xf]
    %v196 = vld [vmem:[%s0 + $0x288] sm:$0xf]
    %v197 = vld [vmem:[%s0 + $0x28c] sm:$0xf]
    %v198 = vld [vmem:[%s0 + $0x290] sm:$0xf]
    %v199 = vld [vmem:[%s0 + $0x294] sm:$0xf]
    %v200 = vld [vmem:[%s0 + $0x298] sm:$0xf]
    %v201 = vld [vmem:[%s0 + $0x29c] sm:$0xf]
    %v202 = vld [vmem:[%s0 + $0x2a0] sm:$0xf]
    %v203 = vld [vmem:[%s0 + $0x2a4] sm:$0xf]
    %v204 = vld [vmem:[%s0 + $0x2a8] sm:$0xf]
    %v205 = vld [vmem:[%s0 + $0x2ac] sm:$0xf]
    %v206 = vld [vmem:[%s0 + $0x2b0] sm:$0xf]
    %v207 = vld [vmem:[%s0 + $0x2b4] sm:$0xf]
    %v208 = vld [vmem:[%s0 + $0x2b8] sm:$0xf]
    %v209 = vld [vmem:[%s0 + $0x2bc] sm:$0xf]
    %v210 = vld [vmem:[%s0 + $0x2c0] sm:$0xf]
    %v211 = vld [vmem:[%s0 + $0x2c4] sm:$0xf]
    %v212 = vld [vmem:[%s0 + $0x2c8] sm:$0xf]
    %v213 = vld [vmem:[%s0 + $0x2cc] sm:$0xf]
    %v214 = vld [vmem:[%s0 + $0x2d0] sm:$0xf]
    %v215 = vld [vmem:[%s0 + $0x2d4] sm:$0xf]
    %v216 = vld [vmem:[%s0 + $0x2d8] sm:$0xf]
    %v217 = vld [vmem:[%s0 + $0x2dc] sm:$0xf]
    %v218 = vld [vmem:[%s0 + $0x2e0] sm:$0xf]
    %v219 = vld [vmem:[%s0 + $0x2e4] sm:$0xf]
    %v220 = vld [vmem:[%s0 + $0x2e8] sm:$0xf]
    %v221 = vld [vmem:[%s0 + $0x2ec] sm:$0xf]
    %v222 = vld [vmem:[%s0 + $0x2f0] sm:$0xf]
    %v223 = vld [vmem:[%s0 + $0x2f4] sm:$0xf]
    %v224 = vld [vmem:[%s0 + $0x2f8] sm:$0xf]
    %v225 = vld [vmem:[%s0 + $0x2fc] sm:$0xf]
    %v226 = vld [vmem:[%s0 + $0x300] sm:$0xf]
    %v227 = vld [vmem:[%s0 + $0x304] sm:$0xf]
    %v228 = vld [vmem:[%s0 + $0x308] sm:$0xf]
    %v229 = vld [vmem:[%s0 + $0x30c] sm:$0xf]
    %v230 = vld [vmem:[%s0 + $0x310] sm:$0xf]
    %v231 = vld [vmem:[%s0 + $0x314] sm:$0xf]
    %v232 = vld [vmem:[%s0 + $0x318] sm:$0xf]
    %v233 = vld [vmem:[%s0 + $0x31c] sm:$0xf]
    %v234 = vld [vmem:[%s0 + $0x320] sm:$0xf]
    %v235 = vld [vmem:[%s0 + $0x324] sm:$0xf]
    %v236 = vld [vmem:[%s0 + $0x328] sm:$0xf]
    %v237 = vld [vmem:[%s0 + $0x32c] sm:$0xf]
    %v238 = vld [vmem:[%s0 + $0x330] sm:$0xf]
    %v239 = vld [vmem:[%s0 + $0x334] sm:$0xf]
    %v240 = vld [vmem:[%s0 + $0x338] sm:$0xf]
    %v241 = vld [vmem:[%s0 + $0x33c] sm:$0xf]
    %v242 = vld [vmem:[%s0 + $0x340] sm:$0xf]
    %v243 = vld [vmem:[%s0 + $0x344] sm:$0xf]
    %v244 = vld [vmem:[%s0 + $0x348] sm:$0xf]
    %v245 = vld [vmem:[%s0 + $0x34c] sm:$0xf]
    %v246 = vld [vmem:[%s0 + $0x350] sm:$0xf]
    %v247 = vld [vmem:[%s0 + $0x354] sm:$0xf]
    %v248 = vld [vmem:[%s0 + $0x358] sm:$0xf]
    %v249 = vld [vmem:[%s0 + $0x35c] sm:$0xf]
    %v250 = vld [vmem:[%s0 + $0x360] sm:$0xf]
    %v251 = vld [vmem:[%s0 + $0x364] sm:$0xf]
    %v252 = vld [vmem:[%s0 + $0x368] sm:$0xf]
    %v253 = vld [vmem:[%s0 + $0x36c] sm:$0xf]
    %v254 = vld [vmem:[%s0 + $0x370] sm:$0xf]
    %v255 = vld [vmem:[%s0 + $0x374] sm:$0xf]
    %v256 = vld [vmem:[%s0 + $0x378] sm:$0xf]
    %v257 = vld [vmem:[%s0 + $0x37c] sm:$0xf]
    %v258 = vld [vmem:[%s0 + $0x380] sm:$0xf]
    %v259 = vld [vmem:[%s0 + $0x384] sm:$0xf]
    %v260 = vld [vmem:[%s0 + $0x388] sm:$0xf]
    %v261 = vld [vmem:[%s0 + $0x38c] sm:$0xf]
    %v262 = vld [vmem:[%s0 + $0x390] sm:$0xf]
    %v263 = vld [vmem:[%s0 + $0x394] sm:$0xf]
    %v264 = vld [vmem:[%s0 + $0x398] sm:$0xf]
    %v265 = vld [vmem:[%s0 + $0x39c] sm:$0xf]
    %v266 = vld [vmem:[%s0 + $0x3a0] sm:$0xf]
    %v267 = vld [vmem:[%s0 + $0x3a4] sm:$0xf]
    %v268 = vld [vmem:[%s0 + $0x3a8] sm:$0xf]
    %v269 = vld [vmem:[%s0 + $0x3ac] sm:$0xf]
    %v270 = vld [vmem:[%s0 + $0x3b0] sm:$0xf]
    %v271 = vld [vmem:[%s0 + $0x3b4] sm:$0xf]
    %v272 = vld [vmem:[%s0 + $0x3b8] sm:$0xf]
    %v273 = vld [vmem:[%s0 + $0x3bc] sm:$0xf]
    %v274 = vld [vmem:[%s0 + $0x3c0] sm:$0xf]
    %v275 = vld [vmem:[%s0 + $0x3c4] sm:$0xf]
    %v276 = vld [vmem:[%s0 + $0x3c8] sm:$0xf]
    %v277 = vld [vmem:[%s0 + $0x3cc] sm:$0xf]
    %v278 = vld [vmem:[%s0 + $0x3d0] sm:$0xf]
    %v279 = vld [vmem:[%s0 + $0x3d4] sm:$0xf]
    %v280 = vld [vmem:[%s0 + $0x3d8] sm:$0xf]
    %v281 = vld [vmem:[%s0 + $0x3dc] sm:$0xf]
    %v282 = vld [vmem:[%s0 + $0x3e0] sm:$0xf]
    %v283 = vld [vmem:[%s0 + $0x3e4] sm:$0xf]
    %v284 = vld [vmem:[%s0 + $0x3e8] sm:$0xf]
    %v285 = vld [vmem:[%s0 + $0x3ec] sm:$0xf]
    %v286 = vld [vmem:[%s0 + $0x3f0] sm:$0xf]
    %v287 = vld [vmem:[%s0 + $0x3f4] sm:$0xf]
    %v288 = vld [vmem:[%s0 + $0x3f8] sm:$0xf]
    %v289 = vld [vmem:[%s0 + $0x3fc] sm:$0xf]
    %v290 = vld [vmem:[%s0 + $0x400] sm:$0xf]
    %v291 = vld [vmem:[%s0 + $0x404] sm:$0xf]
    %v292 = vld [vmem:[%s0 + $0x408] sm:$0xf]
    %v293 = vld [vmem:[%s0 + $0x40c] sm:$0xf]
    %v294 = vld [vmem:[%s0 + $0x410] sm:$0xf]
    %v295 = vld [vmem:[%s0 + $0x414] sm:$0xf]
    %v296 = vld [vmem:[%s0 + $0x418] sm:$0xf]
    %v297 = vld [vmem:[%s0 + $0x41c] sm:$0xf]
    %v298 = vld [vmem:[%s0 + $0x420] sm:$0xf]
    %v299 = vld [vmem:[%s0 + $0x424] sm:$0xf]
    %v300 = vld [vmem:[%s0 + $0x428] sm:$0xf]
    %v301 = vld [vmem:[%s0 + $0x42c] sm:$0xf]
    %v302 = vld [vmem:[%s0 + $0x430] sm:$0xf]
    %v303 = vld [vmem:[%s0 + $0x434] sm:$0xf]
    %v304 = vld [vmem:[%s0 + $0x438] sm:$0xf]
    %v305 = vld [vmem:[%s0 + $0x43c] sm:$0xf]
    %v306 = vld [vmem:[%s0 + $0x440] sm:$0xf]
    %v307 = vld [vmem:[%s0 + $0x444] sm:$0xf]
    %v308 = vld [vmem:[%s0 + $0x448] sm:$0xf]
    %v309 = vld [vmem:[%s0 + $0x44c] sm:$0xf]
    %v310 = vld [vmem:[%s0 + $0x450] sm:$0xf]
    %v311 = vld [vmem:[%s0 + $0x454] sm:$0xf]
    %v312 = vld [vmem:[%s0 + $0x458] sm:$0xf]
    %v313 = vld [vmem:[%s0 + $0x45c] sm:$0xf]
    %v314 = vld [vmem:[%s0 + $0x460] sm:$0xf]
    %v315 = vld [vmem:[%s0 + $0x464] sm:$0xf]
    %v316 = vld [vmem:[%s0 + $0x468] sm:$0xf]
    %v317 = vld [vmem:[%s0 + $0x46c] sm:$0xf]
    %v318 = vld [vmem:[%s0 + $0x470] sm:$0xf]
    %v319 = vld [vmem:[%s0 + $0x474] sm:$0xf]
    %v320 = vld [vmem:[%s0 + $0x478] sm:$0xf]
    %v321 = vld [vmem:[%s0 + $0x47c] sm:$0xf]
    %v322 = vld [vmem:[%s0 + $0x480] sm:$0xf]
    %v323 = vld [vmem:[%s0 + $0x484] sm:$0xf]
    %v324 = vld [vmem:[%s0 + $0x488] sm:$0xf]
    %v325 = vld [vmem:[%s0 + $0x48c] sm:$0xf]
    %v326 = vld [vmem:[%s0 + $0x490] sm:$0xf]
    %v327 = vld [vmem:[%s0 + $0x494] sm:$0xf]
    %v328 = vld [vmem:[%s0 + $0x498] sm:$0xf]
    %v329 = vld [vmem:[%s0 + $0x49c] sm:$0xf]
    %v330 = vld [vmem:[%s0 + $0x4a0] sm:$0xf]
    %v331 = vld [vmem:[%s0 + $0x4a4] sm:$0xf]
    %v332 = vld [vmem:[%s0 + $0x4a8] sm:$0xf]
    %v333 = vld [vmem:[%s0 + $0x4ac] sm:$0xf]
    %v334 = vld [vmem:[%s0 + $0x4b0] sm:$0xf]
    %v335 = vld [vmem:[%s0 + $0x4b4] sm:$0xf]
    %v336 = vld [vmem:[%s0 + $0x4b8] sm:$0xf]
    %v337 = vld [vmem:[%s0 + $0x4bc] sm:$0xf]
    %v338 = vld [vmem:[%s0 + $0x4c0] sm:$0xf]
    %v339 = vld [vmem:[%s0 + $0x4c4] sm:$0xf]
    %v340 = vld [vmem:[%s0 + $0x4c8] sm:$0xf]
    %v341 = vld [vmem:[%s0 + $0x4cc] sm:$0xf]
    %v342 = vld [vmem:[%s0 + $0x4d0] sm:$0xf]
    %v343 = vld [vmem:[%s0 + $0x4d4] sm:$0xf]
    %v344 = vld [vmem:[%s0 + $0x4d8] sm:$0xf]
    %v345 = vld [vmem:[%s0 + $0x4dc] sm:$0xf]
    %v346 = vld [vmem:[%s0 + $0x4e0] sm:$0xf]
    %v347 = vld [vmem:[%s0 + $0x4e4] sm:$0xf]
    %v348 = vld [vmem:[%s0 + $0x4e8] sm:$0xf]
    %v349 = vld [vmem:[%s0 + $0x4ec] sm:$0xf]
    %v350 = vld [vmem:[%s0 + $0x4f0] sm:$0xf]
    %v351 = vld [vmem:[%s0 + $0x4f4] sm:$0xf]
    %v352 = vld [vmem:[%s0 + $0x4f8] sm:$0xf]
    %v353 = vld [vmem:[%s0 + $0x4fc] sm:$0xf]
    %v354 = vld [vmem:[%s0 + $0x500] sm:$0xf]
    %v355 = vld [vmem:[%s0 + $0x504] sm:$0xf]
    %v356 = vld [vmem:[%s0 + $0x508] sm:$0xf]
    %v357 = vld [vmem:[%s0 + $0x50c] sm:$0xf]
    %v358 = vld [vmem:[%s0 + $0x510] sm:$0xf]
    %v359 = vld [vmem:[%s0 + $0x514] sm:$0xf]
    %v360 = vld [vmem:[%s0 + $0x518] sm:$0xf]
    %v361 = vld [vmem:[%s0 + $0x51c] sm:$0xf]
    %v362 = vld [vmem:[%s0 + $0x520] sm:$0xf]
    %v363 = vld [vmem:[%s0 + $0x524] sm:$0xf]
    %v364 = vld [vmem:[%s0 + $0x528] sm:$0xf]
    %v365 = vld [vmem:[%s0 + $0x52c] sm:$0xf]
    %v366 = vld [vmem:[%s0 + $0x530] sm:$0xf]
    %v367 = vld [vmem:[%s0 + $0x534] sm:$0xf]
    %v368 = vld [vmem:[%s0 + $0x538] sm:$0xf]
    %v369 = vld [vmem:[%s0 + $0x53c] sm:$0xf]
    %v370 = vld [vmem:[%s0 + $0x540] sm:$0xf]
    %v371 = vld [vmem:[%s0 + $0x544] sm:$0xf]
    %v372 = vld [vmem:[%s0 + $0x548] sm:$0xf]
    %v373 = vld [vmem:[%s0 + $0x54c] sm:$0xf]
    %v374 = vld [vmem:[%s0 + $0x550] sm:$0xf]
    %v375 = vld [vmem:[%s0 + $0x554] sm:$0xf]
    %v376 = vld [vmem:[%s0 + $0x558] sm:$0xf]
    %v377 = vld [vmem:[%s0 + $0x55c] sm:$0xf]
    %v378 = vld [vmem:[%s0 + $0x560] sm:$0xf]
    %v379 = vld [vmem:[%s0 + $0x564] sm:$0xf]
    %v380 = vld [vmem:[%s0 + $0x568] sm:$0xf]
    %v381 = vld [vmem:[%s0 + $0x56c] sm:$0xf]
    %v382 = vld [vmem:[%s0 + $0x570] sm:$0xf]
    %v383 = vld [vmem:[%s0 + $0x574] sm:$0xf]
    %v384 = vld [vmem:[%s0 + $0x578] sm:$0xf]
    %v385 = vld [vmem:[%s0 + $0x57c] sm:$0xf]
    %v386 = vld [vmem:[%s0 + $0x580] sm:$0xf]
    %v387 = vld [vmem:[%s0 + $0x584] sm:$0xf]
    %v388 = vld [vmem:[%s0 + $0x588] sm:$0xf]
    %v389 = vld [vmem:[%s0 + $0x58c] sm:$0xf]
    %v390 = vld [vmem:[%s0 + $0x590] sm:$0xf]
    %v391 = vld [vmem:[%s0 + $0x594] sm:$0xf]
    %v392 = vld [vmem:[%s0 + $0x598] sm:$0xf]
    %v393 = vld [vmem:[%s0 + $0x59c] sm:$0xf]
    %v394 = vld [vmem:[%s0 + $0x5a0] sm:$0xf]
    %v395 = vld [vmem:[%s0 + $0x5a4] sm:$0xf]
    %v396 = vld [vmem:[%s0 + $0x5a8] sm:$0xf]
    %v397 = vld [vmem:[%s0 + $0x5ac] sm:$0xf]
    %v398 = vld [vmem:[%s0 + $0x5b0] sm:$0xf]
    %v399 = vld [vmem:[%s0 + $0x5b4] sm:$0xf]
    %v400 = vld [vmem:[%s0 + $0x5b8] sm:$0xf]
    %v401 = vld [vmem:[%s0 + $0x5bc] sm:$0xf]
    %v402 = vld [vmem:[%s0 + $0x5c0] sm:$0xf]
    %v403 = vld [vmem:[%s0 + $0x5c4] sm:$0xf]
    %v404 = vld [vmem:[%s0 + $0x5c8] sm:$0xf]
    %v405 = vld [vmem:[%s0 + $0x5cc] sm:$0xf]
    %v406 = vld [vmem:[%s0 + $0x5d0] sm:$0xf]
    %v407 = vld [vmem:[%s0 + $0x5d4] sm:$0xf]
    %v408 = vld [vmem:[%s0 + $0x5d8] sm:$0xf]
    %v409 = vld [vmem:[%s0 + $0x5dc] sm:$0xf]
    %v410 = vld [vmem:[%s0 + $0x5e0] sm:$0xf]
    %v411 = vld [vmem:[%s0 + $0x5e4] sm:$0xf]
    %v412 = vld [vmem:[%s0 + $0x5e8] sm:$0xf]
    %v413 = vld [vmem:[%s0 + $0x5ec] sm:$0xf]
    %v414 = vld [vmem:[%s0 + $0x5f0] sm:$0xf]
    %v415 = vld [vmem:[%s0 + $0x5f4] sm:$0xf]
    %v416 = vld [vmem:[%s0 + $0x5f8] sm:$0xf]
    %v417 = vld [vmem:[%s0 + $0x5fc] sm:$0xf]
    %v418 = vld [vmem:[%s0 + $0x600] sm:$0xf]
    %v419 = vld [vmem:[%s0 + $0x604] sm:$0xf]
    %v420 = vld [vmem:[%s0 + $0x608] sm:$0xf]
    %v421 = vld [vmem:[%s0 + $0x60c] sm:$0xf]
    %v422 = vld [vmem:[%s0 + $0x610] sm:$0xf]
    %v423 = vld [vmem:[%s0 + $0x614] sm:$0xf]
    %v424 = vld [vmem:[%s0 + $0x618] sm:$0xf]
    %v425 = vld [vmem:[%s0 + $0x61c] sm:$0xf]
    %v426 = vld [vmem:[%s0 + $0x620] sm:$0xf]
    %v427 = vld [vmem:[%s0 + $0x624] sm:$0xf]
    %v428 = vld [vmem:[%s0 + $0x628] sm:$0xf]
    %v429 = vld [vmem:[%s0 + $0x62c] sm:$0xf]
    %v430 = vld [vmem:[%s0 + $0x630] sm:$0xf]
    %v431 = vld [vmem:[%s0 + $0x634] sm:$0xf]
    %v432 = vld [vmem:[%s0 + $0x638] sm:$0xf]
    %v433 = vld [vmem:[%s0 + $0x63c] sm:$0xf]
    %v434 = vld [vmem:[%s0 + $0x640] sm:$0xf]
    %v435 = vld [vmem:[%s0 + $0x644] sm:$0xf]
    %v436 = vld [vmem:[%s0 + $0x648] sm:$0xf]
    %v437 = vld [vmem:[%s0 + $0x64c] sm:$0xf]
    %v438 = vld [vmem:[%s0 + $0x650] sm:$0xf]
    %v439 = vld [vmem:[%s0 + $0x654] sm:$0xf]
    %v440 = vld [vmem:[%s0 + $0x658] sm:$0xf]
    %v441 = vld [vmem:[%s0 + $0x65c] sm:$0xf]
    %v442 = vld [vmem:[%s0 + $0x660] sm:$0xf]
    %v443 = vld [vmem:[%s0 + $0x664] sm:$0xf]
    %v444 = vld [vmem:[%s0 + $0x668] sm:$0xf]
    %v445 = vld [vmem:[%s0 + $0x66c] sm:$0xf]
    %v446 = vld [vmem:[%s0 + $0x670] sm:$0xf]
    %v447 = vld [vmem:[%s0 + $0x674] sm:$0xf]
    %v448 = vld [vmem:[%s0 + $0x678] sm:$0xf]
    %v449 = vld [vmem:[%s0 + $0x67c] sm:$0xf]
    %v450 = vld [vmem:[%s0 + $0x680] sm:$0xf]
    %v451 = vld [vmem:[%s0 + $0x684] sm:$0xf]
    %v452 = vld [vmem:[%s0 + $0x688] sm:$0xf]
    %v453 = vld [vmem:[%s0 + $0x68c] sm:$0xf]
    %v454 = vld [vmem:[%s0 + $0x690] sm:$0xf]
    %v455 = vld [vmem:[%s0 + $0x694] sm:$0xf]
    %v456 = vld [vmem:[%s0 + $0x698] sm:$0xf]
    %v457 = vld [vmem:[%s0 + $0x69c] sm:$0xf]
    %v458 = vld [vmem:[%s0 + $0x6a0] sm:$0xf]
    %v459 = vld [vmem:[%s0 + $0x6a4] sm:$0xf]
    %v460 = vld [vmem:[%s0 + $0x6a8] sm:$0xf]
    %v461 = vld [vmem:[%s0 + $0x6ac] sm:$0xf]
    %v462 = vld [vmem:[%s0 + $0x6b0] sm:$0xf]
    %v463 = vld [vmem:[%s0 + $0x6b4] sm:$0xf]
    %v464 = vld [vmem:[%s0 + $0x6b8] sm:$0xf]
    %v465 = vld [vmem:[%s0 + $0x6bc] sm:$0xf]
    %v466 = vld [vmem:[%s0 + $0x6c0] sm:$0xf]
    %v467 = vld [vmem:[%s0 + $0x6c4] sm:$0xf]
    %v468 = vld [vmem:[%s0 + $0x6c8] sm:$0xf]
    %v469 = vld [vmem:[%s0 + $0x6cc] sm:$0xf]
    %v470 = vld [vmem:[%s0 + $0x6d0] sm:$0xf]
    %v471 = vld [vmem:[%s0 + $0x6d4] sm:$0xf]
    %v472 = vld [vmem:[%s0 + $0x6d8] sm:$0xf]
    %v473 = vld [vmem:[%s0 + $0x6dc] sm:$0xf]
    %v474 = vld [vmem:[%s0 + $0x6e0] sm:$0xf]
    %v475 = vld [vmem:[%s0 + $0x6e4] sm:$0xf]
    %v476 = vld [vmem:[%s0 + $0x6e8] sm:$0xf]
    %v477 = vld [vmem:[%s0 + $0x6ec] sm:$0xf]
    %v478 = vld [vmem:[%s0 + $0x6f0] sm:$0xf]
    %v479 = vld [vmem:[%s0 + $0x6f4] sm:$0xf]
    %v480 = vld [vmem:[%s0 + $0x6f8] sm:$0xf]
    %v481 = vld [vmem:[%s0 + $0x6fc] sm:$0xf]
    %v482 = vld [vmem:[%s0 + $0x700] sm:$0xf]
    %v483 = vld [vmem:[%s0 + $0x704] sm:$0xf]
    %v484 = vld [vmem:[%s0 + $0x708] sm:$0xf]
    %v485 = vld [vmem:[%s0 + $0x70c] sm:$0xf]
    %v486 = vld [vmem:[%s0 + $0x710] sm:$0xf]
    %v487 = vld [vmem:[%s0 + $0x714] sm:$0xf]
    %v488 = vld [vmem:[%s0 + $0x718] sm:$0xf]
    %v489 = vld [vmem:[%s0 + $0x71c] sm:$0xf]
    %v490 = vld [vmem:[%s0 + $0x720] sm:$0xf]
    %v491 = vld [vmem:[%s0 + $0x724] sm:$0xf]
    %v492 = vld [vmem:[%s0 + $0x728] sm:$0xf]
    %v493 = vld [vmem:[%s0 + $0x72c] sm:$0xf]
    %v494 = vld [vmem:[%s0 + $0x730] sm:$0xf]
    %v495 = vld [vmem:[%s0 + $0x734] sm:$0xf]
    %v496 = vld [vmem:[%s0 + $0x738] sm:$0xf]
    %v497 = vld [vmem:[%s0 + $0x73c] sm:$0xf]
    %v498 = vld [vmem:[%s0 + $0x740] sm:$0xf]
    %v499 = vld [vmem:[%s0 + $0x744] sm:$0xf]
    %v500 = vld [vmem:[%s0 + $0x748] sm:$0xf]
    %v501 = vld [vmem:[%s0 + $0x74c] sm:$0xf]
    %v502 = vld [vmem:[%s0 + $0x750] sm:$0xf]
    %v503 = vld [vmem:[%s0 + $0x754] sm:$0xf]
    %v504 = vld [vmem:[%s0 + $0x758] sm:$0xf]
    %v505 = vld [vmem:[%s0 + $0x75c] sm:$0xf]
    %v506 = vld [vmem:[%s0 + $0x760] sm:$0xf]
    %v507 = vld [vmem:[%s0 + $0x764] sm:$0xf]
    %v508 = vld [vmem:[%s0 + $0x768] sm:$0xf]
    %v509 = vld [vmem:[%s0 + $0x76c] sm:$0xf]
    %v510 = vld [vmem:[%s0 + $0x770] sm:$0xf]
    %v511 = vld [vmem:[%s0 + $0x774] sm:$0xf]
    %v512 = vld [vmem:[%s0 + $0x778] sm:$0xf]
    %v513 = vld [vmem:[%s0 + $0x77c] sm:$0xf]
    %v514 = vld [vmem:[%s0 + $0x780] sm:$0xf]
    %v515 = vld [vmem:[%s0 + $0x784] sm:$0xf]
    %v516 = vld [vmem:[%s0 + $0x788] sm:$0xf]
    %v517 = vld [vmem:[%s0 + $0x78c] sm:$0xf]
    %v518 = vld [vmem:[%s0 + $0x790] sm:$0xf]
    %v519 = vld [vmem:[%s0 + $0x794] sm:$0xf]
    %v520 = vld [vmem:[%s0 + $0x798] sm:$0xf]
    %v521 = vld [vmem:[%s0 + $0x79c] sm:$0xf]
    %v522 = vld [vmem:[%s0 + $0x7a0] sm:$0xf]
    %v523 = vld [vmem:[%s0 + $0x7a4] sm:$0xf]
    %v524 = vld [vmem:[%s0 + $0x7a8] sm:$0xf]
    %v525 = vld [vmem:[%s0 + $0x7ac] sm:$0xf]
    %v526 = vld [vmem:[%s0 + $0x7b0] sm:$0xf]
    %v527 = vld [vmem:[%s0 + $0x7b4] sm:$0xf]
    %v528 = vld [vmem:[%s0 + $0x7b8] sm:$0xf]
    %v529 = vld [vmem:[%s0 + $0x7bc] sm:$0xf]
    %v530 = vld [vmem:[%s0 + $0x7c0] sm:$0xf]
    %v531 = vld [vmem:[%s0 + $0x7c4] sm:$0xf]
    %v532 = vld [vmem:[%s0 + $0x7c8] sm:$0xf]
    %v533 = vld [vmem:[%s0 + $0x7cc] sm:$0xf]
    %v534 = vld [vmem:[%s0 + $0x7d0] sm:$0xf]
    %v535 = vld [vmem:[%s0 + $0x7d4] sm:$0xf]
    %v536 = vld [vmem:[%s0 + $0x7d8] sm:$0xf]
    %v537 = vld [vmem:[%s0 + $0x7dc] sm:$0xf]
    %v538 = vld [vmem:[%s0 + $0x7e0] sm:$0xf]
    %v539 = vld [vmem:[%s0 + $0x7e4] sm:$0xf]
    %v540 = vld [vmem:[%s0 + $0x7e8] sm:$0xf]
    %v541 = vld [vmem:[%s0 + $0x7ec] sm:$0xf]
    %v542 = vld [vmem:[%s0 + $0x7f0] sm:$0xf]
    %v543 = vld [vmem:[%s0 + $0x7f4] sm:$0xf]
    %v544 = vld [vmem:[%s0 + $0x7f8] sm:$0xf]
    %v545 = vld [vmem:[%s0 + $0x7fc] sm:$0xf]
    %v546 = vld [vmem:[%s0 + $0x800] sm:$0xf]
    %v547 = vld [vmem:[%s0 + $0x804] sm:$0xf]
    %v548 = vld [vmem:[%s0 + $0x808] sm:$0xf]
    %v549 = vld [vmem:[%s0 + $0x80c] sm:$0xf]
    %v550 = vld [vmem:[%s0 + $0x810] sm:$0xf]
    %v551 = vld [vmem:[%s0 + $0x814] sm:$0xf]
    %v552 = vld [vmem:[%s0 + $0x818] sm:$0xf]
    %v553 = vld [vmem:[%s0 + $0x81c] sm:$0xf]
    %v554 = vld [vmem:[%s0 + $0x820] sm:$0xf]
    %v555 = vld [vmem:[%s0 + $0x824] sm:$0xf]
    %v556 = vld [vmem:[%s0 + $0x828] sm:$0xf]
    %v557 = vld [vmem:[%s0 + $0x82c] sm:$0xf]
    %v558 = vld [vmem:[%s0 + $0x830] sm:$0xf]
    %v559 = vld [vmem:[%s0 + $0x834] sm:$0xf]
    %v560 = vld [vmem:[%s0 + $0x838] sm:$0xf]
    %v561 = vld [vmem:[%s0 + $0x83c] sm:$0xf]
    %v562 = vld [vmem:[%s0 + $0x840] sm:$0xf]
    %v563 = vld [vmem:[%s0 + $0x844] sm:$0xf]
    %v564 = vld [vmem:[%s0 + $0x848] sm:$0xf]
    %v565 = vld [vmem:[%s0 + $0x84c] sm:$0xf]
    %v566 = vld [vmem:[%s0 + $0x850] sm:$0xf]
    %v567 = vld [vmem:[%s0 + $0x854] sm:$0xf]
    %v568 = vld [vmem:[%s0 + $0x858] sm:$0xf]
    %v569 = vld [vmem:[%s0 + $0x85c] sm:$0xf]
    %v570 = vld [vmem:[%s0 + $0x860] sm:$0xf]
    %v571 = vld [vmem:[%s0 + $0x864] sm:$0xf]
    %v572 = vld [vmem:[%s0 + $0x868] sm:$0xf]
    %v573 = vld [vmem:[%s0 + $0x86c] sm:$0xf]
    %v574 = vld [vmem:[%s0 + $0x870] sm:$0xf]
    %v575 = vld [vmem:[%s0 + $0x874] sm:$0xf]
    %v576 = vld [vmem:[%s0 + $0x878] sm:$0xf]
    %v577 = vld [vmem:[%s0 + $0x87c] sm:$0xf]
    %v578 = vld [vmem:[%s0 + $0x880] sm:$0xf]
    %v579 = vld [vmem:[%s0 + $0x884] sm:$0xf]
    %v580 = vld [vmem:[%s0 + $0x888] sm:$0xf]
    %v581 = vld [vmem:[%s0 + $0x88c] sm:$0xf]
    %v582 = vld [vmem:[%s0 + $0x890] sm:$0xf]
    %v583 = vld [vmem:[%s0 + $0x894] sm:$0xf]
    %v584 = vld [vmem:[%s0 + $0x898] sm:$0xf]
    %v585 = vld [vmem:[%s0 + $0x89c] sm:$0xf]
    %v586 = vld [vmem:[%s0 + $0x8a0] sm:$0xf]
    %v587 = vld [vmem:[%s0 + $0x8a4] sm:$0xf]
    %v588 = vld [vmem:[%s0 + $0x8a8] sm:$0xf]
    %v589 = vld [vmem:[%s0 + $0x8ac] sm:$0xf]
    %v590 = vld [vmem:[%s0 + $0x8b0] sm:$0xf]
    %v591 = vld [vmem:[%s0 + $0x8b4] sm:$0xf]
    %v592 = vld [vmem:[%s0 + $0x8b8] sm:$0xf]
    %v593 = vld [vmem:[%s0 + $0x8bc] sm:$0xf]
    %v594 = vld [vmem:[%s0 + $0x8c0] sm:$0xf]
    %v595 = vld [vmem:[%s0 + $0x8c4] sm:$0xf]
    %v596 = vld [vmem:[%s0 + $0x8c8] sm:$0xf]
    %v597 = vld [vmem:[%s0 + $0x8cc] sm:$0xf]
    %v598 = vld [vmem:[%s0 + $0x8d0] sm:$0xf]
    %v599 = vld [vmem:[%s0 + $0x8d4] sm:$0xf]
    %v600 = vld [vmem:[%s0 + $0x8d8] sm:$0xf]
    %v601 = vld [vmem:[%s0 + $0x8dc] sm:$0xf]
    %v602 = vld [vmem:[%s0 + $0x8e0] sm:$0xf]
    %v603 = vld [vmem:[%s0 + $0x8e4] sm:$0xf]
    %v604 = vld [vmem:[%s0 + $0x8e8] sm:$0xf]
    %v605 = vld [vmem:[%s0 + $0x8ec] sm:$0xf]
    %v606 = vld [vmem:[%s0 + $0x8f0] sm:$0xf]
    %v607 = vld [vmem:[%s0 + $0x8f4] sm:$0xf]
    %v608 = vld [vmem:[%s0 + $0x8f8] sm:$0xf]
    %v609 = vld [vmem:[%s0 + $0x8fc] sm:$0xf]
    %v610 = vld [vmem:[%s1] sm:$0xf]
    %v611 = vld [vmem:[%s1 + $0x4] sm:$0xf]
    %v612 = vld [vmem:[%s1 + $0x8] sm:$0xf]
    %v613 = vld [vmem:[%s1 + $0xc] sm:$0x1]
    %v1190 = vunpack.c.l.b16 %v34
    %v1191 = vunpack.c.l.b16 %v35
    %v1192 = vunpack.c.l.b16 %v36
    %v1193 = vunpack.c.l.b16 %v37
    %v1194 = vunpack.c.l.b16 %v38
    %v1195 = vunpack.c.l.b16 %v39
    %v1196 = vunpack.c.l.b16 %v40
    %v1197 = vunpack.c.l.b16 %v41
    %v1198 = vunpack.c.l.b16 %v42
    %v1199 = vunpack.c.l.b16 %v43
    %v1200 = vunpack.c.l.b16 %v44
    %v1201 = vunpack.c.l.b16 %v45
    %v1202 = vunpack.c.l.b16 %v46
    %v1203 = vunpack.c.l.b16 %v47
    %v1204 = vunpack.c.l.b16 %v48
    %v1205 = vunpack.c.l.b16 %v49
    %v1206 = vunpack.c.l.b16 %v50
    %v1207 = vunpack.c.l.b16 %v51
    %v1208 = vunpack.c.l.b16 %v52
    %v1209 = vunpack.c.l.b16 %v53
    %v1210 = vunpack.c.l.b16 %v54
    %v1211 = vunpack.c.l.b16 %v55
    %v1212 = vunpack.c.l.b16 %v56
    %v1213 = vunpack.c.l.b16 %v57
    %v1214 = vunpack.c.l.b16 %v58
    %v1215 = vunpack.c.l.b16 %v59
    %v1216 = vunpack.c.l.b16 %v60
    %v1217 = vunpack.c.l.b16 %v61
    %v1218 = vunpack.c.l.b16 %v62
    %v1219 = vunpack.c.l.b16 %v63
    %v1220 = vunpack.c.l.b16 %v64
    %v1221 = vunpack.c.l.b16 %v65
    %v1222 = vunpack.c.l.b16 %v66
    %v1223 = vunpack.c.l.b16 %v67
    %v1224 = vunpack.c.l.b16 %v68
    %v1225 = vunpack.c.l.b16 %v69
    %v1226 = vunpack.c.l.b16 %v70
    %v1227 = vunpack.c.l.b16 %v71
    %v1228 = vunpack.c.l.b16 %v72
    %v1229 = vunpack.c.l.b16 %v73
    %v1230 = vunpack.c.l.b16 %v74
    %v1231 = vunpack.c.l.b16 %v75
    %v1232 = vunpack.c.l.b16 %v76
    %v1233 = vunpack.c.l.b16 %v77
    %v1234 = vunpack.c.l.b16 %v78
    %v1235 = vunpack.c.l.b16 %v79
    %v1236 = vunpack.c.l.b16 %v80
    %v1237 = vunpack.c.l.b16 %v81
    %v1238 = vunpack.c.l.b16 %v82
    %v1239 = vunpack.c.l.b16 %v83
    %v1240 = vunpack.c.l.b16 %v84
    %v1241 = vunpack.c.l.b16 %v85
    %v1242 = vunpack.c.l.b16 %v86
    %v1243 = vunpack.c.l.b16 %v87
    %v1244 = vunpack.c.l.b16 %v88
    %v1245 = vunpack.c.l.b16 %v89
    %v1246 = vunpack.c.l.b16 %v90
    %v1247 = vunpack.c.l.b16 %v91
    %v1248 = vunpack.c.l.b16 %v92
    %v1249 = vunpack.c.l.b16 %v93
    %v1250 = vunpack.c.l.b16 %v94
    %v1251 = vunpack.c.l.b16 %v95
    %v1252 = vunpack.c.l.b16 %v96
    %v1253 = vunpack.c.l.b16 %v97
    %v1254 = vunpack.c.l.b16 %v98
    %v1255 = vunpack.c.l.b16 %v99
    %v1256 = vunpack.c.l.b16 %v100
    %v1257 = vunpack.c.l.b16 %v101
    %v1258 = vunpack.c.l.b16 %v102
    %v1259 = vunpack.c.l.b16 %v103
    %v1260 = vunpack.c.l.b16 %v104
    %v1261 = vunpack.c.l.b16 %v105
    %v1262 = vunpack.c.l.b16 %v106
    %v1263 = vunpack.c.l.b16 %v107
    %v1264 = vunpack.c.l.b16 %v108
    %v1265 = vunpack.c.l.b16 %v109
    %v1266 = vunpack.c.l.b16 %v110
    %v1267 = vunpack.c.l.b16 %v111
    %v1268 = vunpack.c.l.b16 %v112
    %v1269 = vunpack.c.l.b16 %v113
    %v1270 = vunpack.c.l.b16 %v114
    %v1271 = vunpack.c.l.b16 %v115
    %v1272 = vunpack.c.l.b16 %v116
    %v1273 = vunpack.c.l.b16 %v117
    %v1274 = vunpack.c.l.b16 %v118
    %v1275 = vunpack.c.l.b16 %v119
    %v1276 = vunpack.c.l.b16 %v120
    %v1277 = vunpack.c.l.b16 %v121
    %v1278 = vunpack.c.l.b16 %v122
    %v1279 = vunpack.c.l.b16 %v123
    %v1280 = vunpack.c.l.b16 %v124
    %v1281 = vunpack.c.l.b16 %v125
    %v1282 = vunpack.c.l.b16 %v126
    %v1283 = vunpack.c.l.b16 %v127
    %v1284 = vunpack.c.l.b16 %v128
    %v1285 = vunpack.c.l.b16 %v129
    %v1286 = vunpack.c.l.b16 %v130
    %v1287 = vunpack.c.l.b16 %v131
    %v1288 = vunpack.c.l.b16 %v132
    %v1289 = vunpack.c.l.b16 %v133
    %v1290 = vunpack.c.l.b16 %v134
    %v1291 = vunpack.c.l.b16 %v135
    %v1292 = vunpack.c.l.b16 %v136
    %v1293 = vunpack.c.l.b16 %v137
    %v1294 = vunpack.c.l.b16 %v138
    %v1295 = vunpack.c.l.b16 %v139
    %v1296 = vunpack.c.l.b16 %v140
    %v1297 = vunpack.c.l.b16 %v141
    %v1298 = vunpack.c.l.b16 %v142
    %v1299 = vunpack.c.l.b16 %v143
    %v1300 = vunpack.c.l.b16 %v144
    %v1301 = vunpack.c.l.b16 %v145
    %v1302 = vunpack.c.l.b16 %v146
    %v1303 = vunpack.c.l.b16 %v147
    %v1304 = vunpack.c.l.b16 %v148
    %v1305 = vunpack.c.l.b16 %v149
    %v1306 = vunpack.c.l.b16 %v150
    %v1307 = vunpack.c.l.b16 %v151
    %v1308 = vunpack.c.l.b16 %v152
    %v1309 = vunpack.c.l.b16 %v153
    %v1310 = vunpack.c.l.b16 %v154
    %v1311 = vunpack.c.l.b16 %v155
    %v1312 = vunpack.c.l.b16 %v156
    %v1313 = vunpack.c.l.b16 %v157
    %v1314 = vunpack.c.l.b16 %v158
    %v1315 = vunpack.c.l.b16 %v159
    %v1316 = vunpack.c.l.b16 %v160
    %v1317 = vunpack.c.l.b16 %v161
    %v1318 = vunpack.c.l.b16 %v162
    %v1319 = vunpack.c.l.b16 %v163
    %v1320 = vunpack.c.l.b16 %v164
    %v1321 = vunpack.c.l.b16 %v165
    %v1322 = vunpack.c.l.b16 %v166
    %v1323 = vunpack.c.l.b16 %v167
    %v1324 = vunpack.c.l.b16 %v168
    %v1325 = vunpack.c.l.b16 %v169
    %v1326 = vunpack.c.l.b16 %v170
    %v1327 = vunpack.c.l.b16 %v171
    %v1328 = vunpack.c.l.b16 %v172
    %v1329 = vunpack.c.l.b16 %v173
    %v1330 = vunpack.c.l.b16 %v174
    %v1331 = vunpack.c.l.b16 %v175
    %v1332 = vunpack.c.l.b16 %v176
    %v1333 = vunpack.c.l.b16 %v177
    %v1334 = vunpack.c.l.b16 %v178
    %v1335 = vunpack.c.l.b16 %v179
    %v1336 = vunpack.c.l.b16 %v180
    %v1337 = vunpack.c.l.b16 %v181
    %v1338 = vunpack.c.l.b16 %v182
    %v1339 = vunpack.c.l.b16 %v183
    %v1340 = vunpack.c.l.b16 %v184
    %v1341 = vunpack.c.l.b16 %v185
    %v1342 = vunpack.c.l.b16 %v186
    %v1343 = vunpack.c.l.b16 %v187
    %v1344 = vunpack.c.l.b16 %v188
    %v1345 = vunpack.c.l.b16 %v189
    %v1346 = vunpack.c.l.b16 %v190
    %v1347 = vunpack.c.l.b16 %v191
    %v1348 = vunpack.c.l.b16 %v192
    %v1349 = vunpack.c.l.b16 %v193
    %v1350 = vunpack.c.l.b16 %v194
    %v1351 = vunpack.c.l.b16 %v195
    %v1352 = vunpack.c.l.b16 %v196
    %v1353 = vunpack.c.l.b16 %v197
    %v1354 = vunpack.c.l.b16 %v198
    %v1355 = vunpack.c.l.b16 %v199
    %v1356 = vunpack.c.l.b16 %v200
    %v1357 = vunpack.c.l.b16 %v201
    %v1358 = vunpack.c.l.b16 %v202
    %v1359 = vunpack.c.l.b16 %v203
    %v1360 = vunpack.c.l.b16 %v204
    %v1361 = vunpack.c.l.b16 %v205
    %v1362 = vunpack.c.l.b16 %v206
    %v1363 = vunpack.c.l.b16 %v207
    %v1364 = vunpack.c.l.b16 %v208
    %v1365 = vunpack.c.l.b16 %v209
    %v1366 = vunpack.c.l.b16 %v210
    %v1367 = vunpack.c.l.b16 %v211
    %v1368 = vunpack.c.l.b16 %v212
    %v1369 = vunpack.c.l.b16 %v213
    %v1370 = vunpack.c.l.b16 %v214
    %v1371 = vunpack.c.l.b16 %v215
    %v1372 = vunpack.c.l.b16 %v216
    %v1373 = vunpack.c.l.b16 %v217
    %v1374 = vunpack.c.l.b16 %v218
    %v1375 = vunpack.c.l.b16 %v219
    %v1376 = vunpack.c.l.b16 %v220
    %v1377 = vunpack.c.l.b16 %v221
    %v1378 = vunpack.c.l.b16 %v222
    %v1379 = vunpack.c.l.b16 %v223
    %v1380 = vunpack.c.l.b16 %v224
    %v1381 = vunpack.c.l.b16 %v225
    %v1382 = vunpack.c.l.b16 %v226
    %v1383 = vunpack.c.l.b16 %v227
    %v1384 = vunpack.c.l.b16 %v228
    %v1385 = vunpack.c.l.b16 %v229
    %v1386 = vunpack.c.l.b16 %v230
    %v1387 = vunpack.c.l.b16 %v231
    %v1388 = vunpack.c.l.b16 %v232
    %v1389 = vunpack.c.l.b16 %v233
    %v1390 = vunpack.c.l.b16 %v234
    %v1391 = vunpack.c.l.b16 %v235
    %v1392 = vunpack.c.l.b16 %v236
    %v1393 = vunpack.c.l.b16 %v237
    %v1394 = vunpack.c.l.b16 %v238
    %v1395 = vunpack.c.l.b16 %v239
    %v1396 = vunpack.c.l.b16 %v240
    %v1397 = vunpack.c.l.b16 %v241
    %v1398 = vunpack.c.l.b16 %v242
    %v1399 = vunpack.c.l.b16 %v243
    %v1400 = vunpack.c.l.b16 %v244
    %v1401 = vunpack.c.l.b16 %v245
    %v1402 = vunpack.c.l.b16 %v246
    %v1403 = vunpack.c.l.b16 %v247
    %v1404 = vunpack.c.l.b16 %v248
    %v1405 = vunpack.c.l.b16 %v249
    %v1406 = vunpack.c.l.b16 %v250
    %v1407 = vunpack.c.l.b16 %v251
    %v1408 = vunpack.c.l.b16 %v252
    %v1409 = vunpack.c.l.b16 %v253
    %v1410 = vunpack.c.l.b16 %v254
    %v1411 = vunpack.c.l.b16 %v255
    %v1412 = vunpack.c.l.b16 %v256
    %v1413 = vunpack.c.l.b16 %v257
    %v1414 = vunpack.c.l.b16 %v258
    %v1415 = vunpack.c.l.b16 %v259
    %v1416 = vunpack.c.l.b16 %v260
    %v1417 = vunpack.c.l.b16 %v261
    %v1418 = vunpack.c.l.b16 %v262
    %v1419 = vunpack.c.l.b16 %v263
    %v1420 = vunpack.c.l.b16 %v264
    %v1421 = vunpack.c.l.b16 %v265
    %v1422 = vunpack.c.l.b16 %v266
    %v1423 = vunpack.c.l.b16 %v267
    %v1424 = vunpack.c.l.b16 %v268
    %v1425 = vunpack.c.l.b16 %v269
    %v1426 = vunpack.c.l.b16 %v270
    %v1427 = vunpack.c.l.b16 %v271
    %v1428 = vunpack.c.l.b16 %v272
    %v1429 = vunpack.c.l.b16 %v273
    %v1430 = vunpack.c.l.b16 %v274
    %v1431 = vunpack.c.l.b16 %v275
    %v1432 = vunpack.c.l.b16 %v276
    %v1433 = vunpack.c.l.b16 %v277
    %v1434 = vunpack.c.l.b16 %v278
    %v1435 = vunpack.c.l.b16 %v279
    %v1436 = vunpack.c.l.b16 %v280
    %v1437 = vunpack.c.l.b16 %v281
    %v1438 = vunpack.c.l.b16 %v282
    %v1439 = vunpack.c.l.b16 %v283
    %v1440 = vunpack.c.l.b16 %v284
    %v1441 = vunpack.c.l.b16 %v285
    %v1442 = vunpack.c.l.b16 %v286
    %v1443 = vunpack.c.l.b16 %v287
    %v1444 = vunpack.c.l.b16 %v288
    %v1445 = vunpack.c.l.b16 %v289
    %v1446 = vunpack.c.l.b16 %v290
    %v1447 = vunpack.c.l.b16 %v291
    %v1448 = vunpack.c.l.b16 %v292
    %v1449 = vunpack.c.l.b16 %v293
    %v1450 = vunpack.c.l.b16 %v294
    %v1451 = vunpack.c.l.b16 %v295
    %v1452 = vunpack.c.l.b16 %v296
    %v1453 = vunpack.c.l.b16 %v297
    %v1454 = vunpack.c.l.b16 %v298
    %v1455 = vunpack.c.l.b16 %v299
    %v1456 = vunpack.c.l.b16 %v300
    %v1457 = vunpack.c.l.b16 %v301
    %v1458 = vunpack.c.l.b16 %v302
    %v1459 = vunpack.c.l.b16 %v303
    %v1460 = vunpack.c.l.b16 %v304
    %v1461 = vunpack.c.l.b16 %v305
    %v1462 = vunpack.c.l.b16 %v306
    %v1463 = vunpack.c.l.b16 %v307
    %v1464 = vunpack.c.l.b16 %v308
    %v1465 = vunpack.c.l.b16 %v309
    %v1466 = vunpack.c.l.b16 %v310
    %v1467 = vunpack.c.l.b16 %v311
    %v1468 = vunpack.c.l.b16 %v312
    %v1469 = vunpack.c.l.b16 %v313
    %v1470 = vunpack.c.l.b16 %v314
    %v1471 = vunpack.c.l.b16 %v315
    %v1472 = vunpack.c.l.b16 %v316
    %v1473 = vunpack.c.l.b16 %v317
    %v1474 = vunpack.c.l.b16 %v318
    %v1475 = vunpack.c.l.b16 %v319
    %v1476 = vunpack.c.l.b16 %v320
    %v1477 = vunpack.c.l.b16 %v321
    %v1478 = vunpack.c.l.b16 %v322
    %v1479 = vunpack.c.l.b16 %v323
    %v1480 = vunpack.c.l.b16 %v324
    %v1481 = vunpack.c.l.b16 %v325
    %v1482 = vunpack.c.l.b16 %v326
    %v1483 = vunpack.c.l.b16 %v327
    %v1484 = vunpack.c.l.b16 %v328
    %v1485 = vunpack.c.l.b16 %v329
    %v1486 = vunpack.c.l.b16 %v330
    %v1487 = vunpack.c.l.b16 %v331
    %v1488 = vunpack.c.l.b16 %v332
    %v1489 = vunpack.c.l.b16 %v333
    %v1490 = vunpack.c.l.b16 %v334
    %v1491 = vunpack.c.l.b16 %v335
    %v1492 = vunpack.c.l.b16 %v336
    %v1493 = vunpack.c.l.b16 %v337
    %v1494 = vunpack.c.l.b16 %v338
    %v1495 = vunpack.c.l.b16 %v339
    %v1496 = vunpack.c.l.b16 %v340
    %v1497 = vunpack.c.l.b16 %v341
    %v1498 = vunpack.c.l.b16 %v342
    %v1499 = vunpack.c.l.b16 %v343
    %v1500 = vunpack.c.l.b16 %v344
    %v1501 = vunpack.c.l.b16 %v345
    %v1502 = vunpack.c.l.b16 %v346
    %v1503 = vunpack.c.l.b16 %v347
    %v1504 = vunpack.c.l.b16 %v348
    %v1505 = vunpack.c.l.b16 %v349
    %v1506 = vunpack.c.l.b16 %v350
    %v1507 = vunpack.c.l.b16 %v351
    %v1508 = vunpack.c.l.b16 %v352
    %v1509 = vunpack.c.l.b16 %v353
    %v1510 = vunpack.c.l.b16 %v354
    %v1511 = vunpack.c.l.b16 %v355
    %v1512 = vunpack.c.l.b16 %v356
    %v1513 = vunpack.c.l.b16 %v357
    %v1514 = vunpack.c.l.b16 %v358
    %v1515 = vunpack.c.l.b16 %v359
    %v1516 = vunpack.c.l.b16 %v360
    %v1517 = vunpack.c.l.b16 %v361
    %v1518 = vunpack.c.l.b16 %v362
    %v1519 = vunpack.c.l.b16 %v363
    %v1520 = vunpack.c.l.b16 %v364
    %v1521 = vunpack.c.l.b16 %v365
    %v1522 = vunpack.c.l.b16 %v366
    %v1523 = vunpack.c.l.b16 %v367
    %v1524 = vunpack.c.l.b16 %v368
    %v1525 = vunpack.c.l.b16 %v369
    %v1526 = vunpack.c.l.b16 %v370
    %v1527 = vunpack.c.l.b16 %v371
    %v1528 = vunpack.c.l.b16 %v372
    %v1529 = vunpack.c.l.b16 %v373
    %v1530 = vunpack.c.l.b16 %v374
    %v1531 = vunpack.c.l.b16 %v375
    %v1532 = vunpack.c.l.b16 %v376
    %v1533 = vunpack.c.l.b16 %v377
    %v1534 = vunpack.c.l.b16 %v378
    %v1535 = vunpack.c.l.b16 %v379
    %v1536 = vunpack.c.l.b16 %v380
    %v1537 = vunpack.c.l.b16 %v381
    %v1538 = vunpack.c.l.b16 %v382
    %v1539 = vunpack.c.l.b16 %v383
    %v1540 = vunpack.c.l.b16 %v384
    %v1541 = vunpack.c.l.b16 %v385
    %v1542 = vunpack.c.l.b16 %v386
    %v1543 = vunpack.c.l.b16 %v387
    %v1544 = vunpack.c.l.b16 %v388
    %v1545 = vunpack.c.l.b16 %v389
    %v1546 = vunpack.c.l.b16 %v390
    %v1547 = vunpack.c.l.b16 %v391
    %v1548 = vunpack.c.l.b16 %v392
    %v1549 = vunpack.c.l.b16 %v393
    %v1550 = vunpack.c.l.b16 %v394
    %v1551 = vunpack.c.l.b16 %v395
    %v1552 = vunpack.c.l.b16 %v396
    %v1553 = vunpack.c.l.b16 %v397
    %v1554 = vunpack.c.l.b16 %v398
    %v1555 = vunpack.c.l.b16 %v399
    %v1556 = vunpack.c.l.b16 %v400
    %v1557 = vunpack.c.l.b16 %v401
    %v1558 = vunpack.c.l.b16 %v402
    %v1559 = vunpack.c.l.b16 %v403
    %v1560 = vunpack.c.l.b16 %v404
    %v1561 = vunpack.c.l.b16 %v405
    %v1562 = vunpack.c.l.b16 %v406
    %v1563 = vunpack.c.l.b16 %v407
    %v1564 = vunpack.c.l.b16 %v408
    %v1565 = vunpack.c.l.b16 %v409
    %v1566 = vunpack.c.l.b16 %v410
    %v1567 = vunpack.c.l.b16 %v411
    %v1568 = vunpack.c.l.b16 %v412
    %v1569 = vunpack.c.l.b16 %v413
    %v1570 = vunpack.c.l.b16 %v414
    %v1571 = vunpack.c.l.b16 %v415
    %v1572 = vunpack.c.l.b16 %v416
    %v1573 = vunpack.c.l.b16 %v417
    %v1574 = vunpack.c.l.b16 %v418
    %v1575 = vunpack.c.l.b16 %v419
    %v1576 = vunpack.c.l.b16 %v420
    %v1577 = vunpack.c.l.b16 %v421
    %v1578 = vunpack.c.l.b16 %v422
    %v1579 = vunpack.c.l.b16 %v423
    %v1580 = vunpack.c.l.b16 %v424
    %v1581 = vunpack.c.l.b16 %v425
    %v1582 = vunpack.c.l.b16 %v426
    %v1583 = vunpack.c.l.b16 %v427
    %v1584 = vunpack.c.l.b16 %v428
    %v1585 = vunpack.c.l.b16 %v429
    %v1586 = vunpack.c.l.b16 %v430
    %v1587 = vunpack.c.l.b16 %v431
    %v1588 = vunpack.c.l.b16 %v432
    %v1589 = vunpack.c.l.b16 %v433
    %v1590 = vunpack.c.l.b16 %v434
    %v1591 = vunpack.c.l.b16 %v435
    %v1592 = vunpack.c.l.b16 %v436
    %v1593 = vunpack.c.l.b16 %v437
    %v1594 = vunpack.c.l.b16 %v438
    %v1595 = vunpack.c.l.b16 %v439
    %v1596 = vunpack.c.l.b16 %v440
    %v1597 = vunpack.c.l.b16 %v441
    %v1598 = vunpack.c.l.b16 %v442
    %v1599 = vunpack.c.l.b16 %v443
    %v1600 = vunpack.c.l.b16 %v444
    %v1601 = vunpack.c.l.b16 %v445
    %v1602 = vunpack.c.l.b16 %v446
    %v1603 = vunpack.c.l.b16 %v447
    %v1604 = vunpack.c.l.b16 %v448
    %v1605 = vunpack.c.l.b16 %v449
    %v1606 = vunpack.c.l.b16 %v450
    %v1607 = vunpack.c.l.b16 %v451
    %v1608 = vunpack.c.l.b16 %v452
    %v1609 = vunpack.c.l.b16 %v453
    %v1610 = vunpack.c.l.b16 %v454
    %v1611 = vunpack.c.l.b16 %v455
    %v1612 = vunpack.c.l.b16 %v456
    %v1613 = vunpack.c.l.b16 %v457
    %v1614 = vunpack.c.l.b16 %v458
    %v1615 = vunpack.c.l.b16 %v459
    %v1616 = vunpack.c.l.b16 %v460
    %v1617 = vunpack.c.l.b16 %v461
    %v1618 = vunpack.c.l.b16 %v462
    %v1619 = vunpack.c.l.b16 %v463
    %v1620 = vunpack.c.l.b16 %v464
    %v1621 = vunpack.c.l.b16 %v465
    %v1622 = vunpack.c.l.b16 %v466
    %v1623 = vunpack.c.l.b16 %v467
    %v1624 = vunpack.c.l.b16 %v468
    %v1625 = vunpack.c.l.b16 %v469
    %v1626 = vunpack.c.l.b16 %v470
    %v1627 = vunpack.c.l.b16 %v471
    %v1628 = vunpack.c.l.b16 %v472
    %v1629 = vunpack.c.l.b16 %v473
    %v1630 = vunpack.c.l.b16 %v474
    %v1631 = vunpack.c.l.b16 %v475
    %v1632 = vunpack.c.l.b16 %v476
    %v1633 = vunpack.c.l.b16 %v477
    %v1634 = vunpack.c.l.b16 %v478
    %v1635 = vunpack.c.l.b16 %v479
    %v1636 = vunpack.c.l.b16 %v480
    %v1637 = vunpack.c.l.b16 %v481
    %v1638 = vunpack.c.l.b16 %v482
    %v1639 = vunpack.c.l.b16 %v483
    %v1640 = vunpack.c.l.b16 %v484
    %v1641 = vunpack.c.l.b16 %v485
    %v1642 = vunpack.c.l.b16 %v486
    %v1643 = vunpack.c.l.b16 %v487
    %v1644 = vunpack.c.l.b16 %v488
    %v1645 = vunpack.c.l.b16 %v489
    %v1646 = vunpack.c.l.b16 %v490
    %v1647 = vunpack.c.l.b16 %v491
    %v1648 = vunpack.c.l.b16 %v492
    %v1649 = vunpack.c.l.b16 %v493
    %v1650 = vunpack.c.l.b16 %v494
    %v1651 = vunpack.c.l.b16 %v495
    %v1652 = vunpack.c.l.b16 %v496
    %v1653 = vunpack.c.l.b16 %v497
    %v1654 = vunpack.c.l.b16 %v498
    %v1655 = vunpack.c.l.b16 %v499
    %v1656 = vunpack.c.l.b16 %v500
    %v1657 = vunpack.c.l.b16 %v501
    %v1658 = vunpack.c.l.b16 %v502
    %v1659 = vunpack.c.l.b16 %v503
    %v1660 = vunpack.c.l.b16 %v504
    %v1661 = vunpack.c.l.b16 %v505
    %v1662 = vunpack.c.l.b16 %v506
    %v1663 = vunpack.c.l.b16 %v507
    %v1664 = vunpack.c.l.b16 %v508
    %v1665 = vunpack.c.l.b16 %v509
    %v1666 = vunpack.c.l.b16 %v510
    %v1667 = vunpack.c.l.b16 %v511
    %v1668 = vunpack.c.l.b16 %v512
    %v1669 = vunpack.c.l.b16 %v513
    %v1670 = vunpack.c.l.b16 %v514
    %v1671 = vunpack.c.l.b16 %v515
    %v1672 = vunpack.c.l.b16 %v516
    %v1673 = vunpack.c.l.b16 %v517
    %v1674 = vunpack.c.l.b16 %v518
    %v1675 = vunpack.c.l.b16 %v519
    %v1676 = vunpack.c.l.b16 %v520
    %v1677 = vunpack.c.l.b16 %v521
    %v1678 = vunpack.c.l.b16 %v522
    %v1679 = vunpack.c.l.b16 %v523
    %v1680 = vunpack.c.l.b16 %v524
    %v1681 = vunpack.c.l.b16 %v525
    %v1682 = vunpack.c.l.b16 %v526
    %v1683 = vunpack.c.l.b16 %v527
    %v1684 = vunpack.c.l.b16 %v528
    %v1685 = vunpack.c.l.b16 %v529
    %v1686 = vunpack.c.l.b16 %v530
    %v1687 = vunpack.c.l.b16 %v531
    %v1688 = vunpack.c.l.b16 %v532
    %v1689 = vunpack.c.l.b16 %v533
    %v1690 = vunpack.c.l.b16 %v534
    %v1691 = vunpack.c.l.b16 %v535
    %v1692 = vunpack.c.l.b16 %v536
    %v1693 = vunpack.c.l.b16 %v537
    %v1694 = vunpack.c.l.b16 %v538
    %v1695 = vunpack.c.l.b16 %v539
    %v1696 = vunpack.c.l.b16 %v540
    %v1697 = vunpack.c.l.b16 %v541
    %v1698 = vunpack.c.l.b16 %v542
    %v1699 = vunpack.c.l.b16 %v543
    %v1700 = vunpack.c.l.b16 %v544
    %v1701 = vunpack.c.l.b16 %v545
    %v1702 = vunpack.c.l.b16 %v546
    %v1703 = vunpack.c.l.b16 %v547
    %v1704 = vunpack.c.l.b16 %v548
    %v1705 = vunpack.c.l.b16 %v549
    %v1706 = vunpack.c.l.b16 %v550
    %v1707 = vunpack.c.l.b16 %v551
    %v1708 = vunpack.c.l.b16 %v552
    %v1709 = vunpack.c.l.b16 %v553
    %v1710 = vunpack.c.l.b16 %v554
    %v1711 = vunpack.c.l.b16 %v555
    %v1712 = vunpack.c.l.b16 %v556
    %v1713 = vunpack.c.l.b16 %v557
    %v1714 = vunpack.c.l.b16 %v558
    %v1715 = vunpack.c.l.b16 %v559
    %v1716 = vunpack.c.l.b16 %v560
    %v1717 = vunpack.c.l.b16 %v561
    %v1718 = vunpack.c.l.b16 %v562
    %v1719 = vunpack.c.l.b16 %v563
    %v1720 = vunpack.c.l.b16 %v564
    %v1721 = vunpack.c.l.b16 %v565
    %v1722 = vunpack.c.l.b16 %v566
    %v1723 = vunpack.c.l.b16 %v567
    %v1724 = vunpack.c.l.b16 %v568
    %v1725 = vunpack.c.l.b16 %v569
    %v1726 = vunpack.c.l.b16 %v570
    %v1727 = vunpack.c.l.b16 %v571
    %v1728 = vunpack.c.l.b16 %v572
    %v1729 = vunpack.c.l.b16 %v573
    %v1730 = vunpack.c.l.b16 %v574
    %v1731 = vunpack.c.l.b16 %v575
    %v1732 = vunpack.c.l.b16 %v576
    %v1733 = vunpack.c.l.b16 %v577
    %v1734 = vunpack.c.l.b16 %v578
    %v1735 = vunpack.c.l.b16 %v579
    %v1736 = vunpack.c.l.b16 %v580
    %v1737 = vunpack.c.l.b16 %v581
    %v1738 = vunpack.c.l.b16 %v582
    %v1739 = vunpack.c.l.b16 %v583
    %v1740 = vunpack.c.l.b16 %v584
    %v1741 = vunpack.c.l.b16 %v585
    %v1742 = vunpack.c.l.b16 %v586
    %v1743 = vunpack.c.l.b16 %v587
    %v1744 = vunpack.c.l.b16 %v588
    %v1745 = vunpack.c.l.b16 %v589
    %v1746 = vunpack.c.l.b16 %v590
    %v1747 = vunpack.c.l.b16 %v591
    %v1748 = vunpack.c.l.b16 %v592
    %v1749 = vunpack.c.l.b16 %v593
    %v1750 = vunpack.c.l.b16 %v594
    %v1751 = vunpack.c.l.b16 %v595
    %v1752 = vunpack.c.l.b16 %v596
    %v1753 = vunpack.c.l.b16 %v597
    %v1754 = vunpack.c.l.b16 %v598
    %v1755 = vunpack.c.l.b16 %v599
    %v1756 = vunpack.c.l.b16 %v600
    %v1757 = vunpack.c.l.b16 %v601
    %v1758 = vunpack.c.l.b16 %v602
    %v1759 = vunpack.c.l.b16 %v603
    %v1760 = vunpack.c.l.b16 %v604
    %v1761 = vunpack.c.l.b16 %v605
    %v1762 = vunpack.c.l.b16 %v606
    %v1763 = vunpack.c.l.b16 %v607
    %v1764 = vunpack.c.l.b16 %v608
    %v1765 = vunpack.c.l.b16 %v609
    %v1766 = vpack.c.b16 %v1191, %v1190
    %v1767 = vpack.c.b16 %v1193, %v1192
    %v1768 = vpack.c.b16 %v1195, %v1194
    %v1769 = vpack.c.b16 %v1197, %v1196
    %v1770 = vpack.c.b16 %v1199, %v1198
    %v1771 = vpack.c.b16 %v1201, %v1200
    %v1772 = vpack.c.b16 %v1203, %v1202
    %v1773 = vpack.c.b16 %v1205, %v1204
    %v1774 = vpack.c.b16 %v1207, %v1206
    %v1775 = vpack.c.b16 %v1209, %v1208
    %v1776 = vpack.c.b16 %v1211, %v1210
    %v1777 = vpack.c.b16 %v1213, %v1212
    %v1778 = vpack.c.b16 %v1215, %v1214
    %v1779 = vpack.c.b16 %v1217, %v1216
    %v1780 = vpack.c.b16 %v1219, %v1218
    %v1781 = vpack.c.b16 %v1221, %v1220
    %v1782 = vpack.c.b16 %v1223, %v1222
    %v1783 = vpack.c.b16 %v1225, %v1224
    %v1784 = vpack.c.b16 %v1227, %v1226
    %v1785 = vpack.c.b16 %v1229, %v1228
    %v1786 = vpack.c.b16 %v1231, %v1230
    %v1787 = vpack.c.b16 %v1233, %v1232
    %v1788 = vpack.c.b16 %v1235, %v1234
    %v1789 = vpack.c.b16 %v1237, %v1236
    %v1790 = vpack.c.b16 %v1239, %v1238
    %v1791 = vpack.c.b16 %v1241, %v1240
    %v1792 = vpack.c.b16 %v1243, %v1242
    %v1793 = vpack.c.b16 %v1245, %v1244
    %v1794 = vpack.c.b16 %v1247, %v1246
    %v1795 = vpack.c.b16 %v1249, %v1248
    %v1796 = vpack.c.b16 %v1251, %v1250
    %v1797 = vpack.c.b16 %v1253, %v1252
    %v1798 = vpack.c.b16 %v1255, %v1254
    %v1799 = vpack.c.b16 %v1257, %v1256
    %v1800 = vpack.c.b16 %v1259, %v1258
    %v1801 = vpack.c.b16 %v1261, %v1260
    %v1802 = vpack.c.b16 %v1263, %v1262
    %v1803 = vpack.c.b16 %v1265, %v1264
    %v1804 = vpack.c.b16 %v1267, %v1266
    %v1805 = vpack.c.b16 %v1269, %v1268
    %v1806 = vpack.c.b16 %v1271, %v1270
    %v1807 = vpack.c.b16 %v1273, %v1272
    %v1808 = vpack.c.b16 %v1275, %v1274
    %v1809 = vpack.c.b16 %v1277, %v1276
    %v1810 = vpack.c.b16 %v1279, %v1278
    %v1811 = vpack.c.b16 %v1281, %v1280
    %v1812 = vpack.c.b16 %v1283, %v1282
    %v1813 = vpack.c.b16 %v1285, %v1284
    %v1814 = vpack.c.b16 %v1287, %v1286
    %v1815 = vpack.c.b16 %v1289, %v1288
    %v1816 = vpack.c.b16 %v1291, %v1290
    %v1817 = vpack.c.b16 %v1293, %v1292
    %v1818 = vpack.c.b16 %v1295, %v1294
    %v1819 = vpack.c.b16 %v1297, %v1296
    %v1820 = vpack.c.b16 %v1299, %v1298
    %v1821 = vpack.c.b16 %v1301, %v1300
    %v1822 = vpack.c.b16 %v1303, %v1302
    %v1823 = vpack.c.b16 %v1305, %v1304
    %v1824 = vpack.c.b16 %v1307, %v1306
    %v1825 = vpack.c.b16 %v1309, %v1308
    %v1826 = vpack.c.b16 %v1311, %v1310
    %v1827 = vpack.c.b16 %v1313, %v1312
    %v1828 = vpack.c.b16 %v1315, %v1314
    %v1829 = vpack.c.b16 %v1317, %v1316
    %v1830 = vpack.c.b16 %v1319, %v1318
    %v1831 = vpack.c.b16 %v1321, %v1320
    %v1832 = vpack.c.b16 %v1323, %v1322
    %v1833 = vpack.c.b16 %v1325, %v1324
    %v1834 = vpack.c.b16 %v1327, %v1326
    %v1835 = vpack.c.b16 %v1329, %v1328
    %v1836 = vpack.c.b16 %v1331, %v1330
    %v1837 = vpack.c.b16 %v1333, %v1332
    %v1838 = vpack.c.b16 %v1335, %v1334
    %v1839 = vpack.c.b16 %v1337, %v1336
    %v1840 = vpack.c.b16 %v1339, %v1338
    %v1841 = vpack.c.b16 %v1341, %v1340
    %v1842 = vpack.c.b16 %v1343, %v1342
    %v1843 = vpack.c.b16 %v1345, %v1344
    %v1844 = vpack.c.b16 %v1347, %v1346
    %v1845 = vpack.c.b16 %v1349, %v1348
    %v1846 = vpack.c.b16 %v1351, %v1350
    %v1847 = vpack.c.b16 %v1353, %v1352
    %v1848 = vpack.c.b16 %v1355, %v1354
    %v1849 = vpack.c.b16 %v1357, %v1356
    %v1850 = vpack.c.b16 %v1359, %v1358
    %v1851 = vpack.c.b16 %v1361, %v1360
    %v1852 = vpack.c.b16 %v1363, %v1362
    %v1853 = vpack.c.b16 %v1365, %v1364
    %v1854 = vpack.c.b16 %v1367, %v1366
    %v1855 = vpack.c.b16 %v1369, %v1368
    %v1856 = vpack.c.b16 %v1371, %v1370
    %v1857 = vpack.c.b16 %v1373, %v1372
    %v1858 = vpack.c.b16 %v1375, %v1374
    %v1859 = vpack.c.b16 %v1377, %v1376
    %v1860 = vpack.c.b16 %v1379, %v1378
    %v1861 = vpack.c.b16 %v1381, %v1380
    %v1862 = vpack.c.b16 %v1383, %v1382
    %v1863 = vpack.c.b16 %v1385, %v1384
    %v1864 = vpack.c.b16 %v1387, %v1386
    %v1865 = vpack.c.b16 %v1389, %v1388
    %v1866 = vpack.c.b16 %v1391, %v1390
    %v1867 = vpack.c.b16 %v1393, %v1392
    %v1868 = vpack.c.b16 %v1395, %v1394
    %v1869 = vpack.c.b16 %v1397, %v1396
    %v1870 = vpack.c.b16 %v1399, %v1398
    %v1871 = vpack.c.b16 %v1401, %v1400
    %v1872 = vpack.c.b16 %v1403, %v1402
    %v1873 = vpack.c.b16 %v1405, %v1404
    %v1874 = vpack.c.b16 %v1407, %v1406
    %v1875 = vpack.c.b16 %v1409, %v1408
    %v1876 = vpack.c.b16 %v1411, %v1410
    %v1877 = vpack.c.b16 %v1413, %v1412
    %v1878 = vpack.c.b16 %v1415, %v1414
    %v1879 = vpack.c.b16 %v1417, %v1416
    %v1880 = vpack.c.b16 %v1419, %v1418
    %v1881 = vpack.c.b16 %v1421, %v1420
    %v1882 = vpack.c.b16 %v1423, %v1422
    %v1883 = vpack.c.b16 %v1425, %v1424
    %v1884 = vpack.c.b16 %v1427, %v1426
    %v1885 = vpack.c.b16 %v1429, %v1428
    %v1886 = vpack.c.b16 %v1431, %v1430
    %v1887 = vpack.c.b16 %v1433, %v1432
    %v1888 = vpack.c.b16 %v1435, %v1434
    %v1889 = vpack.c.b16 %v1437, %v1436
    %v1890 = vpack.c.b16 %v1439, %v1438
    %v1891 = vpack.c.b16 %v1441, %v1440
    %v1892 = vpack.c.b16 %v1443, %v1442
    %v1893 = vpack.c.b16 %v1445, %v1444
    %v1894 = vpack.c.b16 %v1447, %v1446
    %v1895 = vpack.c.b16 %v1449, %v1448
    %v1896 = vpack.c.b16 %v1451, %v1450
    %v1897 = vpack.c.b16 %v1453, %v1452
    %v1898 = vpack.c.b16 %v1455, %v1454
    %v1899 = vpack.c.b16 %v1457, %v1456
    %v1900 = vpack.c.b16 %v1459, %v1458
    %v1901 = vpack.c.b16 %v1461, %v1460
    %v1902 = vpack.c.b16 %v1463, %v1462
    %v1903 = vpack.c.b16 %v1465, %v1464
    %v1904 = vpack.c.b16 %v1467, %v1466
    %v1905 = vpack.c.b16 %v1469, %v1468
    %v1906 = vpack.c.b16 %v1471, %v1470
    %v1907 = vpack.c.b16 %v1473, %v1472
    %v1908 = vpack.c.b16 %v1475, %v1474
    %v1909 = vpack.c.b16 %v1477, %v1476
    %v1910 = vpack.c.b16 %v1479, %v1478
    %v1911 = vpack.c.b16 %v1481, %v1480
    %v1912 = vpack.c.b16 %v1483, %v1482
    %v1913 = vpack.c.b16 %v1485, %v1484
    %v1914 = vpack.c.b16 %v1487, %v1486
    %v1915 = vpack.c.b16 %v1489, %v1488
    %v1916 = vpack.c.b16 %v1491, %v1490
    %v1917 = vpack.c.b16 %v1493, %v1492
    %v1918 = vpack.c.b16 %v1495, %v1494
    %v1919 = vpack.c.b16 %v1497, %v1496
    %v1920 = vpack.c.b16 %v1499, %v1498
    %v1921 = vpack.c.b16 %v1501, %v1500
    %v1922 = vpack.c.b16 %v1503, %v1502
    %v1923 = vpack.c.b16 %v1505, %v1504
    %v1924 = vpack.c.b16 %v1507, %v1506
    %v1925 = vpack.c.b16 %v1509, %v1508
    %v1926 = vpack.c.b16 %v1511, %v1510
    %v1927 = vpack.c.b16 %v1513, %v1512
    %v1928 = vpack.c.b16 %v1515, %v1514
    %v1929 = vpack.c.b16 %v1517, %v1516
    %v1930 = vpack.c.b16 %v1519, %v1518
    %v1931 = vpack.c.b16 %v1521, %v1520
    %v1932 = vpack.c.b16 %v1523, %v1522
    %v1933 = vpack.c.b16 %v1525, %v1524
    %v1934 = vpack.c.b16 %v1527, %v1526
    %v1935 = vpack.c.b16 %v1529, %v1528
    %v1936 = vpack.c.b16 %v1531, %v1530
    %v1937 = vpack.c.b16 %v1533, %v1532
    %v1938 = vpack.c.b16 %v1535, %v1534
    %v1939 = vpack.c.b16 %v1537, %v1536
    %v1940 = vpack.c.b16 %v1539, %v1538
    %v1941 = vpack.c.b16 %v1541, %v1540
    %v1942 = vpack.c.b16 %v1543, %v1542
    %v1943 = vpack.c.b16 %v1545, %v1544
    %v1944 = vpack.c.b16 %v1547, %v1546
    %v1945 = vpack.c.b16 %v1549, %v1548
    %v1946 = vpack.c.b16 %v1551, %v1550
    %v1947 = vpack.c.b16 %v1553, %v1552
    %v1948 = vpack.c.b16 %v1555, %v1554
    %v1949 = vpack.c.b16 %v1557, %v1556
    %v1950 = vpack.c.b16 %v1559, %v1558
    %v1951 = vpack.c.b16 %v1561, %v1560
    %v1952 = vpack.c.b16 %v1563, %v1562
    %v1953 = vpack.c.b16 %v1565, %v1564
    %v1954 = vpack.c.b16 %v1567, %v1566
    %v1955 = vpack.c.b16 %v1569, %v1568
    %v1956 = vpack.c.b16 %v1571, %v1570
    %v1957 = vpack.c.b16 %v1573, %v1572
    %v1958 = vpack.c.b16 %v1575, %v1574
    %v1959 = vpack.c.b16 %v1577, %v1576
    %v1960 = vpack.c.b16 %v1579, %v1578
    %v1961 = vpack.c.b16 %v1581, %v1580
    %v1962 = vpack.c.b16 %v1583, %v1582
    %v1963 = vpack.c.b16 %v1585, %v1584
    %v1964 = vpack.c.b16 %v1587, %v1586
    %v1965 = vpack.c.b16 %v1589, %v1588
    %v1966 = vpack.c.b16 %v1591, %v1590
    %v1967 = vpack.c.b16 %v1593, %v1592
    %v1968 = vpack.c.b16 %v1595, %v1594
    %v1969 = vpack.c.b16 %v1597, %v1596
    %v1970 = vpack.c.b16 %v1599, %v1598
    %v1971 = vpack.c.b16 %v1601, %v1600
    %v1972 = vpack.c.b16 %v1603, %v1602
    %v1973 = vpack.c.b16 %v1605, %v1604
    %v1974 = vpack.c.b16 %v1607, %v1606
    %v1975 = vpack.c.b16 %v1609, %v1608
    %v1976 = vpack.c.b16 %v1611, %v1610
    %v1977 = vpack.c.b16 %v1613, %v1612
    %v1978 = vpack.c.b16 %v1615, %v1614
    %v1979 = vpack.c.b16 %v1617, %v1616
    %v1980 = vpack.c.b16 %v1619, %v1618
    %v1981 = vpack.c.b16 %v1621, %v1620
    %v1982 = vpack.c.b16 %v1623, %v1622
    %v1983 = vpack.c.b16 %v1625, %v1624
    %v1984 = vpack.c.b16 %v1627, %v1626
    %v1985 = vpack.c.b16 %v1629, %v1628
    %v1986 = vpack.c.b16 %v1631, %v1630
    %v1987 = vpack.c.b16 %v1633, %v1632
    %v1988 = vpack.c.b16 %v1635, %v1634
    %v1989 = vpack.c.b16 %v1637, %v1636
    %v1990 = vpack.c.b16 %v1639, %v1638
    %v1991 = vpack.c.b16 %v1641, %v1640
    %v1992 = vpack.c.b16 %v1643, %v1642
    %v1993 = vpack.c.b16 %v1645, %v1644
    %v1994 = vpack.c.b16 %v1647, %v1646
    %v1995 = vpack.c.b16 %v1649, %v1648
    %v1996 = vpack.c.b16 %v1651, %v1650
    %v1997 = vpack.c.b16 %v1653, %v1652
    %v1998 = vpack.c.b16 %v1655, %v1654
    %v1999 = vpack.c.b16 %v1657, %v1656
    %v2000 = vpack.c.b16 %v1659, %v1658
    %v2001 = vpack.c.b16 %v1661, %v1660
    %v2002 = vpack.c.b16 %v1663, %v1662
    %v2003 = vpack.c.b16 %v1665, %v1664
    %v2004 = vpack.c.b16 %v1667, %v1666
    %v2005 = vpack.c.b16 %v1669, %v1668
    %v2006 = vpack.c.b16 %v1671, %v1670
    %v2007 = vpack.c.b16 %v1673, %v1672
    %v2008 = vpack.c.b16 %v1675, %v1674
    %v2009 = vpack.c.b16 %v1677, %v1676
    %v2010 = vpack.c.b16 %v1679, %v1678
    %v2011 = vpack.c.b16 %v1681, %v1680
    %v2012 = vpack.c.b16 %v1683, %v1682
    %v2013 = vpack.c.b16 %v1685, %v1684
    %v2014 = vpack.c.b16 %v1687, %v1686
    %v2015 = vpack.c.b16 %v1689, %v1688
    %v2016 = vpack.c.b16 %v1691, %v1690
    %v2017 = vpack.c.b16 %v1693, %v1692
    %v2018 = vpack.c.b16 %v1695, %v1694
    %v2019 = vpack.c.b16 %v1697, %v1696
    %v2020 = vpack.c.b16 %v1699, %v1698
    %v2021 = vpack.c.b16 %v1701, %v1700
    %v2022 = vpack.c.b16 %v1703, %v1702
    %v2023 = vpack.c.b16 %v1705, %v1704
    %v2024 = vpack.c.b16 %v1707, %v1706
    %v2025 = vpack.c.b16 %v1709, %v1708
    %v2026 = vpack.c.b16 %v1711, %v1710
    %v2027 = vpack.c.b16 %v1713, %v1712
    %v2028 = vpack.c.b16 %v1715, %v1714
    %v2029 = vpack.c.b16 %v1717, %v1716
    %v2030 = vpack.c.b16 %v1719, %v1718
    %v2031 = vpack.c.b16 %v1721, %v1720
    %v2032 = vpack.c.b16 %v1723, %v1722
    %v2033 = vpack.c.b16 %v1725, %v1724
    %v2034 = vpack.c.b16 %v1727, %v1726
    %v2035 = vpack.c.b16 %v1729, %v1728
    %v2036 = vpack.c.b16 %v1731, %v1730
    %v2037 = vpack.c.b16 %v1733, %v1732
    %v2038 = vpack.c.b16 %v1735, %v1734
    %v2039 = vpack.c.b16 %v1737, %v1736
    %v2040 = vpack.c.b16 %v1739, %v1738
    %v2041 = vpack.c.b16 %v1741, %v1740
    %v2042 = vpack.c.b16 %v1743, %v1742
    %v2043 = vpack.c.b16 %v1745, %v1744
    %v2044 = vpack.c.b16 %v1747, %v1746
    %v2045 = vpack.c.b16 %v1749, %v1748
    %v2046 = vpack.c.b16 %v1751, %v1750
    %v2047 = vpack.c.b16 %v1753, %v1752
    %v2048 = vpack.c.b16 %v1755, %v1754
    %v2049 = vpack.c.b16 %v1757, %v1756
    %v2050 = vpack.c.b16 %v1759, %v1758
    %v2051 = vpack.c.b16 %v1761, %v1760
    %v2052 = vpack.c.b16 %v1763, %v1762
    %v2053 = vpack.c.b16 %v1765, %v1764
    %v2058 = vunpack.c.l.b16 %v610
    %v2059 = vunpack.c.l.b16 %v611
    %v2060 = vunpack.c.l.b16 %v612
    %v2061 = vunpack.c.l.b16 %v613
    %v2062 = vpack.c.b16 %v2059, %v2058
    %v2063 = vpack.c.b16 %v2061, %v2060
    %vm2065 = vcmask 203776
    %v2067 = vsel %vm2065, %v1766, 0
    %v2070 = vsel %vm2065, %v1767, 0
    %v2073 = vsel %vm2065, %v1768, 0
    %v2076 = vsel %vm2065, %v1769, 0
    %v2079 = vsel %vm2065, %v1770, 0
    %v2082 = vsel %vm2065, %v1771, 0
    %v2085 = vsel %vm2065, %v1772, 0
    %v2088 = vsel %vm2065, %v1773, 0
    %v2091 = vsel %vm2065, %v1774, 0
    %v2094 = vsel %vm2065, %v1775, 0
    %v2097 = vsel %vm2065, %v1776, 0
    %v2100 = vsel %vm2065, %v1777, 0
    %v2103 = vsel %vm2065, %v1778, 0
    %v2106 = vsel %vm2065, %v1779, 0
    %v2109 = vsel %vm2065, %v1780, 0
    %v2112 = vsel %vm2065, %v1781, 0
    %v2115 = vsel %vm2065, %v1782, 0
    %v2118 = vsel %vm2065, %v1783, 0
    %v2121 = vsel %vm2065, %v1784, 0
    %v2124 = vsel %vm2065, %v1785, 0
    %v2127 = vsel %vm2065, %v1786, 0
    %v2130 = vsel %vm2065, %v1787, 0
    %v2133 = vsel %vm2065, %v1788, 0
    %v2136 = vsel %vm2065, %v1789, 0
    %v2139 = vsel %vm2065, %v1790, 0
    %v2142 = vsel %vm2065, %v1791, 0
    %v2145 = vsel %vm2065, %v1792, 0
    %v2148 = vsel %vm2065, %v1793, 0
    %v2151 = vsel %vm2065, %v1794, 0
    %v2154 = vsel %vm2065, %v1795, 0
    %v2157 = vsel %vm2065, %v1796, 0
    %v2160 = vsel %vm2065, %v1797, 0
    %v2163 = vsel %vm2065, %v1798, 0
    %v2166 = vsel %vm2065, %v1799, 0
    %v2169 = vsel %vm2065, %v1800, 0
    %v2172 = vsel %vm2065, %v1801, 0
    %v2175 = vsel %vm2065, %v1802, 0
    %v2178 = vsel %vm2065, %v1803, 0
    %v2181 = vsel %vm2065, %v1804, 0
    %v2184 = vsel %vm2065, %v1805, 0
    %v2187 = vsel %vm2065, %v1806, 0
    %v2190 = vsel %vm2065, %v1807, 0
    %v2193 = vsel %vm2065, %v1808, 0
    %v2196 = vsel %vm2065, %v1809, 0
    %v2199 = vsel %vm2065, %v1810, 0
    %v2202 = vsel %vm2065, %v1811, 0
    %v2205 = vsel %vm2065, %v1812, 0
    %v2208 = vsel %vm2065, %v1813, 0
    %v2211 = vsel %vm2065, %v1814, 0
    %v2214 = vsel %vm2065, %v1815, 0
    %v2217 = vsel %vm2065, %v1816, 0
    %v2220 = vsel %vm2065, %v1817, 0
    %v2223 = vsel %vm2065, %v1818, 0
    %v2226 = vsel %vm2065, %v1819, 0
    %v2229 = vsel %vm2065, %v1820, 0
    %v2232 = vsel %vm2065, %v1821, 0
    %v2235 = vsel %vm2065, %v1822, 0
    %v2238 = vsel %vm2065, %v1823, 0
    %v2241 = vsel %vm2065, %v1824, 0
    %v2244 = vsel %vm2065, %v1825, 0
    %v2247 = vsel %vm2065, %v1826, 0
    %v2250 = vsel %vm2065, %v1827, 0
    %v2253 = vsel %vm2065, %v1828, 0
    %v2256 = vsel %vm2065, %v1829, 0
    %v2259 = vsel %vm2065, %v1830, 0
    %v2262 = vsel %vm2065, %v1831, 0
    %v2265 = vsel %vm2065, %v1832, 0
    %v2268 = vsel %vm2065, %v1833, 0
    %v2271 = vsel %vm2065, %v1834, 0
    %v2274 = vsel %vm2065, %v1835, 0
    %v2277 = vsel %vm2065, %v1836, 0
    %v2280 = vsel %vm2065, %v1837, 0
    %v2283 = vsel %vm2065, %v1838, 0
    %v2286 = vsel %vm2065, %v1839, 0
    %v2289 = vsel %vm2065, %v1840, 0
    %v2292 = vsel %vm2065, %v1841, 0
    %v2295 = vsel %vm2065, %v1842, 0
    %v2298 = vsel %vm2065, %v1843, 0
    %v2301 = vsel %vm2065, %v1844, 0
    %v2304 = vsel %vm2065, %v1845, 0
    %v2307 = vsel %vm2065, %v1846, 0
    %v2310 = vsel %vm2065, %v1847, 0
    %v2313 = vsel %vm2065, %v1848, 0
    %v2316 = vsel %vm2065, %v1849, 0
    %v2319 = vsel %vm2065, %v1850, 0
    %v2322 = vsel %vm2065, %v1851, 0
    %v2325 = vsel %vm2065, %v1852, 0
    %v2328 = vsel %vm2065, %v1853, 0
    %v2331 = vsel %vm2065, %v1854, 0
    %v2334 = vsel %vm2065, %v1855, 0
    %v2337 = vsel %vm2065, %v1856, 0
    %v2340 = vsel %vm2065, %v1857, 0
    %v2343 = vsel %vm2065, %v1858, 0
    %v2346 = vsel %vm2065, %v1859, 0
    %v2349 = vsel %vm2065, %v1860, 0
    %v2352 = vsel %vm2065, %v1861, 0
    %v2355 = vsel %vm2065, %v1862, 0
    %v2358 = vsel %vm2065, %v1863, 0
    %v2361 = vsel %vm2065, %v1864, 0
    %v2364 = vsel %vm2065, %v1865, 0
    %v2367 = vsel %vm2065, %v1866, 0
    %v2370 = vsel %vm2065, %v1867, 0
    %v2373 = vsel %vm2065, %v1868, 0
    %v2376 = vsel %vm2065, %v1869, 0
    %v2379 = vsel %vm2065, %v1870, 0
    %v2382 = vsel %vm2065, %v1871, 0
    %v2385 = vsel %vm2065, %v1872, 0
    %v2388 = vsel %vm2065, %v1873, 0
    %v2391 = vsel %vm2065, %v1874, 0
    %v2394 = vsel %vm2065, %v1875, 0
    %v2397 = vsel %vm2065, %v1876, 0
    %v2400 = vsel %vm2065, %v1877, 0
    %v2403 = vsel %vm2065, %v1878, 0
    %v2406 = vsel %vm2065, %v1879, 0
    %v2409 = vsel %vm2065, %v1880, 0
    %v2412 = vsel %vm2065, %v1881, 0
    %v2415 = vsel %vm2065, %v1882, 0
    %v2418 = vsel %vm2065, %v1883, 0
    %v2421 = vsel %vm2065, %v1884, 0
    %v2424 = vsel %vm2065, %v1885, 0
    %v2427 = vsel %vm2065, %v1886, 0
    %v2430 = vsel %vm2065, %v1887, 0
    %v2433 = vsel %vm2065, %v1888, 0
    %v2436 = vsel %vm2065, %v1889, 0
    %v2439 = vsel %vm2065, %v1890, 0
    %v2442 = vsel %vm2065, %v1891, 0
    %v2445 = vsel %vm2065, %v1892, 0
    %v2448 = vsel %vm2065, %v1893, 0
    %v2451 = vsel %vm2065, %v1894, 0
    %v2454 = vsel %vm2065, %v1895, 0
    %v2457 = vsel %vm2065, %v1896, 0
    %v2460 = vsel %vm2065, %v1897, 0
    %v2463 = vsel %vm2065, %v1898, 0
    %v2466 = vsel %vm2065, %v1899, 0
    %v2469 = vsel %vm2065, %v1900, 0
    %v2472 = vsel %vm2065, %v1901, 0
    %v2475 = vsel %vm2065, %v1902, 0
    %v2478 = vsel %vm2065, %v1903, 0
    %v2481 = vsel %vm2065, %v1904, 0
    %v2484 = vsel %vm2065, %v1905, 0
    %v2487 = vsel %vm2065, %v1906, 0
    %v2490 = vsel %vm2065, %v1907, 0
    %v2493 = vsel %vm2065, %v1908, 0
    %v2496 = vsel %vm2065, %v1909, 0
    %v2499 = vsel %vm2065, %v1910, 0
    %v2502 = vsel %vm2065, %v1911, 0
    %v2505 = vsel %vm2065, %v1912, 0
    %v2508 = vsel %vm2065, %v1913, 0
    %v2511 = vsel %vm2065, %v1914, 0
    %v2514 = vsel %vm2065, %v1915, 0
    %v2517 = vsel %vm2065, %v1916, 0
    %v2520 = vsel %vm2065, %v1917, 0
    %v2523 = vsel %vm2065, %v1918, 0
    %v2526 = vsel %vm2065, %v1919, 0
    %v2529 = vsel %vm2065, %v1920, 0
    %v2532 = vsel %vm2065, %v1921, 0
    %v2535 = vsel %vm2065, %v1922, 0
    %v2538 = vsel %vm2065, %v1923, 0
    %v2541 = vsel %vm2065, %v1924, 0
    %v2544 = vsel %vm2065, %v1925, 0
    %v2547 = vsel %vm2065, %v1926, 0
    %v2550 = vsel %vm2065, %v1927, 0
    %v2553 = vsel %vm2065, %v1928, 0
    %v2556 = vsel %vm2065, %v1929, 0
    %v2559 = vsel %vm2065, %v1930, 0
    %v2562 = vsel %vm2065, %v1931, 0
    %v2565 = vsel %vm2065, %v1932, 0
    %v2568 = vsel %vm2065, %v1933, 0
    %v2571 = vsel %vm2065, %v1934, 0
    %v2574 = vsel %vm2065, %v1935, 0
    %v2577 = vsel %vm2065, %v1936, 0
    %v2580 = vsel %vm2065, %v1937, 0
    %v2583 = vsel %vm2065, %v1938, 0
    %v2586 = vsel %vm2065, %v1939, 0
    %v2589 = vsel %vm2065, %v1940, 0
    %v2592 = vsel %vm2065, %v1941, 0
    %v2595 = vsel %vm2065, %v1942, 0
    %v2598 = vsel %vm2065, %v1943, 0
    %v2601 = vsel %vm2065, %v1944, 0
    %v2604 = vsel %vm2065, %v1945, 0
    %v2607 = vsel %vm2065, %v1946, 0
    %v2610 = vsel %vm2065, %v1947, 0
    %v2613 = vsel %vm2065, %v1948, 0
    %v2616 = vsel %vm2065, %v1949, 0
    %v2619 = vsel %vm2065, %v1950, 0
    %v2622 = vsel %vm2065, %v1951, 0
    %v2625 = vsel %vm2065, %v1952, 0
    %v2628 = vsel %vm2065, %v1953, 0
    %v2631 = vsel %vm2065, %v1954, 0
    %v2634 = vsel %vm2065, %v1955, 0
    %v2637 = vsel %vm2065, %v1956, 0
    %v2640 = vsel %vm2065, %v1957, 0
    %v2643 = vsel %vm2065, %v1958, 0
    %v2646 = vsel %vm2065, %v1959, 0
    %v2649 = vsel %vm2065, %v1960, 0
    %v2652 = vsel %vm2065, %v1961, 0
    %v2655 = vsel %vm2065, %v1962, 0
    %v2658 = vsel %vm2065, %v1963, 0
    %v2661 = vsel %vm2065, %v1964, 0
    %v2664 = vsel %vm2065, %v1965, 0
    %v2667 = vsel %vm2065, %v1966, 0
    %v2670 = vsel %vm2065, %v1967, 0
    %v2673 = vsel %vm2065, %v1968, 0
    %v2676 = vsel %vm2065, %v1969, 0
    %v2679 = vsel %vm2065, %v1970, 0
    %v2682 = vsel %vm2065, %v1971, 0
    %v2685 = vsel %vm2065, %v1972, 0
    %v2688 = vsel %vm2065, %v1973, 0
    %v2691 = vsel %vm2065, %v1974, 0
    %v2694 = vsel %vm2065, %v1975, 0
    %v2697 = vsel %vm2065, %v1976, 0
    %v2700 = vsel %vm2065, %v1977, 0
    %v2703 = vsel %vm2065, %v1978, 0
    %v2706 = vsel %vm2065, %v1979, 0
    %v2709 = vsel %vm2065, %v1980, 0
    %v2712 = vsel %vm2065, %v1981, 0
    %v2715 = vsel %vm2065, %v1982, 0
    %v2718 = vsel %vm2065, %v1983, 0
    %v2721 = vsel %vm2065, %v1984, 0
    %v2724 = vsel %vm2065, %v1985, 0
    %v2727 = vsel %vm2065, %v1986, 0
    %v2730 = vsel %vm2065, %v1987, 0
    %v2733 = vsel %vm2065, %v1988, 0
    %v2736 = vsel %vm2065, %v1989, 0
    %v2739 = vsel %vm2065, %v1990, 0
    %v2742 = vsel %vm2065, %v1991, 0
    %v2745 = vsel %vm2065, %v1992, 0
    %v2748 = vsel %vm2065, %v1993, 0
    %v2751 = vsel %vm2065, %v1994, 0
    %v2754 = vsel %vm2065, %v1995, 0
    %v2757 = vsel %vm2065, %v1996, 0
    %v2760 = vsel %vm2065, %v1997, 0
    %v2763 = vsel %vm2065, %v1998, 0
    %v2766 = vsel %vm2065, %v1999, 0
    %v2769 = vsel %vm2065, %v2000, 0
    %v2772 = vsel %vm2065, %v2001, 0
    %v2775 = vsel %vm2065, %v2002, 0
    %v2778 = vsel %vm2065, %v2003, 0
    %v2781 = vsel %vm2065, %v2004, 0
    %v2784 = vsel %vm2065, %v2005, 0
    %v2787 = vsel %vm2065, %v2006, 0
    %v2790 = vsel %vm2065, %v2007, 0
    %v2793 = vsel %vm2065, %v2008, 0
    %v2796 = vsel %vm2065, %v2009, 0
    %v2799 = vsel %vm2065, %v2010, 0
    %v2802 = vsel %vm2065, %v2011, 0
    %v2805 = vsel %vm2065, %v2012, 0
    %v2808 = vsel %vm2065, %v2013, 0
    %v2811 = vsel %vm2065, %v2014, 0
    %v2814 = vsel %vm2065, %v2015, 0
    %v2817 = vsel %vm2065, %v2016, 0
    %v2820 = vsel %vm2065, %v2017, 0
    %v2823 = vsel %vm2065, %v2018, 0
    %v2826 = vsel %vm2065, %v2019, 0
    %v2829 = vsel %vm2065, %v2020, 0
    %v2832 = vsel %vm2065, %v2021, 0
    %v2835 = vsel %vm2065, %v2022, 0
    %v2838 = vsel %vm2065, %v2023, 0
    %v2841 = vsel %vm2065, %v2024, 0
    %v2844 = vsel %vm2065, %v2025, 0
    %v2847 = vsel %vm2065, %v2026, 0
    %v2850 = vsel %vm2065, %v2027, 0
    %v2853 = vsel %vm2065, %v2028, 0
    %v2856 = vsel %vm2065, %v2029, 0
    %v2859 = vsel %vm2065, %v2030, 0
    %v2862 = vsel %vm2065, %v2031, 0
    %v2865 = vsel %vm2065, %v2032, 0
    %v2868 = vsel %vm2065, %v2033, 0
    %v2871 = vsel %vm2065, %v2034, 0
    %v2874 = vsel %vm2065, %v2035, 0
    %v2877 = vsel %vm2065, %v2036, 0
    %v2880 = vsel %vm2065, %v2037, 0
    %v2883 = vsel %vm2065, %v2038, 0
    %v2886 = vsel %vm2065, %v2039, 0
    %v2889 = vsel %vm2065, %v2040, 0
    %v2892 = vsel %vm2065, %v2041, 0
    %v2895 = vsel %vm2065, %v2042, 0
    %v2898 = vsel %vm2065, %v2043, 0
    %v2901 = vsel %vm2065, %v2044, 0
    %v2904 = vsel %vm2065, %v2045, 0
    %v2907 = vsel %vm2065, %v2046, 0
    %v2910 = vsel %vm2065, %v2047, 0
    %v2913 = vsel %vm2065, %v2048, 0
    %v2916 = vsel %vm2065, %v2049, 0
    %v2919 = vsel %vm2065, %v2050, 0
    %v2922 = vsel %vm2065, %v2051, 0
    %v2925 = vsel %vm2065, %v2052, 0
    %v2928 = vsel %vm2065, %v2053, 0
    %vm2930 = vcmask 1043456
    %vm2931 = vcmask 1044480
    %v2932 = vsel %vm2930, 4294967295, 65535
    %v2933 = vsel %vm2931, %v2932, 0
    %v2935 = vand.u32 %v2063, %v2933
    %2937 = vmatpush.bf16.msra.mxu0 0
    %2938 = vmatpush.bf16.msra.mxu0 0
    %2939 = vmatpush.bf16.msra.mxu0 0
    %2940 = vmatpush.bf16.msra.mxu0 0
    %2941 = vmatpush.bf16.msra.mxu0 0
    %2942 = vmatpush.bf16.msra.mxu0 0
    %2943 = vmatpush.bf16.msra.mxu0 %v2935
    %2944 = vmatpush.bf16.msra.mxu0 %v2062
    %2945 = vmatmul.bf16.gmra.mxu0 %v2067
    %v2946 = vpop.f32.mrf.mxu0
    %v2947 = vadd.f32 0.0, %v2946
    %v2948 = vpop.f32.mrf.mxu0
    %v2949 = vadd.f32 0.0, %v2948
    %2950 = vmatmul.bf16.gmra.mxu0 %v2070
    %v2951 = vpop.f32.mrf.mxu0
    %v2952 = vadd.f32 0.0, %v2951
    %v2953 = vpop.f32.mrf.mxu0
    %v2954 = vadd.f32 0.0, %v2953
    %2955 = vmatmul.bf16.gmra.mxu0 %v2073
    %v2956 = vpop.f32.mrf.mxu0
    %v2957 = vadd.f32 0.0, %v2956
    %v2958 = vpop.f32.mrf.mxu0
    %v2959 = vadd.f32 0.0, %v2958
    %2960 = vmatmul.bf16.gmra.mxu0 %v2076
    %v2961 = vpop.f32.mrf.mxu0
    %v2962 = vadd.f32 0.0, %v2961
    %v2963 = vpop.f32.mrf.mxu0
    %v2964 = vadd.f32 0.0, %v2963
    %2965 = vmatmul.bf16.gmra.mxu0 %v2079
    %v2966 = vpop.f32.mrf.mxu0
    %v2967 = vadd.f32 0.0, %v2966
    %v2968 = vpop.f32.mrf.mxu0
    %v2969 = vadd.f32 0.0, %v2968
    %2970 = vmatmul.bf16.gmra.mxu0 %v2082
    %v2971 = vpop.f32.mrf.mxu0
    %v2972 = vadd.f32 0.0, %v2971
    %v2973 = vpop.f32.mrf.mxu0
    %v2974 = vadd.f32 0.0, %v2973
    %2975 = vmatmul.bf16.gmra.mxu0 %v2085
    %v2976 = vpop.f32.mrf.mxu0
    %v2977 = vadd.f32 0.0, %v2976
    %v2978 = vpop.f32.mrf.mxu0
    %v2979 = vadd.f32 0.0, %v2978
    %2980 = vmatmul.bf16.gmra.mxu0 %v2088
    %v2981 = vpop.f32.mrf.mxu0
    %v2982 = vadd.f32 0.0, %v2981
    %v2983 = vpop.f32.mrf.mxu0
    %v2984 = vadd.f32 0.0, %v2983
    %2985 = vmatmul.bf16.gmra.mxu0 %v2091
    %v2986 = vpop.f32.mrf.mxu0
    %v2987 = vadd.f32 0.0, %v2986
    %v2988 = vpop.f32.mrf.mxu0
    %v2989 = vadd.f32 0.0, %v2988
    %2990 = vmatmul.bf16.gmra.mxu0 %v2094
    %v2991 = vpop.f32.mrf.mxu0
    %v2992 = vadd.f32 0.0, %v2991
    %v2993 = vpop.f32.mrf.mxu0
    %v2994 = vadd.f32 0.0, %v2993
    %2995 = vmatmul.bf16.gmra.mxu0 %v2097
    %v2996 = vpop.f32.mrf.mxu0
    %v2997 = vadd.f32 0.0, %v2996
    %v2998 = vpop.f32.mrf.mxu0
    %v2999 = vadd.f32 0.0, %v2998
    %3000 = vmatmul.bf16.gmra.mxu0 %v2100
    %v3001 = vpop.f32.mrf.mxu0
    %v3002 = vadd.f32 0.0, %v3001
    %v3003 = vpop.f32.mrf.mxu0
    %v3004 = vadd.f32 0.0, %v3003
    %3005 = vmatmul.bf16.gmra.mxu0 %v2103
    %v3006 = vpop.f32.mrf.mxu0
    %v3007 = vadd.f32 0.0, %v3006
    %v3008 = vpop.f32.mrf.mxu0
    %v3009 = vadd.f32 0.0, %v3008
    %3010 = vmatmul.bf16.gmra.mxu0 %v2106
    %v3011 = vpop.f32.mrf.mxu0
    %v3012 = vadd.f32 0.0, %v3011
    %v3013 = vpop.f32.mrf.mxu0
    %v3014 = vadd.f32 0.0, %v3013
    %3015 = vmatmul.bf16.gmra.mxu0 %v2109
    %v3016 = vpop.f32.mrf.mxu0
    %v3017 = vadd.f32 0.0, %v3016
    %v3018 = vpop.f32.mrf.mxu0
    %v3019 = vadd.f32 0.0, %v3018
    %3020 = vmatmul.bf16.gmra.mxu0 %v2112
    %v3021 = vpop.f32.mrf.mxu0
    %v3022 = vadd.f32 0.0, %v3021
    %v3023 = vpop.f32.mrf.mxu0
    %v3024 = vadd.f32 0.0, %v3023
    %3025 = vmatmul.bf16.gmra.mxu0 %v2115
    %v3026 = vpop.f32.mrf.mxu0
    %v3027 = vadd.f32 0.0, %v3026
    %v3028 = vpop.f32.mrf.mxu0
    %v3029 = vadd.f32 0.0, %v3028
    %3030 = vmatmul.bf16.gmra.mxu0 %v2118
    %v3031 = vpop.f32.mrf.mxu0
    %v3032 = vadd.f32 0.0, %v3031
    %v3033 = vpop.f32.mrf.mxu0
    %v3034 = vadd.f32 0.0, %v3033
    %3035 = vmatmul.bf16.gmra.mxu0 %v2121
    %v3036 = vpop.f32.mrf.mxu0
    %v3037 = vadd.f32 0.0, %v3036
    %v3038 = vpop.f32.mrf.mxu0
    %v3039 = vadd.f32 0.0, %v3038
    %3040 = vmatmul.bf16.gmra.mxu0 %v2124
    %v3041 = vpop.f32.mrf.mxu0
    %v3042 = vadd.f32 0.0, %v3041
    %v3043 = vpop.f32.mrf.mxu0
    %v3044 = vadd.f32 0.0, %v3043
    %3045 = vmatmul.bf16.gmra.mxu0 %v2127
    %v3046 = vpop.f32.mrf.mxu0
    %v3047 = vadd.f32 0.0, %v3046
    %v3048 = vpop.f32.mrf.mxu0
    %v3049 = vadd.f32 0.0, %v3048
    %3050 = vmatmul.bf16.gmra.mxu0 %v2130
    %v3051 = vpop.f32.mrf.mxu0
    %v3052 = vadd.f32 0.0, %v3051
    %v3053 = vpop.f32.mrf.mxu0
    %v3054 = vadd.f32 0.0, %v3053
    %3055 = vmatmul.bf16.gmra.mxu0 %v2133
    %v3056 = vpop.f32.mrf.mxu0
    %v3057 = vadd.f32 0.0, %v3056
    %v3058 = vpop.f32.mrf.mxu0
    %v3059 = vadd.f32 0.0, %v3058
    %3060 = vmatmul.bf16.gmra.mxu0 %v2136
    %v3061 = vpop.f32.mrf.mxu0
    %v3062 = vadd.f32 0.0, %v3061
    %v3063 = vpop.f32.mrf.mxu0
    %v3064 = vadd.f32 0.0, %v3063
    %3065 = vmatmul.bf16.gmra.mxu0 %v2139
    %v3066 = vpop.f32.mrf.mxu0
    %v3067 = vadd.f32 0.0, %v3066
    %v3068 = vpop.f32.mrf.mxu0
    %v3069 = vadd.f32 0.0, %v3068
    %3070 = vmatmul.bf16.gmra.mxu0 %v2142
    %v3071 = vpop.f32.mrf.mxu0
    %v3072 = vadd.f32 0.0, %v3071
    %v3073 = vpop.f32.mrf.mxu0
    %v3074 = vadd.f32 0.0, %v3073
    %3075 = vmatmul.bf16.gmra.mxu0 %v2145
    %v3076 = vpop.f32.mrf.mxu0
    %v3077 = vadd.f32 0.0, %v3076
    %v3078 = vpop.f32.mrf.mxu0
    %v3079 = vadd.f32 0.0, %v3078
    %3080 = vmatmul.bf16.gmra.mxu0 %v2148
    %v3081 = vpop.f32.mrf.mxu0
    %v3082 = vadd.f32 0.0, %v3081
    %v3083 = vpop.f32.mrf.mxu0
    %v3084 = vadd.f32 0.0, %v3083
    %3085 = vmatmul.bf16.gmra.mxu0 %v2151
    %v3086 = vpop.f32.mrf.mxu0
    %v3087 = vadd.f32 0.0, %v3086
    %v3088 = vpop.f32.mrf.mxu0
    %v3089 = vadd.f32 0.0, %v3088
    %3090 = vmatmul.bf16.gmra.mxu0 %v2154
    %v3091 = vpop.f32.mrf.mxu0
    %v3092 = vadd.f32 0.0, %v3091
    %v3093 = vpop.f32.mrf.mxu0
    %v3094 = vadd.f32 0.0, %v3093
    %3095 = vmatmul.bf16.gmra.mxu0 %v2157
    %v3096 = vpop.f32.mrf.mxu0
    %v3097 = vadd.f32 0.0, %v3096
    %v3098 = vpop.f32.mrf.mxu0
    %v3099 = vadd.f32 0.0, %v3098
    %3100 = vmatmul.bf16.gmra.mxu0 %v2160
    %v3101 = vpop.f32.mrf.mxu0
    %v3102 = vadd.f32 0.0, %v3101
    %v3103 = vpop.f32.mrf.mxu0
    %v3104 = vadd.f32 0.0, %v3103
    %3105 = vmatmul.bf16.gmra.mxu0 %v2163
    %v3106 = vpop.f32.mrf.mxu0
    %v3107 = vadd.f32 0.0, %v3106
    %v3108 = vpop.f32.mrf.mxu0
    %v3109 = vadd.f32 0.0, %v3108
    %3110 = vmatmul.bf16.gmra.mxu0 %v2166
    %v3111 = vpop.f32.mrf.mxu0
    %v3112 = vadd.f32 0.0, %v3111
    %v3113 = vpop.f32.mrf.mxu0
    %v3114 = vadd.f32 0.0, %v3113
    %3115 = vmatmul.bf16.gmra.mxu0 %v2169
    %v3116 = vpop.f32.mrf.mxu0
    %v3117 = vadd.f32 0.0, %v3116
    %v3118 = vpop.f32.mrf.mxu0
    %v3119 = vadd.f32 0.0, %v3118
    %3120 = vmatmul.bf16.gmra.mxu0 %v2172
    %v3121 = vpop.f32.mrf.mxu0
    %v3122 = vadd.f32 0.0, %v3121
    %v3123 = vpop.f32.mrf.mxu0
    %v3124 = vadd.f32 0.0, %v3123
    %3125 = vmatmul.bf16.gmra.mxu0 %v2175
    %v3126 = vpop.f32.mrf.mxu0
    %v3127 = vadd.f32 0.0, %v3126
    %v3128 = vpop.f32.mrf.mxu0
    %v3129 = vadd.f32 0.0, %v3128
    %3130 = vmatmul.bf16.gmra.mxu0 %v2178
    %v3131 = vpop.f32.mrf.mxu0
    %v3132 = vadd.f32 0.0, %v3131
    %v3133 = vpop.f32.mrf.mxu0
    %v3134 = vadd.f32 0.0, %v3133
    %3135 = vmatmul.bf16.gmra.mxu0 %v2181
    %v3136 = vpop.f32.mrf.mxu0
    %v3137 = vadd.f32 0.0, %v3136
    %v3138 = vpop.f32.mrf.mxu0
    %v3139 = vadd.f32 0.0, %v3138
    %3140 = vmatmul.bf16.gmra.mxu0 %v2184
    %v3141 = vpop.f32.mrf.mxu0
    %v3142 = vadd.f32 0.0, %v3141
    %v3143 = vpop.f32.mrf.mxu0
    %v3144 = vadd.f32 0.0, %v3143
    %3145 = vmatmul.bf16.gmra.mxu0 %v2187
    %v3146 = vpop.f32.mrf.mxu0
    %v3147 = vadd.f32 0.0, %v3146
    %v3148 = vpop.f32.mrf.mxu0
    %v3149 = vadd.f32 0.0, %v3148
    %3150 = vmatmul.bf16.gmra.mxu0 %v2190
    %v3151 = vpop.f32.mrf.mxu0
    %v3152 = vadd.f32 0.0, %v3151
    %v3153 = vpop.f32.mrf.mxu0
    %v3154 = vadd.f32 0.0, %v3153
    %3155 = vmatmul.bf16.gmra.mxu0 %v2193
    %v3156 = vpop.f32.mrf.mxu0
    %v3157 = vadd.f32 0.0, %v3156
    %v3158 = vpop.f32.mrf.mxu0
    %v3159 = vadd.f32 0.0, %v3158
    %3160 = vmatmul.bf16.gmra.mxu0 %v2196
    %v3161 = vpop.f32.mrf.mxu0
    %v3162 = vadd.f32 0.0, %v3161
    %v3163 = vpop.f32.mrf.mxu0
    %v3164 = vadd.f32 0.0, %v3163
    %3165 = vmatmul.bf16.gmra.mxu0 %v2199
    %v3166 = vpop.f32.mrf.mxu0
    %v3167 = vadd.f32 0.0, %v3166
    %v3168 = vpop.f32.mrf.mxu0
    %v3169 = vadd.f32 0.0, %v3168
    %3170 = vmatmul.bf16.gmra.mxu0 %v2202
    %v3171 = vpop.f32.mrf.mxu0
    %v3172 = vadd.f32 0.0, %v3171
    %v3173 = vpop.f32.mrf.mxu0
    %v3174 = vadd.f32 0.0, %v3173
    %3175 = vmatmul.bf16.gmra.mxu0 %v2205
    %v3176 = vpop.f32.mrf.mxu0
    %v3177 = vadd.f32 0.0, %v3176
    %v3178 = vpop.f32.mrf.mxu0
    %v3179 = vadd.f32 0.0, %v3178
    %3180 = vmatmul.bf16.gmra.mxu0 %v2208
    %v3181 = vpop.f32.mrf.mxu0
    %v3182 = vadd.f32 0.0, %v3181
    %v3183 = vpop.f32.mrf.mxu0
    %v3184 = vadd.f32 0.0, %v3183
    %3185 = vmatmul.bf16.gmra.mxu0 %v2211
    %v3186 = vpop.f32.mrf.mxu0
    %v3187 = vadd.f32 0.0, %v3186
    %v3188 = vpop.f32.mrf.mxu0
    %v3189 = vadd.f32 0.0, %v3188
    %3190 = vmatmul.bf16.gmra.mxu0 %v2214
    %v3191 = vpop.f32.mrf.mxu0
    %v3192 = vadd.f32 0.0, %v3191
    %v3193 = vpop.f32.mrf.mxu0
    %v3194 = vadd.f32 0.0, %v3193
    %3195 = vmatmul.bf16.gmra.mxu0 %v2217
    %v3196 = vpop.f32.mrf.mxu0
    %v3197 = vadd.f32 0.0, %v3196
    %v3198 = vpop.f32.mrf.mxu0
    %v3199 = vadd.f32 0.0, %v3198
    %3200 = vmatmul.bf16.gmra.mxu0 %v2220
    %v3201 = vpop.f32.mrf.mxu0
    %v3202 = vadd.f32 0.0, %v3201
    %v3203 = vpop.f32.mrf.mxu0
    %v3204 = vadd.f32 0.0, %v3203
    %3205 = vmatmul.bf16.gmra.mxu0 %v2223
    %v3206 = vpop.f32.mrf.mxu0
    %v3207 = vadd.f32 0.0, %v3206
    %v3208 = vpop.f32.mrf.mxu0
    %v3209 = vadd.f32 0.0, %v3208
    %3210 = vmatmul.bf16.gmra.mxu0 %v2226
    %v3211 = vpop.f32.mrf.mxu0
    %v3212 = vadd.f32 0.0, %v3211
    %v3213 = vpop.f32.mrf.mxu0
    %v3214 = vadd.f32 0.0, %v3213
    %3215 = vmatmul.bf16.gmra.mxu0 %v2229
    %v3216 = vpop.f32.mrf.mxu0
    %v3217 = vadd.f32 0.0, %v3216
    %v3218 = vpop.f32.mrf.mxu0
    %v3219 = vadd.f32 0.0, %v3218
    %3220 = vmatmul.bf16.gmra.mxu0 %v2232
    %v3221 = vpop.f32.mrf.mxu0
    %v3222 = vadd.f32 0.0, %v3221
    %v3223 = vpop.f32.mrf.mxu0
    %v3224 = vadd.f32 0.0, %v3223
    %3225 = vmatmul.bf16.gmra.mxu0 %v2235
    %v3226 = vpop.f32.mrf.mxu0
    %v3227 = vadd.f32 0.0, %v3226
    %v3228 = vpop.f32.mrf.mxu0
    %v3229 = vadd.f32 0.0, %v3228
    %3230 = vmatmul.bf16.gmra.mxu0 %v2238
    %v3231 = vpop.f32.mrf.mxu0
    %v3232 = vadd.f32 0.0, %v3231
    %v3233 = vpop.f32.mrf.mxu0
    %v3234 = vadd.f32 0.0, %v3233
    %3235 = vmatmul.bf16.gmra.mxu0 %v2241
    %v3236 = vpop.f32.mrf.mxu0
    %v3237 = vadd.f32 0.0, %v3236
    %v3238 = vpop.f32.mrf.mxu0
    %v3239 = vadd.f32 0.0, %v3238
    %3240 = vmatmul.bf16.gmra.mxu0 %v2244
    %v3241 = vpop.f32.mrf.mxu0
    %v3242 = vadd.f32 0.0, %v3241
    %v3243 = vpop.f32.mrf.mxu0
    %v3244 = vadd.f32 0.0, %v3243
    %3245 = vmatmul.bf16.gmra.mxu0 %v2247
    %v3246 = vpop.f32.mrf.mxu0
    %v3247 = vadd.f32 0.0, %v3246
    %v3248 = vpop.f32.mrf.mxu0
    %v3249 = vadd.f32 0.0, %v3248
    %3250 = vmatmul.bf16.gmra.mxu0 %v2250
    %v3251 = vpop.f32.mrf.mxu0
    %v3252 = vadd.f32 0.0, %v3251
    %v3253 = vpop.f32.mrf.mxu0
    %v3254 = vadd.f32 0.0, %v3253
    %3255 = vmatmul.bf16.gmra.mxu0 %v2253
    %v3256 = vpop.f32.mrf.mxu0
    %v3257 = vadd.f32 0.0, %v3256
    %v3258 = vpop.f32.mrf.mxu0
    %v3259 = vadd.f32 0.0, %v3258
    %3260 = vmatmul.bf16.gmra.mxu0 %v2256
    %v3261 = vpop.f32.mrf.mxu0
    %v3262 = vadd.f32 0.0, %v3261
    %v3263 = vpop.f32.mrf.mxu0
    %v3264 = vadd.f32 0.0, %v3263
    %3265 = vmatmul.bf16.gmra.mxu0 %v2259
    %v3266 = vpop.f32.mrf.mxu0
    %v3267 = vadd.f32 0.0, %v3266
    %v3268 = vpop.f32.mrf.mxu0
    %v3269 = vadd.f32 0.0, %v3268
    %3270 = vmatmul.bf16.gmra.mxu0 %v2262
    %v3271 = vpop.f32.mrf.mxu0
    %v3272 = vadd.f32 0.0, %v3271
    %v3273 = vpop.f32.mrf.mxu0
    %v3274 = vadd.f32 0.0, %v3273
    %3275 = vmatmul.bf16.gmra.mxu0 %v2265
    %v3276 = vpop.f32.mrf.mxu0
    %v3277 = vadd.f32 0.0, %v3276
    %v3278 = vpop.f32.mrf.mxu0
    %v3279 = vadd.f32 0.0, %v3278
    %3280 = vmatmul.bf16.gmra.mxu0 %v2268
    %v3281 = vpop.f32.mrf.mxu0
    %v3282 = vadd.f32 0.0, %v3281
    %v3283 = vpop.f32.mrf.mxu0
    %v3284 = vadd.f32 0.0, %v3283
    %3285 = vmatmul.bf16.gmra.mxu0 %v2271
    %v3286 = vpop.f32.mrf.mxu0
    %v3287 = vadd.f32 0.0, %v3286
    %v3288 = vpop.f32.mrf.mxu0
    %v3289 = vadd.f32 0.0, %v3288
    %3290 = vmatmul.bf16.gmra.mxu0 %v2274
    %v3291 = vpop.f32.mrf.mxu0
    %v3292 = vadd.f32 0.0, %v3291
    %v3293 = vpop.f32.mrf.mxu0
    %v3294 = vadd.f32 0.0, %v3293
    %3295 = vmatmul.bf16.gmra.mxu0 %v2277
    %v3296 = vpop.f32.mrf.mxu0
    %v3297 = vadd.f32 0.0, %v3296
    %v3298 = vpop.f32.mrf.mxu0
    %v3299 = vadd.f32 0.0, %v3298
    %3300 = vmatmul.bf16.gmra.mxu0 %v2280
    %v3301 = vpop.f32.mrf.mxu0
    %v3302 = vadd.f32 0.0, %v3301
    %v3303 = vpop.f32.mrf.mxu0
    %v3304 = vadd.f32 0.0, %v3303
    %3305 = vmatmul.bf16.gmra.mxu0 %v2283
    %v3306 = vpop.f32.mrf.mxu0
    %v3307 = vadd.f32 0.0, %v3306
    %v3308 = vpop.f32.mrf.mxu0
    %v3309 = vadd.f32 0.0, %v3308
    %3310 = vmatmul.bf16.gmra.mxu0 %v2286
    %v3311 = vpop.f32.mrf.mxu0
    %v3312 = vadd.f32 0.0, %v3311
    %v3313 = vpop.f32.mrf.mxu0
    %v3314 = vadd.f32 0.0, %v3313
    %3315 = vmatmul.bf16.gmra.mxu0 %v2289
    %v3316 = vpop.f32.mrf.mxu0
    %v3317 = vadd.f32 0.0, %v3316
    %v3318 = vpop.f32.mrf.mxu0
    %v3319 = vadd.f32 0.0, %v3318
    %3320 = vmatmul.bf16.gmra.mxu0 %v2292
    %v3321 = vpop.f32.mrf.mxu0
    %v3322 = vadd.f32 0.0, %v3321
    %v3323 = vpop.f32.mrf.mxu0
    %v3324 = vadd.f32 0.0, %v3323
    %3325 = vmatmul.bf16.gmra.mxu0 %v2295
    %v3326 = vpop.f32.mrf.mxu0
    %v3327 = vadd.f32 0.0, %v3326
    %v3328 = vpop.f32.mrf.mxu0
    %v3329 = vadd.f32 0.0, %v3328
    %3330 = vmatmul.bf16.gmra.mxu0 %v2298
    %v3331 = vpop.f32.mrf.mxu0
    %v3332 = vadd.f32 0.0, %v3331
    %v3333 = vpop.f32.mrf.mxu0
    %v3334 = vadd.f32 0.0, %v3333
    %3335 = vmatmul.bf16.gmra.mxu0 %v2301
    %v3336 = vpop.f32.mrf.mxu0
    %v3337 = vadd.f32 0.0, %v3336
    %v3338 = vpop.f32.mrf.mxu0
    %v3339 = vadd.f32 0.0, %v3338
    %3340 = vmatmul.bf16.gmra.mxu0 %v2304
    %v3341 = vpop.f32.mrf.mxu0
    %v3342 = vadd.f32 0.0, %v3341
    %v3343 = vpop.f32.mrf.mxu0
    %v3344 = vadd.f32 0.0, %v3343
    %3345 = vmatmul.bf16.gmra.mxu0 %v2307
    %v3346 = vpop.f32.mrf.mxu0
    %v3347 = vadd.f32 0.0, %v3346
    %v3348 = vpop.f32.mrf.mxu0
    %v3349 = vadd.f32 0.0, %v3348
    %3350 = vmatmul.bf16.gmra.mxu0 %v2310
    %v3351 = vpop.f32.mrf.mxu0
    %v3352 = vadd.f32 0.0, %v3351
    %v3353 = vpop.f32.mrf.mxu0
    %v3354 = vadd.f32 0.0, %v3353
    %3355 = vmatmul.bf16.gmra.mxu0 %v2313
    %v3356 = vpop.f32.mrf.mxu0
    %v3357 = vadd.f32 0.0, %v3356
    %v3358 = vpop.f32.mrf.mxu0
    %v3359 = vadd.f32 0.0, %v3358
    %3360 = vmatmul.bf16.gmra.mxu0 %v2316
    %v3361 = vpop.f32.mrf.mxu0
    %v3362 = vadd.f32 0.0, %v3361
    %v3363 = vpop.f32.mrf.mxu0
    %v3364 = vadd.f32 0.0, %v3363
    %3365 = vmatmul.bf16.gmra.mxu0 %v2319
    %v3366 = vpop.f32.mrf.mxu0
    %v3367 = vadd.f32 0.0, %v3366
    %v3368 = vpop.f32.mrf.mxu0
    %v3369 = vadd.f32 0.0, %v3368
    %3370 = vmatmul.bf16.gmra.mxu0 %v2322
    %v3371 = vpop.f32.mrf.mxu0
    %v3372 = vadd.f32 0.0, %v3371
    %v3373 = vpop.f32.mrf.mxu0
    %v3374 = vadd.f32 0.0, %v3373
    %3375 = vmatmul.bf16.gmra.mxu0 %v2325
    %v3376 = vpop.f32.mrf.mxu0
    %v3377 = vadd.f32 0.0, %v3376
    %v3378 = vpop.f32.mrf.mxu0
    %v3379 = vadd.f32 0.0, %v3378
    %3380 = vmatmul.bf16.gmra.mxu0 %v2328
    %v3381 = vpop.f32.mrf.mxu0
    %v3382 = vadd.f32 0.0, %v3381
    %v3383 = vpop.f32.mrf.mxu0
    %v3384 = vadd.f32 0.0, %v3383
    %3385 = vmatmul.bf16.gmra.mxu0 %v2331
    %v3386 = vpop.f32.mrf.mxu0
    %v3387 = vadd.f32 0.0, %v3386
    %v3388 = vpop.f32.mrf.mxu0
    %v3389 = vadd.f32 0.0, %v3388
    %3390 = vmatmul.bf16.gmra.mxu0 %v2334
    %v3391 = vpop.f32.mrf.mxu0
    %v3392 = vadd.f32 0.0, %v3391
    %v3393 = vpop.f32.mrf.mxu0
    %v3394 = vadd.f32 0.0, %v3393
    %3395 = vmatmul.bf16.gmra.mxu0 %v2337
    %v3396 = vpop.f32.mrf.mxu0
    %v3397 = vadd.f32 0.0, %v3396
    %v3398 = vpop.f32.mrf.mxu0
    %v3399 = vadd.f32 0.0, %v3398
    %3400 = vmatmul.bf16.gmra.mxu0 %v2340
    %v3401 = vpop.f32.mrf.mxu0
    %v3402 = vadd.f32 0.0, %v3401
    %v3403 = vpop.f32.mrf.mxu0
    %v3404 = vadd.f32 0.0, %v3403
    %3405 = vmatmul.bf16.gmra.mxu0 %v2343
    %v3406 = vpop.f32.mrf.mxu0
    %v3407 = vadd.f32 0.0, %v3406
    %v3408 = vpop.f32.mrf.mxu0
    %v3409 = vadd.f32 0.0, %v3408
    %3410 = vmatmul.bf16.gmra.mxu0 %v2346
    %v3411 = vpop.f32.mrf.mxu0
    %v3412 = vadd.f32 0.0, %v3411
    %v3413 = vpop.f32.mrf.mxu0
    %v3414 = vadd.f32 0.0, %v3413
    %3415 = vmatmul.bf16.gmra.mxu0 %v2349
    %v3416 = vpop.f32.mrf.mxu0
    %v3417 = vadd.f32 0.0, %v3416
    %v3418 = vpop.f32.mrf.mxu0
    %v3419 = vadd.f32 0.0, %v3418
    %3420 = vmatmul.bf16.gmra.mxu0 %v2352
    %v3421 = vpop.f32.mrf.mxu0
    %v3422 = vadd.f32 0.0, %v3421
    %v3423 = vpop.f32.mrf.mxu0
    %v3424 = vadd.f32 0.0, %v3423
    %3425 = vmatmul.bf16.gmra.mxu0 %v2355
    %v3426 = vpop.f32.mrf.mxu0
    %v3427 = vadd.f32 0.0, %v3426
    %v3428 = vpop.f32.mrf.mxu0
    %v3429 = vadd.f32 0.0, %v3428
    %3430 = vmatmul.bf16.gmra.mxu0 %v2358
    %v3431 = vpop.f32.mrf.mxu0
    %v3432 = vadd.f32 0.0, %v3431
    %v3433 = vpop.f32.mrf.mxu0
    %v3434 = vadd.f32 0.0, %v3433
    %3435 = vmatmul.bf16.gmra.mxu0 %v2361
    %v3436 = vpop.f32.mrf.mxu0
    %v3437 = vadd.f32 0.0, %v3436
    %v3438 = vpop.f32.mrf.mxu0
    %v3439 = vadd.f32 0.0, %v3438
    %3440 = vmatmul.bf16.gmra.mxu0 %v2364
    %v3441 = vpop.f32.mrf.mxu0
    %v3442 = vadd.f32 0.0, %v3441
    %v3443 = vpop.f32.mrf.mxu0
    %v3444 = vadd.f32 0.0, %v3443
    %3445 = vmatmul.bf16.gmra.mxu0 %v2367
    %v3446 = vpop.f32.mrf.mxu0
    %v3447 = vadd.f32 0.0, %v3446
    %v3448 = vpop.f32.mrf.mxu0
    %v3449 = vadd.f32 0.0, %v3448
    %3450 = vmatmul.bf16.gmra.mxu0 %v2370
    %v3451 = vpop.f32.mrf.mxu0
    %v3452 = vadd.f32 0.0, %v3451
    %v3453 = vpop.f32.mrf.mxu0
    %v3454 = vadd.f32 0.0, %v3453
    %3455 = vmatmul.bf16.gmra.mxu0 %v2373
    %v3456 = vpop.f32.mrf.mxu0
    %v3457 = vadd.f32 0.0, %v3456
    %v3458 = vpop.f32.mrf.mxu0
    %v3459 = vadd.f32 0.0, %v3458
    %3460 = vmatmul.bf16.gmra.mxu0 %v2376
    %v3461 = vpop.f32.mrf.mxu0
    %v3462 = vadd.f32 0.0, %v3461
    %v3463 = vpop.f32.mrf.mxu0
    %v3464 = vadd.f32 0.0, %v3463
    %3465 = vmatmul.bf16.gmra.mxu0 %v2379
    %v3466 = vpop.f32.mrf.mxu0
    %v3467 = vadd.f32 0.0, %v3466
    %v3468 = vpop.f32.mrf.mxu0
    %v3469 = vadd.f32 0.0, %v3468
    %3470 = vmatmul.bf16.gmra.mxu0 %v2382
    %v3471 = vpop.f32.mrf.mxu0
    %v3472 = vadd.f32 0.0, %v3471
    %v3473 = vpop.f32.mrf.mxu0
    %v3474 = vadd.f32 0.0, %v3473
    %3475 = vmatmul.bf16.gmra.mxu0 %v2385
    %v3476 = vpop.f32.mrf.mxu0
    %v3477 = vadd.f32 0.0, %v3476
    %v3478 = vpop.f32.mrf.mxu0
    %v3479 = vadd.f32 0.0, %v3478
    %3480 = vmatmul.bf16.gmra.mxu0 %v2388
    %v3481 = vpop.f32.mrf.mxu0
    %v3482 = vadd.f32 0.0, %v3481
    %v3483 = vpop.f32.mrf.mxu0
    %v3484 = vadd.f32 0.0, %v3483
    %3485 = vmatmul.bf16.gmra.mxu0 %v2391
    %v3486 = vpop.f32.mrf.mxu0
    %v3487 = vadd.f32 0.0, %v3486
    %v3488 = vpop.f32.mrf.mxu0
    %v3489 = vadd.f32 0.0, %v3488
    %3490 = vmatmul.bf16.gmra.mxu0 %v2394
    %v3491 = vpop.f32.mrf.mxu0
    %v3492 = vadd.f32 0.0, %v3491
    %v3493 = vpop.f32.mrf.mxu0
    %v3494 = vadd.f32 0.0, %v3493
    %3495 = vmatmul.bf16.gmra.mxu0 %v2397
    %v3496 = vpop.f32.mrf.mxu0
    %v3497 = vadd.f32 0.0, %v3496
    %v3498 = vpop.f32.mrf.mxu0
    %v3499 = vadd.f32 0.0, %v3498
    %3500 = vmatmul.bf16.gmra.mxu0 %v2400
    %v3501 = vpop.f32.mrf.mxu0
    %v3502 = vadd.f32 0.0, %v3501
    %v3503 = vpop.f32.mrf.mxu0
    %v3504 = vadd.f32 0.0, %v3503
    %3505 = vmatmul.bf16.gmra.mxu0 %v2403
    %v3506 = vpop.f32.mrf.mxu0
    %v3507 = vadd.f32 0.0, %v3506
    %v3508 = vpop.f32.mrf.mxu0
    %v3509 = vadd.f32 0.0, %v3508
    %3510 = vmatmul.bf16.gmra.mxu0 %v2406
    %v3511 = vpop.f32.mrf.mxu0
    %v3512 = vadd.f32 0.0, %v3511
    %v3513 = vpop.f32.mrf.mxu0
    %v3514 = vadd.f32 0.0, %v3513
    %3515 = vmatmul.bf16.gmra.mxu0 %v2409
    %v3516 = vpop.f32.mrf.mxu0
    %v3517 = vadd.f32 0.0, %v3516
    %v3518 = vpop.f32.mrf.mxu0
    %v3519 = vadd.f32 0.0, %v3518
    %3520 = vmatmul.bf16.gmra.mxu0 %v2412
    %v3521 = vpop.f32.mrf.mxu0
    %v3522 = vadd.f32 0.0, %v3521
    %v3523 = vpop.f32.mrf.mxu0
    %v3524 = vadd.f32 0.0, %v3523
    %3525 = vmatmul.bf16.gmra.mxu0 %v2415
    %v3526 = vpop.f32.mrf.mxu0
    %v3527 = vadd.f32 0.0, %v3526
    %v3528 = vpop.f32.mrf.mxu0
    %v3529 = vadd.f32 0.0, %v3528
    %3530 = vmatmul.bf16.gmra.mxu0 %v2418
    %v3531 = vpop.f32.mrf.mxu0
    %v3532 = vadd.f32 0.0, %v3531
    %v3533 = vpop.f32.mrf.mxu0
    %v3534 = vadd.f32 0.0, %v3533
    %3535 = vmatmul.bf16.gmra.mxu0 %v2421
    %v3536 = vpop.f32.mrf.mxu0
    %v3537 = vadd.f32 0.0, %v3536
    %v3538 = vpop.f32.mrf.mxu0
    %v3539 = vadd.f32 0.0, %v3538
    %3540 = vmatmul.bf16.gmra.mxu0 %v2424
    %v3541 = vpop.f32.mrf.mxu0
    %v3542 = vadd.f32 0.0, %v3541
    %v3543 = vpop.f32.mrf.mxu0
    %v3544 = vadd.f32 0.0, %v3543
    %3545 = vmatmul.bf16.gmra.mxu0 %v2427
    %v3546 = vpop.f32.mrf.mxu0
    %v3547 = vadd.f32 0.0, %v3546
    %v3548 = vpop.f32.mrf.mxu0
    %v3549 = vadd.f32 0.0, %v3548
    %3550 = vmatmul.bf16.gmra.mxu0 %v2430
    %v3551 = vpop.f32.mrf.mxu0
    %v3552 = vadd.f32 0.0, %v3551
    %v3553 = vpop.f32.mrf.mxu0
    %v3554 = vadd.f32 0.0, %v3553
    %3555 = vmatmul.bf16.gmra.mxu0 %v2433
    %v3556 = vpop.f32.mrf.mxu0
    %v3557 = vadd.f32 0.0, %v3556
    %v3558 = vpop.f32.mrf.mxu0
    %v3559 = vadd.f32 0.0, %v3558
    %3560 = vmatmul.bf16.gmra.mxu0 %v2436
    %v3561 = vpop.f32.mrf.mxu0
    %v3562 = vadd.f32 0.0, %v3561
    %v3563 = vpop.f32.mrf.mxu0
    %v3564 = vadd.f32 0.0, %v3563
    %3565 = vmatmul.bf16.gmra.mxu0 %v2439
    %v3566 = vpop.f32.mrf.mxu0
    %v3567 = vadd.f32 0.0, %v3566
    %v3568 = vpop.f32.mrf.mxu0
    %v3569 = vadd.f32 0.0, %v3568
    %3570 = vmatmul.bf16.gmra.mxu0 %v2442
    %v3571 = vpop.f32.mrf.mxu0
    %v3572 = vadd.f32 0.0, %v3571
    %v3573 = vpop.f32.mrf.mxu0
    %v3574 = vadd.f32 0.0, %v3573
    %3575 = vmatmul.bf16.gmra.mxu0 %v2445
    %v3576 = vpop.f32.mrf.mxu0
    %v3577 = vadd.f32 0.0, %v3576
    %v3578 = vpop.f32.mrf.mxu0
    %v3579 = vadd.f32 0.0, %v3578
    %3580 = vmatmul.bf16.gmra.mxu0 %v2448
    %v3581 = vpop.f32.mrf.mxu0
    %v3582 = vadd.f32 0.0, %v3581
    %v3583 = vpop.f32.mrf.mxu0
    %v3584 = vadd.f32 0.0, %v3583
    %3585 = vmatmul.bf16.gmra.mxu0 %v2451
    %v3586 = vpop.f32.mrf.mxu0
    %v3587 = vadd.f32 0.0, %v3586
    %v3588 = vpop.f32.mrf.mxu0
    %v3589 = vadd.f32 0.0, %v3588
    %3590 = vmatmul.bf16.gmra.mxu0 %v2454
    %v3591 = vpop.f32.mrf.mxu0
    %v3592 = vadd.f32 0.0, %v3591
    %v3593 = vpop.f32.mrf.mxu0
    %v3594 = vadd.f32 0.0, %v3593
    %3595 = vmatmul.bf16.gmra.mxu0 %v2457
    %v3596 = vpop.f32.mrf.mxu0
    %v3597 = vadd.f32 0.0, %v3596
    %v3598 = vpop.f32.mrf.mxu0
    %v3599 = vadd.f32 0.0, %v3598
    %3600 = vmatmul.bf16.gmra.mxu0 %v2460
    %v3601 = vpop.f32.mrf.mxu0
    %v3602 = vadd.f32 0.0, %v3601
    %v3603 = vpop.f32.mrf.mxu0
    %v3604 = vadd.f32 0.0, %v3603
    %3605 = vmatmul.bf16.gmra.mxu0 %v2463
    %v3606 = vpop.f32.mrf.mxu0
    %v3607 = vadd.f32 0.0, %v3606
    %v3608 = vpop.f32.mrf.mxu0
    %v3609 = vadd.f32 0.0, %v3608
    %3610 = vmatmul.bf16.gmra.mxu0 %v2466
    %v3611 = vpop.f32.mrf.mxu0
    %v3612 = vadd.f32 0.0, %v3611
    %v3613 = vpop.f32.mrf.mxu0
    %v3614 = vadd.f32 0.0, %v3613
    %3615 = vmatmul.bf16.gmra.mxu0 %v2469
    %v3616 = vpop.f32.mrf.mxu0
    %v3617 = vadd.f32 0.0, %v3616
    %v3618 = vpop.f32.mrf.mxu0
    %v3619 = vadd.f32 0.0, %v3618
    %3620 = vmatmul.bf16.gmra.mxu0 %v2472
    %v3621 = vpop.f32.mrf.mxu0
    %v3622 = vadd.f32 0.0, %v3621
    %v3623 = vpop.f32.mrf.mxu0
    %v3624 = vadd.f32 0.0, %v3623
    %3625 = vmatmul.bf16.gmra.mxu0 %v2475
    %v3626 = vpop.f32.mrf.mxu0
    %v3627 = vadd.f32 0.0, %v3626
    %v3628 = vpop.f32.mrf.mxu0
    %v3629 = vadd.f32 0.0, %v3628
    %3630 = vmatmul.bf16.gmra.mxu0 %v2478
    %v3631 = vpop.f32.mrf.mxu0
    %v3632 = vadd.f32 0.0, %v3631
    %v3633 = vpop.f32.mrf.mxu0
    %v3634 = vadd.f32 0.0, %v3633
    %3635 = vmatmul.bf16.gmra.mxu0 %v2481
    %v3636 = vpop.f32.mrf.mxu0
    %v3637 = vadd.f32 0.0, %v3636
    %v3638 = vpop.f32.mrf.mxu0
    %v3639 = vadd.f32 0.0, %v3638
    %3640 = vmatmul.bf16.gmra.mxu0 %v2484
    %v3641 = vpop.f32.mrf.mxu0
    %v3642 = vadd.f32 0.0, %v3641
    %v3643 = vpop.f32.mrf.mxu0
    %v3644 = vadd.f32 0.0, %v3643
    %3645 = vmatmul.bf16.gmra.mxu0 %v2487
    %v3646 = vpop.f32.mrf.mxu0
    %v3647 = vadd.f32 0.0, %v3646
    %v3648 = vpop.f32.mrf.mxu0
    %v3649 = vadd.f32 0.0, %v3648
    %3650 = vmatmul.bf16.gmra.mxu0 %v2490
    %v3651 = vpop.f32.mrf.mxu0
    %v3652 = vadd.f32 0.0, %v3651
    %v3653 = vpop.f32.mrf.mxu0
    %v3654 = vadd.f32 0.0, %v3653
    %3655 = vmatmul.bf16.gmra.mxu0 %v2493
    %v3656 = vpop.f32.mrf.mxu0
    %v3657 = vadd.f32 0.0, %v3656
    %v3658 = vpop.f32.mrf.mxu0
    %v3659 = vadd.f32 0.0, %v3658
    %3660 = vmatmul.bf16.gmra.mxu0 %v2496
    %v3661 = vpop.f32.mrf.mxu0
    %v3662 = vadd.f32 0.0, %v3661
    %v3663 = vpop.f32.mrf.mxu0
    %v3664 = vadd.f32 0.0, %v3663
    %3665 = vmatmul.bf16.gmra.mxu0 %v2499
    %v3666 = vpop.f32.mrf.mxu0
    %v3667 = vadd.f32 0.0, %v3666
    %v3668 = vpop.f32.mrf.mxu0
    %v3669 = vadd.f32 0.0, %v3668
    %3670 = vmatmul.bf16.gmra.mxu0 %v2502
    %v3671 = vpop.f32.mrf.mxu0
    %v3672 = vadd.f32 0.0, %v3671
    %v3673 = vpop.f32.mrf.mxu0
    %v3674 = vadd.f32 0.0, %v3673
    %3675 = vmatmul.bf16.gmra.mxu0 %v2505
    %v3676 = vpop.f32.mrf.mxu0
    %v3677 = vadd.f32 0.0, %v3676
    %v3678 = vpop.f32.mrf.mxu0
    %v3679 = vadd.f32 0.0, %v3678
    %3680 = vmatmul.bf16.gmra.mxu0 %v2508
    %v3681 = vpop.f32.mrf.mxu0
    %v3682 = vadd.f32 0.0, %v3681
    %v3683 = vpop.f32.mrf.mxu0
    %v3684 = vadd.f32 0.0, %v3683
    %3685 = vmatmul.bf16.gmra.mxu0 %v2511
    %v3686 = vpop.f32.mrf.mxu0
    %v3687 = vadd.f32 0.0, %v3686
    %v3688 = vpop.f32.mrf.mxu0
    %v3689 = vadd.f32 0.0, %v3688
    %3690 = vmatmul.bf16.gmra.mxu0 %v2514
    %v3691 = vpop.f32.mrf.mxu0
    %v3692 = vadd.f32 0.0, %v3691
    %v3693 = vpop.f32.mrf.mxu0
    %v3694 = vadd.f32 0.0, %v3693
    %3695 = vmatmul.bf16.gmra.mxu0 %v2517
    %v3696 = vpop.f32.mrf.mxu0
    %v3697 = vadd.f32 0.0, %v3696
    %v3698 = vpop.f32.mrf.mxu0
    %v3699 = vadd.f32 0.0, %v3698
    %3700 = vmatmul.bf16.gmra.mxu0 %v2520
    %v3701 = vpop.f32.mrf.mxu0
    %v3702 = vadd.f32 0.0, %v3701
    %v3703 = vpop.f32.mrf.mxu0
    %v3704 = vadd.f32 0.0, %v3703
    %3705 = vmatmul.bf16.gmra.mxu0 %v2523
    %v3706 = vpop.f32.mrf.mxu0
    %v3707 = vadd.f32 0.0, %v3706
    %v3708 = vpop.f32.mrf.mxu0
    %v3709 = vadd.f32 0.0, %v3708
    %3710 = vmatmul.bf16.gmra.mxu0 %v2526
    %v3711 = vpop.f32.mrf.mxu0
    %v3712 = vadd.f32 0.0, %v3711
    %v3713 = vpop.f32.mrf.mxu0
    %v3714 = vadd.f32 0.0, %v3713
    %3715 = vmatmul.bf16.gmra.mxu0 %v2529
    %v3716 = vpop.f32.mrf.mxu0
    %v3717 = vadd.f32 0.0, %v3716
    %v3718 = vpop.f32.mrf.mxu0
    %v3719 = vadd.f32 0.0, %v3718
    %3720 = vmatmul.bf16.gmra.mxu0 %v2532
    %v3721 = vpop.f32.mrf.mxu0
    %v3722 = vadd.f32 0.0, %v3721
    %v3723 = vpop.f32.mrf.mxu0
    %v3724 = vadd.f32 0.0, %v3723
    %3725 = vmatmul.bf16.gmra.mxu0 %v2535
    %v3726 = vpop.f32.mrf.mxu0
    %v3727 = vadd.f32 0.0, %v3726
    %v3728 = vpop.f32.mrf.mxu0
    %v3729 = vadd.f32 0.0, %v3728
    %3730 = vmatmul.bf16.gmra.mxu0 %v2538
    %v3731 = vpop.f32.mrf.mxu0
    %v3732 = vadd.f32 0.0, %v3731
    %v3733 = vpop.f32.mrf.mxu0
    %v3734 = vadd.f32 0.0, %v3733
    %3735 = vmatmul.bf16.gmra.mxu0 %v2541
    %v3736 = vpop.f32.mrf.mxu0
    %v3737 = vadd.f32 0.0, %v3736
    %v3738 = vpop.f32.mrf.mxu0
    %v3739 = vadd.f32 0.0, %v3738
    %3740 = vmatmul.bf16.gmra.mxu0 %v2544
    %v3741 = vpop.f32.mrf.mxu0
    %v3742 = vadd.f32 0.0, %v3741
    %v3743 = vpop.f32.mrf.mxu0
    %v3744 = vadd.f32 0.0, %v3743
    %3745 = vmatmul.bf16.gmra.mxu0 %v2547
    %v3746 = vpop.f32.mrf.mxu0
    %v3747 = vadd.f32 0.0, %v3746
    %v3748 = vpop.f32.mrf.mxu0
    %v3749 = vadd.f32 0.0, %v3748
    %3750 = vmatmul.bf16.gmra.mxu0 %v2550
    %v3751 = vpop.f32.mrf.mxu0
    %v3752 = vadd.f32 0.0, %v3751
    %v3753 = vpop.f32.mrf.mxu0
    %v3754 = vadd.f32 0.0, %v3753
    %3755 = vmatmul.bf16.gmra.mxu0 %v2553
    %v3756 = vpop.f32.mrf.mxu0
    %v3757 = vadd.f32 0.0, %v3756
    %v3758 = vpop.f32.mrf.mxu0
    %v3759 = vadd.f32 0.0, %v3758
    %3760 = vmatmul.bf16.gmra.mxu0 %v2556
    %v3761 = vpop.f32.mrf.mxu0
    %v3762 = vadd.f32 0.0, %v3761
    %v3763 = vpop.f32.mrf.mxu0
    %v3764 = vadd.f32 0.0, %v3763
    %3765 = vmatmul.bf16.gmra.mxu0 %v2559
    %v3766 = vpop.f32.mrf.mxu0
    %v3767 = vadd.f32 0.0, %v3766
    %v3768 = vpop.f32.mrf.mxu0
    %v3769 = vadd.f32 0.0, %v3768
    %3770 = vmatmul.bf16.gmra.mxu0 %v2562
    %v3771 = vpop.f32.mrf.mxu0
    %v3772 = vadd.f32 0.0, %v3771
    %v3773 = vpop.f32.mrf.mxu0
    %v3774 = vadd.f32 0.0, %v3773
    %3775 = vmatmul.bf16.gmra.mxu0 %v2565
    %v3776 = vpop.f32.mrf.mxu0
    %v3777 = vadd.f32 0.0, %v3776
    %v3778 = vpop.f32.mrf.mxu0
    %v3779 = vadd.f32 0.0, %v3778
    %3780 = vmatmul.bf16.gmra.mxu0 %v2568
    %v3781 = vpop.f32.mrf.mxu0
    %v3782 = vadd.f32 0.0, %v3781
    %v3783 = vpop.f32.mrf.mxu0
    %v3784 = vadd.f32 0.0, %v3783
    %3785 = vmatmul.bf16.gmra.mxu0 %v2571
    %v3786 = vpop.f32.mrf.mxu0
    %v3787 = vadd.f32 0.0, %v3786
    %v3788 = vpop.f32.mrf.mxu0
    %v3789 = vadd.f32 0.0, %v3788
    %3790 = vmatmul.bf16.gmra.mxu0 %v2574
    %v3791 = vpop.f32.mrf.mxu0
    %v3792 = vadd.f32 0.0, %v3791
    %v3793 = vpop.f32.mrf.mxu0
    %v3794 = vadd.f32 0.0, %v3793
    %3795 = vmatmul.bf16.gmra.mxu0 %v2577
    %v3796 = vpop.f32.mrf.mxu0
    %v3797 = vadd.f32 0.0, %v3796
    %v3798 = vpop.f32.mrf.mxu0
    %v3799 = vadd.f32 0.0, %v3798
    %3800 = vmatmul.bf16.gmra.mxu0 %v2580
    %v3801 = vpop.f32.mrf.mxu0
    %v3802 = vadd.f32 0.0, %v3801
    %v3803 = vpop.f32.mrf.mxu0
    %v3804 = vadd.f32 0.0, %v3803
    %3805 = vmatmul.bf16.gmra.mxu0 %v2583
    %v3806 = vpop.f32.mrf.mxu0
    %v3807 = vadd.f32 0.0, %v3806
    %v3808 = vpop.f32.mrf.mxu0
    %v3809 = vadd.f32 0.0, %v3808
    %3810 = vmatmul.bf16.gmra.mxu0 %v2586
    %v3811 = vpop.f32.mrf.mxu0
    %v3812 = vadd.f32 0.0, %v3811
    %v3813 = vpop.f32.mrf.mxu0
    %v3814 = vadd.f32 0.0, %v3813
    %3815 = vmatmul.bf16.gmra.mxu0 %v2589
    %v3816 = vpop.f32.mrf.mxu0
    %v3817 = vadd.f32 0.0, %v3816
    %v3818 = vpop.f32.mrf.mxu0
    %v3819 = vadd.f32 0.0, %v3818
    %3820 = vmatmul.bf16.gmra.mxu0 %v2592
    %v3821 = vpop.f32.mrf.mxu0
    %v3822 = vadd.f32 0.0, %v3821
    %v3823 = vpop.f32.mrf.mxu0
    %v3824 = vadd.f32 0.0, %v3823
    %3825 = vmatmul.bf16.gmra.mxu0 %v2595
    %v3826 = vpop.f32.mrf.mxu0
    %v3827 = vadd.f32 0.0, %v3826
    %v3828 = vpop.f32.mrf.mxu0
    %v3829 = vadd.f32 0.0, %v3828
    %3830 = vmatmul.bf16.gmra.mxu0 %v2598
    %v3831 = vpop.f32.mrf.mxu0
    %v3832 = vadd.f32 0.0, %v3831
    %v3833 = vpop.f32.mrf.mxu0
    %v3834 = vadd.f32 0.0, %v3833
    %3835 = vmatmul.bf16.gmra.mxu0 %v2601
    %v3836 = vpop.f32.mrf.mxu0
    %v3837 = vadd.f32 0.0, %v3836
    %v3838 = vpop.f32.mrf.mxu0
    %v3839 = vadd.f32 0.0, %v3838
    %3840 = vmatmul.bf16.gmra.mxu0 %v2604
    %v3841 = vpop.f32.mrf.mxu0
    %v3842 = vadd.f32 0.0, %v3841
    %v3843 = vpop.f32.mrf.mxu0
    %v3844 = vadd.f32 0.0, %v3843
    %3845 = vmatmul.bf16.gmra.mxu0 %v2607
    %v3846 = vpop.f32.mrf.mxu0
    %v3847 = vadd.f32 0.0, %v3846
    %v3848 = vpop.f32.mrf.mxu0
    %v3849 = vadd.f32 0.0, %v3848
    %3850 = vmatmul.bf16.gmra.mxu0 %v2610
    %v3851 = vpop.f32.mrf.mxu0
    %v3852 = vadd.f32 0.0, %v3851
    %v3853 = vpop.f32.mrf.mxu0
    %v3854 = vadd.f32 0.0, %v3853
    %3855 = vmatmul.bf16.gmra.mxu0 %v2613
    %v3856 = vpop.f32.mrf.mxu0
    %v3857 = vadd.f32 0.0, %v3856
    %v3858 = vpop.f32.mrf.mxu0
    %v3859 = vadd.f32 0.0, %v3858
    %3860 = vmatmul.bf16.gmra.mxu0 %v2616
    %v3861 = vpop.f32.mrf.mxu0
    %v3862 = vadd.f32 0.0, %v3861
    %v3863 = vpop.f32.mrf.mxu0
    %v3864 = vadd.f32 0.0, %v3863
    %3865 = vmatmul.bf16.gmra.mxu0 %v2619
    %v3866 = vpop.f32.mrf.mxu0
    %v3867 = vadd.f32 0.0, %v3866
    %v3868 = vpop.f32.mrf.mxu0
    %v3869 = vadd.f32 0.0, %v3868
    %3870 = vmatmul.bf16.gmra.mxu0 %v2622
    %v3871 = vpop.f32.mrf.mxu0
    %v3872 = vadd.f32 0.0, %v3871
    %v3873 = vpop.f32.mrf.mxu0
    %v3874 = vadd.f32 0.0, %v3873
    %3875 = vmatmul.bf16.gmra.mxu0 %v2625
    %v3876 = vpop.f32.mrf.mxu0
    %v3877 = vadd.f32 0.0, %v3876
    %v3878 = vpop.f32.mrf.mxu0
    %v3879 = vadd.f32 0.0, %v3878
    %3880 = vmatmul.bf16.gmra.mxu0 %v2628
    %v3881 = vpop.f32.mrf.mxu0
    %v3882 = vadd.f32 0.0, %v3881
    %v3883 = vpop.f32.mrf.mxu0
    %v3884 = vadd.f32 0.0, %v3883
    %3885 = vmatmul.bf16.gmra.mxu0 %v2631
    %v3886 = vpop.f32.mrf.mxu0
    %v3887 = vadd.f32 0.0, %v3886
    %v3888 = vpop.f32.mrf.mxu0
    %v3889 = vadd.f32 0.0, %v3888
    %3890 = vmatmul.bf16.gmra.mxu0 %v2634
    %v3891 = vpop.f32.mrf.mxu0
    %v3892 = vadd.f32 0.0, %v3891
    %v3893 = vpop.f32.mrf.mxu0
    %v3894 = vadd.f32 0.0, %v3893
    %3895 = vmatmul.bf16.gmra.mxu0 %v2637
    %v3896 = vpop.f32.mrf.mxu0
    %v3897 = vadd.f32 0.0, %v3896
    %v3898 = vpop.f32.mrf.mxu0
    %v3899 = vadd.f32 0.0, %v3898
    %3900 = vmatmul.bf16.gmra.mxu0 %v2640
    %v3901 = vpop.f32.mrf.mxu0
    %v3902 = vadd.f32 0.0, %v3901
    %v3903 = vpop.f32.mrf.mxu0
    %v3904 = vadd.f32 0.0, %v3903
    %3905 = vmatmul.bf16.gmra.mxu0 %v2643
    %v3906 = vpop.f32.mrf.mxu0
    %v3907 = vadd.f32 0.0, %v3906
    %v3908 = vpop.f32.mrf.mxu0
    %v3909 = vadd.f32 0.0, %v3908
    %3910 = vmatmul.bf16.gmra.mxu0 %v2646
    %v3911 = vpop.f32.mrf.mxu0
    %v3912 = vadd.f32 0.0, %v3911
    %v3913 = vpop.f32.mrf.mxu0
    %v3914 = vadd.f32 0.0, %v3913
    %3915 = vmatmul.bf16.gmra.mxu0 %v2649
    %v3916 = vpop.f32.mrf.mxu0
    %v3917 = vadd.f32 0.0, %v3916
    %v3918 = vpop.f32.mrf.mxu0
    %v3919 = vadd.f32 0.0, %v3918
    %3920 = vmatmul.bf16.gmra.mxu0 %v2652
    %v3921 = vpop.f32.mrf.mxu0
    %v3922 = vadd.f32 0.0, %v3921
    %v3923 = vpop.f32.mrf.mxu0
    %v3924 = vadd.f32 0.0, %v3923
    %3925 = vmatmul.bf16.gmra.mxu0 %v2655
    %v3926 = vpop.f32.mrf.mxu0
    %v3927 = vadd.f32 0.0, %v3926
    %v3928 = vpop.f32.mrf.mxu0
    %v3929 = vadd.f32 0.0, %v3928
    %3930 = vmatmul.bf16.gmra.mxu0 %v2658
    %v3931 = vpop.f32.mrf.mxu0
    %v3932 = vadd.f32 0.0, %v3931
    %v3933 = vpop.f32.mrf.mxu0
    %v3934 = vadd.f32 0.0, %v3933
    %3935 = vmatmul.bf16.gmra.mxu0 %v2661
    %v3936 = vpop.f32.mrf.mxu0
    %v3937 = vadd.f32 0.0, %v3936
    %v3938 = vpop.f32.mrf.mxu0
    %v3939 = vadd.f32 0.0, %v3938
    %3940 = vmatmul.bf16.gmra.mxu0 %v2664
    %v3941 = vpop.f32.mrf.mxu0
    %v3942 = vadd.f32 0.0, %v3941
    %v3943 = vpop.f32.mrf.mxu0
    %v3944 = vadd.f32 0.0, %v3943
    %3945 = vmatmul.bf16.gmra.mxu0 %v2667
    %v3946 = vpop.f32.mrf.mxu0
    %v3947 = vadd.f32 0.0, %v3946
    %v3948 = vpop.f32.mrf.mxu0
    %v3949 = vadd.f32 0.0, %v3948
    %3950 = vmatmul.bf16.gmra.mxu0 %v2670
    %v3951 = vpop.f32.mrf.mxu0
    %v3952 = vadd.f32 0.0, %v3951
    %v3953 = vpop.f32.mrf.mxu0
    %v3954 = vadd.f32 0.0, %v3953
    %3955 = vmatmul.bf16.gmra.mxu0 %v2673
    %v3956 = vpop.f32.mrf.mxu0
    %v3957 = vadd.f32 0.0, %v3956
    %v3958 = vpop.f32.mrf.mxu0
    %v3959 = vadd.f32 0.0, %v3958
    %3960 = vmatmul.bf16.gmra.mxu0 %v2676
    %v3961 = vpop.f32.mrf.mxu0
    %v3962 = vadd.f32 0.0, %v3961
    %v3963 = vpop.f32.mrf.mxu0
    %v3964 = vadd.f32 0.0, %v3963
    %3965 = vmatmul.bf16.gmra.mxu0 %v2679
    %v3966 = vpop.f32.mrf.mxu0
    %v3967 = vadd.f32 0.0, %v3966
    %v3968 = vpop.f32.mrf.mxu0
    %v3969 = vadd.f32 0.0, %v3968
    %3970 = vmatmul.bf16.gmra.mxu0 %v2682
    %v3971 = vpop.f32.mrf.mxu0
    %v3972 = vadd.f32 0.0, %v3971
    %v3973 = vpop.f32.mrf.mxu0
    %v3974 = vadd.f32 0.0, %v3973
    %3975 = vmatmul.bf16.gmra.mxu0 %v2685
    %v3976 = vpop.f32.mrf.mxu0
    %v3977 = vadd.f32 0.0, %v3976
    %v3978 = vpop.f32.mrf.mxu0
    %v3979 = vadd.f32 0.0, %v3978
    %3980 = vmatmul.bf16.gmra.mxu0 %v2688
    %v3981 = vpop.f32.mrf.mxu0
    %v3982 = vadd.f32 0.0, %v3981
    %v3983 = vpop.f32.mrf.mxu0
    %v3984 = vadd.f32 0.0, %v3983
    %3985 = vmatmul.bf16.gmra.mxu0 %v2691
    %v3986 = vpop.f32.mrf.mxu0
    %v3987 = vadd.f32 0.0, %v3986
    %v3988 = vpop.f32.mrf.mxu0
    %v3989 = vadd.f32 0.0, %v3988
    %3990 = vmatmul.bf16.gmra.mxu0 %v2694
    %v3991 = vpop.f32.mrf.mxu0
    %v3992 = vadd.f32 0.0, %v3991
    %v3993 = vpop.f32.mrf.mxu0
    %v3994 = vadd.f32 0.0, %v3993
    %3995 = vmatmul.bf16.gmra.mxu0 %v2697
    %v3996 = vpop.f32.mrf.mxu0
    %v3997 = vadd.f32 0.0, %v3996
    %v3998 = vpop.f32.mrf.mxu0
    %v3999 = vadd.f32 0.0, %v3998
    %4000 = vmatmul.bf16.gmra.mxu0 %v2700
    %v4001 = vpop.f32.mrf.mxu0
    %v4002 = vadd.f32 0.0, %v4001
    %v4003 = vpop.f32.mrf.mxu0
    %v4004 = vadd.f32 0.0, %v4003
    %4005 = vmatmul.bf16.gmra.mxu0 %v2703
    %v4006 = vpop.f32.mrf.mxu0
    %v4007 = vadd.f32 0.0, %v4006
    %v4008 = vpop.f32.mrf.mxu0
    %v4009 = vadd.f32 0.0, %v4008
    %4010 = vmatmul.bf16.gmra.mxu0 %v2706
    %v4011 = vpop.f32.mrf.mxu0
    %v4012 = vadd.f32 0.0, %v4011
    %v4013 = vpop.f32.mrf.mxu0
    %v4014 = vadd.f32 0.0, %v4013
    %4015 = vmatmul.bf16.gmra.mxu0 %v2709
    %v4016 = vpop.f32.mrf.mxu0
    %v4017 = vadd.f32 0.0, %v4016
    %v4018 = vpop.f32.mrf.mxu0
    %v4019 = vadd.f32 0.0, %v4018
    %4020 = vmatmul.bf16.gmra.mxu0 %v2712
    %v4021 = vpop.f32.mrf.mxu0
    %v4022 = vadd.f32 0.0, %v4021
    %v4023 = vpop.f32.mrf.mxu0
    %v4024 = vadd.f32 0.0, %v4023
    %4025 = vmatmul.bf16.gmra.mxu0 %v2715
    %v4026 = vpop.f32.mrf.mxu0
    %v4027 = vadd.f32 0.0, %v4026
    %v4028 = vpop.f32.mrf.mxu0
    %v4029 = vadd.f32 0.0, %v4028
    %4030 = vmatmul.bf16.gmra.mxu0 %v2718
    %v4031 = vpop.f32.mrf.mxu0
    %v4032 = vadd.f32 0.0, %v4031
    %v4033 = vpop.f32.mrf.mxu0
    %v4034 = vadd.f32 0.0, %v4033
    %4035 = vmatmul.bf16.gmra.mxu0 %v2721
    %v4036 = vpop.f32.mrf.mxu0
    %v4037 = vadd.f32 0.0, %v4036
    %v4038 = vpop.f32.mrf.mxu0
    %v4039 = vadd.f32 0.0, %v4038
    %4040 = vmatmul.bf16.gmra.mxu0 %v2724
    %v4041 = vpop.f32.mrf.mxu0
    %v4042 = vadd.f32 0.0, %v4041
    %v4043 = vpop.f32.mrf.mxu0
    %v4044 = vadd.f32 0.0, %v4043
    %4045 = vmatmul.bf16.gmra.mxu0 %v2727
    %v4046 = vpop.f32.mrf.mxu0
    %v4047 = vadd.f32 0.0, %v4046
    %v4048 = vpop.f32.mrf.mxu0
    %v4049 = vadd.f32 0.0, %v4048
    %4050 = vmatmul.bf16.gmra.mxu0 %v2730
    %v4051 = vpop.f32.mrf.mxu0
    %v4052 = vadd.f32 0.0, %v4051
    %v4053 = vpop.f32.mrf.mxu0
    %v4054 = vadd.f32 0.0, %v4053
    %4055 = vmatmul.bf16.gmra.mxu0 %v2733
    %v4056 = vpop.f32.mrf.mxu0
    %v4057 = vadd.f32 0.0, %v4056
    %v4058 = vpop.f32.mrf.mxu0
    %v4059 = vadd.f32 0.0, %v4058
    %4060 = vmatmul.bf16.gmra.mxu0 %v2736
    %v4061 = vpop.f32.mrf.mxu0
    %v4062 = vadd.f32 0.0, %v4061
    %v4063 = vpop.f32.mrf.mxu0
    %v4064 = vadd.f32 0.0, %v4063
    %4065 = vmatmul.bf16.gmra.mxu0 %v2739
    %v4066 = vpop.f32.mrf.mxu0
    %v4067 = vadd.f32 0.0, %v4066
    %v4068 = vpop.f32.mrf.mxu0
    %v4069 = vadd.f32 0.0, %v4068
    %4070 = vmatmul.bf16.gmra.mxu0 %v2742
    %v4071 = vpop.f32.mrf.mxu0
    %v4072 = vadd.f32 0.0, %v4071
    %v4073 = vpop.f32.mrf.mxu0
    %v4074 = vadd.f32 0.0, %v4073
    %4075 = vmatmul.bf16.gmra.mxu0 %v2745
    %v4076 = vpop.f32.mrf.mxu0
    %v4077 = vadd.f32 0.0, %v4076
    %v4078 = vpop.f32.mrf.mxu0
    %v4079 = vadd.f32 0.0, %v4078
    %4080 = vmatmul.bf16.gmra.mxu0 %v2748
    %v4081 = vpop.f32.mrf.mxu0
    %v4082 = vadd.f32 0.0, %v4081
    %v4083 = vpop.f32.mrf.mxu0
    %v4084 = vadd.f32 0.0, %v4083
    %4085 = vmatmul.bf16.gmra.mxu0 %v2751
    %v4086 = vpop.f32.mrf.mxu0
    %v4087 = vadd.f32 0.0, %v4086
    %v4088 = vpop.f32.mrf.mxu0
    %v4089 = vadd.f32 0.0, %v4088
    %4090 = vmatmul.bf16.gmra.mxu0 %v2754
    %v4091 = vpop.f32.mrf.mxu0
    %v4092 = vadd.f32 0.0, %v4091
    %v4093 = vpop.f32.mrf.mxu0
    %v4094 = vadd.f32 0.0, %v4093
    %4095 = vmatmul.bf16.gmra.mxu0 %v2757
    %v4096 = vpop.f32.mrf.mxu0
    %v4097 = vadd.f32 0.0, %v4096
    %v4098 = vpop.f32.mrf.mxu0
    %v4099 = vadd.f32 0.0, %v4098
    %4100 = vmatmul.bf16.gmra.mxu0 %v2760
    %v4101 = vpop.f32.mrf.mxu0
    %v4102 = vadd.f32 0.0, %v4101
    %v4103 = vpop.f32.mrf.mxu0
    %v4104 = vadd.f32 0.0, %v4103
    %4105 = vmatmul.bf16.gmra.mxu0 %v2763
    %v4106 = vpop.f32.mrf.mxu0
    %v4107 = vadd.f32 0.0, %v4106
    %v4108 = vpop.f32.mrf.mxu0
    %v4109 = vadd.f32 0.0, %v4108
    %4110 = vmatmul.bf16.gmra.mxu0 %v2766
    %v4111 = vpop.f32.mrf.mxu0
    %v4112 = vadd.f32 0.0, %v4111
    %v4113 = vpop.f32.mrf.mxu0
    %v4114 = vadd.f32 0.0, %v4113
    %4115 = vmatmul.bf16.gmra.mxu0 %v2769
    %v4116 = vpop.f32.mrf.mxu0
    %v4117 = vadd.f32 0.0, %v4116
    %v4118 = vpop.f32.mrf.mxu0
    %v4119 = vadd.f32 0.0, %v4118
    %4120 = vmatmul.bf16.gmra.mxu0 %v2772
    %v4121 = vpop.f32.mrf.mxu0
    %v4122 = vadd.f32 0.0, %v4121
    %v4123 = vpop.f32.mrf.mxu0
    %v4124 = vadd.f32 0.0, %v4123
    %4125 = vmatmul.bf16.gmra.mxu0 %v2775
    %v4126 = vpop.f32.mrf.mxu0
    %v4127 = vadd.f32 0.0, %v4126
    %v4128 = vpop.f32.mrf.mxu0
    %v4129 = vadd.f32 0.0, %v4128
    %4130 = vmatmul.bf16.gmra.mxu0 %v2778
    %v4131 = vpop.f32.mrf.mxu0
    %v4132 = vadd.f32 0.0, %v4131
    %v4133 = vpop.f32.mrf.mxu0
    %v4134 = vadd.f32 0.0, %v4133
    %4135 = vmatmul.bf16.gmra.mxu0 %v2781
    %v4136 = vpop.f32.mrf.mxu0
    %v4137 = vadd.f32 0.0, %v4136
    %v4138 = vpop.f32.mrf.mxu0
    %v4139 = vadd.f32 0.0, %v4138
    %4140 = vmatmul.bf16.gmra.mxu0 %v2784
    %v4141 = vpop.f32.mrf.mxu0
    %v4142 = vadd.f32 0.0, %v4141
    %v4143 = vpop.f32.mrf.mxu0
    %v4144 = vadd.f32 0.0, %v4143
    %4145 = vmatmul.bf16.gmra.mxu0 %v2787
    %v4146 = vpop.f32.mrf.mxu0
    %v4147 = vadd.f32 0.0, %v4146
    %v4148 = vpop.f32.mrf.mxu0
    %v4149 = vadd.f32 0.0, %v4148
    %4150 = vmatmul.bf16.gmra.mxu0 %v2790
    %v4151 = vpop.f32.mrf.mxu0
    %v4152 = vadd.f32 0.0, %v4151
    %v4153 = vpop.f32.mrf.mxu0
    %v4154 = vadd.f32 0.0, %v4153
    %4155 = vmatmul.bf16.gmra.mxu0 %v2793
    %v4156 = vpop.f32.mrf.mxu0
    %v4157 = vadd.f32 0.0, %v4156
    %v4158 = vpop.f32.mrf.mxu0
    %v4159 = vadd.f32 0.0, %v4158
    %4160 = vmatmul.bf16.gmra.mxu0 %v2796
    %v4161 = vpop.f32.mrf.mxu0
    %v4162 = vadd.f32 0.0, %v4161
    %v4163 = vpop.f32.mrf.mxu0
    %v4164 = vadd.f32 0.0, %v4163
    %4165 = vmatmul.bf16.gmra.mxu0 %v2799
    %v4166 = vpop.f32.mrf.mxu0
    %v4167 = vadd.f32 0.0, %v4166
    %v4168 = vpop.f32.mrf.mxu0
    %v4169 = vadd.f32 0.0, %v4168
    %4170 = vmatmul.bf16.gmra.mxu0 %v2802
    %v4171 = vpop.f32.mrf.mxu0
    %v4172 = vadd.f32 0.0, %v4171
    %v4173 = vpop.f32.mrf.mxu0
    %v4174 = vadd.f32 0.0, %v4173
    %4175 = vmatmul.bf16.gmra.mxu0 %v2805
    %v4176 = vpop.f32.mrf.mxu0
    %v4177 = vadd.f32 0.0, %v4176
    %v4178 = vpop.f32.mrf.mxu0
    %v4179 = vadd.f32 0.0, %v4178
    %4180 = vmatmul.bf16.gmra.mxu0 %v2808
    %v4181 = vpop.f32.mrf.mxu0
    %v4182 = vadd.f32 0.0, %v4181
    %v4183 = vpop.f32.mrf.mxu0
    %v4184 = vadd.f32 0.0, %v4183
    %4185 = vmatmul.bf16.gmra.mxu0 %v2811
    %v4186 = vpop.f32.mrf.mxu0
    %v4187 = vadd.f32 0.0, %v4186
    %v4188 = vpop.f32.mrf.mxu0
    %v4189 = vadd.f32 0.0, %v4188
    %4190 = vmatmul.bf16.gmra.mxu0 %v2814
    %v4191 = vpop.f32.mrf.mxu0
    %v4192 = vadd.f32 0.0, %v4191
    %v4193 = vpop.f32.mrf.mxu0
    %v4194 = vadd.f32 0.0, %v4193
    %4195 = vmatmul.bf16.gmra.mxu0 %v2817
    %v4196 = vpop.f32.mrf.mxu0
    %v4197 = vadd.f32 0.0, %v4196
    %v4198 = vpop.f32.mrf.mxu0
    %v4199 = vadd.f32 0.0, %v4198
    %4200 = vmatmul.bf16.gmra.mxu0 %v2820
    %v4201 = vpop.f32.mrf.mxu0
    %v4202 = vadd.f32 0.0, %v4201
    %v4203 = vpop.f32.mrf.mxu0
    %v4204 = vadd.f32 0.0, %v4203
    %4205 = vmatmul.bf16.gmra.mxu0 %v2823
    %v4206 = vpop.f32.mrf.mxu0
    %v4207 = vadd.f32 0.0, %v4206
    %v4208 = vpop.f32.mrf.mxu0
    %v4209 = vadd.f32 0.0, %v4208
    %4210 = vmatmul.bf16.gmra.mxu0 %v2826
    %v4211 = vpop.f32.mrf.mxu0
    %v4212 = vadd.f32 0.0, %v4211
    %v4213 = vpop.f32.mrf.mxu0
    %v4214 = vadd.f32 0.0, %v4213
    %4215 = vmatmul.bf16.gmra.mxu0 %v2829
    %v4216 = vpop.f32.mrf.mxu0
    %v4217 = vadd.f32 0.0, %v4216
    %v4218 = vpop.f32.mrf.mxu0
    %v4219 = vadd.f32 0.0, %v4218
    %4220 = vmatmul.bf16.gmra.mxu0 %v2832
    %v4221 = vpop.f32.mrf.mxu0
    %v4222 = vadd.f32 0.0, %v4221
    %v4223 = vpop.f32.mrf.mxu0
    %v4224 = vadd.f32 0.0, %v4223
    %4225 = vmatmul.bf16.gmra.mxu0 %v2835
    %v4226 = vpop.f32.mrf.mxu0
    %v4227 = vadd.f32 0.0, %v4226
    %v4228 = vpop.f32.mrf.mxu0
    %v4229 = vadd.f32 0.0, %v4228
    %4230 = vmatmul.bf16.gmra.mxu0 %v2838
    %v4231 = vpop.f32.mrf.mxu0
    %v4232 = vadd.f32 0.0, %v4231
    %v4233 = vpop.f32.mrf.mxu0
    %v4234 = vadd.f32 0.0, %v4233
    %4235 = vmatmul.bf16.gmra.mxu0 %v2841
    %v4236 = vpop.f32.mrf.mxu0
    %v4237 = vadd.f32 0.0, %v4236
    %v4238 = vpop.f32.mrf.mxu0
    %v4239 = vadd.f32 0.0, %v4238
    %4240 = vmatmul.bf16.gmra.mxu0 %v2844
    %v4241 = vpop.f32.mrf.mxu0
    %v4242 = vadd.f32 0.0, %v4241
    %v4243 = vpop.f32.mrf.mxu0
    %v4244 = vadd.f32 0.0, %v4243
    %4245 = vmatmul.bf16.gmra.mxu0 %v2847
    %v4246 = vpop.f32.mrf.mxu0
    %v4247 = vadd.f32 0.0, %v4246
    %v4248 = vpop.f32.mrf.mxu0
    %v4249 = vadd.f32 0.0, %v4248
    %4250 = vmatmul.bf16.gmra.mxu0 %v2850
    %v4251 = vpop.f32.mrf.mxu0
    %v4252 = vadd.f32 0.0, %v4251
    %v4253 = vpop.f32.mrf.mxu0
    %v4254 = vadd.f32 0.0, %v4253
    %4255 = vmatmul.bf16.gmra.mxu0 %v2853
    %v4256 = vpop.f32.mrf.mxu0
    %v4257 = vadd.f32 0.0, %v4256
    %v4258 = vpop.f32.mrf.mxu0
    %v4259 = vadd.f32 0.0, %v4258
    %4260 = vmatmul.bf16.gmra.mxu0 %v2856
    %v4261 = vpop.f32.mrf.mxu0
    %v4262 = vadd.f32 0.0, %v4261
    %v4263 = vpop.f32.mrf.mxu0
    %v4264 = vadd.f32 0.0, %v4263
    %4265 = vmatmul.bf16.gmra.mxu0 %v2859
    %v4266 = vpop.f32.mrf.mxu0
    %v4267 = vadd.f32 0.0, %v4266
    %v4268 = vpop.f32.mrf.mxu0
    %v4269 = vadd.f32 0.0, %v4268
    %4270 = vmatmul.bf16.gmra.mxu0 %v2862
    %v4271 = vpop.f32.mrf.mxu0
    %v4272 = vadd.f32 0.0, %v4271
    %v4273 = vpop.f32.mrf.mxu0
    %v4274 = vadd.f32 0.0, %v4273
    %4275 = vmatmul.bf16.gmra.mxu0 %v2865
    %v4276 = vpop.f32.mrf.mxu0
    %v4277 = vadd.f32 0.0, %v4276
    %v4278 = vpop.f32.mrf.mxu0
    %v4279 = vadd.f32 0.0, %v4278
    %4280 = vmatmul.bf16.gmra.mxu0 %v2868
    %v4281 = vpop.f32.mrf.mxu0
    %v4282 = vadd.f32 0.0, %v4281
    %v4283 = vpop.f32.mrf.mxu0
    %v4284 = vadd.f32 0.0, %v4283
    %4285 = vmatmul.bf16.gmra.mxu0 %v2871
    %v4286 = vpop.f32.mrf.mxu0
    %v4287 = vadd.f32 0.0, %v4286
    %v4288 = vpop.f32.mrf.mxu0
    %v4289 = vadd.f32 0.0, %v4288
    %4290 = vmatmul.bf16.gmra.mxu0 %v2874
    %v4291 = vpop.f32.mrf.mxu0
    %v4292 = vadd.f32 0.0, %v4291
    %v4293 = vpop.f32.mrf.mxu0
    %v4294 = vadd.f32 0.0, %v4293
    %4295 = vmatmul.bf16.gmra.mxu0 %v2877
    %v4296 = vpop.f32.mrf.mxu0
    %v4297 = vadd.f32 0.0, %v4296
    %v4298 = vpop.f32.mrf.mxu0
    %v4299 = vadd.f32 0.0, %v4298
    %4300 = vmatmul.bf16.gmra.mxu0 %v2880
    %v4301 = vpop.f32.mrf.mxu0
    %v4302 = vadd.f32 0.0, %v4301
    %v4303 = vpop.f32.mrf.mxu0
    %v4304 = vadd.f32 0.0, %v4303
    %4305 = vmatmul.bf16.gmra.mxu0 %v2883
    %v4306 = vpop.f32.mrf.mxu0
    %v4307 = vadd.f32 0.0, %v4306
    %v4308 = vpop.f32.mrf.mxu0
    %v4309 = vadd.f32 0.0, %v4308
    %4310 = vmatmul.bf16.gmra.mxu0 %v2886
    %v4311 = vpop.f32.mrf.mxu0
    %v4312 = vadd.f32 0.0, %v4311
    %v4313 = vpop.f32.mrf.mxu0
    %v4314 = vadd.f32 0.0, %v4313
    %4315 = vmatmul.bf16.gmra.mxu0 %v2889
    %v4316 = vpop.f32.mrf.mxu0
    %v4317 = vadd.f32 0.0, %v4316
    %v4318 = vpop.f32.mrf.mxu0
    %v4319 = vadd.f32 0.0, %v4318
    %4320 = vmatmul.bf16.gmra.mxu0 %v2892
    %v4321 = vpop.f32.mrf.mxu0
    %v4322 = vadd.f32 0.0, %v4321
    %v4323 = vpop.f32.mrf.mxu0
    %v4324 = vadd.f32 0.0, %v4323
    %4325 = vmatmul.bf16.gmra.mxu0 %v2895
    %v4326 = vpop.f32.mrf.mxu0
    %v4327 = vadd.f32 0.0, %v4326
    %v4328 = vpop.f32.mrf.mxu0
    %v4329 = vadd.f32 0.0, %v4328
    %4330 = vmatmul.bf16.gmra.mxu0 %v2898
    %v4331 = vpop.f32.mrf.mxu0
    %v4332 = vadd.f32 0.0, %v4331
    %v4333 = vpop.f32.mrf.mxu0
    %v4334 = vadd.f32 0.0, %v4333
    %4335 = vmatmul.bf16.gmra.mxu0 %v2901
    %v4336 = vpop.f32.mrf.mxu0
    %v4337 = vadd.f32 0.0, %v4336
    %v4338 = vpop.f32.mrf.mxu0
    %v4339 = vadd.f32 0.0, %v4338
    %4340 = vmatmul.bf16.gmra.mxu0 %v2904
    %v4341 = vpop.f32.mrf.mxu0
    %v4342 = vadd.f32 0.0, %v4341
    %v4343 = vpop.f32.mrf.mxu0
    %v4344 = vadd.f32 0.0, %v4343
    %4345 = vmatmul.bf16.gmra.mxu0 %v2907
    %v4346 = vpop.f32.mrf.mxu0
    %v4347 = vadd.f32 0.0, %v4346
    %v4348 = vpop.f32.mrf.mxu0
    %v4349 = vadd.f32 0.0, %v4348
    %4350 = vmatmul.bf16.gmra.mxu0 %v2910
    %v4351 = vpop.f32.mrf.mxu0
    %v4352 = vadd.f32 0.0, %v4351
    %v4353 = vpop.f32.mrf.mxu0
    %v4354 = vadd.f32 0.0, %v4353
    %4355 = vmatmul.bf16.gmra.mxu0 %v2913
    %v4356 = vpop.f32.mrf.mxu0
    %v4357 = vadd.f32 0.0, %v4356
    %v4358 = vpop.f32.mrf.mxu0
    %v4359 = vadd.f32 0.0, %v4358
    %4360 = vmatmul.bf16.gmra.mxu0 %v2916
    %v4361 = vpop.f32.mrf.mxu0
    %v4362 = vadd.f32 0.0, %v4361
    %v4363 = vpop.f32.mrf.mxu0
    %v4364 = vadd.f32 0.0, %v4363
    %4365 = vmatmul.bf16.gmra.mxu0 %v2919
    %v4366 = vpop.f32.mrf.mxu0
    %v4367 = vadd.f32 0.0, %v4366
    %v4368 = vpop.f32.mrf.mxu0
    %v4369 = vadd.f32 0.0, %v4368
    %4370 = vmatmul.bf16.gmra.mxu0 %v2922
    %v4371 = vpop.f32.mrf.mxu0
    %v4372 = vadd.f32 0.0, %v4371
    %v4373 = vpop.f32.mrf.mxu0
    %v4374 = vadd.f32 0.0, %v4373
    %4375 = vmatmul.bf16.gmra.mxu0 %v2925
    %v4376 = vpop.f32.mrf.mxu0
    %v4377 = vadd.f32 0.0, %v4376
    %v4378 = vpop.f32.mrf.mxu0
    %v4379 = vadd.f32 0.0, %v4378
    %4380 = vmatmul.bf16.gmra.mxu0 %v2928
    %v4381 = vpop.f32.mrf.mxu0
    %v4382 = vadd.f32 0.0, %v4381
    %v4383 = vpop.f32.mrf.mxu0
    %v4384 = vadd.f32 0.0, %v4383
    %4385 = vdwg.mxu0
    %v4386 = vmax.f32 %v2947, %v3307
    %v4387 = vmax.f32 %v2949, %v3309
    %v4388 = vmax.f32 %v2952, %v3312
    %v4389 = vmax.f32 %v2954, %v3314
    %v4390 = vmax.f32 %v2957, %v3317
    %v4391 = vmax.f32 %v2959, %v3319
    %v4392 = vmax.f32 %v2962, %v3322
    %v4393 = vmax.f32 %v2964, %v3324
    %v4394 = vmax.f32 %v2967, %v3327
    %v4395 = vmax.f32 %v2969, %v3329
    %v4396 = vmax.f32 %v2972, %v3332
    %v4397 = vmax.f32 %v2974, %v3334
    %v4398 = vmax.f32 %v2977, %v3337
    %v4399 = vmax.f32 %v2979, %v3339
    %v4400 = vmax.f32 %v2982, %v3342
    %v4401 = vmax.f32 %v2984, %v3344
    %v4402 = vmax.f32 %v2987, %v3347
    %v4403 = vmax.f32 %v2989, %v3349
    %v4404 = vmax.f32 %v2992, %v3352
    %v4405 = vmax.f32 %v2994, %v3354
    %v4406 = vmax.f32 %v2997, %v3357
    %v4407 = vmax.f32 %v2999, %v3359
    %v4408 = vmax.f32 %v3002, %v3362
    %v4409 = vmax.f32 %v3004, %v3364
    %v4410 = vmax.f32 %v3007, %v3367
    %v4411 = vmax.f32 %v3009, %v3369
    %v4412 = vmax.f32 %v3012, %v3372
    %v4413 = vmax.f32 %v3014, %v3374
    %v4414 = vmax.f32 %v3017, %v3377
    %v4415 = vmax.f32 %v3019, %v3379
    %v4416 = vmax.f32 %v3022, %v3382
    %v4417 = vmax.f32 %v3024, %v3384
    %v4418 = vmax.f32 %v3027, %v3387
    %v4419 = vmax.f32 %v3029, %v3389
    %v4420 = vmax.f32 %v3032, %v3392
    %v4421 = vmax.f32 %v3034, %v3394
    %v4422 = vmax.f32 %v3037, %v3397
    %v4423 = vmax.f32 %v3039, %v3399
    %v4424 = vmax.f32 %v3042, %v3402
    %v4425 = vmax.f32 %v3044, %v3404
    %v4426 = vmax.f32 %v3047, %v3407
    %v4427 = vmax.f32 %v3049, %v3409
    %v4428 = vmax.f32 %v3052, %v3412
    %v4429 = vmax.f32 %v3054, %v3414
    %v4430 = vmax.f32 %v3057, %v3417
    %v4431 = vmax.f32 %v3059, %v3419
    %v4432 = vmax.f32 %v3062, %v3422
    %v4433 = vmax.f32 %v3064, %v3424
    %v4434 = vmax.f32 %v3067, %v3427
    %v4435 = vmax.f32 %v3069, %v3429
    %v4436 = vmax.f32 %v3072, %v3432
    %v4437 = vmax.f32 %v3074, %v3434
    %v4438 = vmax.f32 %v3077, %v3437
    %v4439 = vmax.f32 %v3079, %v3439
    %v4440 = vmax.f32 %v3082, %v3442
    %v4441 = vmax.f32 %v3084, %v3444
    %v4442 = vmax.f32 %v3087, %v3447
    %v4443 = vmax.f32 %v3089, %v3449
    %v4444 = vmax.f32 %v3092, %v3452
    %v4445 = vmax.f32 %v3094, %v3454
    %v4446 = vmax.f32 %v3097, %v3457
    %v4447 = vmax.f32 %v3099, %v3459
    %v4448 = vmax.f32 %v3102, %v3462
    %v4449 = vmax.f32 %v3104, %v3464
    %v4450 = vmax.f32 %v3107, %v3467
    %v4451 = vmax.f32 %v3109, %v3469
    %v4452 = vmax.f32 %v3112, %v3472
    %v4453 = vmax.f32 %v3114, %v3474
    %v4454 = vmax.f32 %v3117, %v3477
    %v4455 = vmax.f32 %v3119, %v3479
    %v4456 = vmax.f32 %v3122, %v3482
    %v4457 = vmax.f32 %v3124, %v3484
    %v4458 = vmax.f32 %v3127, %v3487
    %v4459 = vmax.f32 %v3129, %v3489
    %v4460 = vmax.f32 %v3132, %v3492
    %v4461 = vmax.f32 %v3134, %v3494
    %v4462 = vmax.f32 %v3137, %v3497
    %v4463 = vmax.f32 %v3139, %v3499
    %v4464 = vmax.f32 %v3142, %v3502
    %v4465 = vmax.f32 %v3144, %v3504
    %v4466 = vmax.f32 %v3147, %v3507
    %v4467 = vmax.f32 %v3149, %v3509
    %v4468 = vmax.f32 %v3152, %v3512
    %v4469 = vmax.f32 %v3154, %v3514
    %v4470 = vmax.f32 %v3157, %v3517
    %v4471 = vmax.f32 %v3159, %v3519
    %v4472 = vmax.f32 %v3162, %v3522
    %v4473 = vmax.f32 %v3164, %v3524
    %v4474 = vmax.f32 %v3167, %v3527
    %v4475 = vmax.f32 %v3169, %v3529
    %v4476 = vmax.f32 %v3172, %v3532
    %v4477 = vmax.f32 %v3174, %v3534
    %v4478 = vmax.f32 %v3177, %v3537
    %v4479 = vmax.f32 %v3179, %v3539
    %v4480 = vmax.f32 %v3182, %v3542
    %v4481 = vmax.f32 %v3184, %v3544
    %v4482 = vmax.f32 %v3187, %v3547
    %v4483 = vmax.f32 %v3189, %v3549
    %v4484 = vmax.f32 %v3192, %v3552
    %v4485 = vmax.f32 %v3194, %v3554
    %v4486 = vmax.f32 %v3197, %v3557
    %v4487 = vmax.f32 %v3199, %v3559
    %v4488 = vmax.f32 %v3202, %v3562
    %v4489 = vmax.f32 %v3204, %v3564
    %v4490 = vmax.f32 %v3207, %v3567
    %v4491 = vmax.f32 %v3209, %v3569
    %v4492 = vmax.f32 %v3212, %v3572
    %v4493 = vmax.f32 %v3214, %v3574
    %v4494 = vmax.f32 %v3217, %v3577
    %v4495 = vmax.f32 %v3219, %v3579
    %v4496 = vmax.f32 %v3222, %v3582
    %v4497 = vmax.f32 %v3224, %v3584
    %v4498 = vmax.f32 %v3227, %v3587
    %v4499 = vmax.f32 %v3229, %v3589
    %v4500 = vmax.f32 %v3232, %v3592
    %v4501 = vmax.f32 %v3234, %v3594
    %v4502 = vmax.f32 %v3237, %v3597
    %v4503 = vmax.f32 %v3239, %v3599
    %v4504 = vmax.f32 %v3242, %v3602
    %v4505 = vmax.f32 %v3244, %v3604
    %v4506 = vmax.f32 %v3247, %v3607
    %v4507 = vmax.f32 %v3249, %v3609
    %v4508 = vmax.f32 %v3252, %v3612
    %v4509 = vmax.f32 %v3254, %v3614
    %v4510 = vmax.f32 %v3257, %v3617
    %v4511 = vmax.f32 %v3259, %v3619
    %v4512 = vmax.f32 %v3262, %v3622
    %v4513 = vmax.f32 %v3264, %v3624
    %v4514 = vmax.f32 %v3267, %v3627
    %v4515 = vmax.f32 %v3269, %v3629
    %v4516 = vmax.f32 %v3272, %v3632
    %v4517 = vmax.f32 %v3274, %v3634
    %v4518 = vmax.f32 %v3277, %v3637
    %v4519 = vmax.f32 %v3279, %v3639
    %v4520 = vmax.f32 %v3282, %v3642
    %v4521 = vmax.f32 %v3284, %v3644
    %v4522 = vmax.f32 %v3287, %v3647
    %v4523 = vmax.f32 %v3289, %v3649
    %v4524 = vmax.f32 %v3292, %v3652
    %v4525 = vmax.f32 %v3294, %v3654
    %v4526 = vmax.f32 %v3297, %v3657
    %v4527 = vmax.f32 %v3299, %v3659
    %v4528 = vmax.f32 %v3302, %v3662
    %v4529 = vmax.f32 %v3304, %v3664
    %v4530 = vmax.f32 %v3667, %v4027
    %v4531 = vmax.f32 %v3669, %v4029
    %v4532 = vmax.f32 %v3672, %v4032
    %v4533 = vmax.f32 %v3674, %v4034
    %v4534 = vmax.f32 %v3677, %v4037
    %v4535 = vmax.f32 %v3679, %v4039
    %v4536 = vmax.f32 %v3682, %v4042
    %v4537 = vmax.f32 %v3684, %v4044
    %v4538 = vmax.f32 %v3687, %v4047
    %v4539 = vmax.f32 %v3689, %v4049
    %v4540 = vmax.f32 %v3692, %v4052
    %v4541 = vmax.f32 %v3694, %v4054
    %v4542 = vmax.f32 %v3697, %v4057
    %v4543 = vmax.f32 %v3699, %v4059
    %v4544 = vmax.f32 %v3702, %v4062
    %v4545 = vmax.f32 %v3704, %v4064
    %v4546 = vmax.f32 %v3707, %v4067
    %v4547 = vmax.f32 %v3709, %v4069
    %v4548 = vmax.f32 %v3712, %v4072
    %v4549 = vmax.f32 %v3714, %v4074
    %v4550 = vmax.f32 %v3717, %v4077
    %v4551 = vmax.f32 %v3719, %v4079
    %v4552 = vmax.f32 %v3722, %v4082
    %v4553 = vmax.f32 %v3724, %v4084
    %v4554 = vmax.f32 %v3727, %v4087
    %v4555 = vmax.f32 %v3729, %v4089
    %v4556 = vmax.f32 %v3732, %v4092
    %v4557 = vmax.f32 %v3734, %v4094
    %v4558 = vmax.f32 %v3737, %v4097
    %v4559 = vmax.f32 %v3739, %v4099
    %v4560 = vmax.f32 %v3742, %v4102
    %v4561 = vmax.f32 %v3744, %v4104
    %v4562 = vmax.f32 %v3747, %v4107
    %v4563 = vmax.f32 %v3749, %v4109
    %v4564 = vmax.f32 %v3752, %v4112
    %v4565 = vmax.f32 %v3754, %v4114
    %v4566 = vmax.f32 %v3757, %v4117
    %v4567 = vmax.f32 %v3759, %v4119
    %v4568 = vmax.f32 %v3762, %v4122
    %v4569 = vmax.f32 %v3764, %v4124
    %v4570 = vmax.f32 %v3767, %v4127
    %v4571 = vmax.f32 %v3769, %v4129
    %v4572 = vmax.f32 %v3772, %v4132
    %v4573 = vmax.f32 %v3774, %v4134
    %v4574 = vmax.f32 %v3777, %v4137
    %v4575 = vmax.f32 %v3779, %v4139
    %v4576 = vmax.f32 %v3782, %v4142
    %v4577 = vmax.f32 %v3784, %v4144
    %v4578 = vmax.f32 %v3787, %v4147
    %v4579 = vmax.f32 %v3789, %v4149
    %v4580 = vmax.f32 %v3792, %v4152
    %v4581 = vmax.f32 %v3794, %v4154
    %v4582 = vmax.f32 %v3797, %v4157
    %v4583 = vmax.f32 %v3799, %v4159
    %v4584 = vmax.f32 %v3802, %v4162
    %v4585 = vmax.f32 %v3804, %v4164
    %v4586 = vmax.f32 %v3807, %v4167
    %v4587 = vmax.f32 %v3809, %v4169
    %v4588 = vmax.f32 %v3812, %v4172
    %v4589 = vmax.f32 %v3814, %v4174
    %v4590 = vmax.f32 %v3817, %v4177
    %v4591 = vmax.f32 %v3819, %v4179
    %v4592 = vmax.f32 %v3822, %v4182
    %v4593 = vmax.f32 %v3824, %v4184
    %v4594 = vmax.f32 %v3827, %v4187
    %v4595 = vmax.f32 %v3829, %v4189
    %v4596 = vmax.f32 %v3832, %v4192
    %v4597 = vmax.f32 %v3834, %v4194
    %v4598 = vmax.f32 %v3837, %v4197
    %v4599 = vmax.f32 %v3839, %v4199
    %v4600 = vmax.f32 %v3842, %v4202
    %v4601 = vmax.f32 %v3844, %v4204
    %v4602 = vmax.f32 %v3847, %v4207
    %v4603 = vmax.f32 %v3849, %v4209
    %v4604 = vmax.f32 %v3852, %v4212
    %v4605 = vmax.f32 %v3854, %v4214
    %v4606 = vmax.f32 %v3857, %v4217
    %v4607 = vmax.f32 %v3859, %v4219
    %v4608 = vmax.f32 %v3862, %v4222
    %v4609 = vmax.f32 %v3864, %v4224
    %v4610 = vmax.f32 %v3867, %v4227
    %v4611 = vmax.f32 %v3869, %v4229
    %v4612 = vmax.f32 %v3872, %v4232
    %v4613 = vmax.f32 %v3874, %v4234
    %v4614 = vmax.f32 %v3877, %v4237
    %v4615 = vmax.f32 %v3879, %v4239
    %v4616 = vmax.f32 %v3882, %v4242
    %v4617 = vmax.f32 %v3884, %v4244
    %v4618 = vmax.f32 %v3887, %v4247
    %v4619 = vmax.f32 %v3889, %v4249
    %v4620 = vmax.f32 %v3892, %v4252
    %v4621 = vmax.f32 %v3894, %v4254
    %v4622 = vmax.f32 %v3897, %v4257
    %v4623 = vmax.f32 %v3899, %v4259
    %v4624 = vmax.f32 %v3902, %v4262
    %v4625 = vmax.f32 %v3904, %v4264
    %v4626 = vmax.f32 %v3907, %v4267
    %v4627 = vmax.f32 %v3909, %v4269
    %v4628 = vmax.f32 %v3912, %v4272
    %v4629 = vmax.f32 %v3914, %v4274
    %v4630 = vmax.f32 %v3917, %v4277
    %v4631 = vmax.f32 %v3919, %v4279
    %v4632 = vmax.f32 %v3922, %v4282
    %v4633 = vmax.f32 %v3924, %v4284
    %v4634 = vmax.f32 %v3927, %v4287
    %v4635 = vmax.f32 %v3929, %v4289
    %v4636 = vmax.f32 %v3932, %v4292
    %v4637 = vmax.f32 %v3934, %v4294
    %v4638 = vmax.f32 %v3937, %v4297
    %v4639 = vmax.f32 %v3939, %v4299
    %v4640 = vmax.f32 %v3942, %v4302
    %v4641 = vmax.f32 %v3944, %v4304
    %v4642 = vmax.f32 %v3947, %v4307
    %v4643 = vmax.f32 %v3949, %v4309
    %v4644 = vmax.f32 %v3952, %v4312
    %v4645 = vmax.f32 %v3954, %v4314
    %v4646 = vmax.f32 %v3957, %v4317
    %v4647 = vmax.f32 %v3959, %v4319
    %v4648 = vmax.f32 %v3962, %v4322
    %v4649 = vmax.f32 %v3964, %v4324
    %v4650 = vmax.f32 %v3967, %v4327
    %v4651 = vmax.f32 %v3969, %v4329
    %v4652 = vmax.f32 %v3972, %v4332
    %v4653 = vmax.f32 %v3974, %v4334
    %v4654 = vmax.f32 %v3977, %v4337
    %v4655 = vmax.f32 %v3979, %v4339
    %v4656 = vmax.f32 %v3982, %v4342
    %v4657 = vmax.f32 %v3984, %v4344
    %v4658 = vmax.f32 %v3987, %v4347
    %v4659 = vmax.f32 %v3989, %v4349
    %v4660 = vmax.f32 %v3992, %v4352
    %v4661 = vmax.f32 %v3994, %v4354
    %v4662 = vmax.f32 %v3997, %v4357
    %v4663 = vmax.f32 %v3999, %v4359
    %v4664 = vmax.f32 %v4002, %v4362
    %v4665 = vmax.f32 %v4004, %v4364
    %v4666 = vmax.f32 %v4007, %v4367
    %v4667 = vmax.f32 %v4009, %v4369
    %v4668 = vmax.f32 %v4012, %v4372
    %v4669 = vmax.f32 %v4014, %v4374
    %v4670 = vmax.f32 %v4017, %v4377
    %v4671 = vmax.f32 %v4019, %v4379
    %v4672 = vmax.f32 %v4022, %v4382
    %v4673 = vmax.f32 %v4024, %v4384
    %v4674 = vmax.f32 %v4386, %v4530
    %v4675 = vmax.f32 %v4387, %v4531
    %v4676 = vmax.f32 %v4388, %v4532
    %v4677 = vmax.f32 %v4389, %v4533
    %v4678 = vmax.f32 %v4390, %v4534
    %v4679 = vmax.f32 %v4391, %v4535
    %v4680 = vmax.f32 %v4392, %v4536
    %v4681 = vmax.f32 %v4393, %v4537
    %v4682 = vmax.f32 %v4394, %v4538
    %v4683 = vmax.f32 %v4395, %v4539
    %v4684 = vmax.f32 %v4396, %v4540
    %v4685 = vmax.f32 %v4397, %v4541
    %v4686 = vmax.f32 %v4398, %v4542
    %v4687 = vmax.f32 %v4399, %v4543
    %v4688 = vmax.f32 %v4400, %v4544
    %v4689 = vmax.f32 %v4401, %v4545
    %v4690 = vmax.f32 %v4402, %v4546
    %v4691 = vmax.f32 %v4403, %v4547
    %v4692 = vmax.f32 %v4404, %v4548
    %v4693 = vmax.f32 %v4405, %v4549
    %v4694 = vmax.f32 %v4406, %v4550
    %v4695 = vmax.f32 %v4407, %v4551
    %v4696 = vmax.f32 %v4408, %v4552
    %v4697 = vmax.f32 %v4409, %v4553
    %v4698 = vmax.f32 %v4410, %v4554
    %v4699 = vmax.f32 %v4411, %v4555
    %v4700 = vmax.f32 %v4412, %v4556
    %v4701 = vmax.f32 %v4413, %v4557
    %v4702 = vmax.f32 %v4414, %v4558
    %v4703 = vmax.f32 %v4415, %v4559
    %v4704 = vmax.f32 %v4416, %v4560
    %v4705 = vmax.f32 %v4417, %v4561
    %v4706 = vmax.f32 %v4418, %v4562
    %v4707 = vmax.f32 %v4419, %v4563
    %v4708 = vmax.f32 %v4420, %v4564
    %v4709 = vmax.f32 %v4421, %v4565
    %v4710 = vmax.f32 %v4422, %v4566
    %v4711 = vmax.f32 %v4423, %v4567
    %v4712 = vmax.f32 %v4424, %v4568
    %v4713 = vmax.f32 %v4425, %v4569
    %v4714 = vmax.f32 %v4426, %v4570
    %v4715 = vmax.f32 %v4427, %v4571
    %v4716 = vmax.f32 %v4428, %v4572
    %v4717 = vmax.f32 %v4429, %v4573
    %v4718 = vmax.f32 %v4430, %v4574
    %v4719 = vmax.f32 %v4431, %v4575
    %v4720 = vmax.f32 %v4432, %v4576
    %v4721 = vmax.f32 %v4433, %v4577
    %v4722 = vmax.f32 %v4434, %v4578
    %v4723 = vmax.f32 %v4435, %v4579
    %v4724 = vmax.f32 %v4436, %v4580
    %v4725 = vmax.f32 %v4437, %v4581
    %v4726 = vmax.f32 %v4438, %v4582
    %v4727 = vmax.f32 %v4439, %v4583
    %v4728 = vmax.f32 %v4440, %v4584
    %v4729 = vmax.f32 %v4441, %v4585
    %v4730 = vmax.f32 %v4442, %v4586
    %v4731 = vmax.f32 %v4443, %v4587
    %v4732 = vmax.f32 %v4444, %v4588
    %v4733 = vmax.f32 %v4445, %v4589
    %v4734 = vmax.f32 %v4446, %v4590
    %v4735 = vmax.f32 %v4447, %v4591
    %v4736 = vmax.f32 %v4448, %v4592
    %v4737 = vmax.f32 %v4449, %v4593
    %v4738 = vmax.f32 %v4450, %v4594
    %v4739 = vmax.f32 %v4451, %v4595
    %v4740 = vmax.f32 %v4452, %v4596
    %v4741 = vmax.f32 %v4453, %v4597
    %v4742 = vmax.f32 %v4454, %v4598
    %v4743 = vmax.f32 %v4455, %v4599
    %v4744 = vmax.f32 %v4456, %v4600
    %v4745 = vmax.f32 %v4457, %v4601
    %v4746 = vmax.f32 %v4458, %v4602
    %v4747 = vmax.f32 %v4459, %v4603
    %v4748 = vmax.f32 %v4460, %v4604
    %v4749 = vmax.f32 %v4461, %v4605
    %v4750 = vmax.f32 %v4462, %v4606
    %v4751 = vmax.f32 %v4463, %v4607
    %v4752 = vmax.f32 %v4464, %v4608
    %v4753 = vmax.f32 %v4465, %v4609
    %v4754 = vmax.f32 %v4466, %v4610
    %v4755 = vmax.f32 %v4467, %v4611
    %v4756 = vmax.f32 %v4468, %v4612
    %v4757 = vmax.f32 %v4469, %v4613
    %v4758 = vmax.f32 %v4470, %v4614
    %v4759 = vmax.f32 %v4471, %v4615
    %v4760 = vmax.f32 %v4472, %v4616
    %v4761 = vmax.f32 %v4473, %v4617
    %v4762 = vmax.f32 %v4474, %v4618
    %v4763 = vmax.f32 %v4475, %v4619
    %v4764 = vmax.f32 %v4476, %v4620
    %v4765 = vmax.f32 %v4477, %v4621
    %v4766 = vmax.f32 %v4478, %v4622
    %v4767 = vmax.f32 %v4479, %v4623
    %v4768 = vmax.f32 %v4480, %v4624
    %v4769 = vmax.f32 %v4481, %v4625
    %v4770 = vmax.f32 %v4482, %v4626
    %v4771 = vmax.f32 %v4483, %v4627
    %v4772 = vmax.f32 %v4484, %v4628
    %v4773 = vmax.f32 %v4485, %v4629
    %v4774 = vmax.f32 %v4486, %v4630
    %v4775 = vmax.f32 %v4487, %v4631
    %v4776 = vmax.f32 %v4488, %v4632
    %v4777 = vmax.f32 %v4489, %v4633
    %v4778 = vmax.f32 %v4490, %v4634
    %v4779 = vmax.f32 %v4491, %v4635
    %v4780 = vmax.f32 %v4492, %v4636
    %v4781 = vmax.f32 %v4493, %v4637
    %v4782 = vmax.f32 %v4494, %v4638
    %v4783 = vmax.f32 %v4495, %v4639
    %v4784 = vmax.f32 %v4496, %v4640
    %v4785 = vmax.f32 %v4497, %v4641
    %v4786 = vmax.f32 %v4498, %v4642
    %v4787 = vmax.f32 %v4499, %v4643
    %v4788 = vmax.f32 %v4500, %v4644
    %v4789 = vmax.f32 %v4501, %v4645
    %v4790 = vmax.f32 %v4502, %v4646
    %v4791 = vmax.f32 %v4503, %v4647
    %v4792 = vmax.f32 %v4504, %v4648
    %v4793 = vmax.f32 %v4505, %v4649
    %v4794 = vmax.f32 %v4506, %v4650
    %v4795 = vmax.f32 %v4507, %v4651
    %v4796 = vmax.f32 %v4508, %v4652
    %v4797 = vmax.f32 %v4509, %v4653
    %v4798 = vmax.f32 %v4510, %v4654
    %v4799 = vmax.f32 %v4511, %v4655
    %v4800 = vmax.f32 %v4512, %v4656
    %v4801 = vmax.f32 %v4513, %v4657
    %v4802 = vmax.f32 %v4514, %v4658
    %v4803 = vmax.f32 %v4515, %v4659
    %v4804 = vmax.f32 %v4516, %v4660
    %v4805 = vmax.f32 %v4517, %v4661
    %v4806 = vmax.f32 %v4518, %v4662
    %v4807 = vmax.f32 %v4519, %v4663
    %v4808 = vmax.f32 %v4520, %v4664
    %v4809 = vmax.f32 %v4521, %v4665
    %v4810 = vmax.f32 %v4522, %v4666
    %v4811 = vmax.f32 %v4523, %v4667
    %v4812 = vmax.f32 %v4524, %v4668
    %v4813 = vmax.f32 %v4525, %v4669
    %v4814 = vmax.f32 %v4526, %v4670
    %v4815 = vmax.f32 %v4527, %v4671
    %v4816 = vmax.f32 %v4528, %v4672
    %v4817 = vmax.f32 %v4529, %v4673
    %v4818 = vld [vmem:[%s2] sm:$0x1]
    %v4820 = vperm.slane %v4818, 0
    %v4822 = vadd.f32 %v4674, %v4820
    %v4823 = vadd.f32 %v4675, %v4820
    %v4824 = vadd.f32 %v4676, %v4820
    %v4825 = vadd.f32 %v4677, %v4820
    %v4826 = vadd.f32 %v4678, %v4820
    %v4827 = vadd.f32 %v4679, %v4820
    %v4828 = vadd.f32 %v4680, %v4820
    %v4829 = vadd.f32 %v4681, %v4820
    %v4830 = vadd.f32 %v4682, %v4820
    %v4831 = vadd.f32 %v4683, %v4820
    %v4832 = vadd.f32 %v4684, %v4820
    %v4833 = vadd.f32 %v4685, %v4820
    %v4834 = vadd.f32 %v4686, %v4820
    %v4835 = vadd.f32 %v4687, %v4820
    %v4836 = vadd.f32 %v4688, %v4820
    %v4837 = vadd.f32 %v4689, %v4820
    %v4838 = vadd.f32 %v4690, %v4820
    %v4839 = vadd.f32 %v4691, %v4820
    %v4840 = vadd.f32 %v4692, %v4820
    %v4841 = vadd.f32 %v4693, %v4820
    %v4842 = vadd.f32 %v4694, %v4820
    %v4843 = vadd.f32 %v4695, %v4820
    %v4844 = vadd.f32 %v4696, %v4820
    %v4845 = vadd.f32 %v4697, %v4820
    %v4846 = vadd.f32 %v4698, %v4820
    %v4847 = vadd.f32 %v4699, %v4820
    %v4848 = vadd.f32 %v4700, %v4820
    %v4849 = vadd.f32 %v4701, %v4820
    %v4850 = vadd.f32 %v4702, %v4820
    %v4851 = vadd.f32 %v4703, %v4820
    %v4852 = vadd.f32 %v4704, %v4820
    %v4853 = vadd.f32 %v4705, %v4820
    %v4854 = vadd.f32 %v4706, %v4820
    %v4855 = vadd.f32 %v4707, %v4820
    %v4856 = vadd.f32 %v4708, %v4820
    %v4857 = vadd.f32 %v4709, %v4820
    %v4858 = vadd.f32 %v4710, %v4820
    %v4859 = vadd.f32 %v4711, %v4820
    %v4860 = vadd.f32 %v4712, %v4820
    %v4861 = vadd.f32 %v4713, %v4820
    %v4862 = vadd.f32 %v4714, %v4820
    %v4863 = vadd.f32 %v4715, %v4820
    %v4864 = vadd.f32 %v4716, %v4820
    %v4865 = vadd.f32 %v4717, %v4820
    %v4866 = vadd.f32 %v4718, %v4820
    %v4867 = vadd.f32 %v4719, %v4820
    %v4868 = vadd.f32 %v4720, %v4820
    %v4869 = vadd.f32 %v4721, %v4820
    %v4870 = vadd.f32 %v4722, %v4820
    %v4871 = vadd.f32 %v4723, %v4820
    %v4872 = vadd.f32 %v4724, %v4820
    %v4873 = vadd.f32 %v4725, %v4820
    %v4874 = vadd.f32 %v4726, %v4820
    %v4875 = vadd.f32 %v4727, %v4820
    %v4876 = vadd.f32 %v4728, %v4820
    %v4877 = vadd.f32 %v4729, %v4820
    %v4878 = vadd.f32 %v4730, %v4820
    %v4879 = vadd.f32 %v4731, %v4820
    %v4880 = vadd.f32 %v4732, %v4820
    %v4881 = vadd.f32 %v4733, %v4820
    %v4882 = vadd.f32 %v4734, %v4820
    %v4883 = vadd.f32 %v4735, %v4820
    %v4884 = vadd.f32 %v4736, %v4820
    %v4885 = vadd.f32 %v4737, %v4820
    %v4886 = vadd.f32 %v4738, %v4820
    %v4887 = vadd.f32 %v4739, %v4820
    %v4888 = vadd.f32 %v4740, %v4820
    %v4889 = vadd.f32 %v4741, %v4820
    %v4890 = vadd.f32 %v4742, %v4820
    %v4891 = vadd.f32 %v4743, %v4820
    %v4892 = vadd.f32 %v4744, %v4820
    %v4893 = vadd.f32 %v4745, %v4820
    %v4894 = vadd.f32 %v4746, %v4820
    %v4895 = vadd.f32 %v4747, %v4820
    %v4896 = vadd.f32 %v4748, %v4820
    %v4897 = vadd.f32 %v4749, %v4820
    %v4898 = vadd.f32 %v4750, %v4820
    %v4899 = vadd.f32 %v4751, %v4820
    %v4900 = vadd.f32 %v4752, %v4820
    %v4901 = vadd.f32 %v4753, %v4820
    %v4902 = vadd.f32 %v4754, %v4820
    %v4903 = vadd.f32 %v4755, %v4820
    %v4904 = vadd.f32 %v4756, %v4820
    %v4905 = vadd.f32 %v4757, %v4820
    %v4906 = vadd.f32 %v4758, %v4820
    %v4907 = vadd.f32 %v4759, %v4820
    %v4908 = vadd.f32 %v4760, %v4820
    %v4909 = vadd.f32 %v4761, %v4820
    %v4910 = vadd.f32 %v4762, %v4820
    %v4911 = vadd.f32 %v4763, %v4820
    %v4912 = vadd.f32 %v4764, %v4820
    %v4913 = vadd.f32 %v4765, %v4820
    %v4914 = vadd.f32 %v4766, %v4820
    %v4915 = vadd.f32 %v4767, %v4820
    %v4916 = vadd.f32 %v4768, %v4820
    %v4917 = vadd.f32 %v4769, %v4820
    %v4918 = vadd.f32 %v4770, %v4820
    %v4919 = vadd.f32 %v4771, %v4820
    %v4920 = vadd.f32 %v4772, %v4820
    %v4921 = vadd.f32 %v4773, %v4820
    %v4922 = vadd.f32 %v4774, %v4820
    %v4923 = vadd.f32 %v4775, %v4820
    %v4924 = vadd.f32 %v4776, %v4820
    %v4925 = vadd.f32 %v4777, %v4820
    %v4926 = vadd.f32 %v4778, %v4820
    %v4927 = vadd.f32 %v4779, %v4820
    %v4928 = vadd.f32 %v4780, %v4820
    %v4929 = vadd.f32 %v4781, %v4820
    %v4930 = vadd.f32 %v4782, %v4820
    %v4931 = vadd.f32 %v4783, %v4820
    %v4932 = vadd.f32 %v4784, %v4820
    %v4933 = vadd.f32 %v4785, %v4820
    %v4934 = vadd.f32 %v4786, %v4820
    %v4935 = vadd.f32 %v4787, %v4820
    %v4936 = vadd.f32 %v4788, %v4820
    %v4937 = vadd.f32 %v4789, %v4820
    %v4938 = vadd.f32 %v4790, %v4820
    %v4939 = vadd.f32 %v4791, %v4820
    %v4940 = vadd.f32 %v4792, %v4820
    %v4941 = vadd.f32 %v4793, %v4820
    %v4942 = vadd.f32 %v4794, %v4820
    %v4943 = vadd.f32 %v4795, %v4820
    %v4944 = vadd.f32 %v4796, %v4820
    %v4945 = vadd.f32 %v4797, %v4820
    %v4946 = vadd.f32 %v4798, %v4820
    %v4947 = vadd.f32 %v4799, %v4820
    %v4948 = vadd.f32 %v4800, %v4820
    %v4949 = vadd.f32 %v4801, %v4820
    %v4950 = vadd.f32 %v4802, %v4820
    %v4951 = vadd.f32 %v4803, %v4820
    %v4952 = vadd.f32 %v4804, %v4820
    %v4953 = vadd.f32 %v4805, %v4820
    %v4954 = vadd.f32 %v4806, %v4820
    %v4955 = vadd.f32 %v4807, %v4820
    %v4956 = vadd.f32 %v4808, %v4820
    %v4957 = vadd.f32 %v4809, %v4820
    %v4958 = vadd.f32 %v4810, %v4820
    %v4959 = vadd.f32 %v4811, %v4820
    %v4960 = vadd.f32 %v4812, %v4820
    %v4961 = vadd.f32 %v4813, %v4820
    %v4962 = vadd.f32 %v4814, %v4820
    %v4963 = vadd.f32 %v4815, %v4820
    %v4964 = vadd.f32 %v4816, %v4820
    %v4965 = vadd.f32 %v4817, %v4820
    %4970 = vrot.lane.b32.xlu0 %v4826, 20
    %v4971 = vpop.permute.xlu0 %4970
    %4972 = vrot.lane.b32.xlu0 %v4827, 20
    %v4973 = vpop.permute.xlu0 %4972
    %4974 = vrot.lane.b32.xlu0 %v4828, 20
    %v4975 = vpop.permute.xlu0 %4974
    %4976 = vrot.lane.b32.xlu0 %v4829, 20
    %v4977 = vpop.permute.xlu0 %4976
    %4986 = vrot.lane.b32.xlu0 %v4838, 40
    %v4987 = vpop.permute.xlu0 %4986
    %4988 = vrot.lane.b32.xlu0 %v4839, 40
    %v4989 = vpop.permute.xlu0 %4988
    %4990 = vrot.lane.b32.xlu0 %v4840, 40
    %v4991 = vpop.permute.xlu0 %4990
    %4992 = vrot.lane.b32.xlu0 %v4841, 40
    %v4993 = vpop.permute.xlu0 %4992
    %5002 = vrot.lane.b32.xlu0 %v4842, 60
    %v5003 = vpop.permute.xlu0 %5002
    %5004 = vrot.lane.b32.xlu0 %v4843, 60
    %v5005 = vpop.permute.xlu0 %5004
    %5006 = vrot.lane.b32.xlu0 %v4844, 60
    %v5007 = vpop.permute.xlu0 %5006
    %5008 = vrot.lane.b32.xlu0 %v4845, 60
    %v5009 = vpop.permute.xlu0 %5008
    %5018 = vrot.lane.b32.xlu0 %v4854, 80
    %v5019 = vpop.permute.xlu0 %5018
    %5020 = vrot.lane.b32.xlu0 %v4855, 80
    %v5021 = vpop.permute.xlu0 %5020
    %5022 = vrot.lane.b32.xlu0 %v4856, 80
    %v5023 = vpop.permute.xlu0 %5022
    %5024 = vrot.lane.b32.xlu0 %v4857, 80
    %v5025 = vpop.permute.xlu0 %5024
    %5034 = vrot.lane.b32.xlu0 %v4830, 100
    %v5035 = vpop.permute.xlu0 %5034
    %5036 = vrot.lane.b32.xlu0 %v4831, 100
    %v5037 = vpop.permute.xlu0 %5036
    %5038 = vrot.lane.b32.xlu0 %v4832, 100
    %v5039 = vpop.permute.xlu0 %5038
    %5040 = vrot.lane.b32.xlu0 %v4833, 100
    %v5041 = vpop.permute.xlu0 %5040
    %5050 = vrot.lane.b32.xlu0 %v4834, 120
    %v5051 = vpop.permute.xlu0 %5050
    %5052 = vrot.lane.b32.xlu0 %v4835, 120
    %v5053 = vpop.permute.xlu0 %5052
    %5054 = vrot.lane.b32.xlu0 %v4836, 120
    %v5055 = vpop.permute.xlu0 %5054
    %5056 = vrot.lane.b32.xlu0 %v4837, 120
    %v5057 = vpop.permute.xlu0 %5056
    %5066 = vrot.lane.b32.xlu0 %v4846, 12
    %v5067 = vpop.permute.xlu0 %5066
    %5068 = vrot.lane.b32.xlu0 %v4847, 12
    %v5069 = vpop.permute.xlu0 %5068
    %5070 = vrot.lane.b32.xlu0 %v4848, 12
    %v5071 = vpop.permute.xlu0 %5070
    %5072 = vrot.lane.b32.xlu0 %v4849, 12
    %v5073 = vpop.permute.xlu0 %5072
    %5082 = vrot.lane.b32.xlu0 %v4850, 32
    %v5083 = vpop.permute.xlu0 %5082
    %5084 = vrot.lane.b32.xlu0 %v4851, 32
    %v5085 = vpop.permute.xlu0 %5084
    %5086 = vrot.lane.b32.xlu0 %v4852, 32
    %v5087 = vpop.permute.xlu0 %5086
    %5088 = vrot.lane.b32.xlu0 %v4853, 32
    %v5089 = vpop.permute.xlu0 %5088
    %5098 = vrot.lane.b32.xlu0 %v4862, 52
    %v5099 = vpop.permute.xlu0 %5098
    %5100 = vrot.lane.b32.xlu0 %v4863, 52
    %v5101 = vpop.permute.xlu0 %5100
    %5102 = vrot.lane.b32.xlu0 %v4864, 52
    %v5103 = vpop.permute.xlu0 %5102
    %5104 = vrot.lane.b32.xlu0 %v4865, 52
    %v5105 = vpop.permute.xlu0 %5104
    %5114 = vrot.lane.b32.xlu0 %v4870, 72
    %v5115 = vpop.permute.xlu0 %5114
    %5116 = vrot.lane.b32.xlu0 %v4871, 72
    %v5117 = vpop.permute.xlu0 %5116
    %5118 = vrot.lane.b32.xlu0 %v4872, 72
    %v5119 = vpop.permute.xlu0 %5118
    %5120 = vrot.lane.b32.xlu0 %v4873, 72
    %v5121 = vpop.permute.xlu0 %5120
    %5130 = vrot.lane.b32.xlu0 %v4874, 92
    %v5131 = vpop.permute.xlu0 %5130
    %5132 = vrot.lane.b32.xlu0 %v4875, 92
    %v5133 = vpop.permute.xlu0 %5132
    %5134 = vrot.lane.b32.xlu0 %v4876, 92
    %v5135 = vpop.permute.xlu0 %5134
    %5136 = vrot.lane.b32.xlu0 %v4877, 92
    %v5137 = vpop.permute.xlu0 %5136
    %5146 = vrot.lane.b32.xlu0 %v4886, 112
    %v5147 = vpop.permute.xlu0 %5146
    %5148 = vrot.lane.b32.xlu0 %v4887, 112
    %v5149 = vpop.permute.xlu0 %5148
    %5150 = vrot.lane.b32.xlu0 %v4888, 112
    %v5151 = vpop.permute.xlu0 %5150
    %5152 = vrot.lane.b32.xlu0 %v4889, 112
    %v5153 = vpop.permute.xlu0 %5152
    %5162 = vrot.lane.b32.xlu0 %v4890, 4
    %v5163 = vpop.permute.xlu0 %5162
    %5164 = vrot.lane.b32.xlu0 %v4891, 4
    %v5165 = vpop.permute.xlu0 %5164
    %5166 = vrot.lane.b32.xlu0 %v4892, 4
    %v5167 = vpop.permute.xlu0 %5166
    %5168 = vrot.lane.b32.xlu0 %v4893, 4
    %v5169 = vpop.permute.xlu0 %5168
    %5178 = vrot.lane.b32.xlu0 %v4902, 24
    %v5179 = vpop.permute.xlu0 %5178
    %5180 = vrot.lane.b32.xlu0 %v4903, 24
    %v5181 = vpop.permute.xlu0 %5180
    %5182 = vrot.lane.b32.xlu0 %v4904, 24
    %v5183 = vpop.permute.xlu0 %5182
    %5184 = vrot.lane.b32.xlu0 %v4905, 24
    %v5185 = vpop.permute.xlu0 %5184
    %5194 = vrot.lane.b32.xlu0 %v4878, 44
    %v5195 = vpop.permute.xlu0 %5194
    %5196 = vrot.lane.b32.xlu0 %v4879, 44
    %v5197 = vpop.permute.xlu0 %5196
    %5198 = vrot.lane.b32.xlu0 %v4880, 44
    %v5199 = vpop.permute.xlu0 %5198
    %5200 = vrot.lane.b32.xlu0 %v4881, 44
    %v5201 = vpop.permute.xlu0 %5200
    %vm5206 = vcmask 162816
    %v5207 = vsel %vm5206, %v4822, %v4971
    %v5208 = vsel %vm5206, %v4823, %v4973
    %v5209 = vsel %vm5206, %v4824, %v4975
    %v5210 = vsel %vm5206, %v4825, %v4977
    %vm5211 = vcmask 326656
    %v5212 = vsel %vm5211, %v5207, %v4987
    %v5213 = vsel %vm5211, %v5208, %v4989
    %v5214 = vsel %vm5211, %v5209, %v4991
    %v5215 = vsel %vm5211, %v5210, %v4993
    %vm5216 = vcmask 490496
    %v5217 = vsel %vm5216, %v5212, %v5003
    %v5218 = vsel %vm5216, %v5213, %v5005
    %v5219 = vsel %vm5216, %v5214, %v5007
    %v5220 = vsel %vm5216, %v5215, %v5009
    %vm5221 = vcmask 654336
    %v5222 = vsel %vm5221, %v5217, %v5019
    %v5223 = vsel %vm5221, %v5218, %v5021
    %v5224 = vsel %vm5221, %v5219, %v5023
    %v5225 = vsel %vm5221, %v5220, %v5025
    %vm5226 = vcmask 818176
    %v5227 = vsel %vm5226, %v5222, %v5035
    %v5228 = vsel %vm5226, %v5223, %v5037
    %v5229 = vsel %vm5226, %v5224, %v5039
    %v5230 = vsel %vm5226, %v5225, %v5041
    %vm5231 = vcmask 982016
    %v5232 = vsel %vm5231, %v5227, %v5051
    %v5233 = vsel %vm5231, %v5228, %v5053
    %v5234 = vsel %vm5231, %v5229, %v5055
    %v5235 = vsel %vm5231, %v5230, %v5057
    %vm5236 = vcmask 97280
    %v5237 = vsel %vm5236, %v5051, %v5067
    %v5238 = vsel %vm5236, %v5053, %v5069
    %v5239 = vsel %vm5236, %v5055, %v5071
    %v5240 = vsel %vm5236, %v5057, %v5073
    %vm5241 = vcmask 261120
    %v5242 = vsel %vm5241, %v5237, %v5083
    %v5243 = vsel %vm5241, %v5238, %v5085
    %v5244 = vsel %vm5241, %v5239, %v5087
    %v5245 = vsel %vm5241, %v5240, %v5089
    %vm5246 = vcmask 424960
    %v5247 = vsel %vm5246, %v5242, %v5099
    %v5248 = vsel %vm5246, %v5243, %v5101
    %v5249 = vsel %vm5246, %v5244, %v5103
    %v5250 = vsel %vm5246, %v5245, %v5105
    %vm5251 = vcmask 588800
    %v5252 = vsel %vm5251, %v5247, %v5115
    %v5253 = vsel %vm5251, %v5248, %v5117
    %v5254 = vsel %vm5251, %v5249, %v5119
    %v5255 = vsel %vm5251, %v5250, %v5121
    %vm5256 = vcmask 752640
    %v5257 = vsel %vm5256, %v5252, %v5131
    %v5258 = vsel %vm5256, %v5253, %v5133
    %v5259 = vsel %vm5256, %v5254, %v5135
    %v5260 = vsel %vm5256, %v5255, %v5137
    %vm5261 = vcmask 916480
    %v5262 = vsel %vm5261, %v5257, %v5147
    %v5263 = vsel %vm5261, %v5258, %v5149
    %v5264 = vsel %vm5261, %v5259, %v5151
    %v5265 = vsel %vm5261, %v5260, %v5153
    %vm5266 = vcmask 31744
    %v5267 = vsel %vm5266, %v5147, %v5163
    %v5268 = vsel %vm5266, %v5149, %v5165
    %v5269 = vsel %vm5266, %v5151, %v5167
    %v5270 = vsel %vm5266, %v5153, %v5169
    %vm5271 = vcmask 195584
    %v5272 = vsel %vm5271, %v5267, %v5179
    %v5273 = vsel %vm5271, %v5268, %v5181
    %v5274 = vsel %vm5271, %v5269, %v5183
    %v5275 = vsel %vm5271, %v5270, %v5185
    %vm5276 = vcmask 359424
    %v5277 = vsel %vm5276, %v5272, %v5195
    %v5278 = vsel %vm5276, %v5273, %v5197
    %v5279 = vsel %vm5276, %v5274, %v5199
    %v5280 = vsel %vm5276, %v5275, %v5201
    %5285 = vrot.lane.b32.xlu0 %v4894, 20
    %v5286 = vpop.permute.xlu0 %5285
    %5287 = vrot.lane.b32.xlu0 %v4895, 20
    %v5288 = vpop.permute.xlu0 %5287
    %5289 = vrot.lane.b32.xlu0 %v4896, 20
    %v5290 = vpop.permute.xlu0 %5289
    %5291 = vrot.lane.b32.xlu0 %v4897, 20
    %v5292 = vpop.permute.xlu0 %5291
    %5301 = vrot.lane.b32.xlu0 %v4898, 40
    %v5302 = vpop.permute.xlu0 %5301
    %5303 = vrot.lane.b32.xlu0 %v4899, 40
    %v5304 = vpop.permute.xlu0 %5303
    %5305 = vrot.lane.b32.xlu0 %v4900, 40
    %v5306 = vpop.permute.xlu0 %5305
    %5307 = vrot.lane.b32.xlu0 %v4901, 40
    %v5308 = vpop.permute.xlu0 %5307
    %5317 = vrot.lane.b32.xlu0 %v4910, 60
    %v5318 = vpop.permute.xlu0 %5317
    %5319 = vrot.lane.b32.xlu0 %v4911, 60
    %v5320 = vpop.permute.xlu0 %5319
    %5321 = vrot.lane.b32.xlu0 %v4912, 60
    %v5322 = vpop.permute.xlu0 %5321
    %5323 = vrot.lane.b32.xlu0 %v4913, 60
    %v5324 = vpop.permute.xlu0 %5323
    %5333 = vrot.lane.b32.xlu0 %v4918, 80
    %v5334 = vpop.permute.xlu0 %5333
    %5335 = vrot.lane.b32.xlu0 %v4919, 80
    %v5336 = vpop.permute.xlu0 %5335
    %5337 = vrot.lane.b32.xlu0 %v4920, 80
    %v5338 = vpop.permute.xlu0 %5337
    %5339 = vrot.lane.b32.xlu0 %v4921, 80
    %v5340 = vpop.permute.xlu0 %5339
    %5349 = vrot.lane.b32.xlu0 %v4922, 100
    %v5350 = vpop.permute.xlu0 %5349
    %5351 = vrot.lane.b32.xlu0 %v4923, 100
    %v5352 = vpop.permute.xlu0 %5351
    %5353 = vrot.lane.b32.xlu0 %v4924, 100
    %v5354 = vpop.permute.xlu0 %5353
    %5355 = vrot.lane.b32.xlu0 %v4925, 100
    %v5356 = vpop.permute.xlu0 %5355
    %5365 = vrot.lane.b32.xlu0 %v4934, 120
    %v5366 = vpop.permute.xlu0 %5365
    %5367 = vrot.lane.b32.xlu0 %v4935, 120
    %v5368 = vpop.permute.xlu0 %5367
    %5369 = vrot.lane.b32.xlu0 %v4936, 120
    %v5370 = vpop.permute.xlu0 %5369
    %5371 = vrot.lane.b32.xlu0 %v4937, 120
    %v5372 = vpop.permute.xlu0 %5371
    %5381 = vrot.lane.b32.xlu0 %v4938, 12
    %v5382 = vpop.permute.xlu0 %5381
    %5383 = vrot.lane.b32.xlu0 %v4939, 12
    %v5384 = vpop.permute.xlu0 %5383
    %5385 = vrot.lane.b32.xlu0 %v4940, 12
    %v5386 = vpop.permute.xlu0 %5385
    %5387 = vrot.lane.b32.xlu0 %v4941, 12
    %v5388 = vpop.permute.xlu0 %5387
    %5397 = vrot.lane.b32.xlu0 %v4950, 32
    %v5398 = vpop.permute.xlu0 %5397
    %5399 = vrot.lane.b32.xlu0 %v4951, 32
    %v5400 = vpop.permute.xlu0 %5399
    %5401 = vrot.lane.b32.xlu0 %v4952, 32
    %v5402 = vpop.permute.xlu0 %5401
    %5403 = vrot.lane.b32.xlu0 %v4953, 32
    %v5404 = vpop.permute.xlu0 %5403
    %v5409 = vsel %vm5206, %v4882, %v5286
    %v5410 = vsel %vm5206, %v4883, %v5288
    %v5411 = vsel %vm5206, %v4884, %v5290
    %v5412 = vsel %vm5206, %v4885, %v5292
    %v5413 = vsel %vm5211, %v5409, %v5302
    %v5414 = vsel %vm5211, %v5410, %v5304
    %v5415 = vsel %vm5211, %v5411, %v5306
    %v5416 = vsel %vm5211, %v5412, %v5308
    %v5417 = vsel %vm5216, %v5413, %v5318
    %v5418 = vsel %vm5216, %v5414, %v5320
    %v5419 = vsel %vm5216, %v5415, %v5322
    %v5420 = vsel %vm5216, %v5416, %v5324
    %v5421 = vsel %vm5221, %v5417, %v5334
    %v5422 = vsel %vm5221, %v5418, %v5336
    %v5423 = vsel %vm5221, %v5419, %v5338
    %v5424 = vsel %vm5221, %v5420, %v5340
    %v5425 = vsel %vm5226, %v5421, %v5350
    %v5426 = vsel %vm5226, %v5422, %v5352
    %v5427 = vsel %vm5226, %v5423, %v5354
    %v5428 = vsel %vm5226, %v5424, %v5356
    %v5429 = vsel %vm5231, %v5425, %v5366
    %v5430 = vsel %vm5231, %v5426, %v5368
    %v5431 = vsel %vm5231, %v5427, %v5370
    %v5432 = vsel %vm5231, %v5428, %v5372
    %v5433 = vsel %vm5236, %v5366, %v5382
    %v5434 = vsel %vm5236, %v5368, %v5384
    %v5435 = vsel %vm5236, %v5370, %v5386
    %v5436 = vsel %vm5236, %v5372, %v5388
    %v5437 = vsel %vm5241, %v5433, %v5398
    %v5438 = vsel %vm5241, %v5434, %v5400
    %v5439 = vsel %vm5241, %v5435, %v5402
    %v5440 = vsel %vm5241, %v5436, %v5404
    %5449 = vrot.lane.b32.xlu0 %v5429, 64
    %v5450 = vpop.permute.xlu0 %5449
    %5451 = vrot.lane.b32.xlu0 %v5437, 64
    %v5452 = vpop.permute.xlu0 %5451
    %5453 = vrot.lane.b32.xlu0 %v5430, 64
    %v5454 = vpop.permute.xlu0 %5453
    %5455 = vrot.lane.b32.xlu0 %v5438, 64
    %v5456 = vpop.permute.xlu0 %5455
    %5457 = vrot.lane.b32.xlu0 %v5431, 64
    %v5458 = vpop.permute.xlu0 %5457
    %5459 = vrot.lane.b32.xlu0 %v5439, 64
    %v5460 = vpop.permute.xlu0 %5459
    %5461 = vrot.lane.b32.xlu0 %v5432, 64
    %v5462 = vpop.permute.xlu0 %5461
    %5463 = vrot.lane.b32.xlu0 %v5440, 64
    %v5464 = vpop.permute.xlu0 %5463
    %vm5465 = vcmask 523264
    %v5466 = vsel %vm5465, %v5450, %v5452
    %v5467 = vsel %vm5465, %v5454, %v5456
    %v5468 = vsel %vm5465, %v5458, %v5460
    %v5469 = vsel %vm5465, %v5462, %v5464
    %v5478 = vsel %vm5465, %v5277, %v5450
    %v5479 = vsel %vm5465, %v5278, %v5454
    %v5480 = vsel %vm5465, %v5279, %v5458
    %v5481 = vsel %vm5465, %v5280, %v5462
    %5482 = vrot.lane.b32.xlu0 %v4838, 20
    %v5483 = vpop.permute.xlu0 %5482
    %5484 = vrot.lane.b32.xlu0 %v4839, 20
    %v5485 = vpop.permute.xlu0 %5484
    %5486 = vrot.lane.b32.xlu0 %v4840, 20
    %v5487 = vpop.permute.xlu0 %5486
    %5488 = vrot.lane.b32.xlu0 %v4841, 20
    %v5489 = vpop.permute.xlu0 %5488
    %5494 = vrot.lane.b32.xlu0 %v4842, 40
    %v5495 = vpop.permute.xlu0 %5494
    %5496 = vrot.lane.b32.xlu0 %v4843, 40
    %v5497 = vpop.permute.xlu0 %5496
    %5498 = vrot.lane.b32.xlu0 %v4844, 40
    %v5499 = vpop.permute.xlu0 %5498
    %5500 = vrot.lane.b32.xlu0 %v4845, 40
    %v5501 = vpop.permute.xlu0 %5500
    %5506 = vrot.lane.b32.xlu0 %v4854, 60
    %v5507 = vpop.permute.xlu0 %5506
    %5508 = vrot.lane.b32.xlu0 %v4855, 60
    %v5509 = vpop.permute.xlu0 %5508
    %5510 = vrot.lane.b32.xlu0 %v4856, 60
    %v5511 = vpop.permute.xlu0 %5510
    %5512 = vrot.lane.b32.xlu0 %v4857, 60
    %v5513 = vpop.permute.xlu0 %5512
    %5522 = vrot.lane.b32.xlu0 %v4858, 80
    %v5523 = vpop.permute.xlu0 %5522
    %5524 = vrot.lane.b32.xlu0 %v4859, 80
    %v5525 = vpop.permute.xlu0 %5524
    %5526 = vrot.lane.b32.xlu0 %v4860, 80
    %v5527 = vpop.permute.xlu0 %5526
    %5528 = vrot.lane.b32.xlu0 %v4861, 80
    %v5529 = vpop.permute.xlu0 %5528
    %5534 = vrot.lane.b32.xlu0 %v4834, 100
    %v5535 = vpop.permute.xlu0 %5534
    %5536 = vrot.lane.b32.xlu0 %v4835, 100
    %v5537 = vpop.permute.xlu0 %5536
    %5538 = vrot.lane.b32.xlu0 %v4836, 100
    %v5539 = vpop.permute.xlu0 %5538
    %5540 = vrot.lane.b32.xlu0 %v4837, 100
    %v5541 = vpop.permute.xlu0 %5540
    %5546 = vrot.lane.b32.xlu0 %v4846, 120
    %v5547 = vpop.permute.xlu0 %5546
    %5548 = vrot.lane.b32.xlu0 %v4847, 120
    %v5549 = vpop.permute.xlu0 %5548
    %5550 = vrot.lane.b32.xlu0 %v4848, 120
    %v5551 = vpop.permute.xlu0 %5550
    %5552 = vrot.lane.b32.xlu0 %v4849, 120
    %v5553 = vpop.permute.xlu0 %5552
    %5558 = vrot.lane.b32.xlu0 %v4850, 12
    %v5559 = vpop.permute.xlu0 %5558
    %5560 = vrot.lane.b32.xlu0 %v4851, 12
    %v5561 = vpop.permute.xlu0 %5560
    %5562 = vrot.lane.b32.xlu0 %v4852, 12
    %v5563 = vpop.permute.xlu0 %5562
    %5564 = vrot.lane.b32.xlu0 %v4853, 12
    %v5565 = vpop.permute.xlu0 %5564
    %5570 = vrot.lane.b32.xlu0 %v4862, 32
    %v5571 = vpop.permute.xlu0 %5570
    %5572 = vrot.lane.b32.xlu0 %v4863, 32
    %v5573 = vpop.permute.xlu0 %5572
    %5574 = vrot.lane.b32.xlu0 %v4864, 32
    %v5575 = vpop.permute.xlu0 %5574
    %5576 = vrot.lane.b32.xlu0 %v4865, 32
    %v5577 = vpop.permute.xlu0 %5576
    %5586 = vrot.lane.b32.xlu0 %v4866, 52
    %v5587 = vpop.permute.xlu0 %5586
    %5588 = vrot.lane.b32.xlu0 %v4867, 52
    %v5589 = vpop.permute.xlu0 %5588
    %5590 = vrot.lane.b32.xlu0 %v4868, 52
    %v5591 = vpop.permute.xlu0 %5590
    %5592 = vrot.lane.b32.xlu0 %v4869, 52
    %v5593 = vpop.permute.xlu0 %5592
    %5598 = vrot.lane.b32.xlu0 %v4874, 72
    %v5599 = vpop.permute.xlu0 %5598
    %5600 = vrot.lane.b32.xlu0 %v4875, 72
    %v5601 = vpop.permute.xlu0 %5600
    %5602 = vrot.lane.b32.xlu0 %v4876, 72
    %v5603 = vpop.permute.xlu0 %5602
    %5604 = vrot.lane.b32.xlu0 %v4877, 72
    %v5605 = vpop.permute.xlu0 %5604
    %5610 = vrot.lane.b32.xlu0 %v4886, 92
    %v5611 = vpop.permute.xlu0 %5610
    %5612 = vrot.lane.b32.xlu0 %v4887, 92
    %v5613 = vpop.permute.xlu0 %5612
    %5614 = vrot.lane.b32.xlu0 %v4888, 92
    %v5615 = vpop.permute.xlu0 %5614
    %5616 = vrot.lane.b32.xlu0 %v4889, 92
    %v5617 = vpop.permute.xlu0 %5616
    %5622 = vrot.lane.b32.xlu0 %v4890, 112
    %v5623 = vpop.permute.xlu0 %5622
    %5624 = vrot.lane.b32.xlu0 %v4891, 112
    %v5625 = vpop.permute.xlu0 %5624
    %5626 = vrot.lane.b32.xlu0 %v4892, 112
    %v5627 = vpop.permute.xlu0 %5626
    %5628 = vrot.lane.b32.xlu0 %v4893, 112
    %v5629 = vpop.permute.xlu0 %5628
    %5634 = vrot.lane.b32.xlu0 %v4902, 4
    %v5635 = vpop.permute.xlu0 %5634
    %5636 = vrot.lane.b32.xlu0 %v4903, 4
    %v5637 = vpop.permute.xlu0 %5636
    %5638 = vrot.lane.b32.xlu0 %v4904, 4
    %v5639 = vpop.permute.xlu0 %5638
    %5640 = vrot.lane.b32.xlu0 %v4905, 4
    %v5641 = vpop.permute.xlu0 %5640
    %5650 = vrot.lane.b32.xlu0 %v4906, 24
    %v5651 = vpop.permute.xlu0 %5650
    %5652 = vrot.lane.b32.xlu0 %v4907, 24
    %v5653 = vpop.permute.xlu0 %5652
    %5654 = vrot.lane.b32.xlu0 %v4908, 24
    %v5655 = vpop.permute.xlu0 %5654
    %5656 = vrot.lane.b32.xlu0 %v4909, 24
    %v5657 = vpop.permute.xlu0 %5656
    %5666 = vrot.lane.b32.xlu0 %v4882, 44
    %v5667 = vpop.permute.xlu0 %5666
    %5668 = vrot.lane.b32.xlu0 %v4883, 44
    %v5669 = vpop.permute.xlu0 %5668
    %5670 = vrot.lane.b32.xlu0 %v4884, 44
    %v5671 = vpop.permute.xlu0 %5670
    %5672 = vrot.lane.b32.xlu0 %v4885, 44
    %v5673 = vpop.permute.xlu0 %5672
    %v5678 = vsel %vm5206, %v4826, %v5483
    %v5679 = vsel %vm5206, %v4827, %v5485
    %v5680 = vsel %vm5206, %v4828, %v5487
    %v5681 = vsel %vm5206, %v4829, %v5489
    %v5682 = vsel %vm5211, %v5678, %v5495
    %v5683 = vsel %vm5211, %v5679, %v5497
    %v5684 = vsel %vm5211, %v5680, %v5499
    %v5685 = vsel %vm5211, %v5681, %v5501
    %v5686 = vsel %vm5216, %v5682, %v5507
    %v5687 = vsel %vm5216, %v5683, %v5509
    %v5688 = vsel %vm5216, %v5684, %v5511
    %v5689 = vsel %vm5216, %v5685, %v5513
    %v5690 = vsel %vm5221, %v5686, %v5523
    %v5691 = vsel %vm5221, %v5687, %v5525
    %v5692 = vsel %vm5221, %v5688, %v5527
    %v5693 = vsel %vm5221, %v5689, %v5529
    %v5694 = vsel %vm5226, %v5690, %v5535
    %v5695 = vsel %vm5226, %v5691, %v5537
    %v5696 = vsel %vm5226, %v5692, %v5539
    %v5697 = vsel %vm5226, %v5693, %v5541
    %v5698 = vsel %vm5231, %v5694, %v5547
    %v5699 = vsel %vm5231, %v5695, %v5549
    %v5700 = vsel %vm5231, %v5696, %v5551
    %v5701 = vsel %vm5231, %v5697, %v5553
    %v5702 = vsel %vm5236, %v5547, %v5559
    %v5703 = vsel %vm5236, %v5549, %v5561
    %v5704 = vsel %vm5236, %v5551, %v5563
    %v5705 = vsel %vm5236, %v5553, %v5565
    %v5706 = vsel %vm5241, %v5702, %v5571
    %v5707 = vsel %vm5241, %v5703, %v5573
    %v5708 = vsel %vm5241, %v5704, %v5575
    %v5709 = vsel %vm5241, %v5705, %v5577
    %v5710 = vsel %vm5246, %v5706, %v5587
    %v5711 = vsel %vm5246, %v5707, %v5589
    %v5712 = vsel %vm5246, %v5708, %v5591
    %v5713 = vsel %vm5246, %v5709, %v5593
    %v5714 = vsel %vm5251, %v5710, %v5599
    %v5715 = vsel %vm5251, %v5711, %v5601
    %v5716 = vsel %vm5251, %v5712, %v5603
    %v5717 = vsel %vm5251, %v5713, %v5605
    %v5718 = vsel %vm5256, %v5714, %v5611
    %v5719 = vsel %vm5256, %v5715, %v5613
    %v5720 = vsel %vm5256, %v5716, %v5615
    %v5721 = vsel %vm5256, %v5717, %v5617
    %v5722 = vsel %vm5261, %v5718, %v5623
    %v5723 = vsel %vm5261, %v5719, %v5625
    %v5724 = vsel %vm5261, %v5720, %v5627
    %v5725 = vsel %vm5261, %v5721, %v5629
    %v5726 = vsel %vm5266, %v5623, %v5635
    %v5727 = vsel %vm5266, %v5625, %v5637
    %v5728 = vsel %vm5266, %v5627, %v5639
    %v5729 = vsel %vm5266, %v5629, %v5641
    %v5730 = vsel %vm5271, %v5726, %v5651
    %v5731 = vsel %vm5271, %v5727, %v5653
    %v5732 = vsel %vm5271, %v5728, %v5655
    %v5733 = vsel %vm5271, %v5729, %v5657
    %v5734 = vsel %vm5276, %v5730, %v5667
    %v5735 = vsel %vm5276, %v5731, %v5669
    %v5736 = vsel %vm5276, %v5732, %v5671
    %v5737 = vsel %vm5276, %v5733, %v5673
    %5738 = vrot.lane.b32.xlu0 %v4898, 20
    %v5739 = vpop.permute.xlu0 %5738
    %5740 = vrot.lane.b32.xlu0 %v4899, 20
    %v5741 = vpop.permute.xlu0 %5740
    %5742 = vrot.lane.b32.xlu0 %v4900, 20
    %v5743 = vpop.permute.xlu0 %5742
    %5744 = vrot.lane.b32.xlu0 %v4901, 20
    %v5745 = vpop.permute.xlu0 %5744
    %5750 = vrot.lane.b32.xlu0 %v4910, 40
    %v5751 = vpop.permute.xlu0 %5750
    %5752 = vrot.lane.b32.xlu0 %v4911, 40
    %v5753 = vpop.permute.xlu0 %5752
    %5754 = vrot.lane.b32.xlu0 %v4912, 40
    %v5755 = vpop.permute.xlu0 %5754
    %5756 = vrot.lane.b32.xlu0 %v4913, 40
    %v5757 = vpop.permute.xlu0 %5756
    %5766 = vrot.lane.b32.xlu0 %v4914, 60
    %v5767 = vpop.permute.xlu0 %5766
    %5768 = vrot.lane.b32.xlu0 %v4915, 60
    %v5769 = vpop.permute.xlu0 %5768
    %5770 = vrot.lane.b32.xlu0 %v4916, 60
    %v5771 = vpop.permute.xlu0 %5770
    %5772 = vrot.lane.b32.xlu0 %v4917, 60
    %v5773 = vpop.permute.xlu0 %5772
    %5778 = vrot.lane.b32.xlu0 %v4922, 80
    %v5779 = vpop.permute.xlu0 %5778
    %5780 = vrot.lane.b32.xlu0 %v4923, 80
    %v5781 = vpop.permute.xlu0 %5780
    %5782 = vrot.lane.b32.xlu0 %v4924, 80
    %v5783 = vpop.permute.xlu0 %5782
    %5784 = vrot.lane.b32.xlu0 %v4925, 80
    %v5785 = vpop.permute.xlu0 %5784
    %5790 = vrot.lane.b32.xlu0 %v4934, 100
    %v5791 = vpop.permute.xlu0 %5790
    %5792 = vrot.lane.b32.xlu0 %v4935, 100
    %v5793 = vpop.permute.xlu0 %5792
    %5794 = vrot.lane.b32.xlu0 %v4936, 100
    %v5795 = vpop.permute.xlu0 %5794
    %5796 = vrot.lane.b32.xlu0 %v4937, 100
    %v5797 = vpop.permute.xlu0 %5796
    %5802 = vrot.lane.b32.xlu0 %v4938, 120
    %v5803 = vpop.permute.xlu0 %5802
    %5804 = vrot.lane.b32.xlu0 %v4939, 120
    %v5805 = vpop.permute.xlu0 %5804
    %5806 = vrot.lane.b32.xlu0 %v4940, 120
    %v5807 = vpop.permute.xlu0 %5806
    %5808 = vrot.lane.b32.xlu0 %v4941, 120
    %v5809 = vpop.permute.xlu0 %5808
    %5814 = vrot.lane.b32.xlu0 %v4950, 12
    %v5815 = vpop.permute.xlu0 %5814
    %5816 = vrot.lane.b32.xlu0 %v4951, 12
    %v5817 = vpop.permute.xlu0 %5816
    %5818 = vrot.lane.b32.xlu0 %v4952, 12
    %v5819 = vpop.permute.xlu0 %5818
    %5820 = vrot.lane.b32.xlu0 %v4953, 12
    %v5821 = vpop.permute.xlu0 %5820
    %5830 = vrot.lane.b32.xlu0 %v4954, 32
    %v5831 = vpop.permute.xlu0 %5830
    %5832 = vrot.lane.b32.xlu0 %v4955, 32
    %v5833 = vpop.permute.xlu0 %5832
    %5834 = vrot.lane.b32.xlu0 %v4956, 32
    %v5835 = vpop.permute.xlu0 %5834
    %5836 = vrot.lane.b32.xlu0 %v4957, 32
    %v5837 = vpop.permute.xlu0 %5836
    %v5842 = vsel %vm5206, %v4894, %v5739
    %v5843 = vsel %vm5206, %v4895, %v5741
    %v5844 = vsel %vm5206, %v4896, %v5743
    %v5845 = vsel %vm5206, %v4897, %v5745
    %v5846 = vsel %vm5211, %v5842, %v5751
    %v5847 = vsel %vm5211, %v5843, %v5753
    %v5848 = vsel %vm5211, %v5844, %v5755
    %v5849 = vsel %vm5211, %v5845, %v5757
    %v5850 = vsel %vm5216, %v5846, %v5767
    %v5851 = vsel %vm5216, %v5847, %v5769
    %v5852 = vsel %vm5216, %v5848, %v5771
    %v5853 = vsel %vm5216, %v5849, %v5773
    %v5854 = vsel %vm5221, %v5850, %v5779
    %v5855 = vsel %vm5221, %v5851, %v5781
    %v5856 = vsel %vm5221, %v5852, %v5783
    %v5857 = vsel %vm5221, %v5853, %v5785
    %v5858 = vsel %vm5226, %v5854, %v5791
    %v5859 = vsel %vm5226, %v5855, %v5793
    %v5860 = vsel %vm5226, %v5856, %v5795
    %v5861 = vsel %vm5226, %v5857, %v5797
    %v5862 = vsel %vm5231, %v5858, %v5803
    %v5863 = vsel %vm5231, %v5859, %v5805
    %v5864 = vsel %vm5231, %v5860, %v5807
    %v5865 = vsel %vm5231, %v5861, %v5809
    %v5866 = vsel %vm5236, %v5803, %v5815
    %v5867 = vsel %vm5236, %v5805, %v5817
    %v5868 = vsel %vm5236, %v5807, %v5819
    %v5869 = vsel %vm5236, %v5809, %v5821
    %v5870 = vsel %vm5241, %v5866, %v5831
    %v5871 = vsel %vm5241, %v5867, %v5833
    %v5872 = vsel %vm5241, %v5868, %v5835
    %v5873 = vsel %vm5241, %v5869, %v5837
    %5882 = vrot.lane.b32.xlu0 %v5862, 64
    %v5883 = vpop.permute.xlu0 %5882
    %5884 = vrot.lane.b32.xlu0 %v5870, 64
    %v5885 = vpop.permute.xlu0 %5884
    %5886 = vrot.lane.b32.xlu0 %v5863, 64
    %v5887 = vpop.permute.xlu0 %5886
    %5888 = vrot.lane.b32.xlu0 %v5871, 64
    %v5889 = vpop.permute.xlu0 %5888
    %5890 = vrot.lane.b32.xlu0 %v5864, 64
    %v5891 = vpop.permute.xlu0 %5890
    %5892 = vrot.lane.b32.xlu0 %v5872, 64
    %v5893 = vpop.permute.xlu0 %5892
    %5894 = vrot.lane.b32.xlu0 %v5865, 64
    %v5895 = vpop.permute.xlu0 %5894
    %5896 = vrot.lane.b32.xlu0 %v5873, 64
    %v5897 = vpop.permute.xlu0 %5896
    %v5898 = vsel %vm5465, %v5883, %v5885
    %v5899 = vsel %vm5465, %v5887, %v5889
    %v5900 = vsel %vm5465, %v5891, %v5893
    %v5901 = vsel %vm5465, %v5895, %v5897
    %v5910 = vsel %vm5465, %v5734, %v5883
    %v5911 = vsel %vm5465, %v5735, %v5887
    %v5912 = vsel %vm5465, %v5736, %v5891
    %v5913 = vsel %vm5465, %v5737, %v5895
    %5914 = vrot.lane.b32.xlu0 %v4834, 20
    %v5915 = vpop.permute.xlu0 %5914
    %5916 = vrot.lane.b32.xlu0 %v4835, 20
    %v5917 = vpop.permute.xlu0 %5916
    %5918 = vrot.lane.b32.xlu0 %v4836, 20
    %v5919 = vpop.permute.xlu0 %5918
    %5920 = vrot.lane.b32.xlu0 %v4837, 20
    %v5921 = vpop.permute.xlu0 %5920
    %5926 = vrot.lane.b32.xlu0 %v4846, 40
    %v5927 = vpop.permute.xlu0 %5926
    %5928 = vrot.lane.b32.xlu0 %v4847, 40
    %v5929 = vpop.permute.xlu0 %5928
    %5930 = vrot.lane.b32.xlu0 %v4848, 40
    %v5931 = vpop.permute.xlu0 %5930
    %5932 = vrot.lane.b32.xlu0 %v4849, 40
    %v5933 = vpop.permute.xlu0 %5932
    %5938 = vrot.lane.b32.xlu0 %v4850, 60
    %v5939 = vpop.permute.xlu0 %5938
    %5940 = vrot.lane.b32.xlu0 %v4851, 60
    %v5941 = vpop.permute.xlu0 %5940
    %5942 = vrot.lane.b32.xlu0 %v4852, 60
    %v5943 = vpop.permute.xlu0 %5942
    %5944 = vrot.lane.b32.xlu0 %v4853, 60
    %v5945 = vpop.permute.xlu0 %5944
    %5950 = vrot.lane.b32.xlu0 %v4862, 80
    %v5951 = vpop.permute.xlu0 %5950
    %5952 = vrot.lane.b32.xlu0 %v4863, 80
    %v5953 = vpop.permute.xlu0 %5952
    %5954 = vrot.lane.b32.xlu0 %v4864, 80
    %v5955 = vpop.permute.xlu0 %5954
    %5956 = vrot.lane.b32.xlu0 %v4865, 80
    %v5957 = vpop.permute.xlu0 %5956
    %5962 = vrot.lane.b32.xlu0 %v4870, 100
    %v5963 = vpop.permute.xlu0 %5962
    %5964 = vrot.lane.b32.xlu0 %v4871, 100
    %v5965 = vpop.permute.xlu0 %5964
    %5966 = vrot.lane.b32.xlu0 %v4872, 100
    %v5967 = vpop.permute.xlu0 %5966
    %5968 = vrot.lane.b32.xlu0 %v4873, 100
    %v5969 = vpop.permute.xlu0 %5968
    %5974 = vrot.lane.b32.xlu0 %v4874, 120
    %v5975 = vpop.permute.xlu0 %5974
    %5976 = vrot.lane.b32.xlu0 %v4875, 120
    %v5977 = vpop.permute.xlu0 %5976
    %5978 = vrot.lane.b32.xlu0 %v4876, 120
    %v5979 = vpop.permute.xlu0 %5978
    %5980 = vrot.lane.b32.xlu0 %v4877, 120
    %v5981 = vpop.permute.xlu0 %5980
    %5986 = vrot.lane.b32.xlu0 %v4886, 12
    %v5987 = vpop.permute.xlu0 %5986
    %5988 = vrot.lane.b32.xlu0 %v4887, 12
    %v5989 = vpop.permute.xlu0 %5988
    %5990 = vrot.lane.b32.xlu0 %v4888, 12
    %v5991 = vpop.permute.xlu0 %5990
    %5992 = vrot.lane.b32.xlu0 %v4889, 12
    %v5993 = vpop.permute.xlu0 %5992
    %5998 = vrot.lane.b32.xlu0 %v4890, 32
    %v5999 = vpop.permute.xlu0 %5998
    %6000 = vrot.lane.b32.xlu0 %v4891, 32
    %v6001 = vpop.permute.xlu0 %6000
    %6002 = vrot.lane.b32.xlu0 %v4892, 32
    %v6003 = vpop.permute.xlu0 %6002
    %6004 = vrot.lane.b32.xlu0 %v4893, 32
    %v6005 = vpop.permute.xlu0 %6004
    %6010 = vrot.lane.b32.xlu0 %v4902, 52
    %v6011 = vpop.permute.xlu0 %6010
    %6012 = vrot.lane.b32.xlu0 %v4903, 52
    %v6013 = vpop.permute.xlu0 %6012
    %6014 = vrot.lane.b32.xlu0 %v4904, 52
    %v6015 = vpop.permute.xlu0 %6014
    %6016 = vrot.lane.b32.xlu0 %v4905, 52
    %v6017 = vpop.permute.xlu0 %6016
    %6022 = vrot.lane.b32.xlu0 %v4878, 72
    %v6023 = vpop.permute.xlu0 %6022
    %6024 = vrot.lane.b32.xlu0 %v4879, 72
    %v6025 = vpop.permute.xlu0 %6024
    %6026 = vrot.lane.b32.xlu0 %v4880, 72
    %v6027 = vpop.permute.xlu0 %6026
    %6028 = vrot.lane.b32.xlu0 %v4881, 72
    %v6029 = vpop.permute.xlu0 %6028
    %6034 = vrot.lane.b32.xlu0 %v4882, 92
    %v6035 = vpop.permute.xlu0 %6034
    %6036 = vrot.lane.b32.xlu0 %v4883, 92
    %v6037 = vpop.permute.xlu0 %6036
    %6038 = vrot.lane.b32.xlu0 %v4884, 92
    %v6039 = vpop.permute.xlu0 %6038
    %6040 = vrot.lane.b32.xlu0 %v4885, 92
    %v6041 = vpop.permute.xlu0 %6040
    %6046 = vrot.lane.b32.xlu0 %v4894, 112
    %v6047 = vpop.permute.xlu0 %6046
    %6048 = vrot.lane.b32.xlu0 %v4895, 112
    %v6049 = vpop.permute.xlu0 %6048
    %6050 = vrot.lane.b32.xlu0 %v4896, 112
    %v6051 = vpop.permute.xlu0 %6050
    %6052 = vrot.lane.b32.xlu0 %v4897, 112
    %v6053 = vpop.permute.xlu0 %6052
    %6058 = vrot.lane.b32.xlu0 %v4898, 4
    %v6059 = vpop.permute.xlu0 %6058
    %6060 = vrot.lane.b32.xlu0 %v4899, 4
    %v6061 = vpop.permute.xlu0 %6060
    %6062 = vrot.lane.b32.xlu0 %v4900, 4
    %v6063 = vpop.permute.xlu0 %6062
    %6064 = vrot.lane.b32.xlu0 %v4901, 4
    %v6065 = vpop.permute.xlu0 %6064
    %6070 = vrot.lane.b32.xlu0 %v4910, 24
    %v6071 = vpop.permute.xlu0 %6070
    %6072 = vrot.lane.b32.xlu0 %v4911, 24
    %v6073 = vpop.permute.xlu0 %6072
    %6074 = vrot.lane.b32.xlu0 %v4912, 24
    %v6075 = vpop.permute.xlu0 %6074
    %6076 = vrot.lane.b32.xlu0 %v4913, 24
    %v6077 = vpop.permute.xlu0 %6076
    %6082 = vrot.lane.b32.xlu0 %v4918, 44
    %v6083 = vpop.permute.xlu0 %6082
    %6084 = vrot.lane.b32.xlu0 %v4919, 44
    %v6085 = vpop.permute.xlu0 %6084
    %6086 = vrot.lane.b32.xlu0 %v4920, 44
    %v6087 = vpop.permute.xlu0 %6086
    %6088 = vrot.lane.b32.xlu0 %v4921, 44
    %v6089 = vpop.permute.xlu0 %6088
    %v6094 = vsel %vm5206, %v4830, %v5915
    %v6095 = vsel %vm5206, %v4831, %v5917
    %v6096 = vsel %vm5206, %v4832, %v5919
    %v6097 = vsel %vm5206, %v4833, %v5921
    %v6098 = vsel %vm5211, %v6094, %v5927
    %v6099 = vsel %vm5211, %v6095, %v5929
    %v6100 = vsel %vm5211, %v6096, %v5931
    %v6101 = vsel %vm5211, %v6097, %v5933
    %v6102 = vsel %vm5216, %v6098, %v5939
    %v6103 = vsel %vm5216, %v6099, %v5941
    %v6104 = vsel %vm5216, %v6100, %v5943
    %v6105 = vsel %vm5216, %v6101, %v5945
    %v6106 = vsel %vm5221, %v6102, %v5951
    %v6107 = vsel %vm5221, %v6103, %v5953
    %v6108 = vsel %vm5221, %v6104, %v5955
    %v6109 = vsel %vm5221, %v6105, %v5957
    %v6110 = vsel %vm5226, %v6106, %v5963
    %v6111 = vsel %vm5226, %v6107, %v5965
    %v6112 = vsel %vm5226, %v6108, %v5967
    %v6113 = vsel %vm5226, %v6109, %v5969
    %v6114 = vsel %vm5231, %v6110, %v5975
    %v6115 = vsel %vm5231, %v6111, %v5977
    %v6116 = vsel %vm5231, %v6112, %v5979
    %v6117 = vsel %vm5231, %v6113, %v5981
    %v6118 = vsel %vm5236, %v5975, %v5987
    %v6119 = vsel %vm5236, %v5977, %v5989
    %v6120 = vsel %vm5236, %v5979, %v5991
    %v6121 = vsel %vm5236, %v5981, %v5993
    %v6122 = vsel %vm5241, %v6118, %v5999
    %v6123 = vsel %vm5241, %v6119, %v6001
    %v6124 = vsel %vm5241, %v6120, %v6003
    %v6125 = vsel %vm5241, %v6121, %v6005
    %v6126 = vsel %vm5246, %v6122, %v6011
    %v6127 = vsel %vm5246, %v6123, %v6013
    %v6128 = vsel %vm5246, %v6124, %v6015
    %v6129 = vsel %vm5246, %v6125, %v6017
    %v6130 = vsel %vm5251, %v6126, %v6023
    %v6131 = vsel %vm5251, %v6127, %v6025
    %v6132 = vsel %vm5251, %v6128, %v6027
    %v6133 = vsel %vm5251, %v6129, %v6029
    %v6134 = vsel %vm5256, %v6130, %v6035
    %v6135 = vsel %vm5256, %v6131, %v6037
    %v6136 = vsel %vm5256, %v6132, %v6039
    %v6137 = vsel %vm5256, %v6133, %v6041
    %v6138 = vsel %vm5261, %v6134, %v6047
    %v6139 = vsel %vm5261, %v6135, %v6049
    %v6140 = vsel %vm5261, %v6136, %v6051
    %v6141 = vsel %vm5261, %v6137, %v6053
    %v6142 = vsel %vm5266, %v6047, %v6059
    %v6143 = vsel %vm5266, %v6049, %v6061
    %v6144 = vsel %vm5266, %v6051, %v6063
    %v6145 = vsel %vm5266, %v6053, %v6065
    %v6146 = vsel %vm5271, %v6142, %v6071
    %v6147 = vsel %vm5271, %v6143, %v6073
    %v6148 = vsel %vm5271, %v6144, %v6075
    %v6149 = vsel %vm5271, %v6145, %v6077
    %v6150 = vsel %vm5276, %v6146, %v6083
    %v6151 = vsel %vm5276, %v6147, %v6085
    %v6152 = vsel %vm5276, %v6148, %v6087
    %v6153 = vsel %vm5276, %v6149, %v6089
    %6154 = vrot.lane.b32.xlu0 %v4934, 20
    %v6155 = vpop.permute.xlu0 %6154
    %6156 = vrot.lane.b32.xlu0 %v4935, 20
    %v6157 = vpop.permute.xlu0 %6156
    %6158 = vrot.lane.b32.xlu0 %v4936, 20
    %v6159 = vpop.permute.xlu0 %6158
    %6160 = vrot.lane.b32.xlu0 %v4937, 20
    %v6161 = vpop.permute.xlu0 %6160
    %6166 = vrot.lane.b32.xlu0 %v4938, 40
    %v6167 = vpop.permute.xlu0 %6166
    %6168 = vrot.lane.b32.xlu0 %v4939, 40
    %v6169 = vpop.permute.xlu0 %6168
    %6170 = vrot.lane.b32.xlu0 %v4940, 40
    %v6171 = vpop.permute.xlu0 %6170
    %6172 = vrot.lane.b32.xlu0 %v4941, 40
    %v6173 = vpop.permute.xlu0 %6172
    %6178 = vrot.lane.b32.xlu0 %v4950, 60
    %v6179 = vpop.permute.xlu0 %6178
    %6180 = vrot.lane.b32.xlu0 %v4951, 60
    %v6181 = vpop.permute.xlu0 %6180
    %6182 = vrot.lane.b32.xlu0 %v4952, 60
    %v6183 = vpop.permute.xlu0 %6182
    %6184 = vrot.lane.b32.xlu0 %v4953, 60
    %v6185 = vpop.permute.xlu0 %6184
    %6194 = vrot.lane.b32.xlu0 %v4926, 80
    %v6195 = vpop.permute.xlu0 %6194
    %6196 = vrot.lane.b32.xlu0 %v4927, 80
    %v6197 = vpop.permute.xlu0 %6196
    %6198 = vrot.lane.b32.xlu0 %v4928, 80
    %v6199 = vpop.permute.xlu0 %6198
    %6200 = vrot.lane.b32.xlu0 %v4929, 80
    %v6201 = vpop.permute.xlu0 %6200
    %6210 = vrot.lane.b32.xlu0 %v4930, 100
    %v6211 = vpop.permute.xlu0 %6210
    %6212 = vrot.lane.b32.xlu0 %v4931, 100
    %v6213 = vpop.permute.xlu0 %6212
    %6214 = vrot.lane.b32.xlu0 %v4932, 100
    %v6215 = vpop.permute.xlu0 %6214
    %6216 = vrot.lane.b32.xlu0 %v4933, 100
    %v6217 = vpop.permute.xlu0 %6216
    %6226 = vrot.lane.b32.xlu0 %v4942, 120
    %v6227 = vpop.permute.xlu0 %6226
    %6228 = vrot.lane.b32.xlu0 %v4943, 120
    %v6229 = vpop.permute.xlu0 %6228
    %6230 = vrot.lane.b32.xlu0 %v4944, 120
    %v6231 = vpop.permute.xlu0 %6230
    %6232 = vrot.lane.b32.xlu0 %v4945, 120
    %v6233 = vpop.permute.xlu0 %6232
    %6242 = vrot.lane.b32.xlu0 %v4946, 12
    %v6243 = vpop.permute.xlu0 %6242
    %6244 = vrot.lane.b32.xlu0 %v4947, 12
    %v6245 = vpop.permute.xlu0 %6244
    %6246 = vrot.lane.b32.xlu0 %v4948, 12
    %v6247 = vpop.permute.xlu0 %6246
    %6248 = vrot.lane.b32.xlu0 %v4949, 12
    %v6249 = vpop.permute.xlu0 %6248
    %6258 = vrot.lane.b32.xlu0 %v4958, 32
    %v6259 = vpop.permute.xlu0 %6258
    %6260 = vrot.lane.b32.xlu0 %v4959, 32
    %v6261 = vpop.permute.xlu0 %6260
    %6262 = vrot.lane.b32.xlu0 %v4960, 32
    %v6263 = vpop.permute.xlu0 %6262
    %6264 = vrot.lane.b32.xlu0 %v4961, 32
    %v6265 = vpop.permute.xlu0 %6264
    %v6270 = vsel %vm5206, %v4922, %v6155
    %v6271 = vsel %vm5206, %v4923, %v6157
    %v6272 = vsel %vm5206, %v4924, %v6159
    %v6273 = vsel %vm5206, %v4925, %v6161
    %v6274 = vsel %vm5211, %v6270, %v6167
    %v6275 = vsel %vm5211, %v6271, %v6169
    %v6276 = vsel %vm5211, %v6272, %v6171
    %v6277 = vsel %vm5211, %v6273, %v6173
    %v6278 = vsel %vm5216, %v6274, %v6179
    %v6279 = vsel %vm5216, %v6275, %v6181
    %v6280 = vsel %vm5216, %v6276, %v6183
    %v6281 = vsel %vm5216, %v6277, %v6185
    %v6282 = vsel %vm5221, %v6278, %v6195
    %v6283 = vsel %vm5221, %v6279, %v6197
    %v6284 = vsel %vm5221, %v6280, %v6199
    %v6285 = vsel %vm5221, %v6281, %v6201
    %v6286 = vsel %vm5226, %v6282, %v6211
    %v6287 = vsel %vm5226, %v6283, %v6213
    %v6288 = vsel %vm5226, %v6284, %v6215
    %v6289 = vsel %vm5226, %v6285, %v6217
    %v6290 = vsel %vm5231, %v6286, %v6227
    %v6291 = vsel %vm5231, %v6287, %v6229
    %v6292 = vsel %vm5231, %v6288, %v6231
    %v6293 = vsel %vm5231, %v6289, %v6233
    %v6294 = vsel %vm5236, %v6227, %v6243
    %v6295 = vsel %vm5236, %v6229, %v6245
    %v6296 = vsel %vm5236, %v6231, %v6247
    %v6297 = vsel %vm5236, %v6233, %v6249
    %v6298 = vsel %vm5241, %v6294, %v6259
    %v6299 = vsel %vm5241, %v6295, %v6261
    %v6300 = vsel %vm5241, %v6296, %v6263
    %v6301 = vsel %vm5241, %v6297, %v6265
    %6310 = vrot.lane.b32.xlu0 %v6290, 64
    %v6311 = vpop.permute.xlu0 %6310
    %6312 = vrot.lane.b32.xlu0 %v6298, 64
    %v6313 = vpop.permute.xlu0 %6312
    %6314 = vrot.lane.b32.xlu0 %v6291, 64
    %v6315 = vpop.permute.xlu0 %6314
    %6316 = vrot.lane.b32.xlu0 %v6299, 64
    %v6317 = vpop.permute.xlu0 %6316
    %6318 = vrot.lane.b32.xlu0 %v6292, 64
    %v6319 = vpop.permute.xlu0 %6318
    %6320 = vrot.lane.b32.xlu0 %v6300, 64
    %v6321 = vpop.permute.xlu0 %6320
    %6322 = vrot.lane.b32.xlu0 %v6293, 64
    %v6323 = vpop.permute.xlu0 %6322
    %6324 = vrot.lane.b32.xlu0 %v6301, 64
    %v6325 = vpop.permute.xlu0 %6324
    %v6326 = vsel %vm5465, %v6311, %v6313
    %v6327 = vsel %vm5465, %v6315, %v6317
    %v6328 = vsel %vm5465, %v6319, %v6321
    %v6329 = vsel %vm5465, %v6323, %v6325
    %v6338 = vsel %vm5465, %v6150, %v6311
    %v6339 = vsel %vm5465, %v6151, %v6315
    %v6340 = vsel %vm5465, %v6152, %v6319
    %v6341 = vsel %vm5465, %v6153, %v6323
    %6342 = vrot.lane.b32.xlu0 %v4846, 20
    %v6343 = vpop.permute.xlu0 %6342
    %6344 = vrot.lane.b32.xlu0 %v4847, 20
    %v6345 = vpop.permute.xlu0 %6344
    %6346 = vrot.lane.b32.xlu0 %v4848, 20
    %v6347 = vpop.permute.xlu0 %6346
    %6348 = vrot.lane.b32.xlu0 %v4849, 20
    %v6349 = vpop.permute.xlu0 %6348
    %6354 = vrot.lane.b32.xlu0 %v4850, 40
    %v6355 = vpop.permute.xlu0 %6354
    %6356 = vrot.lane.b32.xlu0 %v4851, 40
    %v6357 = vpop.permute.xlu0 %6356
    %6358 = vrot.lane.b32.xlu0 %v4852, 40
    %v6359 = vpop.permute.xlu0 %6358
    %6360 = vrot.lane.b32.xlu0 %v4853, 40
    %v6361 = vpop.permute.xlu0 %6360
    %6366 = vrot.lane.b32.xlu0 %v4862, 60
    %v6367 = vpop.permute.xlu0 %6366
    %6368 = vrot.lane.b32.xlu0 %v4863, 60
    %v6369 = vpop.permute.xlu0 %6368
    %6370 = vrot.lane.b32.xlu0 %v4864, 60
    %v6371 = vpop.permute.xlu0 %6370
    %6372 = vrot.lane.b32.xlu0 %v4865, 60
    %v6373 = vpop.permute.xlu0 %6372
    %6378 = vrot.lane.b32.xlu0 %v4866, 80
    %v6379 = vpop.permute.xlu0 %6378
    %6380 = vrot.lane.b32.xlu0 %v4867, 80
    %v6381 = vpop.permute.xlu0 %6380
    %6382 = vrot.lane.b32.xlu0 %v4868, 80
    %v6383 = vpop.permute.xlu0 %6382
    %6384 = vrot.lane.b32.xlu0 %v4869, 80
    %v6385 = vpop.permute.xlu0 %6384
    %6390 = vrot.lane.b32.xlu0 %v4874, 100
    %v6391 = vpop.permute.xlu0 %6390
    %6392 = vrot.lane.b32.xlu0 %v4875, 100
    %v6393 = vpop.permute.xlu0 %6392
    %6394 = vrot.lane.b32.xlu0 %v4876, 100
    %v6395 = vpop.permute.xlu0 %6394
    %6396 = vrot.lane.b32.xlu0 %v4877, 100
    %v6397 = vpop.permute.xlu0 %6396
    %6402 = vrot.lane.b32.xlu0 %v4886, 120
    %v6403 = vpop.permute.xlu0 %6402
    %6404 = vrot.lane.b32.xlu0 %v4887, 120
    %v6405 = vpop.permute.xlu0 %6404
    %6406 = vrot.lane.b32.xlu0 %v4888, 120
    %v6407 = vpop.permute.xlu0 %6406
    %6408 = vrot.lane.b32.xlu0 %v4889, 120
    %v6409 = vpop.permute.xlu0 %6408
    %6414 = vrot.lane.b32.xlu0 %v4890, 12
    %v6415 = vpop.permute.xlu0 %6414
    %6416 = vrot.lane.b32.xlu0 %v4891, 12
    %v6417 = vpop.permute.xlu0 %6416
    %6418 = vrot.lane.b32.xlu0 %v4892, 12
    %v6419 = vpop.permute.xlu0 %6418
    %6420 = vrot.lane.b32.xlu0 %v4893, 12
    %v6421 = vpop.permute.xlu0 %6420
    %6426 = vrot.lane.b32.xlu0 %v4902, 32
    %v6427 = vpop.permute.xlu0 %6426
    %6428 = vrot.lane.b32.xlu0 %v4903, 32
    %v6429 = vpop.permute.xlu0 %6428
    %6430 = vrot.lane.b32.xlu0 %v4904, 32
    %v6431 = vpop.permute.xlu0 %6430
    %6432 = vrot.lane.b32.xlu0 %v4905, 32
    %v6433 = vpop.permute.xlu0 %6432
    %6438 = vrot.lane.b32.xlu0 %v4906, 52
    %v6439 = vpop.permute.xlu0 %6438
    %6440 = vrot.lane.b32.xlu0 %v4907, 52
    %v6441 = vpop.permute.xlu0 %6440
    %6442 = vrot.lane.b32.xlu0 %v4908, 52
    %v6443 = vpop.permute.xlu0 %6442
    %6444 = vrot.lane.b32.xlu0 %v4909, 52
    %v6445 = vpop.permute.xlu0 %6444
    %6450 = vrot.lane.b32.xlu0 %v4882, 72
    %v6451 = vpop.permute.xlu0 %6450
    %6452 = vrot.lane.b32.xlu0 %v4883, 72
    %v6453 = vpop.permute.xlu0 %6452
    %6454 = vrot.lane.b32.xlu0 %v4884, 72
    %v6455 = vpop.permute.xlu0 %6454
    %6456 = vrot.lane.b32.xlu0 %v4885, 72
    %v6457 = vpop.permute.xlu0 %6456
    %6462 = vrot.lane.b32.xlu0 %v4894, 92
    %v6463 = vpop.permute.xlu0 %6462
    %6464 = vrot.lane.b32.xlu0 %v4895, 92
    %v6465 = vpop.permute.xlu0 %6464
    %6466 = vrot.lane.b32.xlu0 %v4896, 92
    %v6467 = vpop.permute.xlu0 %6466
    %6468 = vrot.lane.b32.xlu0 %v4897, 92
    %v6469 = vpop.permute.xlu0 %6468
    %6474 = vrot.lane.b32.xlu0 %v4898, 112
    %v6475 = vpop.permute.xlu0 %6474
    %6476 = vrot.lane.b32.xlu0 %v4899, 112
    %v6477 = vpop.permute.xlu0 %6476
    %6478 = vrot.lane.b32.xlu0 %v4900, 112
    %v6479 = vpop.permute.xlu0 %6478
    %6480 = vrot.lane.b32.xlu0 %v4901, 112
    %v6481 = vpop.permute.xlu0 %6480
    %6486 = vrot.lane.b32.xlu0 %v4910, 4
    %v6487 = vpop.permute.xlu0 %6486
    %6488 = vrot.lane.b32.xlu0 %v4911, 4
    %v6489 = vpop.permute.xlu0 %6488
    %6490 = vrot.lane.b32.xlu0 %v4912, 4
    %v6491 = vpop.permute.xlu0 %6490
    %6492 = vrot.lane.b32.xlu0 %v4913, 4
    %v6493 = vpop.permute.xlu0 %6492
    %6498 = vrot.lane.b32.xlu0 %v4914, 24
    %v6499 = vpop.permute.xlu0 %6498
    %6500 = vrot.lane.b32.xlu0 %v4915, 24
    %v6501 = vpop.permute.xlu0 %6500
    %6502 = vrot.lane.b32.xlu0 %v4916, 24
    %v6503 = vpop.permute.xlu0 %6502
    %6504 = vrot.lane.b32.xlu0 %v4917, 24
    %v6505 = vpop.permute.xlu0 %6504
    %6510 = vrot.lane.b32.xlu0 %v4922, 44
    %v6511 = vpop.permute.xlu0 %6510
    %6512 = vrot.lane.b32.xlu0 %v4923, 44
    %v6513 = vpop.permute.xlu0 %6512
    %6514 = vrot.lane.b32.xlu0 %v4924, 44
    %v6515 = vpop.permute.xlu0 %6514
    %6516 = vrot.lane.b32.xlu0 %v4925, 44
    %v6517 = vpop.permute.xlu0 %6516
    %v6522 = vsel %vm5206, %v4834, %v6343
    %v6523 = vsel %vm5206, %v4835, %v6345
    %v6524 = vsel %vm5206, %v4836, %v6347
    %v6525 = vsel %vm5206, %v4837, %v6349
    %v6526 = vsel %vm5211, %v6522, %v6355
    %v6527 = vsel %vm5211, %v6523, %v6357
    %v6528 = vsel %vm5211, %v6524, %v6359
    %v6529 = vsel %vm5211, %v6525, %v6361
    %v6530 = vsel %vm5216, %v6526, %v6367
    %v6531 = vsel %vm5216, %v6527, %v6369
    %v6532 = vsel %vm5216, %v6528, %v6371
    %v6533 = vsel %vm5216, %v6529, %v6373
    %v6534 = vsel %vm5221, %v6530, %v6379
    %v6535 = vsel %vm5221, %v6531, %v6381
    %v6536 = vsel %vm5221, %v6532, %v6383
    %v6537 = vsel %vm5221, %v6533, %v6385
    %v6538 = vsel %vm5226, %v6534, %v6391
    %v6539 = vsel %vm5226, %v6535, %v6393
    %v6540 = vsel %vm5226, %v6536, %v6395
    %v6541 = vsel %vm5226, %v6537, %v6397
    %v6542 = vsel %vm5231, %v6538, %v6403
    %v6543 = vsel %vm5231, %v6539, %v6405
    %v6544 = vsel %vm5231, %v6540, %v6407
    %v6545 = vsel %vm5231, %v6541, %v6409
    %v6546 = vsel %vm5236, %v6403, %v6415
    %v6547 = vsel %vm5236, %v6405, %v6417
    %v6548 = vsel %vm5236, %v6407, %v6419
    %v6549 = vsel %vm5236, %v6409, %v6421
    %v6550 = vsel %vm5241, %v6546, %v6427
    %v6551 = vsel %vm5241, %v6547, %v6429
    %v6552 = vsel %vm5241, %v6548, %v6431
    %v6553 = vsel %vm5241, %v6549, %v6433
    %v6554 = vsel %vm5246, %v6550, %v6439
    %v6555 = vsel %vm5246, %v6551, %v6441
    %v6556 = vsel %vm5246, %v6552, %v6443
    %v6557 = vsel %vm5246, %v6553, %v6445
    %v6558 = vsel %vm5251, %v6554, %v6451
    %v6559 = vsel %vm5251, %v6555, %v6453
    %v6560 = vsel %vm5251, %v6556, %v6455
    %v6561 = vsel %vm5251, %v6557, %v6457
    %v6562 = vsel %vm5256, %v6558, %v6463
    %v6563 = vsel %vm5256, %v6559, %v6465
    %v6564 = vsel %vm5256, %v6560, %v6467
    %v6565 = vsel %vm5256, %v6561, %v6469
    %v6566 = vsel %vm5261, %v6562, %v6475
    %v6567 = vsel %vm5261, %v6563, %v6477
    %v6568 = vsel %vm5261, %v6564, %v6479
    %v6569 = vsel %vm5261, %v6565, %v6481
    %v6570 = vsel %vm5266, %v6475, %v6487
    %v6571 = vsel %vm5266, %v6477, %v6489
    %v6572 = vsel %vm5266, %v6479, %v6491
    %v6573 = vsel %vm5266, %v6481, %v6493
    %v6574 = vsel %vm5271, %v6570, %v6499
    %v6575 = vsel %vm5271, %v6571, %v6501
    %v6576 = vsel %vm5271, %v6572, %v6503
    %v6577 = vsel %vm5271, %v6573, %v6505
    %v6578 = vsel %vm5276, %v6574, %v6511
    %v6579 = vsel %vm5276, %v6575, %v6513
    %v6580 = vsel %vm5276, %v6576, %v6515
    %v6581 = vsel %vm5276, %v6577, %v6517
    %6582 = vrot.lane.b32.xlu0 %v4938, 20
    %v6583 = vpop.permute.xlu0 %6582
    %6584 = vrot.lane.b32.xlu0 %v4939, 20
    %v6585 = vpop.permute.xlu0 %6584
    %6586 = vrot.lane.b32.xlu0 %v4940, 20
    %v6587 = vpop.permute.xlu0 %6586
    %6588 = vrot.lane.b32.xlu0 %v4941, 20
    %v6589 = vpop.permute.xlu0 %6588
    %6594 = vrot.lane.b32.xlu0 %v4950, 40
    %v6595 = vpop.permute.xlu0 %6594
    %6596 = vrot.lane.b32.xlu0 %v4951, 40
    %v6597 = vpop.permute.xlu0 %6596
    %6598 = vrot.lane.b32.xlu0 %v4952, 40
    %v6599 = vpop.permute.xlu0 %6598
    %6600 = vrot.lane.b32.xlu0 %v4953, 40
    %v6601 = vpop.permute.xlu0 %6600
    %6606 = vrot.lane.b32.xlu0 %v4954, 60
    %v6607 = vpop.permute.xlu0 %6606
    %6608 = vrot.lane.b32.xlu0 %v4955, 60
    %v6609 = vpop.permute.xlu0 %6608
    %6610 = vrot.lane.b32.xlu0 %v4956, 60
    %v6611 = vpop.permute.xlu0 %6610
    %6612 = vrot.lane.b32.xlu0 %v4957, 60
    %v6613 = vpop.permute.xlu0 %6612
    %6618 = vrot.lane.b32.xlu0 %v4930, 80
    %v6619 = vpop.permute.xlu0 %6618
    %6620 = vrot.lane.b32.xlu0 %v4931, 80
    %v6621 = vpop.permute.xlu0 %6620
    %6622 = vrot.lane.b32.xlu0 %v4932, 80
    %v6623 = vpop.permute.xlu0 %6622
    %6624 = vrot.lane.b32.xlu0 %v4933, 80
    %v6625 = vpop.permute.xlu0 %6624
    %6630 = vrot.lane.b32.xlu0 %v4942, 100
    %v6631 = vpop.permute.xlu0 %6630
    %6632 = vrot.lane.b32.xlu0 %v4943, 100
    %v6633 = vpop.permute.xlu0 %6632
    %6634 = vrot.lane.b32.xlu0 %v4944, 100
    %v6635 = vpop.permute.xlu0 %6634
    %6636 = vrot.lane.b32.xlu0 %v4945, 100
    %v6637 = vpop.permute.xlu0 %6636
    %6642 = vrot.lane.b32.xlu0 %v4946, 120
    %v6643 = vpop.permute.xlu0 %6642
    %6644 = vrot.lane.b32.xlu0 %v4947, 120
    %v6645 = vpop.permute.xlu0 %6644
    %6646 = vrot.lane.b32.xlu0 %v4948, 120
    %v6647 = vpop.permute.xlu0 %6646
    %6648 = vrot.lane.b32.xlu0 %v4949, 120
    %v6649 = vpop.permute.xlu0 %6648
    %6654 = vrot.lane.b32.xlu0 %v4958, 12
    %v6655 = vpop.permute.xlu0 %6654
    %6656 = vrot.lane.b32.xlu0 %v4959, 12
    %v6657 = vpop.permute.xlu0 %6656
    %6658 = vrot.lane.b32.xlu0 %v4960, 12
    %v6659 = vpop.permute.xlu0 %6658
    %6660 = vrot.lane.b32.xlu0 %v4961, 12
    %v6661 = vpop.permute.xlu0 %6660
    %6670 = vrot.lane.b32.xlu0 %v4962, 32
    %v6671 = vpop.permute.xlu0 %6670
    %6672 = vrot.lane.b32.xlu0 %v4963, 32
    %v6673 = vpop.permute.xlu0 %6672
    %6674 = vrot.lane.b32.xlu0 %v4964, 32
    %v6675 = vpop.permute.xlu0 %6674
    %6676 = vrot.lane.b32.xlu0 %v4965, 32
    %v6677 = vpop.permute.xlu0 %6676
    %v6682 = vsel %vm5206, %v4934, %v6583
    %v6683 = vsel %vm5206, %v4935, %v6585
    %v6684 = vsel %vm5206, %v4936, %v6587
    %v6685 = vsel %vm5206, %v4937, %v6589
    %v6686 = vsel %vm5211, %v6682, %v6595
    %v6687 = vsel %vm5211, %v6683, %v6597
    %v6688 = vsel %vm5211, %v6684, %v6599
    %v6689 = vsel %vm5211, %v6685, %v6601
    %v6690 = vsel %vm5216, %v6686, %v6607
    %v6691 = vsel %vm5216, %v6687, %v6609
    %v6692 = vsel %vm5216, %v6688, %v6611
    %v6693 = vsel %vm5216, %v6689, %v6613
    %v6694 = vsel %vm5221, %v6690, %v6619
    %v6695 = vsel %vm5221, %v6691, %v6621
    %v6696 = vsel %vm5221, %v6692, %v6623
    %v6697 = vsel %vm5221, %v6693, %v6625
    %v6698 = vsel %vm5226, %v6694, %v6631
    %v6699 = vsel %vm5226, %v6695, %v6633
    %v6700 = vsel %vm5226, %v6696, %v6635
    %v6701 = vsel %vm5226, %v6697, %v6637
    %v6702 = vsel %vm5231, %v6698, %v6643
    %v6703 = vsel %vm5231, %v6699, %v6645
    %v6704 = vsel %vm5231, %v6700, %v6647
    %v6705 = vsel %vm5231, %v6701, %v6649
    %v6706 = vsel %vm5236, %v6643, %v6655
    %v6707 = vsel %vm5236, %v6645, %v6657
    %v6708 = vsel %vm5236, %v6647, %v6659
    %v6709 = vsel %vm5236, %v6649, %v6661
    %v6710 = vsel %vm5241, %v6706, %v6671
    %v6711 = vsel %vm5241, %v6707, %v6673
    %v6712 = vsel %vm5241, %v6708, %v6675
    %v6713 = vsel %vm5241, %v6709, %v6677
    %6722 = vrot.lane.b32.xlu0 %v6702, 64
    %v6723 = vpop.permute.xlu0 %6722
    %6724 = vrot.lane.b32.xlu0 %v6710, 64
    %v6725 = vpop.permute.xlu0 %6724
    %6726 = vrot.lane.b32.xlu0 %v6703, 64
    %v6727 = vpop.permute.xlu0 %6726
    %6728 = vrot.lane.b32.xlu0 %v6711, 64
    %v6729 = vpop.permute.xlu0 %6728
    %6730 = vrot.lane.b32.xlu0 %v6704, 64
    %v6731 = vpop.permute.xlu0 %6730
    %6732 = vrot.lane.b32.xlu0 %v6712, 64
    %v6733 = vpop.permute.xlu0 %6732
    %6734 = vrot.lane.b32.xlu0 %v6705, 64
    %v6735 = vpop.permute.xlu0 %6734
    %6736 = vrot.lane.b32.xlu0 %v6713, 64
    %v6737 = vpop.permute.xlu0 %6736
    %v6738 = vsel %vm5465, %v6723, %v6725
    %v6739 = vsel %vm5465, %v6727, %v6729
    %v6740 = vsel %vm5465, %v6731, %v6733
    %v6741 = vsel %vm5465, %v6735, %v6737
    %v6750 = vsel %vm5465, %v6578, %v6723
    %v6751 = vsel %vm5465, %v6579, %v6727
    %v6752 = vsel %vm5465, %v6580, %v6731
    %v6753 = vsel %vm5465, %v6581, %v6735
    %v6754 = vpack.c.bf16 %v5233, %v5232
    %v6755 = vpack.c.bf16 %v5263, %v5262
    %v6756 = vpack.c.bf16 %v5479, %v5478
    %v6757 = vpack.c.bf16 %v5467, %v5466
    %v6758 = vpack.c.bf16 %v5235, %v5234
    %v6759 = vpack.c.bf16 %v5265, %v5264
    %v6760 = vpack.c.bf16 %v5481, %v5480
    %v6761 = vpack.c.bf16 %v5469, %v5468
    %v6762 = vpack.c.bf16 %v5699, %v5698
    %v6763 = vpack.c.bf16 %v5723, %v5722
    %v6764 = vpack.c.bf16 %v5911, %v5910
    %v6765 = vpack.c.bf16 %v5899, %v5898
    %v6766 = vpack.c.bf16 %v5701, %v5700
    %v6767 = vpack.c.bf16 %v5725, %v5724
    %v6768 = vpack.c.bf16 %v5913, %v5912
    %v6769 = vpack.c.bf16 %v5901, %v5900
    %v6770 = vpack.c.bf16 %v6115, %v6114
    %v6771 = vpack.c.bf16 %v6139, %v6138
    %v6772 = vpack.c.bf16 %v6339, %v6338
    %v6773 = vpack.c.bf16 %v6327, %v6326
    %v6774 = vpack.c.bf16 %v6117, %v6116
    %v6775 = vpack.c.bf16 %v6141, %v6140
    %v6776 = vpack.c.bf16 %v6341, %v6340
    %v6777 = vpack.c.bf16 %v6329, %v6328
    %v6778 = vpack.c.bf16 %v6543, %v6542
    %v6779 = vpack.c.bf16 %v6567, %v6566
    %v6780 = vpack.c.bf16 %v6751, %v6750
    %v6781 = vpack.c.bf16 %v6739, %v6738
    %v6782 = vpack.c.bf16 %v6545, %v6544
    %v6783 = vpack.c.bf16 %v6569, %v6568
    %v6784 = vpack.c.bf16 %v6753, %v6752
    %v6785 = vpack.c.bf16 %v6741, %v6740
    %v6786 = vld [vmem:[%s3] sm:$0xf]
    %v6787 = vld [vmem:[%s3 + $0x4] sm:$0xf]
    %v6788 = vld [vmem:[%s3 + $0x8] sm:$0xf]
    %v6789 = vld [vmem:[%s3 + $0xc] sm:$0xf]
    %v6790 = vld [vmem:[%s3 + $0x10] sm:$0xf]
    %v6791 = vld [vmem:[%s3 + $0x14] sm:$0xf]
    %v6792 = vld [vmem:[%s3 + $0x18] sm:$0xf]
    %v6793 = vld [vmem:[%s3 + $0x1c] sm:$0xf]
    %v6794 = vld [vmem:[%s3 + $0x20] sm:$0xf]
    %v6795 = vld [vmem:[%s3 + $0x24] sm:$0xf]
    %v6796 = vld [vmem:[%s3 + $0x28] sm:$0xf]
    %v6797 = vld [vmem:[%s3 + $0x2c] sm:$0xf]
    %v6798 = vld [vmem:[%s3 + $0x30] sm:$0xf]
    %v6799 = vld [vmem:[%s3 + $0x34] sm:$0xf]
    %v6800 = vld [vmem:[%s3 + $0x38] sm:$0xf]
    %v6801 = vld [vmem:[%s3 + $0x3c] sm:$0xf]
    %v6802 = vld [vmem:[%s3 + $0x40] sm:$0xf]
    %v6803 = vld [vmem:[%s3 + $0x44] sm:$0xf]
    %v6804 = vld [vmem:[%s3 + $0x48] sm:$0xf]
    %v6805 = vld [vmem:[%s3 + $0x4c] sm:$0xf]
    %v6806 = vld [vmem:[%s3 + $0x50] sm:$0xf]
    %v6807 = vld [vmem:[%s3 + $0x54] sm:$0xf]
    %v6808 = vld [vmem:[%s3 + $0x58] sm:$0xf]
    %v6809 = vld [vmem:[%s3 + $0x5c] sm:$0xf]
    %v6810 = vld [vmem:[%s3 + $0x60] sm:$0xf]
    %v6811 = vld [vmem:[%s3 + $0x64] sm:$0xf]
    %v6812 = vld [vmem:[%s3 + $0x68] sm:$0xf]
    %v6813 = vld [vmem:[%s3 + $0x6c] sm:$0xf]
    %v6814 = vld [vmem:[%s3 + $0x70] sm:$0xf]
    %v6815 = vld [vmem:[%s3 + $0x74] sm:$0xf]
    %v6816 = vld [vmem:[%s3 + $0x78] sm:$0xf]
    %v6817 = vld [vmem:[%s3 + $0x7c] sm:$0xf]
    %v6818 = vld [vmem:[%s3 + $0x80] sm:$0xf]
    %v6819 = vld [vmem:[%s3 + $0x84] sm:$0xf]
    %v6820 = vld [vmem:[%s3 + $0x88] sm:$0xf]
    %v6821 = vld [vmem:[%s3 + $0x8c] sm:$0xf]
    %v6822 = vld [vmem:[%s3 + $0x90] sm:$0xf]
    %v6823 = vld [vmem:[%s3 + $0x94] sm:$0xf]
    %v6824 = vld [vmem:[%s3 + $0x98] sm:$0xf]
    %v6825 = vld [vmem:[%s3 + $0x9c] sm:$0xf]
    %v6826 = vld [vmem:[%s3 + $0xa0] sm:$0xf]
    %v6827 = vld [vmem:[%s3 + $0xa4] sm:$0xf]
    %v6828 = vld [vmem:[%s3 + $0xa8] sm:$0xf]
    %v6829 = vld [vmem:[%s3 + $0xac] sm:$0xf]
    %v6830 = vld [vmem:[%s3 + $0xb0] sm:$0xf]
    %v6831 = vld [vmem:[%s3 + $0xb4] sm:$0xf]
    %v6832 = vld [vmem:[%s3 + $0xb8] sm:$0xf]
    %v6833 = vld [vmem:[%s3 + $0xbc] sm:$0xf]
    %v6834 = vld [vmem:[%s3 + $0xc0] sm:$0xf]
    %v6835 = vld [vmem:[%s3 + $0xc4] sm:$0xf]
    %v6836 = vld [vmem:[%s3 + $0xc8] sm:$0xf]
    %v6837 = vld [vmem:[%s3 + $0xcc] sm:$0xf]
    %v6838 = vld [vmem:[%s3 + $0xd0] sm:$0xf]
    %v6839 = vld [vmem:[%s3 + $0xd4] sm:$0xf]
    %v6840 = vld [vmem:[%s3 + $0xd8] sm:$0xf]
    %v6841 = vld [vmem:[%s3 + $0xdc] sm:$0xf]
    %v6842 = vld [vmem:[%s3 + $0xe0] sm:$0xf]
    %v6843 = vld [vmem:[%s3 + $0xe4] sm:$0xf]
    %v6844 = vld [vmem:[%s3 + $0xe8] sm:$0xf]
    %v6845 = vld [vmem:[%s3 + $0xec] sm:$0xf]
    %v6846 = vld [vmem:[%s3 + $0xf0] sm:$0xf]
    %v6847 = vld [vmem:[%s3 + $0xf4] sm:$0xf]
    %v6848 = vld [vmem:[%s3 + $0xf8] sm:$0x3]
    %v6912 = vunpack.c.l.b16 %v6786
    %v6913 = vunpack.c.l.b16 %v6787
    %v6914 = vunpack.c.l.b16 %v6788
    %v6915 = vunpack.c.l.b16 %v6789
    %v6916 = vunpack.c.l.b16 %v6790
    %v6917 = vunpack.c.l.b16 %v6791
    %v6918 = vunpack.c.l.b16 %v6792
    %v6919 = vunpack.c.l.b16 %v6793
    %v6920 = vunpack.c.l.b16 %v6794
    %v6921 = vunpack.c.l.b16 %v6795
    %v6922 = vunpack.c.l.b16 %v6796
    %v6923 = vunpack.c.l.b16 %v6797
    %v6924 = vunpack.c.l.b16 %v6798
    %v6925 = vunpack.c.l.b16 %v6799
    %v6926 = vunpack.c.l.b16 %v6800
    %v6927 = vunpack.c.l.b16 %v6801
    %v6928 = vunpack.c.l.b16 %v6802
    %v6929 = vunpack.c.l.b16 %v6803
    %v6930 = vunpack.c.l.b16 %v6804
    %v6931 = vunpack.c.l.b16 %v6805
    %v6932 = vunpack.c.l.b16 %v6806
    %v6933 = vunpack.c.l.b16 %v6807
    %v6934 = vunpack.c.l.b16 %v6808
    %v6935 = vunpack.c.l.b16 %v6809
    %v6936 = vunpack.c.l.b16 %v6810
    %v6937 = vunpack.c.l.b16 %v6811
    %v6938 = vunpack.c.l.b16 %v6812
    %v6939 = vunpack.c.l.b16 %v6813
    %v6940 = vunpack.c.l.b16 %v6814
    %v6941 = vunpack.c.l.b16 %v6815
    %v6942 = vunpack.c.l.b16 %v6816
    %v6943 = vunpack.c.l.b16 %v6817
    %v6944 = vunpack.c.l.b16 %v6818
    %v6945 = vunpack.c.l.b16 %v6819
    %v6946 = vunpack.c.l.b16 %v6820
    %v6947 = vunpack.c.l.b16 %v6821
    %v6948 = vunpack.c.l.b16 %v6822
    %v6949 = vunpack.c.l.b16 %v6823
    %v6950 = vunpack.c.l.b16 %v6824
    %v6951 = vunpack.c.l.b16 %v6825
    %v6952 = vunpack.c.l.b16 %v6826
    %v6953 = vunpack.c.l.b16 %v6827
    %v6954 = vunpack.c.l.b16 %v6828
    %v6955 = vunpack.c.l.b16 %v6829
    %v6956 = vunpack.c.l.b16 %v6830
    %v6957 = vunpack.c.l.b16 %v6831
    %v6958 = vunpack.c.l.b16 %v6832
    %v6959 = vunpack.c.l.b16 %v6833
    %v6960 = vunpack.c.l.b16 %v6834
    %v6961 = vunpack.c.l.b16 %v6835
    %v6962 = vunpack.c.l.b16 %v6836
    %v6963 = vunpack.c.l.b16 %v6837
    %v6964 = vunpack.c.l.b16 %v6838
    %v6965 = vunpack.c.l.b16 %v6839
    %v6966 = vunpack.c.l.b16 %v6840
    %v6967 = vunpack.c.l.b16 %v6841
    %v6968 = vunpack.c.l.b16 %v6842
    %v6969 = vunpack.c.l.b16 %v6843
    %v6970 = vunpack.c.l.b16 %v6844
    %v6971 = vunpack.c.l.b16 %v6845
    %v6972 = vunpack.c.l.b16 %v6846
    %v6973 = vunpack.c.l.b16 %v6847
    %v6974 = vunpack.c.l.b16 %v6848
    %v6975 = vpack.c.b16 %v6913, %v6912
    %v6976 = vpack.c.b16 %v6915, %v6914
    %v6977 = vpack.c.b16 %v6917, %v6916
    %v6978 = vpack.c.b16 %v6919, %v6918
    %v6979 = vpack.c.b16 %v6921, %v6920
    %v6980 = vpack.c.b16 %v6923, %v6922
    %v6981 = vpack.c.b16 %v6925, %v6924
    %v6982 = vpack.c.b16 %v6927, %v6926
    %v6983 = vpack.c.b16 %v6929, %v6928
    %v6984 = vpack.c.b16 %v6931, %v6930
    %v6985 = vpack.c.b16 %v6933, %v6932
    %v6986 = vpack.c.b16 %v6935, %v6934
    %v6987 = vpack.c.b16 %v6937, %v6936
    %v6988 = vpack.c.b16 %v6939, %v6938
    %v6989 = vpack.c.b16 %v6941, %v6940
    %v6990 = vpack.c.b16 %v6943, %v6942
    %v6991 = vpack.c.b16 %v6945, %v6944
    %v6992 = vpack.c.b16 %v6947, %v6946
    %v6993 = vpack.c.b16 %v6949, %v6948
    %v6994 = vpack.c.b16 %v6951, %v6950
    %v6995 = vpack.c.b16 %v6953, %v6952
    %v6996 = vpack.c.b16 %v6955, %v6954
    %v6997 = vpack.c.b16 %v6957, %v6956
    %v6998 = vpack.c.b16 %v6959, %v6958
    %v6999 = vpack.c.b16 %v6961, %v6960
    %v7000 = vpack.c.b16 %v6963, %v6962
    %v7001 = vpack.c.b16 %v6965, %v6964
    %v7002 = vpack.c.b16 %v6967, %v6966
    %v7003 = vpack.c.b16 %v6969, %v6968
    %v7004 = vpack.c.b16 %v6971, %v6970
    %v7005 = vpack.c.b16 %v6973, %v6972
    %v7006 = vpack.c.b16 %v6974, %v6974
    %vm7038 = vcmask 949248
    %v7040 = vsel %vm7038, %v6757, 0
    %v7043 = vsel %vm7038, %v6761, 0
    %v7046 = vsel %vm7038, %v6765, 0
    %v7049 = vsel %vm7038, %v6769, 0
    %v7052 = vsel %vm7038, %v6773, 0
    %v7055 = vsel %vm7038, %v6777, 0
    %v7058 = vsel %vm7038, %v6781, 0
    %v7061 = vsel %vm7038, %v6785, 0
    %vm7063 = vcmask 1041408
    %v7065 = vsel %vm7063, %v7006, 0
    %7067 = vmatpush.bf16.msra.mxu0 %v6982
    %7068 = vmatpush.bf16.msra.mxu0 %v6981
    %7069 = vmatpush.bf16.msra.mxu0 %v6980
    %7070 = vmatpush.bf16.msra.mxu0 %v6979
    %7071 = vmatpush.bf16.msra.mxu0 %v6978
    %7072 = vmatpush.bf16.msra.mxu0 %v6977
    %7073 = vmatpush.bf16.msra.mxu0 %v6976
    %7074 = vmatpush.bf16.msra.mxu0 %v6975
    %7075 = vmatmul.bf16.gmra.mxu0 %v6754
    %v7076 = vpop.f32.mrf.mxu0
    %v7077 = vadd.f32 0.0, %v7076
    %v7078 = vpop.f32.mrf.mxu0
    %v7079 = vadd.f32 0.0, %v7078
    %7080 = vmatmul.bf16.gmra.mxu0 %v6758
    %v7081 = vpop.f32.mrf.mxu0
    %v7082 = vadd.f32 0.0, %v7081
    %v7083 = vpop.f32.mrf.mxu0
    %v7084 = vadd.f32 0.0, %v7083
    %7085 = vmatmul.bf16.gmra.mxu0 %v6762
    %v7086 = vpop.f32.mrf.mxu0
    %v7087 = vadd.f32 0.0, %v7086
    %v7088 = vpop.f32.mrf.mxu0
    %v7089 = vadd.f32 0.0, %v7088
    %7090 = vmatmul.bf16.gmra.mxu0 %v6766
    %v7091 = vpop.f32.mrf.mxu0
    %v7092 = vadd.f32 0.0, %v7091
    %v7093 = vpop.f32.mrf.mxu0
    %v7094 = vadd.f32 0.0, %v7093
    %7095 = vmatmul.bf16.gmra.mxu0 %v6770
    %v7096 = vpop.f32.mrf.mxu0
    %v7097 = vadd.f32 0.0, %v7096
    %v7098 = vpop.f32.mrf.mxu0
    %v7099 = vadd.f32 0.0, %v7098
    %7100 = vmatmul.bf16.gmra.mxu0 %v6774
    %v7101 = vpop.f32.mrf.mxu0
    %v7102 = vadd.f32 0.0, %v7101
    %v7103 = vpop.f32.mrf.mxu0
    %v7104 = vadd.f32 0.0, %v7103
    %7105 = vmatmul.bf16.gmra.mxu0 %v6778
    %v7106 = vpop.f32.mrf.mxu0
    %v7107 = vadd.f32 0.0, %v7106
    %v7108 = vpop.f32.mrf.mxu0
    %v7109 = vadd.f32 0.0, %v7108
    %7110 = vmatmul.bf16.gmra.mxu0 %v6782
    %v7111 = vpop.f32.mrf.mxu0
    %v7112 = vadd.f32 0.0, %v7111
    %v7113 = vpop.f32.mrf.mxu0
    %v7114 = vadd.f32 0.0, %v7113
    %7115 = vdwg.mxu0
    %7116 = vmatpush.bf16.msra.mxu0 %v6990
    %7117 = vmatpush.bf16.msra.mxu0 %v6989
    %7118 = vmatpush.bf16.msra.mxu0 %v6988
    %7119 = vmatpush.bf16.msra.mxu0 %v6987
    %7120 = vmatpush.bf16.msra.mxu0 %v6986
    %7121 = vmatpush.bf16.msra.mxu0 %v6985
    %7122 = vmatpush.bf16.msra.mxu0 %v6984
    %7123 = vmatpush.bf16.msra.mxu0 %v6983
    %7124 = vmatmul.bf16.gmra.mxu0 %v6755
    %v7125 = vpop.f32.mrf.mxu0
    %v7126 = vadd.f32 %v7077, %v7125
    %v7127 = vpop.f32.mrf.mxu0
    %v7128 = vadd.f32 %v7079, %v7127
    %7129 = vmatmul.bf16.gmra.mxu0 %v6759
    %v7130 = vpop.f32.mrf.mxu0
    %v7131 = vadd.f32 %v7082, %v7130
    %v7132 = vpop.f32.mrf.mxu0
    %v7133 = vadd.f32 %v7084, %v7132
    %7134 = vmatmul.bf16.gmra.mxu0 %v6763
    %v7135 = vpop.f32.mrf.mxu0
    %v7136 = vadd.f32 %v7087, %v7135
    %v7137 = vpop.f32.mrf.mxu0
    %v7138 = vadd.f32 %v7089, %v7137
    %7139 = vmatmul.bf16.gmra.mxu0 %v6767
    %v7140 = vpop.f32.mrf.mxu0
    %v7141 = vadd.f32 %v7092, %v7140
    %v7142 = vpop.f32.mrf.mxu0
    %v7143 = vadd.f32 %v7094, %v7142
    %7144 = vmatmul.bf16.gmra.mxu0 %v6771
    %v7145 = vpop.f32.mrf.mxu0
    %v7146 = vadd.f32 %v7097, %v7145
    %v7147 = vpop.f32.mrf.mxu0
    %v7148 = vadd.f32 %v7099, %v7147
    %7149 = vmatmul.bf16.gmra.mxu0 %v6775
    %v7150 = vpop.f32.mrf.mxu0
    %v7151 = vadd.f32 %v7102, %v7150
    %v7152 = vpop.f32.mrf.mxu0
    %v7153 = vadd.f32 %v7104, %v7152
    %7154 = vmatmul.bf16.gmra.mxu0 %v6779
    %v7155 = vpop.f32.mrf.mxu0
    %v7156 = vadd.f32 %v7107, %v7155
    %v7157 = vpop.f32.mrf.mxu0
    %v7158 = vadd.f32 %v7109, %v7157
    %7159 = vmatmul.bf16.gmra.mxu0 %v6783
    %v7160 = vpop.f32.mrf.mxu0
    %v7161 = vadd.f32 %v7112, %v7160
    %v7162 = vpop.f32.mrf.mxu0
    %v7163 = vadd.f32 %v7114, %v7162
    %7164 = vdwg.mxu0
    %7165 = vmatpush.bf16.msra.mxu0 %v6998
    %7166 = vmatpush.bf16.msra.mxu0 %v6997
    %7167 = vmatpush.bf16.msra.mxu0 %v6996
    %7168 = vmatpush.bf16.msra.mxu0 %v6995
    %7169 = vmatpush.bf16.msra.mxu0 %v6994
    %7170 = vmatpush.bf16.msra.mxu0 %v6993
    %7171 = vmatpush.bf16.msra.mxu0 %v6992
    %7172 = vmatpush.bf16.msra.mxu0 %v6991
    %7173 = vmatmul.bf16.gmra.mxu0 %v6756
    %v7174 = vpop.f32.mrf.mxu0
    %v7175 = vadd.f32 %v7126, %v7174
    %v7176 = vpop.f32.mrf.mxu0
    %v7177 = vadd.f32 %v7128, %v7176
    %7178 = vmatmul.bf16.gmra.mxu0 %v6760
    %v7179 = vpop.f32.mrf.mxu0
    %v7180 = vadd.f32 %v7131, %v7179
    %v7181 = vpop.f32.mrf.mxu0
    %v7182 = vadd.f32 %v7133, %v7181
    %7183 = vmatmul.bf16.gmra.mxu0 %v6764
    %v7184 = vpop.f32.mrf.mxu0
    %v7185 = vadd.f32 %v7136, %v7184
    %v7186 = vpop.f32.mrf.mxu0
    %v7187 = vadd.f32 %v7138, %v7186
    %7188 = vmatmul.bf16.gmra.mxu0 %v6768
    %v7189 = vpop.f32.mrf.mxu0
    %v7190 = vadd.f32 %v7141, %v7189
    %v7191 = vpop.f32.mrf.mxu0
    %v7192 = vadd.f32 %v7143, %v7191
    %7193 = vmatmul.bf16.gmra.mxu0 %v6772
    %v7194 = vpop.f32.mrf.mxu0
    %v7195 = vadd.f32 %v7146, %v7194
    %v7196 = vpop.f32.mrf.mxu0
    %v7197 = vadd.f32 %v7148, %v7196
    %7198 = vmatmul.bf16.gmra.mxu0 %v6776
    %v7199 = vpop.f32.mrf.mxu0
    %v7200 = vadd.f32 %v7151, %v7199
    %v7201 = vpop.f32.mrf.mxu0
    %v7202 = vadd.f32 %v7153, %v7201
    %7203 = vmatmul.bf16.gmra.mxu0 %v6780
    %v7204 = vpop.f32.mrf.mxu0
    %v7205 = vadd.f32 %v7156, %v7204
    %v7206 = vpop.f32.mrf.mxu0
    %v7207 = vadd.f32 %v7158, %v7206
    %7208 = vmatmul.bf16.gmra.mxu0 %v6784
    %v7209 = vpop.f32.mrf.mxu0
    %v7210 = vadd.f32 %v7161, %v7209
    %v7211 = vpop.f32.mrf.mxu0
    %v7212 = vadd.f32 %v7163, %v7211
    %7213 = vdwg.mxu0
    %7214 = vmatpush.bf16.msra.mxu0 %v7065
    %7215 = vmatpush.bf16.msra.mxu0 %v7005
    %7216 = vmatpush.bf16.msra.mxu0 %v7004
    %7217 = vmatpush.bf16.msra.mxu0 %v7003
    %7218 = vmatpush.bf16.msra.mxu0 %v7002
    %7219 = vmatpush.bf16.msra.mxu0 %v7001
    %7220 = vmatpush.bf16.msra.mxu0 %v7000
    %7221 = vmatpush.bf16.msra.mxu0 %v6999
    %7222 = vmatmul.bf16.gmra.mxu0 %v7040
    %v7223 = vpop.f32.mrf.mxu0
    %v7224 = vadd.f32 %v7175, %v7223
    %v7225 = vpop.f32.mrf.mxu0
    %v7226 = vadd.f32 %v7177, %v7225
    %7227 = vmatmul.bf16.gmra.mxu0 %v7043
    %v7228 = vpop.f32.mrf.mxu0
    %v7229 = vadd.f32 %v7180, %v7228
    %v7230 = vpop.f32.mrf.mxu0
    %v7231 = vadd.f32 %v7182, %v7230
    %7232 = vmatmul.bf16.gmra.mxu0 %v7046
    %v7233 = vpop.f32.mrf.mxu0
    %v7234 = vadd.f32 %v7185, %v7233
    %v7235 = vpop.f32.mrf.mxu0
    %v7236 = vadd.f32 %v7187, %v7235
    %7237 = vmatmul.bf16.gmra.mxu0 %v7049
    %v7238 = vpop.f32.mrf.mxu0
    %v7239 = vadd.f32 %v7190, %v7238
    %v7240 = vpop.f32.mrf.mxu0
    %v7241 = vadd.f32 %v7192, %v7240
    %7242 = vmatmul.bf16.gmra.mxu0 %v7052
    %v7243 = vpop.f32.mrf.mxu0
    %v7244 = vadd.f32 %v7195, %v7243
    %v7245 = vpop.f32.mrf.mxu0
    %v7246 = vadd.f32 %v7197, %v7245
    %7247 = vmatmul.bf16.gmra.mxu0 %v7055
    %v7248 = vpop.f32.mrf.mxu0
    %v7249 = vadd.f32 %v7200, %v7248
    %v7250 = vpop.f32.mrf.mxu0
    %v7251 = vadd.f32 %v7202, %v7250
    %7252 = vmatmul.bf16.gmra.mxu0 %v7058
    %v7253 = vpop.f32.mrf.mxu0
    %v7254 = vadd.f32 %v7205, %v7253
    %v7255 = vpop.f32.mrf.mxu0
    %v7256 = vadd.f32 %v7207, %v7255
    %7257 = vmatmul.bf16.gmra.mxu0 %v7061
    %v7258 = vpop.f32.mrf.mxu0
    %v7259 = vadd.f32 %v7210, %v7258
    %v7260 = vpop.f32.mrf.mxu0
    %v7261 = vadd.f32 %v7212, %v7260
    %7262 = vdwg.mxu0
    %v7263 = vmax.f32 %v7224, %v7234
    %v7264 = vmax.f32 %v7226, %v7236
    %v7265 = vmax.f32 %v7229, %v7239
    %v7266 = vmax.f32 %v7231, %v7241
    %v7267 = vmax.f32 %v7244, %v7254
    %v7268 = vmax.f32 %v7246, %v7256
    %v7269 = vmax.f32 %v7249, %v7259
    %v7270 = vmax.f32 %v7251, %v7261
    %v7271 = vmax.f32 %v7263, %v7267
    %v7272 = vmax.f32 %v7264, %v7268
    %v7273 = vmax.f32 %v7265, %v7269
    %v7274 = vmax.f32 %v7266, %v7270
    %v7275 = vld [vmem:[%s4] sm:$0x1]
    %v7277 = vperm.slane %v7275, 0
    %v7279 = vadd.f32 %v7271, %v7277
    %v7280 = vadd.f32 %v7272, %v7277
    %v7281 = vadd.f32 %v7273, %v7277
    %v7282 = vadd.f32 %v7274, %v7277
    %v7284 = vrot.slane %v7279, 2
    %7285 = vrot.lane.b32.xlu0 %v7284, 50
    %v7286 = vpop.permute.xlu0 %7285
    %v7288 = vrot.slane %v7279, 4
    %7289 = vrot.lane.b32.xlu0 %v7288, 100
    %v7290 = vpop.permute.xlu0 %7289
    %v7292 = vrot.slane %v7279, 6
    %7293 = vrot.lane.b32.xlu0 %v7292, 22
    %v7294 = vpop.permute.xlu0 %7293
    %7297 = vrot.lane.b32.xlu0 %v7280, 72
    %v7298 = vpop.permute.xlu0 %7297
    %v7300 = vrot.slane %v7280, 2
    %7301 = vrot.lane.b32.xlu0 %v7300, 122
    %v7302 = vpop.permute.xlu0 %7301
    %v7304 = vrot.slane %v7280, 4
    %7305 = vrot.lane.b32.xlu0 %v7304, 44
    %v7306 = vpop.permute.xlu0 %7305
    %v7308 = vrot.slane %v7280, 6
    %7309 = vrot.lane.b32.xlu0 %v7308, 94
    %v7310 = vpop.permute.xlu0 %7309
    %7313 = vrot.lane.b32.xlu0 %v7281, 16
    %v7314 = vpop.permute.xlu0 %7313
    %v7316 = vrot.slane %v7281, 2
    %7317 = vrot.lane.b32.xlu0 %v7316, 66
    %v7318 = vpop.permute.xlu0 %7317
    %v7320 = vrot.slane %v7281, 4
    %7321 = vrot.lane.b32.xlu0 %v7320, 116
    %v7322 = vpop.permute.xlu0 %7321
    %v7324 = vrot.slane %v7281, 6
    %7325 = vrot.lane.b32.xlu0 %v7324, 38
    %v7326 = vpop.permute.xlu0 %7325
    %7329 = vrot.lane.b32.xlu0 %v7282, 88
    %v7330 = vpop.permute.xlu0 %7329
    %v7332 = vrot.slane %v7282, 2
    %7333 = vrot.lane.b32.xlu0 %v7332, 10
    %v7334 = vpop.permute.xlu0 %7333
    %v7336 = vrot.slane %v7282, 4
    %7337 = vrot.lane.b32.xlu0 %v7336, 60
    %v7338 = vpop.permute.xlu0 %7337
    %v7340 = vrot.slane %v7282, 6
    %7341 = vrot.lane.b32.xlu0 %v7340, 110
    %v7342 = vpop.permute.xlu0 %7341
    %vm7344 = vcmask 408576
    %v7345 = vsel %vm7344, %v7279, %v7286
    %v7346 = vsel %vm5226, %v7345, %v7290
    %vm7347 = vcmask 179200
    %v7348 = vsel %vm7347, %v7290, %v7294
    %v7349 = vsel %vm5251, %v7348, %v7298
    %vm7350 = vcmask 998400
    %v7351 = vsel %vm7350, %v7349, %v7302
    %v7352 = vsel %vm5276, %v7302, %v7306
    %vm7353 = vcmask 769024
    %v7354 = vsel %vm7353, %v7352, %v7310
    %vm7355 = vcmask 130048
    %v7356 = vsel %vm7355, %v7310, %v7314
    %vm7357 = vcmask 539648
    %v7358 = vsel %vm7357, %v7356, %v7318
    %v7359 = vsel %vm7038, %v7358, %v7322
    %vm7360 = vcmask 310272
    %v7361 = vsel %vm7360, %v7322, %v7326
    %vm7362 = vcmask 719872
    %v7363 = vsel %vm7362, %v7361, %v7330
    %vm7364 = vcmask 80896
    %v7365 = vsel %vm7364, %v7330, %v7334
    %v7366 = vsel %vm5216, %v7365, %v7338
    %vm7367 = vcmask 900096
    %v7368 = vsel %vm7367, %v7366, %v7342
    %v7369 = vpack.c.bf16 %v7346, %v7346
    %v7370 = vpack.c.bf16 %v7351, %v7351
    %v7371 = vpack.c.bf16 %v7354, %v7354
    %v7372 = vpack.c.bf16 %v7359, %v7359
    %v7373 = vpack.c.bf16 %v7363, %v7363
    %v7374 = vpack.c.bf16 %v7368, %v7368
    %v7375 = vpack.c.bf16 %v7342, %v7342
    %v7376 = vld [vmem:[%s5] sm:$0xff]
    %v7377 = vld [vmem:[%s5 + $0x8] sm:$0xff]
    %v7378 = vld [vmem:[%s5 + $0x10] sm:$0xff]
    %v7379 = vld [vmem:[%s5 + $0x18] sm:$0xff]
    %v7380 = vld [vmem:[%s5 + $0x20] sm:$0xff]
    %v7381 = vld [vmem:[%s5 + $0x28] sm:$0xff]
    %v7382 = vld [vmem:[%s5 + $0x30] sm:$0xff]
    %v7383 = vld [vmem:[%s5 + $0x38] sm:$0xff]
    %v7384 = vld [vmem:[%s5 + $0x40] sm:$0xff]
    %v7385 = vld [vmem:[%s5 + $0x48] sm:$0xff]
    %v7386 = vld [vmem:[%s5 + $0x50] sm:$0xff]
    %v7387 = vld [vmem:[%s5 + $0x58] sm:$0xff]
    %v7388 = vld [vmem:[%s5 + $0x60] sm:$0xff]
    %v7389 = vld [vmem:[%s5 + $0x68] sm:$0xff]
    %v7390 = vld [vmem:[%s5 + $0x70] sm:$0xff]
    %v7391 = vld [vmem:[%s5 + $0x78] sm:$0xff]
    %v7392 = vld [vmem:[%s5 + $0x80] sm:$0xff]
    %v7393 = vld [vmem:[%s5 + $0x88] sm:$0xff]
    %v7394 = vld [vmem:[%s5 + $0x90] sm:$0xff]
    %v7395 = vld [vmem:[%s5 + $0x98] sm:$0xff]
    %v7396 = vld [vmem:[%s5 + $0xa0] sm:$0xff]
    %v7397 = vld [vmem:[%s5 + $0xa8] sm:$0xff]
    %v7398 = vld [vmem:[%s5 + $0xb0] sm:$0xff]
    %v7399 = vld [vmem:[%s5 + $0xb8] sm:$0xff]
    %v7400 = vld [vmem:[%s5 + $0xc0] sm:$0xff]
    %v7401 = vld [vmem:[%s5 + $0xc8] sm:$0xff]
    %v7402 = vld [vmem:[%s5 + $0xd0] sm:$0xff]
    %v7403 = vld [vmem:[%s5 + $0xd8] sm:$0xff]
    %v7404 = vld [vmem:[%s5 + $0xe0] sm:$0xff]
    %v7405 = vld [vmem:[%s5 + $0xe8] sm:$0xff]
    %v7406 = vld [vmem:[%s5 + $0xf0] sm:$0xff]
    %v7407 = vld [vmem:[%s5 + $0xf8] sm:$0xff]
    %v7408 = vld [vmem:[%s5 + $0x100] sm:$0xff]
    %v7409 = vld [vmem:[%s5 + $0x108] sm:$0xff]
    %v7410 = vld [vmem:[%s5 + $0x110] sm:$0xff]
    %v7411 = vld [vmem:[%s5 + $0x118] sm:$0xff]
    %v7412 = vld [vmem:[%s5 + $0x120] sm:$0xff]
    %v7413 = vld [vmem:[%s5 + $0x128] sm:$0xff]
    %v7414 = vld [vmem:[%s5 + $0x130] sm:$0xff]
    %v7415 = vld [vmem:[%s5 + $0x138] sm:$0xff]
    %v7416 = vld [vmem:[%s5 + $0x140] sm:$0xff]
    %v7417 = vld [vmem:[%s5 + $0x148] sm:$0xff]
    %v7418 = vld [vmem:[%s5 + $0x150] sm:$0xff]
    %v7419 = vld [vmem:[%s5 + $0x158] sm:$0xff]
    %v7420 = vld [vmem:[%s5 + $0x160] sm:$0xff]
    %v7421 = vld [vmem:[%s5 + $0x168] sm:$0xff]
    %v7422 = vld [vmem:[%s5 + $0x170] sm:$0xff]
    %v7423 = vld [vmem:[%s5 + $0x178] sm:$0xff]
    %v7424 = vld [vmem:[%s5 + $0x180] sm:$0xff]
    %v7425 = vld [vmem:[%s5 + $0x188] sm:$0xff]
    %v7426 = vld [vmem:[%s5 + $0x190] sm:$0xff]
    %v7427 = vld [vmem:[%s5 + $0x198] sm:$0xff]
    %v7428 = vld [vmem:[%s5 + $0x1a0] sm:$0xff]
    %v7429 = vld [vmem:[%s5 + $0x1a8] sm:$0xff]
    %v7430 = vld [vmem:[%s5 + $0x1b0] sm:$0xff]
    %v7431 = vld [vmem:[%s5 + $0x1b8] sm:$0xff]
    %v7432 = vld [vmem:[%s5 + $0x1c0] sm:$0xff]
    %v7433 = vld [vmem:[%s5 + $0x1c8] sm:$0xff]
    %v7434 = vld [vmem:[%s5 + $0x1d0] sm:$0xff]
    %v7435 = vld [vmem:[%s5 + $0x1d8] sm:$0xff]
    %v7436 = vld [vmem:[%s5 + $0x1e0] sm:$0xff]
    %v7437 = vld [vmem:[%s5 + $0x1e8] sm:$0xff]
    %v7438 = vld [vmem:[%s5 + $0x1f0] sm:$0xff]
    %v7439 = vld [vmem:[%s5 + $0x1f8] sm:$0xff]
    %v7440 = vld [vmem:[%s5 + $0x200] sm:$0xff]
    %v7441 = vld [vmem:[%s5 + $0x208] sm:$0xff]
    %v7442 = vld [vmem:[%s5 + $0x210] sm:$0xff]
    %v7443 = vld [vmem:[%s5 + $0x218] sm:$0xff]
    %v7444 = vld [vmem:[%s5 + $0x220] sm:$0xff]
    %v7445 = vld [vmem:[%s5 + $0x228] sm:$0xff]
    %v7446 = vld [vmem:[%s5 + $0x230] sm:$0xff]
    %v7447 = vld [vmem:[%s5 + $0x238] sm:$0xff]
    %v7448 = vld [vmem:[%s5 + $0x240] sm:$0xff]
    %v7449 = vld [vmem:[%s5 + $0x248] sm:$0xff]
    %v7450 = vld [vmem:[%s5 + $0x250] sm:$0xff]
    %v7451 = vld [vmem:[%s5 + $0x258] sm:$0xff]
    %v7452 = vld [vmem:[%s5 + $0x260] sm:$0xff]
    %v7453 = vld [vmem:[%s5 + $0x268] sm:$0xff]
    %v7454 = vld [vmem:[%s5 + $0x270] sm:$0xff]
    %v7455 = vld [vmem:[%s5 + $0x278] sm:$0xff]
    %v7456 = vld [vmem:[%s5 + $0x280] sm:$0xff]
    %v7457 = vld [vmem:[%s5 + $0x288] sm:$0xff]
    %v7458 = vld [vmem:[%s5 + $0x290] sm:$0xff]
    %v7459 = vld [vmem:[%s5 + $0x298] sm:$0xff]
    %v7460 = vld [vmem:[%s5 + $0x2a0] sm:$0xff]
    %v7461 = vld [vmem:[%s5 + $0x2a8] sm:$0xff]
    %v7462 = vld [vmem:[%s5 + $0x2b0] sm:$0xff]
    %v7463 = vld [vmem:[%s5 + $0x2b8] sm:$0xff]
    %v7464 = vld [vmem:[%s5 + $0x2c0] sm:$0xff]
    %v7465 = vld [vmem:[%s5 + $0x2c8] sm:$0xff]
    %v7466 = vld [vmem:[%s5 + $0x2d0] sm:$0xff]
    %v7467 = vld [vmem:[%s5 + $0x2d8] sm:$0xff]
    %v7468 = vld [vmem:[%s5 + $0x2e0] sm:$0xff]
    %v7469 = vld [vmem:[%s5 + $0x2e8] sm:$0xff]
    %v7470 = vld [vmem:[%s5 + $0x2f0] sm:$0xff]
    %v7471 = vld [vmem:[%s5 + $0x2f8] sm:$0xff]
    %v7472 = vld [vmem:[%s5 + $0x300] sm:$0xff]
    %v7473 = vld [vmem:[%s5 + $0x308] sm:$0xff]
    %v7474 = vld [vmem:[%s5 + $0x310] sm:$0xff]
    %v7475 = vld [vmem:[%s5 + $0x318] sm:$0xff]
    %v7476 = vld [vmem:[%s5 + $0x320] sm:$0xff]
    %v7477 = vld [vmem:[%s5 + $0x328] sm:$0xff]
    %v7478 = vld [vmem:[%s5 + $0x330] sm:$0xff]
    %v7479 = vld [vmem:[%s5 + $0x338] sm:$0xff]
    %v7480 = vld [vmem:[%s5 + $0x340] sm:$0xff]
    %v7481 = vld [vmem:[%s5 + $0x348] sm:$0xff]
    %v7482 = vld [vmem:[%s5 + $0x350] sm:$0xff]
    %v7483 = vld [vmem:[%s5 + $0x358] sm:$0xff]
    %v7484 = vld [vmem:[%s5 + $0x360] sm:$0xff]
    %v7485 = vld [vmem:[%s5 + $0x368] sm:$0xff]
    %v7486 = vld [vmem:[%s5 + $0x370] sm:$0xff]
    %v7487 = vld [vmem:[%s5 + $0x378] sm:$0xff]
    %v7488 = vld [vmem:[%s5 + $0x380] sm:$0xff]
    %v7489 = vld [vmem:[%s5 + $0x388] sm:$0xff]
    %v7490 = vld [vmem:[%s5 + $0x390] sm:$0xff]
    %v7491 = vld [vmem:[%s5 + $0x398] sm:$0xff]
    %v7492 = vld [vmem:[%s5 + $0x3a0] sm:$0xff]
    %v7493 = vld [vmem:[%s5 + $0x3a8] sm:$0xff]
    %v7494 = vld [vmem:[%s5 + $0x3b0] sm:$0xff]
    %v7495 = vld [vmem:[%s5 + $0x3b8] sm:$0xff]
    %v7496 = vld [vmem:[%s5 + $0x3c0] sm:$0xff]
    %v7497 = vld [vmem:[%s5 + $0x3c8] sm:$0xff]
    %v7498 = vld [vmem:[%s5 + $0x3d0] sm:$0xff]
    %v7499 = vld [vmem:[%s5 + $0x3d8] sm:$0xff]
    %v7500 = vld [vmem:[%s5 + $0x3e0] sm:$0xff]
    %v7501 = vld [vmem:[%s5 + $0x3e8] sm:$0xff]
    %v7502 = vld [vmem:[%s5 + $0x3f0] sm:$0xff]
    %v7503 = vld [vmem:[%s5 + $0x3f8] sm:$0xff]
    %v7504 = vld [vmem:[%s5 + $0x400] sm:$0xff]
    %v7505 = vld [vmem:[%s5 + $0x408] sm:$0xff]
    %v7506 = vld [vmem:[%s5 + $0x410] sm:$0xff]
    %v7507 = vld [vmem:[%s5 + $0x418] sm:$0xff]
    %v7508 = vld [vmem:[%s5 + $0x420] sm:$0xff]
    %v7509 = vld [vmem:[%s5 + $0x428] sm:$0xff]
    %v7510 = vld [vmem:[%s5 + $0x430] sm:$0xff]
    %v7511 = vld [vmem:[%s5 + $0x438] sm:$0xff]
    %v7512 = vld [vmem:[%s5 + $0x440] sm:$0xff]
    %v7513 = vld [vmem:[%s5 + $0x448] sm:$0xff]
    %v7514 = vld [vmem:[%s5 + $0x450] sm:$0xff]
    %v7515 = vld [vmem:[%s5 + $0x458] sm:$0xff]
    %v7516 = vld [vmem:[%s5 + $0x460] sm:$0xff]
    %v7517 = vld [vmem:[%s5 + $0x468] sm:$0xff]
    %v7518 = vld [vmem:[%s5 + $0x470] sm:$0xff]
    %v7519 = vld [vmem:[%s5 + $0x478] sm:$0xff]
    %v7520 = vld [vmem:[%s5 + $0x480] sm:$0xff]
    %v7521 = vld [vmem:[%s5 + $0x488] sm:$0xff]
    %v7522 = vld [vmem:[%s5 + $0x490] sm:$0xff]
    %v7523 = vld [vmem:[%s5 + $0x498] sm:$0xff]
    %v7524 = vld [vmem:[%s5 + $0x4a0] sm:$0xff]
    %v7525 = vld [vmem:[%s5 + $0x4a8] sm:$0xff]
    %v7526 = vld [vmem:[%s5 + $0x4b0] sm:$0xff]
    %v7527 = vld [vmem:[%s5 + $0x4b8] sm:$0xff]
    %v7528 = vld [vmem:[%s5 + $0x4c0] sm:$0xff]
    %v7529 = vld [vmem:[%s5 + $0x4c8] sm:$0xff]
    %v7530 = vld [vmem:[%s5 + $0x4d0] sm:$0xff]
    %v7531 = vld [vmem:[%s5 + $0x4d8] sm:$0xff]
    %v7532 = vld [vmem:[%s5 + $0x4e0] sm:$0xff]
    %v7533 = vld [vmem:[%s5 + $0x4e8] sm:$0xff]
    %v7534 = vld [vmem:[%s5 + $0x4f0] sm:$0xff]
    %v7535 = vld [vmem:[%s5 + $0x4f8] sm:$0xff]
    %v7536 = vld [vmem:[%s5 + $0x500] sm:$0xff]
    %v7537 = vld [vmem:[%s5 + $0x508] sm:$0xff]
    %v7538 = vld [vmem:[%s5 + $0x510] sm:$0xff]
    %v7539 = vld [vmem:[%s5 + $0x518] sm:$0xff]
    %v7540 = vld [vmem:[%s5 + $0x520] sm:$0xff]
    %v7541 = vld [vmem:[%s5 + $0x528] sm:$0xff]
    %v7542 = vld [vmem:[%s5 + $0x530] sm:$0xff]
    %v7543 = vld [vmem:[%s5 + $0x538] sm:$0xff]
    %v7544 = vld [vmem:[%s5 + $0x540] sm:$0xff]
    %v7545 = vld [vmem:[%s5 + $0x548] sm:$0xff]
    %v7546 = vld [vmem:[%s5 + $0x550] sm:$0xff]
    %v7547 = vld [vmem:[%s5 + $0x558] sm:$0xff]
    %v7548 = vld [vmem:[%s5 + $0x560] sm:$0xff]
    %v7549 = vld [vmem:[%s5 + $0x568] sm:$0xff]
    %v7550 = vld [vmem:[%s5 + $0x570] sm:$0xff]
    %v7551 = vld [vmem:[%s5 + $0x578] sm:$0xff]
    %v7552 = vld [vmem:[%s5 + $0x580] sm:$0xff]
    %v7553 = vld [vmem:[%s5 + $0x588] sm:$0xff]
    %v7554 = vld [vmem:[%s5 + $0x590] sm:$0xff]
    %v7555 = vld [vmem:[%s5 + $0x598] sm:$0xff]
    %v7556 = vld [vmem:[%s5 + $0x5a0] sm:$0xff]
    %v7557 = vld [vmem:[%s5 + $0x5a8] sm:$0xff]
    %v7558 = vld [vmem:[%s5 + $0x5b0] sm:$0xff]
    %v7559 = vld [vmem:[%s5 + $0x5b8] sm:$0xff]
    %v7560 = vld [vmem:[%s5 + $0x5c0] sm:$0xff]
    %v7561 = vld [vmem:[%s5 + $0x5c8] sm:$0xff]
    %v7562 = vld [vmem:[%s5 + $0x5d0] sm:$0xff]
    %v7563 = vld [vmem:[%s5 + $0x5d8] sm:$0xff]
    %v7564 = vld [vmem:[%s5 + $0x5e0] sm:$0xff]
    %v7565 = vld [vmem:[%s5 + $0x5e8] sm:$0xff]
    %v7566 = vld [vmem:[%s5 + $0x5f0] sm:$0xff]
    %v7567 = vld [vmem:[%s5 + $0x5f8] sm:$0xff]
    %v7568 = vld [vmem:[%s5 + $0x600] sm:$0xff]
    %v7569 = vld [vmem:[%s5 + $0x608] sm:$0xff]
    %v7570 = vld [vmem:[%s5 + $0x610] sm:$0xff]
    %v7571 = vld [vmem:[%s5 + $0x618] sm:$0xff]
    %v7572 = vld [vmem:[%s5 + $0x620] sm:$0xff]
    %v7573 = vld [vmem:[%s5 + $0x628] sm:$0xff]
    %v7574 = vld [vmem:[%s5 + $0x630] sm:$0xff]
    %v7575 = vld [vmem:[%s5 + $0x638] sm:$0xff]
    %v7576 = vld [vmem:[%s6] sm:$0xf]
    %v7578 = vperm.slane %v7576, 0
    %v7579 = vperm.slane %v7576, 1
    %v7580 = vperm.slane %v7576, 2
    %v7581 = vperm.slane %v7576, 3
    %v7786 = vunpack.c.l.b16 %v7376
    %v7787 = vunpack.c.h.b16 %v7376
    %v7788 = vunpack.c.l.b16 %v7377
    %v7789 = vunpack.c.h.b16 %v7377
    %v7790 = vunpack.c.l.b16 %v7378
    %v7791 = vunpack.c.h.b16 %v7378
    %v7792 = vunpack.c.l.b16 %v7379
    %v7793 = vunpack.c.h.b16 %v7379
    %v7794 = vunpack.c.l.b16 %v7380
    %v7795 = vunpack.c.h.b16 %v7380
    %v7796 = vunpack.c.l.b16 %v7381
    %v7797 = vunpack.c.h.b16 %v7381
    %v7798 = vunpack.c.l.b16 %v7382
    %v7799 = vunpack.c.h.b16 %v7382
    %v7800 = vunpack.c.l.b16 %v7383
    %v7801 = vunpack.c.h.b16 %v7383
    %v7802 = vunpack.c.l.b16 %v7384
    %v7803 = vunpack.c.h.b16 %v7384
    %v7804 = vunpack.c.l.b16 %v7385
    %v7805 = vunpack.c.h.b16 %v7385
    %v7806 = vunpack.c.l.b16 %v7386
    %v7807 = vunpack.c.h.b16 %v7386
    %v7808 = vunpack.c.l.b16 %v7387
    %v7809 = vunpack.c.h.b16 %v7387
    %v7810 = vunpack.c.l.b16 %v7388
    %v7811 = vunpack.c.h.b16 %v7388
    %v7812 = vunpack.c.l.b16 %v7389
    %v7813 = vunpack.c.h.b16 %v7389
    %v7814 = vunpack.c.l.b16 %v7390
    %v7815 = vunpack.c.h.b16 %v7390
    %v7816 = vunpack.c.l.b16 %v7391
    %v7817 = vunpack.c.h.b16 %v7391
    %v7818 = vunpack.c.l.b16 %v7392
    %v7819 = vunpack.c.h.b16 %v7392
    %v7820 = vunpack.c.l.b16 %v7393
    %v7821 = vunpack.c.h.b16 %v7393
    %v7822 = vunpack.c.l.b16 %v7394
    %v7823 = vunpack.c.h.b16 %v7394
    %v7824 = vunpack.c.l.b16 %v7395
    %v7825 = vunpack.c.h.b16 %v7395
    %v7826 = vunpack.c.l.b16 %v7396
    %v7827 = vunpack.c.h.b16 %v7396
    %v7828 = vunpack.c.l.b16 %v7397
    %v7829 = vunpack.c.h.b16 %v7397
    %v7830 = vunpack.c.l.b16 %v7398
    %v7831 = vunpack.c.h.b16 %v7398
    %v7832 = vunpack.c.l.b16 %v7399
    %v7833 = vunpack.c.h.b16 %v7399
    %v7834 = vunpack.c.l.b16 %v7400
    %v7835 = vunpack.c.h.b16 %v7400
    %v7836 = vunpack.c.l.b16 %v7401
    %v7837 = vunpack.c.h.b16 %v7401
    %v7838 = vunpack.c.l.b16 %v7402
    %v7839 = vunpack.c.h.b16 %v7402
    %v7840 = vunpack.c.l.b16 %v7403
    %v7841 = vunpack.c.h.b16 %v7403
    %v7842 = vunpack.c.l.b16 %v7404
    %v7843 = vunpack.c.h.b16 %v7404
    %v7844 = vunpack.c.l.b16 %v7405
    %v7845 = vunpack.c.h.b16 %v7405
    %v7846 = vunpack.c.l.b16 %v7406
    %v7847 = vunpack.c.h.b16 %v7406
    %v7848 = vunpack.c.l.b16 %v7407
    %v7849 = vunpack.c.h.b16 %v7407
    %v7850 = vunpack.c.l.b16 %v7408
    %v7851 = vunpack.c.h.b16 %v7408
    %v7852 = vunpack.c.l.b16 %v7409
    %v7853 = vunpack.c.h.b16 %v7409
    %v7854 = vunpack.c.l.b16 %v7410
    %v7855 = vunpack.c.h.b16 %v7410
    %v7856 = vunpack.c.l.b16 %v7411
    %v7857 = vunpack.c.h.b16 %v7411
    %v7858 = vunpack.c.l.b16 %v7412
    %v7859 = vunpack.c.h.b16 %v7412
    %v7860 = vunpack.c.l.b16 %v7413
    %v7861 = vunpack.c.h.b16 %v7413
    %v7862 = vunpack.c.l.b16 %v7414
    %v7863 = vunpack.c.h.b16 %v7414
    %v7864 = vunpack.c.l.b16 %v7415
    %v7865 = vunpack.c.h.b16 %v7415
    %v7866 = vunpack.c.l.b16 %v7416
    %v7867 = vunpack.c.h.b16 %v7416
    %v7868 = vunpack.c.l.b16 %v7417
    %v7869 = vunpack.c.h.b16 %v7417
    %v7870 = vunpack.c.l.b16 %v7418
    %v7871 = vunpack.c.h.b16 %v7418
    %v7872 = vunpack.c.l.b16 %v7419
    %v7873 = vunpack.c.h.b16 %v7419
    %v7874 = vunpack.c.l.b16 %v7420
    %v7875 = vunpack.c.h.b16 %v7420
    %v7876 = vunpack.c.l.b16 %v7421
    %v7877 = vunpack.c.h.b16 %v7421
    %v7878 = vunpack.c.l.b16 %v7422
    %v7879 = vunpack.c.h.b16 %v7422
    %v7880 = vunpack.c.l.b16 %v7423
    %v7881 = vunpack.c.h.b16 %v7423
    %v7882 = vunpack.c.l.b16 %v7424
    %v7883 = vunpack.c.h.b16 %v7424
    %v7884 = vunpack.c.l.b16 %v7425
    %v7885 = vunpack.c.h.b16 %v7425
    %v7886 = vunpack.c.l.b16 %v7426
    %v7887 = vunpack.c.h.b16 %v7426
    %v7888 = vunpack.c.l.b16 %v7427
    %v7889 = vunpack.c.h.b16 %v7427
    %v7890 = vunpack.c.l.b16 %v7428
    %v7891 = vunpack.c.h.b16 %v7428
    %v7892 = vunpack.c.l.b16 %v7429
    %v7893 = vunpack.c.h.b16 %v7429
    %v7894 = vunpack.c.l.b16 %v7430
    %v7895 = vunpack.c.h.b16 %v7430
    %v7896 = vunpack.c.l.b16 %v7431
    %v7897 = vunpack.c.h.b16 %v7431
    %v7898 = vunpack.c.l.b16 %v7432
    %v7899 = vunpack.c.h.b16 %v7432
    %v7900 = vunpack.c.l.b16 %v7433
    %v7901 = vunpack.c.h.b16 %v7433
    %v7902 = vunpack.c.l.b16 %v7434
    %v7903 = vunpack.c.h.b16 %v7434
    %v7904 = vunpack.c.l.b16 %v7435
    %v7905 = vunpack.c.h.b16 %v7435
    %v7906 = vunpack.c.l.b16 %v7436
    %v7907 = vunpack.c.h.b16 %v7436
    %v7908 = vunpack.c.l.b16 %v7437
    %v7909 = vunpack.c.h.b16 %v7437
    %v7910 = vunpack.c.l.b16 %v7438
    %v7911 = vunpack.c.h.b16 %v7438
    %v7912 = vunpack.c.l.b16 %v7439
    %v7913 = vunpack.c.h.b16 %v7439
    %v7914 = vunpack.c.l.b16 %v7440
    %v7915 = vunpack.c.h.b16 %v7440
    %v7916 = vunpack.c.l.b16 %v7441
    %v7917 = vunpack.c.h.b16 %v7441
    %v7918 = vunpack.c.l.b16 %v7442
    %v7919 = vunpack.c.h.b16 %v7442
    %v7920 = vunpack.c.l.b16 %v7443
    %v7921 = vunpack.c.h.b16 %v7443
    %v7922 = vunpack.c.l.b16 %v7444
    %v7923 = vunpack.c.h.b16 %v7444
    %v7924 = vunpack.c.l.b16 %v7445
    %v7925 = vunpack.c.h.b16 %v7445
    %v7926 = vunpack.c.l.b16 %v7446
    %v7927 = vunpack.c.h.b16 %v7446
    %v7928 = vunpack.c.l.b16 %v7447
    %v7929 = vunpack.c.h.b16 %v7447
    %v7930 = vunpack.c.l.b16 %v7448
    %v7931 = vunpack.c.h.b16 %v7448
    %v7932 = vunpack.c.l.b16 %v7449
    %v7933 = vunpack.c.h.b16 %v7449
    %v7934 = vunpack.c.l.b16 %v7450
    %v7935 = vunpack.c.h.b16 %v7450
    %v7936 = vunpack.c.l.b16 %v7451
    %v7937 = vunpack.c.h.b16 %v7451
    %v7938 = vunpack.c.l.b16 %v7452
    %v7939 = vunpack.c.h.b16 %v7452
    %v7940 = vunpack.c.l.b16 %v7453
    %v7941 = vunpack.c.h.b16 %v7453
    %v7942 = vunpack.c.l.b16 %v7454
    %v7943 = vunpack.c.h.b16 %v7454
    %v7944 = vunpack.c.l.b16 %v7455
    %v7945 = vunpack.c.h.b16 %v7455
    %v7946 = vunpack.c.l.b16 %v7456
    %v7947 = vunpack.c.h.b16 %v7456
    %v7948 = vunpack.c.l.b16 %v7457
    %v7949 = vunpack.c.h.b16 %v7457
    %v7950 = vunpack.c.l.b16 %v7458
    %v7951 = vunpack.c.h.b16 %v7458
    %v7952 = vunpack.c.l.b16 %v7459
    %v7953 = vunpack.c.h.b16 %v7459
    %v7954 = vunpack.c.l.b16 %v7460
    %v7955 = vunpack.c.h.b16 %v7460
    %v7956 = vunpack.c.l.b16 %v7461
    %v7957 = vunpack.c.h.b16 %v7461
    %v7958 = vunpack.c.l.b16 %v7462
    %v7959 = vunpack.c.h.b16 %v7462
    %v7960 = vunpack.c.l.b16 %v7463
    %v7961 = vunpack.c.h.b16 %v7463
    %v7962 = vunpack.c.l.b16 %v7464
    %v7963 = vunpack.c.h.b16 %v7464
    %v7964 = vunpack.c.l.b16 %v7465
    %v7965 = vunpack.c.h.b16 %v7465
    %v7966 = vunpack.c.l.b16 %v7466
    %v7967 = vunpack.c.h.b16 %v7466
    %v7968 = vunpack.c.l.b16 %v7467
    %v7969 = vunpack.c.h.b16 %v7467
    %v7970 = vunpack.c.l.b16 %v7468
    %v7971 = vunpack.c.h.b16 %v7468
    %v7972 = vunpack.c.l.b16 %v7469
    %v7973 = vunpack.c.h.b16 %v7469
    %v7974 = vunpack.c.l.b16 %v7470
    %v7975 = vunpack.c.h.b16 %v7470
    %v7976 = vunpack.c.l.b16 %v7471
    %v7977 = vunpack.c.h.b16 %v7471
    %v7978 = vunpack.c.l.b16 %v7472
    %v7979 = vunpack.c.h.b16 %v7472
    %v7980 = vunpack.c.l.b16 %v7473
    %v7981 = vunpack.c.h.b16 %v7473
    %v7982 = vunpack.c.l.b16 %v7474
    %v7983 = vunpack.c.h.b16 %v7474
    %v7984 = vunpack.c.l.b16 %v7475
    %v7985 = vunpack.c.h.b16 %v7475
    %v7986 = vunpack.c.l.b16 %v7476
    %v7987 = vunpack.c.h.b16 %v7476
    %v7988 = vunpack.c.l.b16 %v7477
    %v7989 = vunpack.c.h.b16 %v7477
    %v7990 = vunpack.c.l.b16 %v7478
    %v7991 = vunpack.c.h.b16 %v7478
    %v7992 = vunpack.c.l.b16 %v7479
    %v7993 = vunpack.c.h.b16 %v7479
    %v7994 = vunpack.c.l.b16 %v7480
    %v7995 = vunpack.c.h.b16 %v7480
    %v7996 = vunpack.c.l.b16 %v7481
    %v7997 = vunpack.c.h.b16 %v7481
    %v7998 = vunpack.c.l.b16 %v7482
    %v7999 = vunpack.c.h.b16 %v7482
    %v8000 = vunpack.c.l.b16 %v7483
    %v8001 = vunpack.c.h.b16 %v7483
    %v8002 = vunpack.c.l.b16 %v7484
    %v8003 = vunpack.c.h.b16 %v7484
    %v8004 = vunpack.c.l.b16 %v7485
    %v8005 = vunpack.c.h.b16 %v7485
    %v8006 = vunpack.c.l.b16 %v7486
    %v8007 = vunpack.c.h.b16 %v7486
    %v8008 = vunpack.c.l.b16 %v7487
    %v8009 = vunpack.c.h.b16 %v7487
    %v8010 = vunpack.c.l.b16 %v7488
    %v8011 = vunpack.c.h.b16 %v7488
    %v8012 = vunpack.c.l.b16 %v7489
    %v8013 = vunpack.c.h.b16 %v7489
    %v8014 = vunpack.c.l.b16 %v7490
    %v8015 = vunpack.c.h.b16 %v7490
    %v8016 = vunpack.c.l.b16 %v7491
    %v8017 = vunpack.c.h.b16 %v7491
    %v8018 = vunpack.c.l.b16 %v7492
    %v8019 = vunpack.c.h.b16 %v7492
    %v8020 = vunpack.c.l.b16 %v7493
    %v8021 = vunpack.c.h.b16 %v7493
    %v8022 = vunpack.c.l.b16 %v7494
    %v8023 = vunpack.c.h.b16 %v7494
    %v8024 = vunpack.c.l.b16 %v7495
    %v8025 = vunpack.c.h.b16 %v7495
    %v8026 = vunpack.c.l.b16 %v7496
    %v8027 = vunpack.c.h.b16 %v7496
    %v8028 = vunpack.c.l.b16 %v7497
    %v8029 = vunpack.c.h.b16 %v7497
    %v8030 = vunpack.c.l.b16 %v7498
    %v8031 = vunpack.c.h.b16 %v7498
    %v8032 = vunpack.c.l.b16 %v7499
    %v8033 = vunpack.c.h.b16 %v7499
    %v8034 = vunpack.c.l.b16 %v7500
    %v8035 = vunpack.c.h.b16 %v7500
    %v8036 = vunpack.c.l.b16 %v7501
    %v8037 = vunpack.c.h.b16 %v7501
    %v8038 = vunpack.c.l.b16 %v7502
    %v8039 = vunpack.c.h.b16 %v7502
    %v8040 = vunpack.c.l.b16 %v7503
    %v8041 = vunpack.c.h.b16 %v7503
    %v8042 = vunpack.c.l.b16 %v7504
    %v8043 = vunpack.c.h.b16 %v7504
    %v8044 = vunpack.c.l.b16 %v7505
    %v8045 = vunpack.c.h.b16 %v7505
    %v8046 = vunpack.c.l.b16 %v7506
    %v8047 = vunpack.c.h.b16 %v7506
    %v8048 = vunpack.c.l.b16 %v7507
    %v8049 = vunpack.c.h.b16 %v7507
    %v8050 = vunpack.c.l.b16 %v7508
    %v8051 = vunpack.c.h.b16 %v7508
    %v8052 = vunpack.c.l.b16 %v7509
    %v8053 = vunpack.c.h.b16 %v7509
    %v8054 = vunpack.c.l.b16 %v7510
    %v8055 = vunpack.c.h.b16 %v7510
    %v8056 = vunpack.c.l.b16 %v7511
    %v8057 = vunpack.c.h.b16 %v7511
    %v8058 = vunpack.c.l.b16 %v7512
    %v8059 = vunpack.c.h.b16 %v7512
    %v8060 = vunpack.c.l.b16 %v7513
    %v8061 = vunpack.c.h.b16 %v7513
    %v8062 = vunpack.c.l.b16 %v7514
    %v8063 = vunpack.c.h.b16 %v7514
    %v8064 = vunpack.c.l.b16 %v7515
    %v8065 = vunpack.c.h.b16 %v7515
    %v8066 = vunpack.c.l.b16 %v7516
    %v8067 = vunpack.c.h.b16 %v7516
    %v8068 = vunpack.c.l.b16 %v7517
    %v8069 = vunpack.c.h.b16 %v7517
    %v8070 = vunpack.c.l.b16 %v7518
    %v8071 = vunpack.c.h.b16 %v7518
    %v8072 = vunpack.c.l.b16 %v7519
    %v8073 = vunpack.c.h.b16 %v7519
    %v8074 = vunpack.c.l.b16 %v7520
    %v8075 = vunpack.c.h.b16 %v7520
    %v8076 = vunpack.c.l.b16 %v7521
    %v8077 = vunpack.c.h.b16 %v7521
    %v8078 = vunpack.c.l.b16 %v7522
    %v8079 = vunpack.c.h.b16 %v7522
    %v8080 = vunpack.c.l.b16 %v7523
    %v8081 = vunpack.c.h.b16 %v7523
    %v8082 = vunpack.c.l.b16 %v7524
    %v8083 = vunpack.c.h.b16 %v7524
    %v8084 = vunpack.c.l.b16 %v7525
    %v8085 = vunpack.c.h.b16 %v7525
    %v8086 = vunpack.c.l.b16 %v7526
    %v8087 = vunpack.c.h.b16 %v7526
    %v8088 = vunpack.c.l.b16 %v7527
    %v8089 = vunpack.c.h.b16 %v7527
    %v8090 = vunpack.c.l.b16 %v7528
    %v8091 = vunpack.c.h.b16 %v7528
    %v8092 = vunpack.c.l.b16 %v7529
    %v8093 = vunpack.c.h.b16 %v7529
    %v8094 = vunpack.c.l.b16 %v7530
    %v8095 = vunpack.c.h.b16 %v7530
    %v8096 = vunpack.c.l.b16 %v7531
    %v8097 = vunpack.c.h.b16 %v7531
    %v8098 = vunpack.c.l.b16 %v7532
    %v8099 = vunpack.c.h.b16 %v7532
    %v8100 = vunpack.c.l.b16 %v7533
    %v8101 = vunpack.c.h.b16 %v7533
    %v8102 = vunpack.c.l.b16 %v7534
    %v8103 = vunpack.c.h.b16 %v7534
    %v8104 = vunpack.c.l.b16 %v7535
    %v8105 = vunpack.c.h.b16 %v7535
    %v8106 = vunpack.c.l.b16 %v7536
    %v8107 = vunpack.c.h.b16 %v7536
    %v8108 = vunpack.c.l.b16 %v7537
    %v8109 = vunpack.c.h.b16 %v7537
    %v8110 = vunpack.c.l.b16 %v7538
    %v8111 = vunpack.c.h.b16 %v7538
    %v8112 = vunpack.c.l.b16 %v7539
    %v8113 = vunpack.c.h.b16 %v7539
    %v8114 = vunpack.c.l.b16 %v7540
    %v8115 = vunpack.c.h.b16 %v7540
    %v8116 = vunpack.c.l.b16 %v7541
    %v8117 = vunpack.c.h.b16 %v7541
    %v8118 = vunpack.c.l.b16 %v7542
    %v8119 = vunpack.c.h.b16 %v7542
    %v8120 = vunpack.c.l.b16 %v7543
    %v8121 = vunpack.c.h.b16 %v7543
    %v8122 = vunpack.c.l.b16 %v7544
    %v8123 = vunpack.c.h.b16 %v7544
    %v8124 = vunpack.c.l.b16 %v7545
    %v8125 = vunpack.c.h.b16 %v7545
    %v8126 = vunpack.c.l.b16 %v7546
    %v8127 = vunpack.c.h.b16 %v7546
    %v8128 = vunpack.c.l.b16 %v7547
    %v8129 = vunpack.c.h.b16 %v7547
    %v8130 = vunpack.c.l.b16 %v7548
    %v8131 = vunpack.c.h.b16 %v7548
    %v8132 = vunpack.c.l.b16 %v7549
    %v8133 = vunpack.c.h.b16 %v7549
    %v8134 = vunpack.c.l.b16 %v7550
    %v8135 = vunpack.c.h.b16 %v7550
    %v8136 = vunpack.c.l.b16 %v7551
    %v8137 = vunpack.c.h.b16 %v7551
    %v8138 = vunpack.c.l.b16 %v7552
    %v8139 = vunpack.c.h.b16 %v7552
    %v8140 = vunpack.c.l.b16 %v7553
    %v8141 = vunpack.c.h.b16 %v7553
    %v8142 = vunpack.c.l.b16 %v7554
    %v8143 = vunpack.c.h.b16 %v7554
    %v8144 = vunpack.c.l.b16 %v7555
    %v8145 = vunpack.c.h.b16 %v7555
    %v8146 = vunpack.c.l.b16 %v7556
    %v8147 = vunpack.c.h.b16 %v7556
    %v8148 = vunpack.c.l.b16 %v7557
    %v8149 = vunpack.c.h.b16 %v7557
    %v8150 = vunpack.c.l.b16 %v7558
    %v8151 = vunpack.c.h.b16 %v7558
    %v8152 = vunpack.c.l.b16 %v7559
    %v8153 = vunpack.c.h.b16 %v7559
    %v8154 = vunpack.c.l.b16 %v7560
    %v8155 = vunpack.c.h.b16 %v7560
    %v8156 = vunpack.c.l.b16 %v7561
    %v8157 = vunpack.c.h.b16 %v7561
    %v8158 = vunpack.c.l.b16 %v7562
    %v8159 = vunpack.c.h.b16 %v7562
    %v8160 = vunpack.c.l.b16 %v7563
    %v8161 = vunpack.c.h.b16 %v7563
    %v8162 = vunpack.c.l.b16 %v7564
    %v8163 = vunpack.c.h.b16 %v7564
    %v8164 = vunpack.c.l.b16 %v7565
    %v8165 = vunpack.c.h.b16 %v7565
    %v8166 = vunpack.c.l.b16 %v7566
    %v8167 = vunpack.c.h.b16 %v7566
    %v8168 = vunpack.c.l.b16 %v7567
    %v8169 = vunpack.c.h.b16 %v7567
    %v8170 = vunpack.c.l.b16 %v7568
    %v8171 = vunpack.c.h.b16 %v7568
    %v8172 = vunpack.c.l.b16 %v7569
    %v8173 = vunpack.c.h.b16 %v7569
    %v8174 = vunpack.c.l.b16 %v7570
    %v8175 = vunpack.c.h.b16 %v7570
    %v8176 = vunpack.c.l.b16 %v7571
    %v8177 = vunpack.c.h.b16 %v7571
    %v8178 = vunpack.c.l.b16 %v7572
    %v8179 = vunpack.c.h.b16 %v7572
    %v8180 = vunpack.c.l.b16 %v7573
    %v8181 = vunpack.c.h.b16 %v7573
    %v8182 = vunpack.c.l.b16 %v7574
    %v8183 = vunpack.c.h.b16 %v7574
    %v8184 = vunpack.c.l.b16 %v7575
    %v8185 = vunpack.c.h.b16 %v7575
    %v8186 = vpack.c.b16 %v7790, %v7786
    %v8187 = vpack.c.b16 %v7791, %v7787
    %v8188 = vpack.c.b16 %v7792, %v7788
    %v8189 = vpack.c.b16 %v7793, %v7789
    %v8190 = vpack.c.b16 %v7798, %v7794
    %v8191 = vpack.c.b16 %v7799, %v7795
    %v8192 = vpack.c.b16 %v7800, %v7796
    %v8193 = vpack.c.b16 %v7801, %v7797
    %v8194 = vpack.c.b16 %v7806, %v7802
    %v8195 = vpack.c.b16 %v7807, %v7803
    %v8196 = vpack.c.b16 %v7808, %v7804
    %v8197 = vpack.c.b16 %v7809, %v7805
    %v8198 = vpack.c.b16 %v7814, %v7810
    %v8199 = vpack.c.b16 %v7815, %v7811
    %v8200 = vpack.c.b16 %v7816, %v7812
    %v8201 = vpack.c.b16 %v7817, %v7813
    %v8202 = vpack.c.b16 %v7822, %v7818
    %v8203 = vpack.c.b16 %v7823, %v7819
    %v8204 = vpack.c.b16 %v7824, %v7820
    %v8205 = vpack.c.b16 %v7825, %v7821
    %v8206 = vpack.c.b16 %v7830, %v7826
    %v8207 = vpack.c.b16 %v7831, %v7827
    %v8208 = vpack.c.b16 %v7832, %v7828
    %v8209 = vpack.c.b16 %v7833, %v7829
    %v8210 = vpack.c.b16 %v7838, %v7834
    %v8211 = vpack.c.b16 %v7839, %v7835
    %v8212 = vpack.c.b16 %v7840, %v7836
    %v8213 = vpack.c.b16 %v7841, %v7837
    %v8214 = vpack.c.b16 %v7846, %v7842
    %v8215 = vpack.c.b16 %v7847, %v7843
    %v8216 = vpack.c.b16 %v7848, %v7844
    %v8217 = vpack.c.b16 %v7849, %v7845
    %v8218 = vpack.c.b16 %v7854, %v7850
    %v8219 = vpack.c.b16 %v7855, %v7851
    %v8220 = vpack.c.b16 %v7856, %v7852
    %v8221 = vpack.c.b16 %v7857, %v7853
    %v8222 = vpack.c.b16 %v7862, %v7858
    %v8223 = vpack.c.b16 %v7863, %v7859
    %v8224 = vpack.c.b16 %v7864, %v7860
    %v8225 = vpack.c.b16 %v7865, %v7861
    %v8226 = vpack.c.b16 %v7870, %v7866
    %v8227 = vpack.c.b16 %v7871, %v7867
    %v8228 = vpack.c.b16 %v7872, %v7868
    %v8229 = vpack.c.b16 %v7873, %v7869
    %v8230 = vpack.c.b16 %v7878, %v7874
    %v8231 = vpack.c.b16 %v7879, %v7875
    %v8232 = vpack.c.b16 %v7880, %v7876
    %v8233 = vpack.c.b16 %v7881, %v7877
    %v8234 = vpack.c.b16 %v7886, %v7882
    %v8235 = vpack.c.b16 %v7887, %v7883
    %v8236 = vpack.c.b16 %v7888, %v7884
    %v8237 = vpack.c.b16 %v7889, %v7885
    %v8238 = vpack.c.b16 %v7894, %v7890
    %v8239 = vpack.c.b16 %v7895, %v7891
    %v8240 = vpack.c.b16 %v7896, %v7892
    %v8241 = vpack.c.b16 %v7897, %v7893
    %v8242 = vpack.c.b16 %v7902, %v7898
    %v8243 = vpack.c.b16 %v7903, %v7899
    %v8244 = vpack.c.b16 %v7904, %v7900
    %v8245 = vpack.c.b16 %v7905, %v7901
    %v8246 = vpack.c.b16 %v7910, %v7906
    %v8247 = vpack.c.b16 %v7911, %v7907
    %v8248 = vpack.c.b16 %v7912, %v7908
    %v8249 = vpack.c.b16 %v7913, %v7909
    %v8250 = vpack.c.b16 %v7918, %v7914
    %v8251 = vpack.c.b16 %v7919, %v7915
    %v8252 = vpack.c.b16 %v7920, %v7916
    %v8253 = vpack.c.b16 %v7921, %v7917
    %v8254 = vpack.c.b16 %v7926, %v7922
    %v8255 = vpack.c.b16 %v7927, %v7923
    %v8256 = vpack.c.b16 %v7928, %v7924
    %v8257 = vpack.c.b16 %v7929, %v7925
    %v8258 = vpack.c.b16 %v7934, %v7930
    %v8259 = vpack.c.b16 %v7935, %v7931
    %v8260 = vpack.c.b16 %v7936, %v7932
    %v8261 = vpack.c.b16 %v7937, %v7933
    %v8262 = vpack.c.b16 %v7942, %v7938
    %v8263 = vpack.c.b16 %v7943, %v7939
    %v8264 = vpack.c.b16 %v7944, %v7940
    %v8265 = vpack.c.b16 %v7945, %v7941
    %v8266 = vpack.c.b16 %v7950, %v7946
    %v8267 = vpack.c.b16 %v7951, %v7947
    %v8268 = vpack.c.b16 %v7952, %v7948
    %v8269 = vpack.c.b16 %v7953, %v7949
    %v8270 = vpack.c.b16 %v7958, %v7954
    %v8271 = vpack.c.b16 %v7959, %v7955
    %v8272 = vpack.c.b16 %v7960, %v7956
    %v8273 = vpack.c.b16 %v7961, %v7957
    %v8274 = vpack.c.b16 %v7966, %v7962
    %v8275 = vpack.c.b16 %v7967, %v7963
    %v8276 = vpack.c.b16 %v7968, %v7964
    %v8277 = vpack.c.b16 %v7969, %v7965
    %v8278 = vpack.c.b16 %v7974, %v7970
    %v8279 = vpack.c.b16 %v7975, %v7971
    %v8280 = vpack.c.b16 %v7976, %v7972
    %v8281 = vpack.c.b16 %v7977, %v7973
    %v8282 = vpack.c.b16 %v7982, %v7978
    %v8283 = vpack.c.b16 %v7983, %v7979
    %v8284 = vpack.c.b16 %v7984, %v7980
    %v8285 = vpack.c.b16 %v7985, %v7981
    %v8286 = vpack.c.b16 %v7990, %v7986
    %v8287 = vpack.c.b16 %v7991, %v7987
    %v8288 = vpack.c.b16 %v7992, %v7988
    %v8289 = vpack.c.b16 %v7993, %v7989
    %v8290 = vpack.c.b16 %v7998, %v7994
    %v8291 = vpack.c.b16 %v7999, %v7995
    %v8292 = vpack.c.b16 %v8000, %v7996
    %v8293 = vpack.c.b16 %v8001, %v7997
    %v8294 = vpack.c.b16 %v8006, %v8002
    %v8295 = vpack.c.b16 %v8007, %v8003
    %v8296 = vpack.c.b16 %v8008, %v8004
    %v8297 = vpack.c.b16 %v8009, %v8005
    %v8298 = vpack.c.b16 %v8014, %v8010
    %v8299 = vpack.c.b16 %v8015, %v8011
    %v8300 = vpack.c.b16 %v8016, %v8012
    %v8301 = vpack.c.b16 %v8017, %v8013
    %v8302 = vpack.c.b16 %v8022, %v8018
    %v8303 = vpack.c.b16 %v8023, %v8019
    %v8304 = vpack.c.b16 %v8024, %v8020
    %v8305 = vpack.c.b16 %v8025, %v8021
    %v8306 = vpack.c.b16 %v8030, %v8026
    %v8307 = vpack.c.b16 %v8031, %v8027
    %v8308 = vpack.c.b16 %v8032, %v8028
    %v8309 = vpack.c.b16 %v8033, %v8029
    %v8310 = vpack.c.b16 %v8038, %v8034
    %v8311 = vpack.c.b16 %v8039, %v8035
    %v8312 = vpack.c.b16 %v8040, %v8036
    %v8313 = vpack.c.b16 %v8041, %v8037
    %v8314 = vpack.c.b16 %v8046, %v8042
    %v8315 = vpack.c.b16 %v8047, %v8043
    %v8316 = vpack.c.b16 %v8048, %v8044
    %v8317 = vpack.c.b16 %v8049, %v8045
    %v8318 = vpack.c.b16 %v8054, %v8050
    %v8319 = vpack.c.b16 %v8055, %v8051
    %v8320 = vpack.c.b16 %v8056, %v8052
    %v8321 = vpack.c.b16 %v8057, %v8053
    %v8322 = vpack.c.b16 %v8062, %v8058
    %v8323 = vpack.c.b16 %v8063, %v8059
    %v8324 = vpack.c.b16 %v8064, %v8060
    %v8325 = vpack.c.b16 %v8065, %v8061
    %v8326 = vpack.c.b16 %v8070, %v8066
    %v8327 = vpack.c.b16 %v8071, %v8067
    %v8328 = vpack.c.b16 %v8072, %v8068
    %v8329 = vpack.c.b16 %v8073, %v8069
    %v8330 = vpack.c.b16 %v8078, %v8074
    %v8331 = vpack.c.b16 %v8079, %v8075
    %v8332 = vpack.c.b16 %v8080, %v8076
    %v8333 = vpack.c.b16 %v8081, %v8077
    %v8334 = vpack.c.b16 %v8086, %v8082
    %v8335 = vpack.c.b16 %v8087, %v8083
    %v8336 = vpack.c.b16 %v8088, %v8084
    %v8337 = vpack.c.b16 %v8089, %v8085
    %v8338 = vpack.c.b16 %v8094, %v8090
    %v8339 = vpack.c.b16 %v8095, %v8091
    %v8340 = vpack.c.b16 %v8096, %v8092
    %v8341 = vpack.c.b16 %v8097, %v8093
    %v8342 = vpack.c.b16 %v8102, %v8098
    %v8343 = vpack.c.b16 %v8103, %v8099
    %v8344 = vpack.c.b16 %v8104, %v8100
    %v8345 = vpack.c.b16 %v8105, %v8101
    %v8346 = vpack.c.b16 %v8110, %v8106
    %v8347 = vpack.c.b16 %v8111, %v8107
    %v8348 = vpack.c.b16 %v8112, %v8108
    %v8349 = vpack.c.b16 %v8113, %v8109
    %v8350 = vpack.c.b16 %v8118, %v8114
    %v8351 = vpack.c.b16 %v8119, %v8115
    %v8352 = vpack.c.b16 %v8120, %v8116
    %v8353 = vpack.c.b16 %v8121, %v8117
    %v8354 = vpack.c.b16 %v8126, %v8122
    %v8355 = vpack.c.b16 %v8127, %v8123
    %v8356 = vpack.c.b16 %v8128, %v8124
    %v8357 = vpack.c.b16 %v8129, %v8125
    %v8358 = vpack.c.b16 %v8134, %v8130
    %v8359 = vpack.c.b16 %v8135, %v8131
    %v8360 = vpack.c.b16 %v8136, %v8132
    %v8361 = vpack.c.b16 %v8137, %v8133
    %v8362 = vpack.c.b16 %v8142, %v8138
    %v8363 = vpack.c.b16 %v8143, %v8139
    %v8364 = vpack.c.b16 %v8144, %v8140
    %v8365 = vpack.c.b16 %v8145, %v8141
    %v8366 = vpack.c.b16 %v8150, %v8146
    %v8367 = vpack.c.b16 %v8151, %v8147
    %v8368 = vpack.c.b16 %v8152, %v8148
    %v8369 = vpack.c.b16 %v8153, %v8149
    %v8370 = vpack.c.b16 %v8158, %v8154
    %v8371 = vpack.c.b16 %v8159, %v8155
    %v8372 = vpack.c.b16 %v8160, %v8156
    %v8373 = vpack.c.b16 %v8161, %v8157
    %v8374 = vpack.c.b16 %v8166, %v8162
    %v8375 = vpack.c.b16 %v8167, %v8163
    %v8376 = vpack.c.b16 %v8168, %v8164
    %v8377 = vpack.c.b16 %v8169, %v8165
    %v8378 = vpack.c.b16 %v8174, %v8170
    %v8379 = vpack.c.b16 %v8175, %v8171
    %v8380 = vpack.c.b16 %v8176, %v8172
    %v8381 = vpack.c.b16 %v8177, %v8173
    %v8382 = vpack.c.b16 %v8182, %v8178
    %v8383 = vpack.c.b16 %v8183, %v8179
    %v8384 = vpack.c.b16 %v8184, %v8180
    %v8385 = vpack.c.b16 %v8185, %v8181
    %v8587 = vsel %vm5241, %v7375, 0
    %8589 = vmatpush.bf16.msra.mxu0 %v8214
    %8590 = vmatpush.bf16.msra.mxu0 %v8210
    %8591 = vmatpush.bf16.msra.mxu0 %v8206
    %8592 = vmatpush.bf16.msra.mxu0 %v8202
    %8593 = vmatpush.bf16.msra.mxu0 %v8198
    %8594 = vmatpush.bf16.msra.mxu0 %v8194
    %8595 = vmatpush.bf16.msra.mxu0 %v8190
    %8596 = vmatpush.bf16.msra.mxu0 %v8186
    %8597 = vmatmul.bf16.gmra.mxu0 %v7369
    %v8598 = vpop.f32.mrf.mxu0
    %v8599 = vadd.f32 %v7578, %v8598
    %v8600 = vpop.f32.mrf.mxu0
    %8601 = vdwg.mxu0
    %8602 = vmatpush.bf16.msra.mxu0 %v8246
    %8603 = vmatpush.bf16.msra.mxu0 %v8242
    %8604 = vmatpush.bf16.msra.mxu0 %v8238
    %8605 = vmatpush.bf16.msra.mxu0 %v8234
    %8606 = vmatpush.bf16.msra.mxu0 %v8230
    %8607 = vmatpush.bf16.msra.mxu0 %v8226
    %8608 = vmatpush.bf16.msra.mxu0 %v8222
    %8609 = vmatpush.bf16.msra.mxu0 %v8218
    %8610 = vmatmul.bf16.gmra.mxu0 %v7370
    %v8611 = vpop.f32.mrf.mxu0
    %v8612 = vadd.f32 %v8599, %v8611
    %v8613 = vpop.f32.mrf.mxu0
    %8614 = vdwg.mxu0
    %8615 = vmatpush.bf16.msra.mxu0 %v8278
    %8616 = vmatpush.bf16.msra.mxu0 %v8274
    %8617 = vmatpush.bf16.msra.mxu0 %v8270
    %8618 = vmatpush.bf16.msra.mxu0 %v8266
    %8619 = vmatpush.bf16.msra.mxu0 %v8262
    %8620 = vmatpush.bf16.msra.mxu0 %v8258
    %8621 = vmatpush.bf16.msra.mxu0 %v8254
    %8622 = vmatpush.bf16.msra.mxu0 %v8250
    %8623 = vmatmul.bf16.gmra.mxu0 %v7371
    %v8624 = vpop.f32.mrf.mxu0
    %v8625 = vadd.f32 %v8612, %v8624
    %v8626 = vpop.f32.mrf.mxu0
    %8627 = vdwg.mxu0
    %8628 = vmatpush.bf16.msra.mxu0 %v8310
    %8629 = vmatpush.bf16.msra.mxu0 %v8306
    %8630 = vmatpush.bf16.msra.mxu0 %v8302
    %8631 = vmatpush.bf16.msra.mxu0 %v8298
    %8632 = vmatpush.bf16.msra.mxu0 %v8294
    %8633 = vmatpush.bf16.msra.mxu0 %v8290
    %8634 = vmatpush.bf16.msra.mxu0 %v8286
    %8635 = vmatpush.bf16.msra.mxu0 %v8282
    %8636 = vmatmul.bf16.gmra.mxu0 %v7372
    %v8637 = vpop.f32.mrf.mxu0
    %v8638 = vadd.f32 %v8625, %v8637
    %v8639 = vpop.f32.mrf.mxu0
    %8640 = vdwg.mxu0
    %8641 = vmatpush.bf16.msra.mxu0 %v8342
    %8642 = vmatpush.bf16.msra.mxu0 %v8338
    %8643 = vmatpush.bf16.msra.mxu0 %v8334
    %8644 = vmatpush.bf16.msra.mxu0 %v8330
    %8645 = vmatpush.bf16.msra.mxu0 %v8326
    %8646 = vmatpush.bf16.msra.mxu0 %v8322
    %8647 = vmatpush.bf16.msra.mxu0 %v8318
    %8648 = vmatpush.bf16.msra.mxu0 %v8314
    %8649 = vmatmul.bf16.gmra.mxu0 %v7373
    %v8650 = vpop.f32.mrf.mxu0
    %v8651 = vadd.f32 %v8638, %v8650
    %v8652 = vpop.f32.mrf.mxu0
    %8653 = vdwg.mxu0
    %8654 = vmatpush.bf16.msra.mxu0 %v8374
    %8655 = vmatpush.bf16.msra.mxu0 %v8370
    %8656 = vmatpush.bf16.msra.mxu0 %v8366
    %8657 = vmatpush.bf16.msra.mxu0 %v8362
    %8658 = vmatpush.bf16.msra.mxu0 %v8358
    %8659 = vmatpush.bf16.msra.mxu0 %v8354
    %8660 = vmatpush.bf16.msra.mxu0 %v8350
    %8661 = vmatpush.bf16.msra.mxu0 %v8346
    %8662 = vmatmul.bf16.gmra.mxu0 %v7374
    %v8663 = vpop.f32.mrf.mxu0
    %v8664 = vadd.f32 %v8651, %v8663
    %v8665 = vpop.f32.mrf.mxu0
    %8666 = vdwg.mxu0
    %8667 = vmatpush.bf16.msra.mxu0 0
    %8668 = vmatpush.bf16.msra.mxu0 0
    %8669 = vmatpush.bf16.msra.mxu0 0
    %8670 = vmatpush.bf16.msra.mxu0 0
    %8671 = vmatpush.bf16.msra.mxu0 0
    %8672 = vmatpush.bf16.msra.mxu0 0
    %8673 = vmatpush.bf16.msra.mxu0 %v8382
    %8674 = vmatpush.bf16.msra.mxu0 %v8378
    %8675 = vmatmul.bf16.gmra.mxu0 %v8587
    %v8676 = vpop.f32.mrf.mxu0
    %v8677 = vadd.f32 %v8664, %v8676
    %v8678 = vpop.f32.mrf.mxu0
    %8679 = vdwg.mxu0
    %8680 = vmatpush.bf16.msra.mxu0 %v8215
    %8681 = vmatpush.bf16.msra.mxu0 %v8211
    %8682 = vmatpush.bf16.msra.mxu0 %v8207
    %8683 = vmatpush.bf16.msra.mxu0 %v8203
    %8684 = vmatpush.bf16.msra.mxu0 %v8199
    %8685 = vmatpush.bf16.msra.mxu0 %v8195
    %8686 = vmatpush.bf16.msra.mxu0 %v8191
    %8687 = vmatpush.bf16.msra.mxu0 %v8187
    %8688 = vmatmul.bf16.gmra.mxu0 %v7369
    %v8689 = vpop.f32.mrf.mxu0
    %v8690 = vadd.f32 %v7579, %v8689
    %v8691 = vpop.f32.mrf.mxu0
    %8692 = vdwg.mxu0
    %8693 = vmatpush.bf16.msra.mxu0 %v8247
    %8694 = vmatpush.bf16.msra.mxu0 %v8243
    %8695 = vmatpush.bf16.msra.mxu0 %v8239
    %8696 = vmatpush.bf16.msra.mxu0 %v8235
    %8697 = vmatpush.bf16.msra.mxu0 %v8231
    %8698 = vmatpush.bf16.msra.mxu0 %v8227
    %8699 = vmatpush.bf16.msra.mxu0 %v8223
    %8700 = vmatpush.bf16.msra.mxu0 %v8219
    %8701 = vmatmul.bf16.gmra.mxu0 %v7370
    %v8702 = vpop.f32.mrf.mxu0
    %v8703 = vadd.f32 %v8690, %v8702
    %v8704 = vpop.f32.mrf.mxu0
    %8705 = vdwg.mxu0
    %8706 = vmatpush.bf16.msra.mxu0 %v8279
    %8707 = vmatpush.bf16.msra.mxu0 %v8275
    %8708 = vmatpush.bf16.msra.mxu0 %v8271
    %8709 = vmatpush.bf16.msra.mxu0 %v8267
    %8710 = vmatpush.bf16.msra.mxu0 %v8263
    %8711 = vmatpush.bf16.msra.mxu0 %v8259
    %8712 = vmatpush.bf16.msra.mxu0 %v8255
    %8713 = vmatpush.bf16.msra.mxu0 %v8251
    %8714 = vmatmul.bf16.gmra.mxu0 %v7371
    %v8715 = vpop.f32.mrf.mxu0
    %v8716 = vadd.f32 %v8703, %v8715
    %v8717 = vpop.f32.mrf.mxu0
    %8718 = vdwg.mxu0
    %8719 = vmatpush.bf16.msra.mxu0 %v8311
    %8720 = vmatpush.bf16.msra.mxu0 %v8307
    %8721 = vmatpush.bf16.msra.mxu0 %v8303
    %8722 = vmatpush.bf16.msra.mxu0 %v8299
    %8723 = vmatpush.bf16.msra.mxu0 %v8295
    %8724 = vmatpush.bf16.msra.mxu0 %v8291
    %8725 = vmatpush.bf16.msra.mxu0 %v8287
    %8726 = vmatpush.bf16.msra.mxu0 %v8283
    %8727 = vmatmul.bf16.gmra.mxu0 %v7372
    %v8728 = vpop.f32.mrf.mxu0
    %v8729 = vadd.f32 %v8716, %v8728
    %v8730 = vpop.f32.mrf.mxu0
    %8731 = vdwg.mxu0
    %8732 = vmatpush.bf16.msra.mxu0 %v8343
    %8733 = vmatpush.bf16.msra.mxu0 %v8339
    %8734 = vmatpush.bf16.msra.mxu0 %v8335
    %8735 = vmatpush.bf16.msra.mxu0 %v8331
    %8736 = vmatpush.bf16.msra.mxu0 %v8327
    %8737 = vmatpush.bf16.msra.mxu0 %v8323
    %8738 = vmatpush.bf16.msra.mxu0 %v8319
    %8739 = vmatpush.bf16.msra.mxu0 %v8315
    %8740 = vmatmul.bf16.gmra.mxu0 %v7373
    %v8741 = vpop.f32.mrf.mxu0
    %v8742 = vadd.f32 %v8729, %v8741
    %v8743 = vpop.f32.mrf.mxu0
    %8744 = vdwg.mxu0
    %8745 = vmatpush.bf16.msra.mxu0 %v8375
    %8746 = vmatpush.bf16.msra.mxu0 %v8371
    %8747 = vmatpush.bf16.msra.mxu0 %v8367
    %8748 = vmatpush.bf16.msra.mxu0 %v8363
    %8749 = vmatpush.bf16.msra.mxu0 %v8359
    %8750 = vmatpush.bf16.msra.mxu0 %v8355
    %8751 = vmatpush.bf16.msra.mxu0 %v8351
    %8752 = vmatpush.bf16.msra.mxu0 %v8347
    %8753 = vmatmul.bf16.gmra.mxu0 %v7374
    %v8754 = vpop.f32.mrf.mxu0
    %v8755 = vadd.f32 %v8742, %v8754
    %v8756 = vpop.f32.mrf.mxu0
    %8757 = vdwg.mxu0
    %8758 = vmatpush.bf16.msra.mxu0 0
    %8759 = vmatpush.bf16.msra.mxu0 0
    %8760 = vmatpush.bf16.msra.mxu0 0
    %8761 = vmatpush.bf16.msra.mxu0 0
    %8762 = vmatpush.bf16.msra.mxu0 0
    %8763 = vmatpush.bf16.msra.mxu0 0
    %8764 = vmatpush.bf16.msra.mxu0 %v8383
    %8765 = vmatpush.bf16.msra.mxu0 %v8379
    %8766 = vmatmul.bf16.gmra.mxu0 %v8587
    %v8767 = vpop.f32.mrf.mxu0
    %v8768 = vadd.f32 %v8755, %v8767
    %v8769 = vpop.f32.mrf.mxu0
    %8770 = vdwg.mxu0
    %8771 = vmatpush.bf16.msra.mxu0 %v8216
    %8772 = vmatpush.bf16.msra.mxu0 %v8212
    %8773 = vmatpush.bf16.msra.mxu0 %v8208
    %8774 = vmatpush.bf16.msra.mxu0 %v8204
    %8775 = vmatpush.bf16.msra.mxu0 %v8200
    %8776 = vmatpush.bf16.msra.mxu0 %v8196
    %8777 = vmatpush.bf16.msra.mxu0 %v8192
    %8778 = vmatpush.bf16.msra.mxu0 %v8188
    %8779 = vmatmul.bf16.gmra.mxu0 %v7369
    %v8780 = vpop.f32.mrf.mxu0
    %v8781 = vadd.f32 %v7580, %v8780
    %v8782 = vpop.f32.mrf.mxu0
    %8783 = vdwg.mxu0
    %8784 = vmatpush.bf16.msra.mxu0 %v8248
    %8785 = vmatpush.bf16.msra.mxu0 %v8244
    %8786 = vmatpush.bf16.msra.mxu0 %v8240
    %8787 = vmatpush.bf16.msra.mxu0 %v8236
    %8788 = vmatpush.bf16.msra.mxu0 %v8232
    %8789 = vmatpush.bf16.msra.mxu0 %v8228
    %8790 = vmatpush.bf16.msra.mxu0 %v8224
    %8791 = vmatpush.bf16.msra.mxu0 %v8220
    %8792 = vmatmul.bf16.gmra.mxu0 %v7370
    %v8793 = vpop.f32.mrf.mxu0
    %v8794 = vadd.f32 %v8781, %v8793
    %v8795 = vpop.f32.mrf.mxu0
    %8796 = vdwg.mxu0
    %8797 = vmatpush.bf16.msra.mxu0 %v8280
    %8798 = vmatpush.bf16.msra.mxu0 %v8276
    %8799 = vmatpush.bf16.msra.mxu0 %v8272
    %8800 = vmatpush.bf16.msra.mxu0 %v8268
    %8801 = vmatpush.bf16.msra.mxu0 %v8264
    %8802 = vmatpush.bf16.msra.mxu0 %v8260
    %8803 = vmatpush.bf16.msra.mxu0 %v8256
    %8804 = vmatpush.bf16.msra.mxu0 %v8252
    %8805 = vmatmul.bf16.gmra.mxu0 %v7371
    %v8806 = vpop.f32.mrf.mxu0
    %v8807 = vadd.f32 %v8794, %v8806
    %v8808 = vpop.f32.mrf.mxu0
    %8809 = vdwg.mxu0
    %8810 = vmatpush.bf16.msra.mxu0 %v8312
    %8811 = vmatpush.bf16.msra.mxu0 %v8308
    %8812 = vmatpush.bf16.msra.mxu0 %v8304
    %8813 = vmatpush.bf16.msra.mxu0 %v8300
    %8814 = vmatpush.bf16.msra.mxu0 %v8296
    %8815 = vmatpush.bf16.msra.mxu0 %v8292
    %8816 = vmatpush.bf16.msra.mxu0 %v8288
    %8817 = vmatpush.bf16.msra.mxu0 %v8284
    %8818 = vmatmul.bf16.gmra.mxu0 %v7372
    %v8819 = vpop.f32.mrf.mxu0
    %v8820 = vadd.f32 %v8807, %v8819
    %v8821 = vpop.f32.mrf.mxu0
    %8822 = vdwg.mxu0
    %8823 = vmatpush.bf16.msra.mxu0 %v8344
    %8824 = vmatpush.bf16.msra.mxu0 %v8340
    %8825 = vmatpush.bf16.msra.mxu0 %v8336
    %8826 = vmatpush.bf16.msra.mxu0 %v8332
    %8827 = vmatpush.bf16.msra.mxu0 %v8328
    %8828 = vmatpush.bf16.msra.mxu0 %v8324
    %8829 = vmatpush.bf16.msra.mxu0 %v8320
    %8830 = vmatpush.bf16.msra.mxu0 %v8316
    %8831 = vmatmul.bf16.gmra.mxu0 %v7373
    %v8832 = vpop.f32.mrf.mxu0
    %v8833 = vadd.f32 %v8820, %v8832
    %v8834 = vpop.f32.mrf.mxu0
    %8835 = vdwg.mxu0
    %8836 = vmatpush.bf16.msra.mxu0 %v8376
    %8837 = vmatpush.bf16.msra.mxu0 %v8372
    %8838 = vmatpush.bf16.msra.mxu0 %v8368
    %8839 = vmatpush.bf16.msra.mxu0 %v8364
    %8840 = vmatpush.bf16.msra.mxu0 %v8360
    %8841 = vmatpush.bf16.msra.mxu0 %v8356
    %8842 = vmatpush.bf16.msra.mxu0 %v8352
    %8843 = vmatpush.bf16.msra.mxu0 %v8348
    %8844 = vmatmul.bf16.gmra.mxu0 %v7374
    %v8845 = vpop.f32.mrf.mxu0
    %v8846 = vadd.f32 %v8833, %v8845
    %v8847 = vpop.f32.mrf.mxu0
    %8848 = vdwg.mxu0
    %8849 = vmatpush.bf16.msra.mxu0 0
    %8850 = vmatpush.bf16.msra.mxu0 0
    %8851 = vmatpush.bf16.msra.mxu0 0
    %8852 = vmatpush.bf16.msra.mxu0 0
    %8853 = vmatpush.bf16.msra.mxu0 0
    %8854 = vmatpush.bf16.msra.mxu0 0
    %8855 = vmatpush.bf16.msra.mxu0 %v8384
    %8856 = vmatpush.bf16.msra.mxu0 %v8380
    %8857 = vmatmul.bf16.gmra.mxu0 %v8587
    %v8858 = vpop.f32.mrf.mxu0
    %v8859 = vadd.f32 %v8846, %v8858
    %v8860 = vpop.f32.mrf.mxu0
    %8861 = vdwg.mxu0
    %8862 = vmatpush.bf16.msra.mxu0 %v8217
    %8863 = vmatpush.bf16.msra.mxu0 %v8213
    %8864 = vmatpush.bf16.msra.mxu0 %v8209
    %8865 = vmatpush.bf16.msra.mxu0 %v8205
    %8866 = vmatpush.bf16.msra.mxu0 %v8201
    %8867 = vmatpush.bf16.msra.mxu0 %v8197
    %8868 = vmatpush.bf16.msra.mxu0 %v8193
    %8869 = vmatpush.bf16.msra.mxu0 %v8189
    %8870 = vmatmul.bf16.gmra.mxu0 %v7369
    %v8871 = vpop.f32.mrf.mxu0
    %v8872 = vadd.f32 %v7581, %v8871
    %v8873 = vpop.f32.mrf.mxu0
    %8874 = vdwg.mxu0
    %8875 = vmatpush.bf16.msra.mxu0 %v8249
    %8876 = vmatpush.bf16.msra.mxu0 %v8245
    %8877 = vmatpush.bf16.msra.mxu0 %v8241
    %8878 = vmatpush.bf16.msra.mxu0 %v8237
    %8879 = vmatpush.bf16.msra.mxu0 %v8233
    %8880 = vmatpush.bf16.msra.mxu0 %v8229
    %8881 = vmatpush.bf16.msra.mxu0 %v8225
    %8882 = vmatpush.bf16.msra.mxu0 %v8221
    %8883 = vmatmul.bf16.gmra.mxu0 %v7370
    %v8884 = vpop.f32.mrf.mxu0
    %v8885 = vadd.f32 %v8872, %v8884
    %v8886 = vpop.f32.mrf.mxu0
    %8887 = vdwg.mxu0
    %8888 = vmatpush.bf16.msra.mxu0 %v8281
    %8889 = vmatpush.bf16.msra.mxu0 %v8277
    %8890 = vmatpush.bf16.msra.mxu0 %v8273
    %8891 = vmatpush.bf16.msra.mxu0 %v8269
    %8892 = vmatpush.bf16.msra.mxu0 %v8265
    %8893 = vmatpush.bf16.msra.mxu0 %v8261
    %8894 = vmatpush.bf16.msra.mxu0 %v8257
    %8895 = vmatpush.bf16.msra.mxu0 %v8253
    %8896 = vmatmul.bf16.gmra.mxu0 %v7371
    %v8897 = vpop.f32.mrf.mxu0
    %v8898 = vadd.f32 %v8885, %v8897
    %v8899 = vpop.f32.mrf.mxu0
    %8900 = vdwg.mxu0
    %8901 = vmatpush.bf16.msra.mxu0 %v8313
    %8902 = vmatpush.bf16.msra.mxu0 %v8309
    %8903 = vmatpush.bf16.msra.mxu0 %v8305
    %8904 = vmatpush.bf16.msra.mxu0 %v8301
    %8905 = vmatpush.bf16.msra.mxu0 %v8297
    %8906 = vmatpush.bf16.msra.mxu0 %v8293
    %8907 = vmatpush.bf16.msra.mxu0 %v8289
    %8908 = vmatpush.bf16.msra.mxu0 %v8285
    %8909 = vmatmul.bf16.gmra.mxu0 %v7372
    %v8910 = vpop.f32.mrf.mxu0
    %v8911 = vadd.f32 %v8898, %v8910
    %v8912 = vpop.f32.mrf.mxu0
    %8913 = vdwg.mxu0
    %8914 = vmatpush.bf16.msra.mxu0 %v8345
    %8915 = vmatpush.bf16.msra.mxu0 %v8341
    %8916 = vmatpush.bf16.msra.mxu0 %v8337
    %8917 = vmatpush.bf16.msra.mxu0 %v8333
    %8918 = vmatpush.bf16.msra.mxu0 %v8329
    %8919 = vmatpush.bf16.msra.mxu0 %v8325
    %8920 = vmatpush.bf16.msra.mxu0 %v8321
    %8921 = vmatpush.bf16.msra.mxu0 %v8317
    %8922 = vmatmul.bf16.gmra.mxu0 %v7373
    %v8923 = vpop.f32.mrf.mxu0
    %v8924 = vadd.f32 %v8911, %v8923
    %v8925 = vpop.f32.mrf.mxu0
    %8926 = vdwg.mxu0
    %8927 = vmatpush.bf16.msra.mxu0 %v8377
    %8928 = vmatpush.bf16.msra.mxu0 %v8373
    %8929 = vmatpush.bf16.msra.mxu0 %v8369
    %8930 = vmatpush.bf16.msra.mxu0 %v8365
    %8931 = vmatpush.bf16.msra.mxu0 %v8361
    %8932 = vmatpush.bf16.msra.mxu0 %v8357
    %8933 = vmatpush.bf16.msra.mxu0 %v8353
    %8934 = vmatpush.bf16.msra.mxu0 %v8349
    %8935 = vmatmul.bf16.gmra.mxu0 %v7374
    %v8936 = vpop.f32.mrf.mxu0
    %v8937 = vadd.f32 %v8924, %v8936
    %v8938 = vpop.f32.mrf.mxu0
    %8939 = vdwg.mxu0
    %8940 = vmatpush.bf16.msra.mxu0 0
    %8941 = vmatpush.bf16.msra.mxu0 0
    %8942 = vmatpush.bf16.msra.mxu0 0
    %8943 = vmatpush.bf16.msra.mxu0 0
    %8944 = vmatpush.bf16.msra.mxu0 0
    %8945 = vmatpush.bf16.msra.mxu0 0
    %8946 = vmatpush.bf16.msra.mxu0 %v8385
    %8947 = vmatpush.bf16.msra.mxu0 %v8381
    %8948 = vmatmul.bf16.gmra.mxu0 %v8587
    %v8949 = vpop.f32.mrf.mxu0
    %v8950 = vadd.f32 %v8937, %v8949
    %v8951 = vpop.f32.mrf.mxu0
    %8952 = vdwg.mxu0
    %v8953 = vmax.f32 %v8677, 0.0
    %v8954 = vmax.f32 %v8768, 0.0
    %v8955 = vmax.f32 %v8859, 0.0
    %v8956 = vmax.f32 %v8950, 0.0
    %v8957 = vpack.c.bf16 %v8953, %v8953
    %v8958 = vpack.c.bf16 %v8954, %v8954
    %v8959 = vpack.c.bf16 %v8955, %v8955
    %v8960 = vpack.c.bf16 %v8956, %v8956
    %v8961 = vld [vmem:[%s7] sm:$0xf]
    %v8962 = vld [vmem:[%s7 + $0x4] sm:$0xf]
    %v8963 = vld [vmem:[%s7 + $0x8] sm:$0xf]
    %v8964 = vld [vmem:[%s7 + $0xc] sm:$0xf]
    %v8965 = vld [vmem:[%s7 + $0x10] sm:$0xf]
    %v8966 = vld [vmem:[%s7 + $0x14] sm:$0xf]
    %v8967 = vld [vmem:[%s7 + $0x18] sm:$0xf]
    %v8968 = vld [vmem:[%s7 + $0x1c] sm:$0xf]
    %v8969 = vld [vmem:[%s7 + $0x20] sm:$0xf]
    %v8970 = vld [vmem:[%s7 + $0x24] sm:$0xf]
    %v8971 = vld [vmem:[%s7 + $0x28] sm:$0xf]
    %v8972 = vld [vmem:[%s7 + $0x2c] sm:$0xf]
    %v8973 = vld [vmem:[%s7 + $0x30] sm:$0xf]
    %v8974 = vld [vmem:[%s7 + $0x34] sm:$0xf]
    %v8975 = vld [vmem:[%s7 + $0x38] sm:$0xf]
    %v8976 = vld [vmem:[%s7 + $0x3c] sm:$0xf]
    %v8977 = vld [vmem:[%s7 + $0x40] sm:$0xf]
    %v8978 = vld [vmem:[%s7 + $0x44] sm:$0xf]
    %v8979 = vld [vmem:[%s7 + $0x48] sm:$0xf]
    %v8980 = vld [vmem:[%s7 + $0x4c] sm:$0xf]
    %v8981 = vld [vmem:[%s7 + $0x50] sm:$0xf]
    %v8982 = vld [vmem:[%s7 + $0x54] sm:$0xf]
    %v8983 = vld [vmem:[%s7 + $0x58] sm:$0xf]
    %v8984 = vld [vmem:[%s7 + $0x5c] sm:$0xf]
    %v8985 = vld [vmem:[%s7 + $0x60] sm:$0xf]
    %v8986 = vld [vmem:[%s7 + $0x64] sm:$0xf]
    %v8987 = vld [vmem:[%s7 + $0x68] sm:$0xf]
    %v8988 = vld [vmem:[%s7 + $0x6c] sm:$0xf]
    %v8989 = vld [vmem:[%s7 + $0x70] sm:$0xf]
    %v8990 = vld [vmem:[%s7 + $0x74] sm:$0xf]
    %v8991 = vld [vmem:[%s7 + $0x78] sm:$0xf]
    %v8992 = vld [vmem:[%s7 + $0x7c] sm:$0xf]
    %v8993 = vld [vmem:[%s7 + $0x80] sm:$0xf]
    %v8994 = vld [vmem:[%s7 + $0x84] sm:$0xf]
    %v8995 = vld [vmem:[%s7 + $0x88] sm:$0xf]
    %v8996 = vld [vmem:[%s7 + $0x8c] sm:$0xf]
    %v8997 = vld [vmem:[%s7 + $0x90] sm:$0xf]
    %v8998 = vld [vmem:[%s7 + $0x94] sm:$0xf]
    %v8999 = vld [vmem:[%s7 + $0x98] sm:$0xf]
    %v9000 = vld [vmem:[%s7 + $0x9c] sm:$0xf]
    %v9001 = vld [vmem:[%s7 + $0xa0] sm:$0xf]
    %v9002 = vld [vmem:[%s7 + $0xa4] sm:$0xf]
    %v9003 = vld [vmem:[%s7 + $0xa8] sm:$0xf]
    %v9004 = vld [vmem:[%s7 + $0xac] sm:$0xf]
    %v9005 = vld [vmem:[%s7 + $0xb0] sm:$0xf]
    %v9006 = vld [vmem:[%s7 + $0xb4] sm:$0xf]
    %v9007 = vld [vmem:[%s7 + $0xb8] sm:$0xf]
    %v9008 = vld [vmem:[%s7 + $0xbc] sm:$0xf]
    %v9009 = vld [vmem:[%s7 + $0xc0] sm:$0xf]
    %v9010 = vld [vmem:[%s7 + $0xc4] sm:$0xf]
    %v9011 = vld [vmem:[%s7 + $0xc8] sm:$0xf]
    %v9012 = vld [vmem:[%s7 + $0xcc] sm:$0xf]
    %v9013 = vld [vmem:[%s7 + $0xd0] sm:$0xf]
    %v9014 = vld [vmem:[%s7 + $0xd4] sm:$0xf]
    %v9015 = vld [vmem:[%s7 + $0xd8] sm:$0xf]
    %v9016 = vld [vmem:[%s7 + $0xdc] sm:$0xf]
    %v9017 = vld [vmem:[%s7 + $0xe0] sm:$0xf]
    %v9018 = vld [vmem:[%s7 + $0xe4] sm:$0xf]
    %v9019 = vld [vmem:[%s7 + $0xe8] sm:$0xf]
    %v9020 = vld [vmem:[%s7 + $0xec] sm:$0xf]
    %v9021 = vld [vmem:[%s7 + $0xf0] sm:$0xf]
    %v9022 = vld [vmem:[%s7 + $0xf4] sm:$0xf]
    %v9023 = vld [vmem:[%s7 + $0xf8] sm:$0x3]
    %v9024 = vld [vmem:[%s8] sm:$0x1]
    %v9026 = vperm.slane %v9024, 0
    %v9091 = vunpack.c.l.b16 %v8961
    %v9092 = vunpack.c.l.b16 %v8962
    %v9093 = vunpack.c.l.b16 %v8963
    %v9094 = vunpack.c.l.b16 %v8964
    %v9095 = vunpack.c.l.b16 %v8965
    %v9096 = vunpack.c.l.b16 %v8966
    %v9097 = vunpack.c.l.b16 %v8967
    %v9098 = vunpack.c.l.b16 %v8968
    %v9099 = vunpack.c.l.b16 %v8969
    %v9100 = vunpack.c.l.b16 %v8970
    %v9101 = vunpack.c.l.b16 %v8971
    %v9102 = vunpack.c.l.b16 %v8972
    %v9103 = vunpack.c.l.b16 %v8973
    %v9104 = vunpack.c.l.b16 %v8974
    %v9105 = vunpack.c.l.b16 %v8975
    %v9106 = vunpack.c.l.b16 %v8976
    %v9107 = vunpack.c.l.b16 %v8977
    %v9108 = vunpack.c.l.b16 %v8978
    %v9109 = vunpack.c.l.b16 %v8979
    %v9110 = vunpack.c.l.b16 %v8980
    %v9111 = vunpack.c.l.b16 %v8981
    %v9112 = vunpack.c.l.b16 %v8982
    %v9113 = vunpack.c.l.b16 %v8983
    %v9114 = vunpack.c.l.b16 %v8984
    %v9115 = vunpack.c.l.b16 %v8985
    %v9116 = vunpack.c.l.b16 %v8986
    %v9117 = vunpack.c.l.b16 %v8987
    %v9118 = vunpack.c.l.b16 %v8988
    %v9119 = vunpack.c.l.b16 %v8989
    %v9120 = vunpack.c.l.b16 %v8990
    %v9121 = vunpack.c.l.b16 %v8991
    %v9122 = vunpack.c.l.b16 %v8992
    %v9123 = vunpack.c.l.b16 %v8993
    %v9124 = vunpack.c.l.b16 %v8994
    %v9125 = vunpack.c.l.b16 %v8995
    %v9126 = vunpack.c.l.b16 %v8996
    %v9127 = vunpack.c.l.b16 %v8997
    %v9128 = vunpack.c.l.b16 %v8998
    %v9129 = vunpack.c.l.b16 %v8999
    %v9130 = vunpack.c.l.b16 %v9000
    %v9131 = vunpack.c.l.b16 %v9001
    %v9132 = vunpack.c.l.b16 %v9002
    %v9133 = vunpack.c.l.b16 %v9003
    %v9134 = vunpack.c.l.b16 %v9004
    %v9135 = vunpack.c.l.b16 %v9005
    %v9136 = vunpack.c.l.b16 %v9006
    %v9137 = vunpack.c.l.b16 %v9007
    %v9138 = vunpack.c.l.b16 %v9008
    %v9139 = vunpack.c.l.b16 %v9009
    %v9140 = vunpack.c.l.b16 %v9010
    %v9141 = vunpack.c.l.b16 %v9011
    %v9142 = vunpack.c.l.b16 %v9012
    %v9143 = vunpack.c.l.b16 %v9013
    %v9144 = vunpack.c.l.b16 %v9014
    %v9145 = vunpack.c.l.b16 %v9015
    %v9146 = vunpack.c.l.b16 %v9016
    %v9147 = vunpack.c.l.b16 %v9017
    %v9148 = vunpack.c.l.b16 %v9018
    %v9149 = vunpack.c.l.b16 %v9019
    %v9150 = vunpack.c.l.b16 %v9020
    %v9151 = vunpack.c.l.b16 %v9021
    %v9152 = vunpack.c.l.b16 %v9022
    %v9153 = vunpack.c.l.b16 %v9023
    %v9154 = vpack.c.b16 %v9092, %v9091
    %v9155 = vpack.c.b16 %v9094, %v9093
    %v9156 = vpack.c.b16 %v9096, %v9095
    %v9157 = vpack.c.b16 %v9098, %v9097
    %v9158 = vpack.c.b16 %v9100, %v9099
    %v9159 = vpack.c.b16 %v9102, %v9101
    %v9160 = vpack.c.b16 %v9104, %v9103
    %v9161 = vpack.c.b16 %v9106, %v9105
    %v9162 = vpack.c.b16 %v9108, %v9107
    %v9163 = vpack.c.b16 %v9110, %v9109
    %v9164 = vpack.c.b16 %v9112, %v9111
    %v9165 = vpack.c.b16 %v9114, %v9113
    %v9166 = vpack.c.b16 %v9116, %v9115
    %v9167 = vpack.c.b16 %v9118, %v9117
    %v9168 = vpack.c.b16 %v9120, %v9119
    %v9169 = vpack.c.b16 %v9122, %v9121
    %v9170 = vpack.c.b16 %v9124, %v9123
    %v9171 = vpack.c.b16 %v9126, %v9125
    %v9172 = vpack.c.b16 %v9128, %v9127
    %v9173 = vpack.c.b16 %v9130, %v9129
    %v9174 = vpack.c.b16 %v9132, %v9131
    %v9175 = vpack.c.b16 %v9134, %v9133
    %v9176 = vpack.c.b16 %v9136, %v9135
    %v9177 = vpack.c.b16 %v9138, %v9137
    %v9178 = vpack.c.b16 %v9140, %v9139
    %v9179 = vpack.c.b16 %v9142, %v9141
    %v9180 = vpack.c.b16 %v9144, %v9143
    %v9181 = vpack.c.b16 %v9146, %v9145
    %v9182 = vpack.c.b16 %v9148, %v9147
    %v9183 = vpack.c.b16 %v9150, %v9149
    %v9184 = vpack.c.b16 %v9152, %v9151
    %v9185 = vpack.c.b16 %v9153, %v9153
    %v9218 = vsel %vm7038, %v8960, 0
    %v9221 = vsel %vm7063, %v9185, 0
    %9223 = vmatpush.bf16.msra.mxu0 %v9161
    %9224 = vmatpush.bf16.msra.mxu0 %v9160
    %9225 = vmatpush.bf16.msra.mxu0 %v9159
    %9226 = vmatpush.bf16.msra.mxu0 %v9158
    %9227 = vmatpush.bf16.msra.mxu0 %v9157
    %9228 = vmatpush.bf16.msra.mxu0 %v9156
    %9229 = vmatpush.bf16.msra.mxu0 %v9155
    %9230 = vmatpush.bf16.msra.mxu0 %v9154
    %9231 = vmatmul.bf16.gmra.mxu0 %v8957
    %v9232 = vpop.f32.mrf.mxu0
    %v9233 = vadd.f32 %v9026, %v9232
    %v9234 = vpop.f32.mrf.mxu0
    %9235 = vdwg.mxu0
    %9236 = vmatpush.bf16.msra.mxu0 %v9169
    %9237 = vmatpush.bf16.msra.mxu0 %v9168
    %9238 = vmatpush.bf16.msra.mxu0 %v9167
    %9239 = vmatpush.bf16.msra.mxu0 %v9166
    %9240 = vmatpush.bf16.msra.mxu0 %v9165
    %9241 = vmatpush.bf16.msra.mxu0 %v9164
    %9242 = vmatpush.bf16.msra.mxu0 %v9163
    %9243 = vmatpush.bf16.msra.mxu0 %v9162
    %9244 = vmatmul.bf16.gmra.mxu0 %v8958
    %v9245 = vpop.f32.mrf.mxu0
    %v9246 = vadd.f32 %v9233, %v9245
    %v9247 = vpop.f32.mrf.mxu0
    %9248 = vdwg.mxu0
    %9249 = vmatpush.bf16.msra.mxu0 %v9177
    %9250 = vmatpush.bf16.msra.mxu0 %v9176
    %9251 = vmatpush.bf16.msra.mxu0 %v9175
    %9252 = vmatpush.bf16.msra.mxu0 %v9174
    %9253 = vmatpush.bf16.msra.mxu0 %v9173
    %9254 = vmatpush.bf16.msra.mxu0 %v9172
    %9255 = vmatpush.bf16.msra.mxu0 %v9171
    %9256 = vmatpush.bf16.msra.mxu0 %v9170
    %9257 = vmatmul.bf16.gmra.mxu0 %v8959
    %v9258 = vpop.f32.mrf.mxu0
    %v9259 = vadd.f32 %v9246, %v9258
    %v9260 = vpop.f32.mrf.mxu0
    %9261 = vdwg.mxu0
    %9262 = vmatpush.bf16.msra.mxu0 %v9221
    %9263 = vmatpush.bf16.msra.mxu0 %v9184
    %9264 = vmatpush.bf16.msra.mxu0 %v9183
    %9265 = vmatpush.bf16.msra.mxu0 %v9182
    %9266 = vmatpush.bf16.msra.mxu0 %v9181
    %9267 = vmatpush.bf16.msra.mxu0 %v9180
    %9268 = vmatpush.bf16.msra.mxu0 %v9179
    %9269 = vmatpush.bf16.msra.mxu0 %v9178
    %9270 = vmatmul.bf16.gmra.mxu0 %v9218
    %v9271 = vpop.f32.mrf.mxu0
    %v9272 = vadd.f32 %v9259, %v9271
    %v9273 = vpop.f32.mrf.mxu0
    %9274 = vdwg.mxu0
    %vm9275 = vcmask 74752
    %v9276 = vsel %vm9275, %v9272, -inf
    %9277 = vmax.xlane.f32.xlu0 %v9276
    %v9278 = vpop.xlane.xlu0 %9277
    %v9279 = vsub.f32 %v9272, %v9278
    %v9280 = vmul.f32 %v9279, 1.442695
    %v9281 = vpow.pop %v9280
    %v9282 = vsel %vm9275, %v9281, 0.0
    %9283 = vadd.xlane.f32.xlu0 %v9282
    %v9284 = vpop.xlane.xlu0 %9283
    %v9285 = vrcp.pop %v9284
    %v9286 = vmul.f32 %v9284, %v9285
    %v9287 = vsub.f32 1.0, %v9286
    %v9288 = vmul.f32 %v9285, %v9287
    %v9289 = vadd.f32 %v9285, %v9288
    %vm9290 = vweird.f32 %v9284
    %vm9291 = vweird.f32 %v9285
    %vm9292 = vmor %vm9290, %vm9291
    %v9293 = vsel %vm9292, %v9285, %v9289
    %v9294 = vand.u32 2147483647, %v9284
    %vm9295 = vcmp.eq.f32.partialorder %v9294, 8.507059e+37
    %v9296 = vand.u32 %v9284, 2147483648
    %v9297 = vor.u32 1.1754944e-38, %v9296
    %v9298 = vsel %vm9295, %v9297, %v9293
    %v9299 = vmul.f32 %v9281, %v9298
    %9300 = vst.msk [vmem:[#allocation2] sm:$0x3] %vm9275, %v9299
    // Predicated region
    $region38: #{caffenet_forward.1} parent=1 // pred_check
      _
    $region39: #{caffenet_forward.1} parent=1 // pred_check_branch
      %9302 = sbr.rel (0) target = $region41
    $region40: #{caffenet_forward.1} parent=1 // pred_region
      %9304 = vsyncadd [#allocation3], 0
      %s9306 = sshll.u32 [#allocation2], 4
      %s9307 = int_to_ptr.vmem [resolvable:$true] %s9306
      %s9308 = sshll.u32 %s9, 4
      %s9309 = int_to_ptr.hbm [resolvable:$true] %s9308
      %9311 = dma.vmem_to_hbm [thread:$0]  %s9307, 32, %s9309, [#allocation3]
    $region41: #{caffenet_forward.1} parent=1 // pred_fallthru
      _
    // Predicated region
    $region42: #{caffenet_forward.1} parent=1 // pred_check
      _
    $region43: #{caffenet_forward.1} parent=1 // pred_check_branch
      %9313 = sbr.rel (0) target = $region45
    $region44: #{caffenet_forward.1} parent=1 // pred_region
      %9315 = dma.done [#allocation3], 32
    $region45: #{caffenet_forward.1} parent=1 // pred_fallthru
      _
    %9316 = vsyncpa [#allocation3], 1

</llo_original>
